<compile_context>
chip_gen: v5e
topology: v5e:2x2
jax: 0.10.0
libtpu: 0.0.40
codegen_flags: <defaults>
</compile_context>

<pallas_src>
import jax
import jax.numpy as jnp
from jax.experimental import pallas as pl
from jax.experimental.pallas import tpu as pltpu

EPS = 1e-5
CHANNELS = [3, 32, 64, 128, 256, 512]
SPATIAL = [16, 8, 4, 2]          # conv-block input spatial sizes for a 16x16 image


# ---------------------------------------------------------------------------
# Host-side constant "pool + re-pad" gather matrices (one-hot, exact selection)
# ---------------------------------------------------------------------------
def _pool_gather(n, h, w):
    """Maps the dense `max of 4 shifted conv rows` buffer (len m-wp-1) onto the
    next layer's zero-padded flat activation grid (rows for padding are all-zero)."""
    hp, wp = h + 2, w + 2
    m = n * hp * wp - 2 * wp - 2
    lpool = m - wp - 1
    hq, wq = h // 2 + 2, w // 2 + 2
    r = jnp.arange(n * hq * wq)
    b, rem = r // (hq * wq), r % (hq * wq)
    pi, pj = rem // wq, rem % wq
    interior = (pi >= 1) & (pi <= h // 2) & (pj >= 1) & (pj <= w // 2)
    u = (b * hp + 2 * (pi - 1)) * wp + 2 * (pj - 1)
    g = jax.nn.one_hot(jnp.where(interior, u, 0), lpool, dtype=jnp.float32)
    return g * interior[:, None].astype(jnp.float32)


def _final_gather(n, h, w):
    """After the last 2x2 pool the spatial size is 1x1: select one row per image."""
    hp, wp = h + 2, w + 2
    m = n * hp * wp - 2 * wp - 2
    lpool = m - wp - 1
    return jax.nn.one_hot(jnp.arange(n) * hp * wp, lpool, dtype=jnp.float32)


# ---------------------------------------------------------------------------
# Deterministic parameter construction (synthetic; matches module shapes)
# ---------------------------------------------------------------------------
def init_params(key):
    params = {"convs": [], "conv5": None, "fc": None}
    for i in range(5):
        cin, cout = CHANNELS[i], CHANNELS[i + 1]
        key, kw, kb, kg, kbe, km, kv = jax.random.split(key, 7)
        w = 0.05 * jax.random.normal(kw, (cout, cin, 3, 3), jnp.float32)   # torch OIHW
        b = 0.05 * jax.random.normal(kb, (cout,), jnp.float32)
        gamma = 1.0 + 0.1 * jax.random.normal(kg, (cout,), jnp.float32)
        beta = 0.1 * jax.random.normal(kbe, (cout,), jnp.float32)
        mean = 0.1 * jax.random.normal(km, (cout,), jnp.float32)
        var = jax.random.uniform(kv, (cout,), jnp.float32, 0.5, 1.5)
        # Fold conv bias + eval-mode BatchNorm into the weights (scale) and a shift.
        scale = gamma / jnp.sqrt(var + EPS)
        shift = ((b - mean) * scale + beta).reshape(1, cout)
        if i < 4:
            # (Cout,Cin,3,3) -> (kh,kw,Cin,Cout) -> (9,Cin,Cout), BN scale folded in.
            w_mat = jnp.transpose(w, (2, 3, 1, 0)).reshape(9, cin, cout) * scale
            params["convs"].append((w_mat, shift))
        else:
            # conv5 input is 1x1 spatial (everything else is zero padding) -> only
            # the center tap w[:, :, 1, 1] contributes.  Guarded in bombus_forward.
            w5 = jnp.transpose(w[:, :, 1, 1], (1, 0)) * scale        # (256, 512)
            params["conv5"] = (w5, shift)

    key, k1, k1b, k2, k2b = jax.random.split(key, 5)
    w1 = 0.05 * jax.random.normal(k1, (256, 512), jnp.float32)        # torch (out, in)
    b1 = 0.05 * jax.random.normal(k1b, (256,), jnp.float32)
    w2 = 0.05 * jax.random.normal(k2, (2, 256), jnp.float32)
    b2 = 0.05 * jax.random.normal(k2b, (2,), jnp.float32)
    params["fc"] = (w1.T, b1.reshape(1, -1), w2.T, b2.reshape(1, -1))
    return params


# ---------------------------------------------------------------------------
# Fused forward pass: one pallas_call for the whole network
# ---------------------------------------------------------------------------
def bombus_forward(x_nchw, params):
    n, c, h, w = x_nchw.shape
    # The conv5 center-tap simplification and the gather matrices assume 16x16 input
    # (spatial is 1x1 when conv5 runs).  Larger inputs would need the general path.
    assert c == 3 and h == 16 and w == 16, "fused kernel is specialized to 16x16 RGB"

    # Glue (once per call): NCHW -> NHWC -> zero-pad -> flat (N*(H+2)*(W+2), C).
    x = jnp.transpose(x_nchw, (0, 2, 3, 1)).astype(jnp.float32)
    x = jnp.pad(x, ((0, 0), (1, 1), (1, 1), (0, 0)))
    x_flat = x.reshape(n * (h + 2) * (w + 2), c)

    gathers = [_pool_gather(n, s, s) for s in SPATIAL[:3]] + [_final_gather(n, 2, 2)]
    conv_ws = [p[0] for p in params["convs"]]
    conv_shifts = [p[1] for p in params["convs"]]
    w5, s5 = params["conv5"]
    wf1, b1, wf2, b2 = params["fc"]
    wps = [s + 2 for s in SPATIAL]                       # 18, 10, 6, 4

    # VMEM scratch: conv(+BN+ReLU) output per block, and the next padded activation.
    scratch = []
    for li, s in enumerate(SPATIAL):
        wp = s + 2
        m = n * wp * wp - 2 * wp - 2
        cout = CHANNELS[li + 1]
        scratch.append(pltpu.VMEM((m, cout), jnp.float32))             # conv output
        if li < 3:
            sq = s // 2 + 2
            scratch.append(pltpu.VMEM((n * sq * sq, cout), jnp.float32))  # next act

    def kernel(x_ref,
               w1_ref, s1_ref, g1_ref, w2_ref, s2_ref, g2_ref,
               w3_ref, s3_ref, g3_ref, w4_ref, s4_ref, g4_ref,
               w5_ref, s5_ref, wf1_ref, b1_ref, wf2_ref, b2_ref,
               out_ref,
               o1_ref, a2_ref, o2_ref, a3_ref, o3_ref, a4_ref, o4_ref):

        def conv_block(a_ref, w_ref, shift_ref, g_ref, conv_ref, wp):
            m, cout = conv_ref.shape
            # 3x3 conv as 9 shifted-row GEMMs over the flat padded activation.
            acc = None
            for t in range(9):
                dy, dx = divmod(t, 3)
                part = jnp.dot(a_ref[pl.ds(dy * wp + dx, m), :], w_ref[t],
                               preferred_element_type=jnp.float32)
                acc = part if acc is None else acc + part
            # BN scale is folded into the weights; epilogue = shift + ReLU.
            conv_ref[...] = jnp.maximum(acc + shift_ref[...], 0.0)
            # Fused 2x2 max-pool: max of 4 shifted views, then a one-hot gather GEMM
            # that compacts valid windows and re-embeds them into the next padded grid.
            lp = m - wp - 1
            pooled = jnp.maximum(
                jnp.maximum(conv_ref[pl.ds(0, lp), :], conv_ref[pl.ds(1, lp), :]),
                jnp.maximum(conv_ref[pl.ds(wp, lp), :], conv_ref[pl.ds(wp + 1, lp), :]))
            return jnp.dot(g_ref[...], pooled, preferred_element_type=jnp.float32)

        a2_ref[...] = conv_block(x_ref, w1_ref, s1_ref, g1_ref, o1_ref, wps[0])
        a3_ref[...] = conv_block(a2_ref, w2_ref, s2_ref, g2_ref, o2_ref, wps[1])
        a4_ref[...] = conv_block(a3_ref, w3_ref, s3_ref, g3_ref, o3_ref, wps[2])
        feat = conv_block(a4_ref, w4_ref, s4_ref, g4_ref, o4_ref, wps[3])   # (N, 256)

        # conv5 (1x1 input -> center tap only) + BN + ReLU.
        h5 = jnp.maximum(
            jnp.dot(feat, w5_ref[...], preferred_element_type=jnp.float32)
            + s5_ref[...], 0.0)
        # AdaptiveAvgPool2d((1,1)) over a 1x1 map is the identity.
        # TODO(synk): Dropout layers are inference no-ops; BatchNorm uses running stats.
        hid = jnp.maximum(
            jnp.dot(h5, wf1_ref[...], preferred_element_type=jnp.float32)
            + b1_ref[...], 0.0)
        out_ref[...] = (jnp.dot(hid, wf2_ref[...], preferred_element_type=jnp.float32)
                        + b2_ref[...])

    inputs = [x_flat]
    for li in range(4):
        inputs += [conv_ws[li], conv_shifts[li], gathers[li]]
    inputs += [w5, s5, wf1, b1, wf2, b2]

    # Advisory cost estimate for XLA's scheduler.
    flops = 0
    for li, s in enumerate(SPATIAL):
        wp = s + 2
        m = n * wp * wp - 2 * wp - 2
        ci, co = CHANNELS[li], CHANNELS[li + 1]
        flops += 2 * m * 9 * ci * co                              # conv GEMMs
        flops += 2 * gathers[li].shape[0] * (m - wp - 1) * co     # pool gather GEMM
    flops += 2 * n * (256 * 512 + 512 * 256 + 256 * 2)            # conv5 + fc1 + fc2
    bytes_accessed = sum(int(a.size) * 4 for a in inputs) + n * 2 * 4

    return pl.pallas_call(
        kernel,
        out_shape=jax.ShapeDtypeStruct((n, 2), jnp.float32),
        in_specs=[pl.BlockSpec(memory_space=pltpu.MemorySpace.VMEM)] * len(inputs),
        out_specs=pl.BlockSpec(memory_space=pltpu.MemorySpace.VMEM),
        scratch_shapes=scratch,
        cost_estimate=pl.CostEstimate(flops=int(flops), transcendentals=0,
                                      bytes_accessed=int(bytes_accessed)),
    )(*inputs)


if __name__ == "__main__":
    key = jax.random.PRNGKey(0)
    key, kx, kp = jax.random.split(key, 3)
    # NCHW input, 3 channels, 16x16 spatial (four 2x2 pools -> 1x1 before conv5).
    x = jax.random.normal(kx, (2, 3, 16, 16), jnp.float32)
    params = init_params(kp)

    logits = jax.block_until_ready(jax.jit(bombus_forward)(x, params))

    assert logits.shape == (2, 2), logits.shape
    assert bool(jnp.all(jnp.isfinite(logits)))
    print("KERNEL_OK")
</pallas_src>

<mosaic_0001>
module attributes {stable_mosaic.version = 11 : i64} {
  func.func @kernel(%arg0: memref<648x3xf32, #tpu.memory_space<vmem>>, %arg1: memref<9x3x32xf32, #tpu.memory_space<vmem>>, %arg2: memref<1x32xf32, #tpu.memory_space<vmem>>, %arg3: memref<200x591xf32, #tpu.memory_space<vmem>>, %arg4: memref<9x32x64xf32, #tpu.memory_space<vmem>>, %arg5: memref<1x64xf32, #tpu.memory_space<vmem>>, %arg6: memref<72x167xf32, #tpu.memory_space<vmem>>, %arg7: memref<9x64x128xf32, #tpu.memory_space<vmem>>, %arg8: memref<1x128xf32, #tpu.memory_space<vmem>>, %arg9: memref<32x51xf32, #tpu.memory_space<vmem>>, %arg10: memref<9x128x256xf32, #tpu.memory_space<vmem>>, %arg11: memref<1x256xf32, #tpu.memory_space<vmem>>, %arg12: memref<2x17xf32, #tpu.memory_space<vmem>>, %arg13: memref<256x512xf32, #tpu.memory_space<vmem>>, %arg14: memref<1x512xf32, #tpu.memory_space<vmem>>, %arg15: memref<512x256xf32, #tpu.memory_space<vmem>>, %arg16: memref<1x256xf32, #tpu.memory_space<vmem>>, %arg17: memref<256x2xf32, #tpu.memory_space<vmem>>, %arg18: memref<1x2xf32, #tpu.memory_space<vmem>>, %arg19: memref<2x2xf32, #tpu.memory_space<vmem>>, %arg20: memref<610x32xf32, #tpu.memory_space<vmem>>, %arg21: memref<200x32xf32, #tpu.memory_space<vmem>>, %arg22: memref<178x64xf32, #tpu.memory_space<vmem>>, %arg23: memref<72x64xf32, #tpu.memory_space<vmem>>, %arg24: memref<58x128xf32, #tpu.memory_space<vmem>>, %arg25: memref<32x128xf32, #tpu.memory_space<vmem>>, %arg26: memref<22x256xf32, #tpu.memory_space<vmem>>) attributes {dimension_semantics = [], scalar_prefetch = 0 : i64, scratch_operands = 7 : i64, tpu.core_type = #tpu.core_type<tc>} {
    %c0 = arith.constant 0 : index
    %c0_0 = arith.constant 0 : index
    %0 = vector.load %arg0[%c0, %c0_0] : memref<648x3xf32, #tpu.memory_space<vmem>>, vector<610x3xf32>
    %c0_1 = arith.constant 0 : index
    %c0_2 = arith.constant 0 : index
    %c0_3 = arith.constant 0 : index
    %1 = vector.load %arg1[%c0_1, %c0_2, %c0_3] : memref<9x3x32xf32, #tpu.memory_space<vmem>>, vector<1x3x32xf32>
    %2 = vector.shape_cast %1 : vector<1x3x32xf32> to vector<3x32xf32>
    %cst = arith.constant dense<0.000000e+00> : vector<610x32xf32>
    %3 = tpu.matmul %0, %2, %cst {dimension_numbers = #tpu.dot_dimension_numbers<[1], [0], [0], [1], [0, 0, 1, 1], [], []>} : vector<610x3xf32>, vector<3x32xf32>, vector<610x32xf32> -> vector<610x32xf32>
    %c1 = arith.constant 1 : index
    %c0_4 = arith.constant 0 : index
    %4 = vector.load %arg0[%c1, %c0_4] : memref<648x3xf32, #tpu.memory_space<vmem>>, vector<610x3xf32>
    %c1_5 = arith.constant 1 : index
    %c0_6 = arith.constant 0 : index
    %c0_7 = arith.constant 0 : index
    %5 = vector.load %arg1[%c1_5, %c0_6, %c0_7] : memref<9x3x32xf32, #tpu.memory_space<vmem>>, vector<1x3x32xf32>
    %6 = vector.shape_cast %5 : vector<1x3x32xf32> to vector<3x32xf32>
    %cst_8 = arith.constant dense<0.000000e+00> : vector<610x32xf32>
    %7 = tpu.matmul %4, %6, %cst_8 {dimension_numbers = #tpu.dot_dimension_numbers<[1], [0], [0], [1], [0, 0, 1, 1], [], []>} : vector<610x3xf32>, vector<3x32xf32>, vector<610x32xf32> -> vector<610x32xf32>
    %8 = arith.addf %3, %7 : vector<610x32xf32>
    %c2 = arith.constant 2 : index
    %c0_9 = arith.constant 0 : index
    %9 = vector.load %arg0[%c2, %c0_9] : memref<648x3xf32, #tpu.memory_space<vmem>>, vector<610x3xf32>
    %c2_10 = arith.constant 2 : index
    %c0_11 = arith.constant 0 : index
    %c0_12 = arith.constant 0 : index
    %10 = vector.load %arg1[%c2_10, %c0_11, %c0_12] : memref<9x3x32xf32, #tpu.memory_space<vmem>>, vector<1x3x32xf32>
    %11 = vector.shape_cast %10 : vector<1x3x32xf32> to vector<3x32xf32>
    %cst_13 = arith.constant dense<0.000000e+00> : vector<610x32xf32>
    %12 = tpu.matmul %9, %11, %cst_13 {dimension_numbers = #tpu.dot_dimension_numbers<[1], [0], [0], [1], [0, 0, 1, 1], [], []>} : vector<610x3xf32>, vector<3x32xf32>, vector<610x32xf32> -> vector<610x32xf32>
    %13 = arith.addf %8, %12 : vector<610x32xf32>
    %c18 = arith.constant 18 : index
    %c0_14 = arith.constant 0 : index
    %14 = vector.load %arg0[%c18, %c0_14] : memref<648x3xf32, #tpu.memory_space<vmem>>, vector<610x3xf32>
    %c3 = arith.constant 3 : index
    %c0_15 = arith.constant 0 : index
    %c0_16 = arith.constant 0 : index
    %15 = vector.load %arg1[%c3, %c0_15, %c0_16] : memref<9x3x32xf32, #tpu.memory_space<vmem>>, vector<1x3x32xf32>
    %16 = vector.shape_cast %15 : vector<1x3x32xf32> to vector<3x32xf32>
    %cst_17 = arith.constant dense<0.000000e+00> : vector<610x32xf32>
    %17 = tpu.matmul %14, %16, %cst_17 {dimension_numbers = #tpu.dot_dimension_numbers<[1], [0], [0], [1], [0, 0, 1, 1], [], []>} : vector<610x3xf32>, vector<3x32xf32>, vector<610x32xf32> -> vector<610x32xf32>
    %18 = arith.addf %13, %17 : vector<610x32xf32>
    %c19 = arith.constant 19 : index
    %c0_18 = arith.constant 0 : index
    %19 = vector.load %arg0[%c19, %c0_18] : memref<648x3xf32, #tpu.memory_space<vmem>>, vector<610x3xf32>
    %c4 = arith.constant 4 : index
    %c0_19 = arith.constant 0 : index
    %c0_20 = arith.constant 0 : index
    %20 = vector.load %arg1[%c4, %c0_19, %c0_20] : memref<9x3x32xf32, #tpu.memory_space<vmem>>, vector<1x3x32xf32>
    %21 = vector.shape_cast %20 : vector<1x3x32xf32> to vector<3x32xf32>
    %cst_21 = arith.constant dense<0.000000e+00> : vector<610x32xf32>
    %22 = tpu.matmul %19, %21, %cst_21 {dimension_numbers = #tpu.dot_dimension_numbers<[1], [0], [0], [1], [0, 0, 1, 1], [], []>} : vector<610x3xf32>, vector<3x32xf32>, vector<610x32xf32> -> vector<610x32xf32>
    %23 = arith.addf %18, %22 : vector<610x32xf32>
    %c20 = arith.constant 20 : index
    %c0_22 = arith.constant 0 : index
    %24 = vector.load %arg0[%c20, %c0_22] : memref<648x3xf32, #tpu.memory_space<vmem>>, vector<610x3xf32>
    %c5 = arith.constant 5 : index
    %c0_23 = arith.constant 0 : index
    %c0_24 = arith.constant 0 : index
    %25 = vector.load %arg1[%c5, %c0_23, %c0_24] : memref<9x3x32xf32, #tpu.memory_space<vmem>>, vector<1x3x32xf32>
    %26 = vector.shape_cast %25 : vector<1x3x32xf32> to vector<3x32xf32>
    %cst_25 = arith.constant dense<0.000000e+00> : vector<610x32xf32>
    %27 = tpu.matmul %24, %26, %cst_25 {dimension_numbers = #tpu.dot_dimension_numbers<[1], [0], [0], [1], [0, 0, 1, 1], [], []>} : vector<610x3xf32>, vector<3x32xf32>, vector<610x32xf32> -> vector<610x32xf32>
    %28 = arith.addf %23, %27 : vector<610x32xf32>
    %c36 = arith.constant 36 : index
    %c0_26 = arith.constant 0 : index
    %29 = vector.load %arg0[%c36, %c0_26] : memref<648x3xf32, #tpu.memory_space<vmem>>, vector<610x3xf32>
    %c6 = arith.constant 6 : index
    %c0_27 = arith.constant 0 : index
    %c0_28 = arith.constant 0 : index
    %30 = vector.load %arg1[%c6, %c0_27, %c0_28] : memref<9x3x32xf32, #tpu.memory_space<vmem>>, vector<1x3x32xf32>
    %31 = vector.shape_cast %30 : vector<1x3x32xf32> to vector<3x32xf32>
    %cst_29 = arith.constant dense<0.000000e+00> : vector<610x32xf32>
    %32 = tpu.matmul %29, %31, %cst_29 {dimension_numbers = #tpu.dot_dimension_numbers<[1], [0], [0], [1], [0, 0, 1, 1], [], []>} : vector<610x3xf32>, vector<3x32xf32>, vector<610x32xf32> -> vector<610x32xf32>
    %33 = arith.addf %28, %32 : vector<610x32xf32>
    %c37 = arith.constant 37 : index
    %c0_30 = arith.constant 0 : index
    %34 = vector.load %arg0[%c37, %c0_30] : memref<648x3xf32, #tpu.memory_space<vmem>>, vector<610x3xf32>
    %c7 = arith.constant 7 : index
    %c0_31 = arith.constant 0 : index
    %c0_32 = arith.constant 0 : index
    %35 = vector.load %arg1[%c7, %c0_31, %c0_32] : memref<9x3x32xf32, #tpu.memory_space<vmem>>, vector<1x3x32xf32>
    %36 = vector.shape_cast %35 : vector<1x3x32xf32> to vector<3x32xf32>
    %cst_33 = arith.constant dense<0.000000e+00> : vector<610x32xf32>
    %37 = tpu.matmul %34, %36, %cst_33 {dimension_numbers = #tpu.dot_dimension_numbers<[1], [0], [0], [1], [0, 0, 1, 1], [], []>} : vector<610x3xf32>, vector<3x32xf32>, vector<610x32xf32> -> vector<610x32xf32>
    %38 = arith.addf %33, %37 : vector<610x32xf32>
    %c38 = arith.constant 38 : index
    %c0_34 = arith.constant 0 : index
    %39 = vector.load %arg0[%c38, %c0_34] : memref<648x3xf32, #tpu.memory_space<vmem>>, vector<610x3xf32>
    %c8 = arith.constant 8 : index
    %c0_35 = arith.constant 0 : index
    %c0_36 = arith.constant 0 : index
    %40 = vector.load %arg1[%c8, %c0_35, %c0_36] : memref<9x3x32xf32, #tpu.memory_space<vmem>>, vector<1x3x32xf32>
    %41 = vector.shape_cast %40 : vector<1x3x32xf32> to vector<3x32xf32>
    %cst_37 = arith.constant dense<0.000000e+00> : vector<610x32xf32>
    %42 = tpu.matmul %39, %41, %cst_37 {dimension_numbers = #tpu.dot_dimension_numbers<[1], [0], [0], [1], [0, 0, 1, 1], [], []>} : vector<610x3xf32>, vector<3x32xf32>, vector<610x32xf32> -> vector<610x32xf32>
    %43 = arith.addf %38, %42 : vector<610x32xf32>
    %c0_38 = arith.constant 0 : index
    %c0_39 = arith.constant 0 : index
    %44 = vector.load %arg2[%c0_38, %c0_39] : memref<1x32xf32, #tpu.memory_space<vmem>>, vector<1x32xf32>
    %45 = vector.broadcast %44 : vector<1x32xf32> to vector<610x32xf32>
    %46 = arith.addf %43, %45 : vector<610x32xf32>
    %cst_40 = arith.constant 0.000000e+00 : f32
    %47 = vector.broadcast %cst_40 : f32 to vector<610x32xf32>
    %48 = arith.maximumf %46, %47 : vector<610x32xf32>
    %c0_41 = arith.constant 0 : index
    %c0_42 = arith.constant 0 : index
    %49 = vector.load %arg20[%c0_41, %c0_42] : memref<610x32xf32, #tpu.memory_space<vmem>>, vector<610x32xf32>
    tpu.vector_store %arg20[%c0_41, %c0_42], %48 {strides = array<i32>} : memref<610x32xf32, #tpu.memory_space<vmem>>, vector<610x32xf32>,
    %c0_43 = arith.constant 0 : index
    %c0_44 = arith.constant 0 : index
    %50 = vector.load %arg20[%c0_43, %c0_44] : memref<610x32xf32, #tpu.memory_space<vmem>>, vector<591x32xf32>
    %c1_45 = arith.constant 1 : index
    %c0_46 = arith.constant 0 : index
    %51 = vector.load %arg20[%c1_45, %c0_46] : memref<610x32xf32, #tpu.memory_space<vmem>>, vector<591x32xf32>
    %52 = arith.maximumf %50, %51 : vector<591x32xf32>
    %c18_47 = arith.constant 18 : index
    %c0_48 = arith.constant 0 : index
    %53 = vector.load %arg20[%c18_47, %c0_48] : memref<610x32xf32, #tpu.memory_space<vmem>>, vector<591x32xf32>
    %c19_49 = arith.constant 19 : index
    %c0_50 = arith.constant 0 : index
    %54 = vector.load %arg20[%c19_49, %c0_50] : memref<610x32xf32, #tpu.memory_space<vmem>>, vector<591x32xf32>
    %55 = arith.maximumf %53, %54 : vector<591x32xf32>
    %56 = arith.maximumf %52, %55 : vector<591x32xf32>
    %c0_51 = arith.constant 0 : index
    %c0_52 = arith.constant 0 : index
    %57 = vector.load %arg3[%c0_51, %c0_52] : memref<200x591xf32, #tpu.memory_space<vmem>>, vector<200x591xf32>
    %cst_53 = arith.constant dense<0.000000e+00> : vector<200x32xf32>
    %58 = tpu.matmul %57, %56, %cst_53 {dimension_numbers = #tpu.dot_dimension_numbers<[1], [0], [0], [1], [0, 0, 1, 1], [], []>} : vector<200x591xf32>, vector<591x32xf32>, vector<200x32xf32> -> vector<200x32xf32>
    %c0_54 = arith.constant 0 : index
    %c0_55 = arith.constant 0 : index
    %59 = vector.load %arg21[%c0_54, %c0_55] : memref<200x32xf32, #tpu.memory_space<vmem>>, vector<200x32xf32>
    tpu.vector_store %arg21[%c0_54, %c0_55], %58 {strides = array<i32>} : memref<200x32xf32, #tpu.memory_space<vmem>>, vector<200x32xf32>,
    %c0_56 = arith.constant 0 : index
    %c0_57 = arith.constant 0 : index
    %60 = vector.load %arg21[%c0_56, %c0_57] : memref<200x32xf32, #tpu.memory_space<vmem>>, vector<178x32xf32>
    %c0_58 = arith.constant 0 : index
    %c0_59 = arith.constant 0 : index
    %c0_60 = arith.constant 0 : index
    %61 = vector.load %arg4[%c0_58, %c0_59, %c0_60] : memref<9x32x64xf32, #tpu.memory_space<vmem>>, vector<1x32x64xf32>
    %62 = vector.shape_cast %61 : vector<1x32x64xf32> to vector<32x64xf32>
    %cst_61 = arith.constant dense<0.000000e+00> : vector<178x64xf32>
    %63 = tpu.matmul %60, %62, %cst_61 {dimension_numbers = #tpu.dot_dimension_numbers<[1], [0], [0], [1], [0, 0, 1, 1], [], []>} : vector<178x32xf32>, vector<32x64xf32>, vector<178x64xf32> -> vector<178x64xf32>
    %c1_62 = arith.constant 1 : index
    %c0_63 = arith.constant 0 : index
    %64 = vector.load %arg21[%c1_62, %c0_63] : memref<200x32xf32, #tpu.memory_space<vmem>>, vector<178x32xf32>
    %c1_64 = arith.constant 1 : index
    %c0_65 = arith.constant 0 : index
    %c0_66 = arith.constant 0 : index
    %65 = vector.load %arg4[%c1_64, %c0_65, %c0_66] : memref<9x32x64xf32, #tpu.memory_space<vmem>>, vector<1x32x64xf32>
    %66 = vector.shape_cast %65 : vector<1x32x64xf32> to vector<32x64xf32>
    %cst_67 = arith.constant dense<0.000000e+00> : vector<178x64xf32>
    %67 = tpu.matmul %64, %66, %cst_67 {dimension_numbers = #tpu.dot_dimension_numbers<[1], [0], [0], [1], [0, 0, 1, 1], [], []>} : vector<178x32xf32>, vector<32x64xf32>, vector<178x64xf32> -> vector<178x64xf32>
    %68 = arith.addf %63, %67 : vector<178x64xf32>
    %c2_68 = arith.constant 2 : index
    %c0_69 = arith.constant 0 : index
    %69 = vector.load %arg21[%c2_68, %c0_69] : memref<200x32xf32, #tpu.memory_space<vmem>>, vector<178x32xf32>
    %c2_70 = arith.constant 2 : index
    %c0_71 = arith.constant 0 : index
    %c0_72 = arith.constant 0 : index
    %70 = vector.load %arg4[%c2_70, %c0_71, %c0_72] : memref<9x32x64xf32, #tpu.memory_space<vmem>>, vector<1x32x64xf32>
    %71 = vector.shape_cast %70 : vector<1x32x64xf32> to vector<32x64xf32>
    %cst_73 = arith.constant dense<0.000000e+00> : vector<178x64xf32>
    %72 = tpu.matmul %69, %71, %cst_73 {dimension_numbers = #tpu.dot_dimension_numbers<[1], [0], [0], [1], [0, 0, 1, 1], [], []>} : vector<178x32xf32>, vector<32x64xf32>, vector<178x64xf32> -> vector<178x64xf32>
    %73 = arith.addf %68, %72 : vector<178x64xf32>
    %c10 = arith.constant 10 : index
    %c0_74 = arith.constant 0 : index
    %74 = vector.load %arg21[%c10, %c0_74] : memref<200x32xf32, #tpu.memory_space<vmem>>, vector<178x32xf32>
    %c3_75 = arith.constant 3 : index
    %c0_76 = arith.constant 0 : index
    %c0_77 = arith.constant 0 : index
    %75 = vector.load %arg4[%c3_75, %c0_76, %c0_77] : memref<9x32x64xf32, #tpu.memory_space<vmem>>, vector<1x32x64xf32>
    %76 = vector.shape_cast %75 : vector<1x32x64xf32> to vector<32x64xf32>
    %cst_78 = arith.constant dense<0.000000e+00> : vector<178x64xf32>
    %77 = tpu.matmul %74, %76, %cst_78 {dimension_numbers = #tpu.dot_dimension_numbers<[1], [0], [0], [1], [0, 0, 1, 1], [], []>} : vector<178x32xf32>, vector<32x64xf32>, vector<178x64xf32> -> vector<178x64xf32>
    %78 = arith.addf %73, %77 : vector<178x64xf32>
    %c11 = arith.constant 11 : index
    %c0_79 = arith.constant 0 : index
    %79 = vector.load %arg21[%c11, %c0_79] : memref<200x32xf32, #tpu.memory_space<vmem>>, vector<178x32xf32>
    %c4_80 = arith.constant 4 : index
    %c0_81 = arith.constant 0 : index
    %c0_82 = arith.constant 0 : index
    %80 = vector.load %arg4[%c4_80, %c0_81, %c0_82] : memref<9x32x64xf32, #tpu.memory_space<vmem>>, vector<1x32x64xf32>
    %81 = vector.shape_cast %80 : vector<1x32x64xf32> to vector<32x64xf32>
    %cst_83 = arith.constant dense<0.000000e+00> : vector<178x64xf32>
    %82 = tpu.matmul %79, %81, %cst_83 {dimension_numbers = #tpu.dot_dimension_numbers<[1], [0], [0], [1], [0, 0, 1, 1], [], []>} : vector<178x32xf32>, vector<32x64xf32>, vector<178x64xf32> -> vector<178x64xf32>
    %83 = arith.addf %78, %82 : vector<178x64xf32>
    %c12 = arith.constant 12 : index
    %c0_84 = arith.constant 0 : index
    %84 = vector.load %arg21[%c12, %c0_84] : memref<200x32xf32, #tpu.memory_space<vmem>>, vector<178x32xf32>
    %c5_85 = arith.constant 5 : index
    %c0_86 = arith.constant 0 : index
    %c0_87 = arith.constant 0 : index
    %85 = vector.load %arg4[%c5_85, %c0_86, %c0_87] : memref<9x32x64xf32, #tpu.memory_space<vmem>>, vector<1x32x64xf32>
    %86 = vector.shape_cast %85 : vector<1x32x64xf32> to vector<32x64xf32>
    %cst_88 = arith.constant dense<0.000000e+00> : vector<178x64xf32>
    %87 = tpu.matmul %84, %86, %cst_88 {dimension_numbers = #tpu.dot_dimension_numbers<[1], [0], [0], [1], [0, 0, 1, 1], [], []>} : vector<178x32xf32>, vector<32x64xf32>, vector<178x64xf32> -> vector<178x64xf32>
    %88 = arith.addf %83, %87 : vector<178x64xf32>
    %c20_89 = arith.constant 20 : index
    %c0_90 = arith.constant 0 : index
    %89 = vector.load %arg21[%c20_89, %c0_90] : memref<200x32xf32, #tpu.memory_space<vmem>>, vector<178x32xf32>
    %c6_91 = arith.constant 6 : index
    %c0_92 = arith.constant 0 : index
    %c0_93 = arith.constant 0 : index
    %90 = vector.load %arg4[%c6_91, %c0_92, %c0_93] : memref<9x32x64xf32, #tpu.memory_space<vmem>>, vector<1x32x64xf32>
    %91 = vector.shape_cast %90 : vector<1x32x64xf32> to vector<32x64xf32>
    %cst_94 = arith.constant dense<0.000000e+00> : vector<178x64xf32>
    %92 = tpu.matmul %89, %91, %cst_94 {dimension_numbers = #tpu.dot_dimension_numbers<[1], [0], [0], [1], [0, 0, 1, 1], [], []>} : vector<178x32xf32>, vector<32x64xf32>, vector<178x64xf32> -> vector<178x64xf32>
    %93 = arith.addf %88, %92 : vector<178x64xf32>
    %c21 = arith.constant 21 : index
    %c0_95 = arith.constant 0 : index
    %94 = vector.load %arg21[%c21, %c0_95] : memref<200x32xf32, #tpu.memory_space<vmem>>, vector<178x32xf32>
    %c7_96 = arith.constant 7 : index
    %c0_97 = arith.constant 0 : index
    %c0_98 = arith.constant 0 : index
    %95 = vector.load %arg4[%c7_96, %c0_97, %c0_98] : memref<9x32x64xf32, #tpu.memory_space<vmem>>, vector<1x32x64xf32>
    %96 = vector.shape_cast %95 : vector<1x32x64xf32> to vector<32x64xf32>
    %cst_99 = arith.constant dense<0.000000e+00> : vector<178x64xf32>
    %97 = tpu.matmul %94, %96, %cst_99 {dimension_numbers = #tpu.dot_dimension_numbers<[1], [0], [0], [1], [0, 0, 1, 1], [], []>} : vector<178x32xf32>, vector<32x64xf32>, vector<178x64xf32> -> vector<178x64xf32>
    %98 = arith.addf %93, %97 : vector<178x64xf32>
    %c22 = arith.constant 22 : index
    %c0_100 = arith.constant 0 : index
    %99 = vector.load %arg21[%c22, %c0_100] : memref<200x32xf32, #tpu.memory_space<vmem>>, vector<178x32xf32>
    %c8_101 = arith.constant 8 : index
    %c0_102 = arith.constant 0 : index
    %c0_103 = arith.constant 0 : index
    %100 = vector.load %arg4[%c8_101, %c0_102, %c0_103] : memref<9x32x64xf32, #tpu.memory_space<vmem>>, vector<1x32x64xf32>
    %101 = vector.shape_cast %100 : vector<1x32x64xf32> to vector<32x64xf32>
    %cst_104 = arith.constant dense<0.000000e+00> : vector<178x64xf32>
    %102 = tpu.matmul %99, %101, %cst_104 {dimension_numbers = #tpu.dot_dimension_numbers<[1], [0], [0], [1], [0, 0, 1, 1], [], []>} : vector<178x32xf32>, vector<32x64xf32>, vector<178x64xf32> -> vector<178x64xf32>
    %103 = arith.addf %98, %102 : vector<178x64xf32>
    %c0_105 = arith.constant 0 : index
    %c0_106 = arith.constant 0 : index
    %104 = vector.load %arg5[%c0_105, %c0_106] : memref<1x64xf32, #tpu.memory_space<vmem>>, vector<1x64xf32>
    %105 = vector.broadcast %104 : vector<1x64xf32> to vector<178x64xf32>
    %106 = arith.addf %103, %105 : vector<178x64xf32>
    %cst_107 = arith.constant 0.000000e+00 : f32
    %107 = vector.broadcast %cst_107 : f32 to vector<178x64xf32>
    %108 = arith.maximumf %106, %107 : vector<178x64xf32>
    %c0_108 = arith.constant 0 : index
    %c0_109 = arith.constant 0 : index
    %109 = vector.load %arg22[%c0_108, %c0_109] : memref<178x64xf32, #tpu.memory_space<vmem>>, vector<178x64xf32>
    tpu.vector_store %arg22[%c0_108, %c0_109], %108 {strides = array<i32>} : memref<178x64xf32, #tpu.memory_space<vmem>>, vector<178x64xf32>,
    %c0_110 = arith.constant 0 : index
    %c0_111 = arith.constant 0 : index
    %110 = vector.load %arg22[%c0_110, %c0_111] : memref<178x64xf32, #tpu.memory_space<vmem>>, vector<167x64xf32>
    %c1_112 = arith.constant 1 : index
    %c0_113 = arith.constant 0 : index
    %111 = vector.load %arg22[%c1_112, %c0_113] : memref<178x64xf32, #tpu.memory_space<vmem>>, vector<167x64xf32>
    %112 = arith.maximumf %110, %111 : vector<167x64xf32>
    %c10_114 = arith.constant 10 : index
    %c0_115 = arith.constant 0 : index
    %113 = vector.load %arg22[%c10_114, %c0_115] : memref<178x64xf32, #tpu.memory_space<vmem>>, vector<167x64xf32>
    %c11_116 = arith.constant 11 : index
    %c0_117 = arith.constant 0 : index
    %114 = vector.load %arg22[%c11_116, %c0_117] : memref<178x64xf32, #tpu.memory_space<vmem>>, vector<167x64xf32>
    %115 = arith.maximumf %113, %114 : vector<167x64xf32>
    %116 = arith.maximumf %112, %115 : vector<167x64xf32>
    %c0_118 = arith.constant 0 : index
    %c0_119 = arith.constant 0 : index
    %117 = vector.load %arg6[%c0_118, %c0_119] : memref<72x167xf32, #tpu.memory_space<vmem>>, vector<72x167xf32>
    %cst_120 = arith.constant dense<0.000000e+00> : vector<72x64xf32>
    %118 = tpu.matmul %117, %116, %cst_120 {dimension_numbers = #tpu.dot_dimension_numbers<[1], [0], [0], [1], [0, 0, 1, 1], [], []>} : vector<72x167xf32>, vector<167x64xf32>, vector<72x64xf32> -> vector<72x64xf32>
    %c0_121 = arith.constant 0 : index
    %c0_122 = arith.constant 0 : index
    %119 = vector.load %arg23[%c0_121, %c0_122] : memref<72x64xf32, #tpu.memory_space<vmem>>, vector<72x64xf32>
    tpu.vector_store %arg23[%c0_121, %c0_122], %118 {strides = array<i32>} : memref<72x64xf32, #tpu.memory_space<vmem>>, vector<72x64xf32>,
    %c0_123 = arith.constant 0 : index
    %c0_124 = arith.constant 0 : index
    %120 = vector.load %arg23[%c0_123, %c0_124] : memref<72x64xf32, #tpu.memory_space<vmem>>, vector<58x64xf32>
    %c0_125 = arith.constant 0 : index
    %c0_126 = arith.constant 0 : index
    %c0_127 = arith.constant 0 : index
    %121 = vector.load %arg7[%c0_125, %c0_126, %c0_127] : memref<9x64x128xf32, #tpu.memory_space<vmem>>, vector<1x64x128xf32>
    %122 = vector.shape_cast %121 : vector<1x64x128xf32> to vector<64x128xf32>
    %cst_128 = arith.constant dense<0.000000e+00> : vector<58x128xf32>
    %123 = tpu.matmul %120, %122, %cst_128 {dimension_numbers = #tpu.dot_dimension_numbers<[1], [0], [0], [1], [0, 0, 1, 1], [], []>} : vector<58x64xf32>, vector<64x128xf32>, vector<58x128xf32> -> vector<58x128xf32>
    %c1_129 = arith.constant 1 : index
    %c0_130 = arith.constant 0 : index
    %124 = vector.load %arg23[%c1_129, %c0_130] : memref<72x64xf32, #tpu.memory_space<vmem>>, vector<58x64xf32>
    %c1_131 = arith.constant 1 : index
    %c0_132 = arith.constant 0 : index
    %c0_133 = arith.constant 0 : index
    %125 = vector.load %arg7[%c1_131, %c0_132, %c0_133] : memref<9x64x128xf32, #tpu.memory_space<vmem>>, vector<1x64x128xf32>
    %126 = vector.shape_cast %125 : vector<1x64x128xf32> to vector<64x128xf32>
    %cst_134 = arith.constant dense<0.000000e+00> : vector<58x128xf32>
    %127 = tpu.matmul %124, %126, %cst_134 {dimension_numbers = #tpu.dot_dimension_numbers<[1], [0], [0], [1], [0, 0, 1, 1], [], []>} : vector<58x64xf32>, vector<64x128xf32>, vector<58x128xf32> -> vector<58x128xf32>
    %128 = arith.addf %123, %127 : vector<58x128xf32>
    %c2_135 = arith.constant 2 : index
    %c0_136 = arith.constant 0 : index
    %129 = vector.load %arg23[%c2_135, %c0_136] : memref<72x64xf32, #tpu.memory_space<vmem>>, vector<58x64xf32>
    %c2_137 = arith.constant 2 : index
    %c0_138 = arith.constant 0 : index
    %c0_139 = arith.constant 0 : index
    %130 = vector.load %arg7[%c2_137, %c0_138, %c0_139] : memref<9x64x128xf32, #tpu.memory_space<vmem>>, vector<1x64x128xf32>
    %131 = vector.shape_cast %130 : vector<1x64x128xf32> to vector<64x128xf32>
    %cst_140 = arith.constant dense<0.000000e+00> : vector<58x128xf32>
    %132 = tpu.matmul %129, %131, %cst_140 {dimension_numbers = #tpu.dot_dimension_numbers<[1], [0], [0], [1], [0, 0, 1, 1], [], []>} : vector<58x64xf32>, vector<64x128xf32>, vector<58x128xf32> -> vector<58x128xf32>
    %133 = arith.addf %128, %132 : vector<58x128xf32>
    %c6_141 = arith.constant 6 : index
    %c0_142 = arith.constant 0 : index
    %134 = vector.load %arg23[%c6_141, %c0_142] : memref<72x64xf32, #tpu.memory_space<vmem>>, vector<58x64xf32>
    %c3_143 = arith.constant 3 : index
    %c0_144 = arith.constant 0 : index
    %c0_145 = arith.constant 0 : index
    %135 = vector.load %arg7[%c3_143, %c0_144, %c0_145] : memref<9x64x128xf32, #tpu.memory_space<vmem>>, vector<1x64x128xf32>
    %136 = vector.shape_cast %135 : vector<1x64x128xf32> to vector<64x128xf32>
    %cst_146 = arith.constant dense<0.000000e+00> : vector<58x128xf32>
    %137 = tpu.matmul %134, %136, %cst_146 {dimension_numbers = #tpu.dot_dimension_numbers<[1], [0], [0], [1], [0, 0, 1, 1], [], []>} : vector<58x64xf32>, vector<64x128xf32>, vector<58x128xf32> -> vector<58x128xf32>
    %138 = arith.addf %133, %137 : vector<58x128xf32>
    %c7_147 = arith.constant 7 : index
    %c0_148 = arith.constant 0 : index
    %139 = vector.load %arg23[%c7_147, %c0_148] : memref<72x64xf32, #tpu.memory_space<vmem>>, vector<58x64xf32>
    %c4_149 = arith.constant 4 : index
    %c0_150 = arith.constant 0 : index
    %c0_151 = arith.constant 0 : index
    %140 = vector.load %arg7[%c4_149, %c0_150, %c0_151] : memref<9x64x128xf32, #tpu.memory_space<vmem>>, vector<1x64x128xf32>
    %141 = vector.shape_cast %140 : vector<1x64x128xf32> to vector<64x128xf32>
    %cst_152 = arith.constant dense<0.000000e+00> : vector<58x128xf32>
    %142 = tpu.matmul %139, %141, %cst_152 {dimension_numbers = #tpu.dot_dimension_numbers<[1], [0], [0], [1], [0, 0, 1, 1], [], []>} : vector<58x64xf32>, vector<64x128xf32>, vector<58x128xf32> -> vector<58x128xf32>
    %143 = arith.addf %138, %142 : vector<58x128xf32>
    %c8_153 = arith.constant 8 : index
    %c0_154 = arith.constant 0 : index
    %144 = vector.load %arg23[%c8_153, %c0_154] : memref<72x64xf32, #tpu.memory_space<vmem>>, vector<58x64xf32>
    %c5_155 = arith.constant 5 : index
    %c0_156 = arith.constant 0 : index
    %c0_157 = arith.constant 0 : index
    %145 = vector.load %arg7[%c5_155, %c0_156, %c0_157] : memref<9x64x128xf32, #tpu.memory_space<vmem>>, vector<1x64x128xf32>
    %146 = vector.shape_cast %145 : vector<1x64x128xf32> to vector<64x128xf32>
    %cst_158 = arith.constant dense<0.000000e+00> : vector<58x128xf32>
    %147 = tpu.matmul %144, %146, %cst_158 {dimension_numbers = #tpu.dot_dimension_numbers<[1], [0], [0], [1], [0, 0, 1, 1], [], []>} : vector<58x64xf32>, vector<64x128xf32>, vector<58x128xf32> -> vector<58x128xf32>
    %148 = arith.addf %143, %147 : vector<58x128xf32>
    %c12_159 = arith.constant 12 : index
    %c0_160 = arith.constant 0 : index
    %149 = vector.load %arg23[%c12_159, %c0_160] : memref<72x64xf32, #tpu.memory_space<vmem>>, vector<58x64xf32>
    %c6_161 = arith.constant 6 : index
    %c0_162 = arith.constant 0 : index
    %c0_163 = arith.constant 0 : index
    %150 = vector.load %arg7[%c6_161, %c0_162, %c0_163] : memref<9x64x128xf32, #tpu.memory_space<vmem>>, vector<1x64x128xf32>
    %151 = vector.shape_cast %150 : vector<1x64x128xf32> to vector<64x128xf32>
    %cst_164 = arith.constant dense<0.000000e+00> : vector<58x128xf32>
    %152 = tpu.matmul %149, %151, %cst_164 {dimension_numbers = #tpu.dot_dimension_numbers<[1], [0], [0], [1], [0, 0, 1, 1], [], []>} : vector<58x64xf32>, vector<64x128xf32>, vector<58x128xf32> -> vector<58x128xf32>
    %153 = arith.addf %148, %152 : vector<58x128xf32>
    %c13 = arith.constant 13 : index
    %c0_165 = arith.constant 0 : index
    %154 = vector.load %arg23[%c13, %c0_165] : memref<72x64xf32, #tpu.memory_space<vmem>>, vector<58x64xf32>
    %c7_166 = arith.constant 7 : index
    %c0_167 = arith.constant 0 : index
    %c0_168 = arith.constant 0 : index
    %155 = vector.load %arg7[%c7_166, %c0_167, %c0_168] : memref<9x64x128xf32, #tpu.memory_space<vmem>>, vector<1x64x128xf32>
    %156 = vector.shape_cast %155 : vector<1x64x128xf32> to vector<64x128xf32>
    %cst_169 = arith.constant dense<0.000000e+00> : vector<58x128xf32>
    %157 = tpu.matmul %154, %156, %cst_169 {dimension_numbers = #tpu.dot_dimension_numbers<[1], [0], [0], [1], [0, 0, 1, 1], [], []>} : vector<58x64xf32>, vector<64x128xf32>, vector<58x128xf32> -> vector<58x128xf32>
    %158 = arith.addf %153, %157 : vector<58x128xf32>
    %c14 = arith.constant 14 : index
    %c0_170 = arith.constant 0 : index
    %159 = vector.load %arg23[%c14, %c0_170] : memref<72x64xf32, #tpu.memory_space<vmem>>, vector<58x64xf32>
    %c8_171 = arith.constant 8 : index
    %c0_172 = arith.constant 0 : index
    %c0_173 = arith.constant 0 : index
    %160 = vector.load %arg7[%c8_171, %c0_172, %c0_173] : memref<9x64x128xf32, #tpu.memory_space<vmem>>, vector<1x64x128xf32>
    %161 = vector.shape_cast %160 : vector<1x64x128xf32> to vector<64x128xf32>
    %cst_174 = arith.constant dense<0.000000e+00> : vector<58x128xf32>
    %162 = tpu.matmul %159, %161, %cst_174 {dimension_numbers = #tpu.dot_dimension_numbers<[1], [0], [0], [1], [0, 0, 1, 1], [], []>} : vector<58x64xf32>, vector<64x128xf32>, vector<58x128xf32> -> vector<58x128xf32>
    %163 = arith.addf %158, %162 : vector<58x128xf32>
    %c0_175 = arith.constant 0 : index
    %c0_176 = arith.constant 0 : index
    %164 = vector.load %arg8[%c0_175, %c0_176] : memref<1x128xf32, #tpu.memory_space<vmem>>, vector<1x128xf32>
    %165 = vector.broadcast %164 : vector<1x128xf32> to vector<58x128xf32>
    %166 = arith.addf %163, %165 : vector<58x128xf32>
    %cst_177 = arith.constant 0.000000e+00 : f32
    %167 = vector.broadcast %cst_177 : f32 to vector<58x128xf32>
    %168 = arith.maximumf %166, %167 : vector<58x128xf32>
    %c0_178 = arith.constant 0 : index
    %c0_179 = arith.constant 0 : index
    %169 = vector.load %arg24[%c0_178, %c0_179] : memref<58x128xf32, #tpu.memory_space<vmem>>, vector<58x128xf32>
    tpu.vector_store %arg24[%c0_178, %c0_179], %168 {strides = array<i32>} : memref<58x128xf32, #tpu.memory_space<vmem>>, vector<58x128xf32>,
    %c0_180 = arith.constant 0 : index
    %c0_181 = arith.constant 0 : index
    %170 = vector.load %arg24[%c0_180, %c0_181] : memref<58x128xf32, #tpu.memory_space<vmem>>, vector<51x128xf32>
    %c1_182 = arith.constant 1 : index
    %c0_183 = arith.constant 0 : index
    %171 = vector.load %arg24[%c1_182, %c0_183] : memref<58x128xf32, #tpu.memory_space<vmem>>, vector<51x128xf32>
    %172 = arith.maximumf %170, %171 : vector<51x128xf32>
    %c6_184 = arith.constant 6 : index
    %c0_185 = arith.constant 0 : index
    %173 = vector.load %arg24[%c6_184, %c0_185] : memref<58x128xf32, #tpu.memory_space<vmem>>, vector<51x128xf32>
    %c7_186 = arith.constant 7 : index
    %c0_187 = arith.constant 0 : index
    %174 = vector.load %arg24[%c7_186, %c0_187] : memref<58x128xf32, #tpu.memory_space<vmem>>, vector<51x128xf32>
    %175 = arith.maximumf %173, %174 : vector<51x128xf32>
    %176 = arith.maximumf %172, %175 : vector<51x128xf32>
    %c0_188 = arith.constant 0 : index
    %c0_189 = arith.constant 0 : index
    %177 = vector.load %arg9[%c0_188, %c0_189] : memref<32x51xf32, #tpu.memory_space<vmem>>, vector<32x51xf32>
    %cst_190 = arith.constant dense<0.000000e+00> : vector<32x128xf32>
    %178 = tpu.matmul %177, %176, %cst_190 {dimension_numbers = #tpu.dot_dimension_numbers<[1], [0], [0], [1], [0, 0, 1, 1], [], []>} : vector<32x51xf32>, vector<51x128xf32>, vector<32x128xf32> -> vector<32x128xf32>
    %c0_191 = arith.constant 0 : index
    %c0_192 = arith.constant 0 : index
    %179 = vector.load %arg25[%c0_191, %c0_192] : memref<32x128xf32, #tpu.memory_space<vmem>>, vector<32x128xf32>
    tpu.vector_store %arg25[%c0_191, %c0_192], %178 {strides = array<i32>} : memref<32x128xf32, #tpu.memory_space<vmem>>, vector<32x128xf32>,
    %c0_193 = arith.constant 0 : index
    %c0_194 = arith.constant 0 : index
    %180 = vector.load %arg25[%c0_193, %c0_194] : memref<32x128xf32, #tpu.memory_space<vmem>>, vector<22x128xf32>
    %c0_195 = arith.constant 0 : index
    %c0_196 = arith.constant 0 : index
    %c0_197 = arith.constant 0 : index
    %181 = vector.load %arg10[%c0_195, %c0_196, %c0_197] : memref<9x128x256xf32, #tpu.memory_space<vmem>>, vector<1x128x256xf32>
    %182 = vector.shape_cast %181 : vector<1x128x256xf32> to vector<128x256xf32>
    %cst_198 = arith.constant dense<0.000000e+00> : vector<22x256xf32>
    %183 = tpu.matmul %180, %182, %cst_198 {dimension_numbers = #tpu.dot_dimension_numbers<[1], [0], [0], [1], [0, 0, 1, 1], [], []>} : vector<22x128xf32>, vector<128x256xf32>, vector<22x256xf32> -> vector<22x256xf32>
    %c1_199 = arith.constant 1 : index
    %c0_200 = arith.constant 0 : index
    %184 = vector.load %arg25[%c1_199, %c0_200] : memref<32x128xf32, #tpu.memory_space<vmem>>, vector<22x128xf32>
    %c1_201 = arith.constant 1 : index
    %c0_202 = arith.constant 0 : index
    %c0_203 = arith.constant 0 : index
    %185 = vector.load %arg10[%c1_201, %c0_202, %c0_203] : memref<9x128x256xf32, #tpu.memory_space<vmem>>, vector<1x128x256xf32>
    %186 = vector.shape_cast %185 : vector<1x128x256xf32> to vector<128x256xf32>
    %cst_204 = arith.constant dense<0.000000e+00> : vector<22x256xf32>
    %187 = tpu.matmul %184, %186, %cst_204 {dimension_numbers = #tpu.dot_dimension_numbers<[1], [0], [0], [1], [0, 0, 1, 1], [], []>} : vector<22x128xf32>, vector<128x256xf32>, vector<22x256xf32> -> vector<22x256xf32>
    %188 = arith.addf %183, %187 : vector<22x256xf32>
    %c2_205 = arith.constant 2 : index
    %c0_206 = arith.constant 0 : index
    %189 = vector.load %arg25[%c2_205, %c0_206] : memref<32x128xf32, #tpu.memory_space<vmem>>, vector<22x128xf32>
    %c2_207 = arith.constant 2 : index
    %c0_208 = arith.constant 0 : index
    %c0_209 = arith.constant 0 : index
    %190 = vector.load %arg10[%c2_207, %c0_208, %c0_209] : memref<9x128x256xf32, #tpu.memory_space<vmem>>, vector<1x128x256xf32>
    %191 = vector.shape_cast %190 : vector<1x128x256xf32> to vector<128x256xf32>
    %cst_210 = arith.constant dense<0.000000e+00> : vector<22x256xf32>
    %192 = tpu.matmul %189, %191, %cst_210 {dimension_numbers = #tpu.dot_dimension_numbers<[1], [0], [0], [1], [0, 0, 1, 1], [], []>} : vector<22x128xf32>, vector<128x256xf32>, vector<22x256xf32> -> vector<22x256xf32>
    %193 = arith.addf %188, %192 : vector<22x256xf32>
    %c4_211 = arith.constant 4 : index
    %c0_212 = arith.constant 0 : index
    %194 = vector.load %arg25[%c4_211, %c0_212] : memref<32x128xf32, #tpu.memory_space<vmem>>, vector<22x128xf32>
    %c3_213 = arith.constant 3 : index
    %c0_214 = arith.constant 0 : index
    %c0_215 = arith.constant 0 : index
    %195 = vector.load %arg10[%c3_213, %c0_214, %c0_215] : memref<9x128x256xf32, #tpu.memory_space<vmem>>, vector<1x128x256xf32>
    %196 = vector.shape_cast %195 : vector<1x128x256xf32> to vector<128x256xf32>
    %cst_216 = arith.constant dense<0.000000e+00> : vector<22x256xf32>
    %197 = tpu.matmul %194, %196, %cst_216 {dimension_numbers = #tpu.dot_dimension_numbers<[1], [0], [0], [1], [0, 0, 1, 1], [], []>} : vector<22x128xf32>, vector<128x256xf32>, vector<22x256xf32> -> vector<22x256xf32>
    %198 = arith.addf %193, %197 : vector<22x256xf32>
    %c5_217 = arith.constant 5 : index
    %c0_218 = arith.constant 0 : index
    %199 = vector.load %arg25[%c5_217, %c0_218] : memref<32x128xf32, #tpu.memory_space<vmem>>, vector<22x128xf32>
    %c4_219 = arith.constant 4 : index
    %c0_220 = arith.constant 0 : index
    %c0_221 = arith.constant 0 : index
    %200 = vector.load %arg10[%c4_219, %c0_220, %c0_221] : memref<9x128x256xf32, #tpu.memory_space<vmem>>, vector<1x128x256xf32>
    %201 = vector.shape_cast %200 : vector<1x128x256xf32> to vector<128x256xf32>
    %cst_222 = arith.constant dense<0.000000e+00> : vector<22x256xf32>
    %202 = tpu.matmul %199, %201, %cst_222 {dimension_numbers = #tpu.dot_dimension_numbers<[1], [0], [0], [1], [0, 0, 1, 1], [], []>} : vector<22x128xf32>, vector<128x256xf32>, vector<22x256xf32> -> vector<22x256xf32>
    %203 = arith.addf %198, %202 : vector<22x256xf32>
    %c6_223 = arith.constant 6 : index
    %c0_224 = arith.constant 0 : index
    %204 = vector.load %arg25[%c6_223, %c0_224] : memref<32x128xf32, #tpu.memory_space<vmem>>, vector<22x128xf32>
    %c5_225 = arith.constant 5 : index
    %c0_226 = arith.constant 0 : index
    %c0_227 = arith.constant 0 : index
    %205 = vector.load %arg10[%c5_225, %c0_226, %c0_227] : memref<9x128x256xf32, #tpu.memory_space<vmem>>, vector<1x128x256xf32>
    %206 = vector.shape_cast %205 : vector<1x128x256xf32> to vector<128x256xf32>
    %cst_228 = arith.constant dense<0.000000e+00> : vector<22x256xf32>
    %207 = tpu.matmul %204, %206, %cst_228 {dimension_numbers = #tpu.dot_dimension_numbers<[1], [0], [0], [1], [0, 0, 1, 1], [], []>} : vector<22x128xf32>, vector<128x256xf32>, vector<22x256xf32> -> vector<22x256xf32>
    %208 = arith.addf %203, %207 : vector<22x256xf32>
    %c8_229 = arith.constant 8 : index
    %c0_230 = arith.constant 0 : index
    %209 = vector.load %arg25[%c8_229, %c0_230] : memref<32x128xf32, #tpu.memory_space<vmem>>, vector<22x128xf32>
    %c6_231 = arith.constant 6 : index
    %c0_232 = arith.constant 0 : index
    %c0_233 = arith.constant 0 : index
    %210 = vector.load %arg10[%c6_231, %c0_232, %c0_233] : memref<9x128x256xf32, #tpu.memory_space<vmem>>, vector<1x128x256xf32>
    %211 = vector.shape_cast %210 : vector<1x128x256xf32> to vector<128x256xf32>
    %cst_234 = arith.constant dense<0.000000e+00> : vector<22x256xf32>
    %212 = tpu.matmul %209, %211, %cst_234 {dimension_numbers = #tpu.dot_dimension_numbers<[1], [0], [0], [1], [0, 0, 1, 1], [], []>} : vector<22x128xf32>, vector<128x256xf32>, vector<22x256xf32> -> vector<22x256xf32>
    %213 = arith.addf %208, %212 : vector<22x256xf32>
    %c9 = arith.constant 9 : index
    %c0_235 = arith.constant 0 : index
    %214 = vector.load %arg25[%c9, %c0_235] : memref<32x128xf32, #tpu.memory_space<vmem>>, vector<22x128xf32>
    %c7_236 = arith.constant 7 : index
    %c0_237 = arith.constant 0 : index
    %c0_238 = arith.constant 0 : index
    %215 = vector.load %arg10[%c7_236, %c0_237, %c0_238] : memref<9x128x256xf32, #tpu.memory_space<vmem>>, vector<1x128x256xf32>
    %216 = vector.shape_cast %215 : vector<1x128x256xf32> to vector<128x256xf32>
    %cst_239 = arith.constant dense<0.000000e+00> : vector<22x256xf32>
    %217 = tpu.matmul %214, %216, %cst_239 {dimension_numbers = #tpu.dot_dimension_numbers<[1], [0], [0], [1], [0, 0, 1, 1], [], []>} : vector<22x128xf32>, vector<128x256xf32>, vector<22x256xf32> -> vector<22x256xf32>
    %218 = arith.addf %213, %217 : vector<22x256xf32>
    %c10_240 = arith.constant 10 : index
    %c0_241 = arith.constant 0 : index
    %219 = vector.load %arg25[%c10_240, %c0_241] : memref<32x128xf32, #tpu.memory_space<vmem>>, vector<22x128xf32>
    %c8_242 = arith.constant 8 : index
    %c0_243 = arith.constant 0 : index
    %c0_244 = arith.constant 0 : index
    %220 = vector.load %arg10[%c8_242, %c0_243, %c0_244] : memref<9x128x256xf32, #tpu.memory_space<vmem>>, vector<1x128x256xf32>
    %221 = vector.shape_cast %220 : vector<1x128x256xf32> to vector<128x256xf32>
    %cst_245 = arith.constant dense<0.000000e+00> : vector<22x256xf32>
    %222 = tpu.matmul %219, %221, %cst_245 {dimension_numbers = #tpu.dot_dimension_numbers<[1], [0], [0], [1], [0, 0, 1, 1], [], []>} : vector<22x128xf32>, vector<128x256xf32>, vector<22x256xf32> -> vector<22x256xf32>
    %223 = arith.addf %218, %222 : vector<22x256xf32>
    %c0_246 = arith.constant 0 : index
    %c0_247 = arith.constant 0 : index
    %224 = vector.load %arg11[%c0_246, %c0_247] : memref<1x256xf32, #tpu.memory_space<vmem>>, vector<1x256xf32>
    %225 = vector.broadcast %224 : vector<1x256xf32> to vector<22x256xf32>
    %226 = arith.addf %223, %225 : vector<22x256xf32>
    %cst_248 = arith.constant 0.000000e+00 : f32
    %227 = vector.broadcast %cst_248 : f32 to vector<22x256xf32>
    %228 = arith.maximumf %226, %227 : vector<22x256xf32>
    %c0_249 = arith.constant 0 : index
    %c0_250 = arith.constant 0 : index
    %229 = vector.load %arg26[%c0_249, %c0_250] : memref<22x256xf32, #tpu.memory_space<vmem>>, vector<22x256xf32>
    tpu.vector_store %arg26[%c0_249, %c0_250], %228 {strides = array<i32>} : memref<22x256xf32, #tpu.memory_space<vmem>>, vector<22x256xf32>,
    %c0_251 = arith.constant 0 : index
    %c0_252 = arith.constant 0 : index
    %230 = vector.load %arg26[%c0_251, %c0_252] : memref<22x256xf32, #tpu.memory_space<vmem>>, vector<17x256xf32>
    %c1_253 = arith.constant 1 : index
    %c0_254 = arith.constant 0 : index
    %231 = vector.load %arg26[%c1_253, %c0_254] : memref<22x256xf32, #tpu.memory_space<vmem>>, vector<17x256xf32>
    %232 = arith.maximumf %230, %231 : vector<17x256xf32>
    %c4_255 = arith.constant 4 : index
    %c0_256 = arith.constant 0 : index
    %233 = vector.load %arg26[%c4_255, %c0_256] : memref<22x256xf32, #tpu.memory_space<vmem>>, vector<17x256xf32>
    %c5_257 = arith.constant 5 : index
    %c0_258 = arith.constant 0 : index
    %234 = vector.load %arg26[%c5_257, %c0_258] : memref<22x256xf32, #tpu.memory_space<vmem>>, vector<17x256xf32>
    %235 = arith.maximumf %233, %234 : vector<17x256xf32>
    %236 = arith.maximumf %232, %235 : vector<17x256xf32>
    %c0_259 = arith.constant 0 : index
    %c0_260 = arith.constant 0 : index
    %237 = vector.load %arg12[%c0_259, %c0_260] : memref<2x17xf32, #tpu.memory_space<vmem>>, vector<2x17xf32>
    %cst_261 = arith.constant dense<0.000000e+00> : vector<2x256xf32>
    %238 = tpu.matmul %237, %236, %cst_261 {dimension_numbers = #tpu.dot_dimension_numbers<[1], [0], [0], [1], [0, 0, 1, 1], [], []>} : vector<2x17xf32>, vector<17x256xf32>, vector<2x256xf32> -> vector<2x256xf32>
    %c0_262 = arith.constant 0 : index
    %c0_263 = arith.constant 0 : index
    %239 = vector.load %arg13[%c0_262, %c0_263] : memref<256x512xf32, #tpu.memory_space<vmem>>, vector<256x512xf32>
    %cst_264 = arith.constant dense<0.000000e+00> : vector<2x512xf32>
    %240 = tpu.matmul %238, %239, %cst_264 {dimension_numbers = #tpu.dot_dimension_numbers<[1], [0], [0], [1], [0, 0, 1, 1], [], []>} : vector<2x256xf32>, vector<256x512xf32>, vector<2x512xf32> -> vector<2x512xf32>
    %c0_265 = arith.constant 0 : index
    %c0_266 = arith.constant 0 : index
    %241 = vector.load %arg14[%c0_265, %c0_266] : memref<1x512xf32, #tpu.memory_space<vmem>>, vector<1x512xf32>
    %242 = vector.broadcast %241 : vector<1x512xf32> to vector<2x512xf32>
    %243 = arith.addf %240, %242 : vector<2x512xf32>
    %cst_267 = arith.constant 0.000000e+00 : f32
    %244 = vector.broadcast %cst_267 : f32 to vector<2x512xf32>
    %245 = arith.maximumf %243, %244 : vector<2x512xf32>
    %c0_268 = arith.constant 0 : index
    %c0_269 = arith.constant 0 : index
    %246 = vector.load %arg15[%c0_268, %c0_269] : memref<512x256xf32, #tpu.memory_space<vmem>>, vector<512x256xf32>
    %cst_270 = arith.constant dense<0.000000e+00> : vector<2x256xf32>
    %247 = tpu.matmul %245, %246, %cst_270 {dimension_numbers = #tpu.dot_dimension_numbers<[1], [0], [0], [1], [0, 0, 1, 1], [], []>} : vector<2x512xf32>, vector<512x256xf32>, vector<2x256xf32> -> vector<2x256xf32>
    %c0_271 = arith.constant 0 : index
    %c0_272 = arith.constant 0 : index
    %248 = vector.load %arg16[%c0_271, %c0_272] : memref<1x256xf32, #tpu.memory_space<vmem>>, vector<1x256xf32>
    %249 = vector.broadcast %248 : vector<1x256xf32> to vector<2x256xf32>
    %250 = arith.addf %247, %249 : vector<2x256xf32>
    %cst_273 = arith.constant 0.000000e+00 : f32
    %251 = vector.broadcast %cst_273 : f32 to vector<2x256xf32>
    %252 = arith.maximumf %250, %251 : vector<2x256xf32>
    %c0_274 = arith.constant 0 : index
    %c0_275 = arith.constant 0 : index
    %253 = vector.load %arg17[%c0_274, %c0_275] : memref<256x2xf32, #tpu.memory_space<vmem>>, vector<256x2xf32>
    %cst_276 = arith.constant dense<0.000000e+00> : vector<2x2xf32>
    %254 = tpu.matmul %252, %253, %cst_276 {dimension_numbers = #tpu.dot_dimension_numbers<[1], [0], [0], [1], [0, 0, 1, 1], [], []>} : vector<2x256xf32>, vector<256x2xf32>, vector<2x2xf32> -> vector<2x2xf32>
    %c0_277 = arith.constant 0 : index
    %c0_278 = arith.constant 0 : index
    %255 = vector.load %arg18[%c0_277, %c0_278] : memref<1x2xf32, #tpu.memory_space<vmem>>, vector<1x2xf32>
    %256 = vector.broadcast %255 : vector<1x2xf32> to vector<2x2xf32>
    %257 = arith.addf %254, %256 : vector<2x2xf32>
    %c0_279 = arith.constant 0 : index
    %c0_280 = arith.constant 0 : index
    %258 = vector.load %arg19[%c0_279, %c0_280] : memref<2x2xf32, #tpu.memory_space<vmem>>, vector<2x2xf32>
    tpu.vector_store %arg19[%c0_279, %c0_280], %257 {strides = array<i32>} : memref<2x2xf32, #tpu.memory_space<vmem>>, vector<2x2xf32>,
    return
  }
}

</mosaic_0001>

<llo_original>
// kernel: bombus_forward.1
$region0: #{bombus_forward.1}
  #allocation0 [shape = 'u32[]', space=smem, size = 0x4, offset = 0x4, fixed_abs, tag = 'smem constant byte address 0x4 - core index']
  #allocation1 [shape = 'u32[72,128]{1,0:T(1,128)}', space=vmem, size = 0x9000, scoped, tag = 'internal scratch']
  #allocation2 [shape = 'f32[610,32]{1,0:T(8,128)}', space=vmem, size = 0x4d000, scoped, tag = 'scratch operand']
  #allocation3 [shape = 'f32[200,32]{1,0:T(8,128)}', space=vmem, size = 0x19000, scoped, tag = 'scratch operand']
  #allocation4 [shape = 'f32[178,64]{1,0:T(8,128)}', space=vmem, size = 0x17000, scoped, tag = 'scratch operand']
  #allocation5 [shape = 'f32[72,64]{1,0:T(8,128)}', space=vmem, size = 0x9000, scoped, tag = 'scratch operand']
  #allocation6 [shape = 'f32[58,128]{1,0:T(8,128)}', space=vmem, size = 0x8000, scoped, tag = 'scratch operand']
  #allocation7 [shape = 'f32[32,128]{1,0:T(8,128)}', space=vmem, size = 0x4000, scoped, tag = 'scratch operand']
  #allocation8 [shape = 'f32[22,256]{1,0:T(8,128)}', space=vmem, size = 0x6000, scoped, tag = 'scratch operand']
  %s0 = inlined_call_operand.vmem [shape: f32[648,3], index: 0, kind: input, shape index: {}]
  %s1 = inlined_call_operand.vmem [shape: f32[9,3,32], index: 1, kind: input, shape index: {}]
  %s2 = inlined_call_operand.vmem [shape: f32[1,32], index: 2, kind: input, shape index: {}]
  %s3 = inlined_call_operand.vmem [shape: f32[200,591], index: 3, kind: input, shape index: {}]
  %s4 = inlined_call_operand.vmem [shape: f32[9,32,64], index: 4, kind: input, shape index: {}]
  %s5 = inlined_call_operand.vmem [shape: f32[1,64], index: 5, kind: input, shape index: {}]
  %s6 = inlined_call_operand.vmem [shape: f32[72,167], index: 6, kind: input, shape index: {}]
  %s7 = inlined_call_operand.hbm [shape: f32[9,64,128], index: 7, kind: input, shape index: {}]
  %s8 = inlined_call_operand.vmem [shape: f32[1,128], index: 8, kind: input, shape index: {}]
  %s9 = inlined_call_operand.vmem [shape: f32[32,51], index: 9, kind: input, shape index: {}]
  %s10 = inlined_call_operand.vmem [shape: f32[9,128,256], index: 10, kind: input, shape index: {}]
  %s11 = inlined_call_operand.vmem [shape: f32[1,256], index: 11, kind: input, shape index: {}]
  %s12 = inlined_call_operand.vmem [shape: f32[2,17], index: 12, kind: input, shape index: {}]
  %s13 = inlined_call_operand.hbm [shape: f32[256,512], index: 13, kind: input, shape index: {}]
  %s14 = inlined_call_operand.vmem [shape: f32[1,512], index: 14, kind: input, shape index: {}]
  %s15 = inlined_call_operand.hbm [shape: f32[512,256], index: 15, kind: input, shape index: {}]
  %s16 = inlined_call_operand.vmem [shape: f32[1,256], index: 16, kind: input, shape index: {}]
  %s17 = inlined_call_operand.vmem [shape: f32[256,2], index: 17, kind: input, shape index: {}]
  %s18 = inlined_call_operand.vmem [shape: f32[1,2], index: 18, kind: input, shape index: {}]
  %s19 = inlined_call_operand.hbm [shape: f32[2,2], index: 19, kind: output, shape index: {}]
  %s20 = sld [smem:[#allocation0]]
  $region98: #{bombus_forward.1} parent=0
    _
  %s22 = ssub.s32 1, %s20
  %s23 = scalar_select 0, %s22, %s20
  $region1: #{bombus_forward.1} parent=0
    #allocation9 [shape = 'u8[294912]{0}', space=vmem, size = 0x48000, scoped, tag = 'input window, operand 7, single buffered']
    #allocation10 [shape = 's32[1]{0}', space=sflag, size = 0x4, scoped, tag = 'scoped memory for bombus_forward.1']
    #allocation11 [shape = 's32[1]{0}', space=sflag, size = 0x4, scoped, tag = 'scoped memory for bombus_forward.1']
    #allocation12 [shape = 'u8[524288]{0}', space=vmem, size = 0x80000, scoped, tag = 'input window, operand 13, single buffered']
    #allocation13 [shape = 's32[1]{0}', space=sflag, size = 0x4, scoped, tag = 'scoped memory for bombus_forward.1']
    #allocation14 [shape = 'u8[524288]{0}', space=vmem, size = 0x80000, scoped, tag = 'input window, operand 15, single buffered']
    #allocation15 [shape = 'u8[1024]{0}', space=vmem, size = 0x400, scoped, tag = 'output window, operand 0, single buffered']
    %24 = vsyncpa [#allocation10], 0
    %25 = vsyncpa [#allocation13], 0
    %26 = vsyncpa [#allocation11], 0
    // Predicated region
    $region2: #{bombus_forward.1} parent=1 // pred_check
      _
    $region3: #{bombus_forward.1} parent=1 // pred_check_branch
      %28 = sbr.rel (0) target = $region5
    $region4: #{bombus_forward.1} parent=1 // pred_region
      _
    $region5: #{bombus_forward.1} parent=1 // pred_fallthru
      _
    // Predicated region
    $region6: #{bombus_forward.1} parent=1 // pred_check
      _
    $region7: #{bombus_forward.1} parent=1 // pred_check_branch
      %30 = sbr.rel (0) target = $region9
    $region8: #{bombus_forward.1} parent=1 // pred_region
      _
    $region9: #{bombus_forward.1} parent=1 // pred_fallthru
      _
    // Predicated region
    $region10: #{bombus_forward.1} parent=1 // pred_check
      _
    $region11: #{bombus_forward.1} parent=1 // pred_check_branch
      %32 = sbr.rel (0) target = $region13
    $region12: #{bombus_forward.1} parent=1 // pred_region
      _
    $region13: #{bombus_forward.1} parent=1 // pred_fallthru
      _
    // Predicated region
    $region14: #{bombus_forward.1} parent=1 // pred_check
      _
    $region15: #{bombus_forward.1} parent=1 // pred_check_branch
      %34 = sbr.rel (0) target = $region17
    $region16: #{bombus_forward.1} parent=1 // pred_region
      _
    $region17: #{bombus_forward.1} parent=1 // pred_fallthru
      _
    // Predicated region
    $region18: #{bombus_forward.1} parent=1 // pred_check
      _
    $region19: #{bombus_forward.1} parent=1 // pred_check_branch
      %36 = sbr.rel (0) target = $region21
    $region20: #{bombus_forward.1} parent=1 // pred_region
      _
    $region21: #{bombus_forward.1} parent=1 // pred_fallthru
      _
    // Predicated region
    $region22: #{bombus_forward.1} parent=1 // pred_check
      _
    $region23: #{bombus_forward.1} parent=1 // pred_check_branch
      %38 = sbr.rel (0) target = $region25
    $region24: #{bombus_forward.1} parent=1 // pred_region
      _
    $region25: #{bombus_forward.1} parent=1 // pred_fallthru
      _
    // Predicated region
    $region26: #{bombus_forward.1} parent=1 // pred_check
      _
    $region27: #{bombus_forward.1} parent=1 // pred_check_branch
      %40 = sbr.rel (0) target = $region29
    $region28: #{bombus_forward.1} parent=1 // pred_region
      _
    $region29: #{bombus_forward.1} parent=1 // pred_fallthru
      _
    // Predicated region
    $region30: #{bombus_forward.1} parent=1 // pred_check
      _
    $region31: #{bombus_forward.1} parent=1 // pred_check_branch
      %42 = sbr.rel (0) target = $region33
    $region32: #{bombus_forward.1} parent=1 // pred_region
      %44 = vsyncadd [#allocation10], 0
      %s45 = sshll.u32 %s7, 4
      %s46 = int_to_ptr.hbm [resolvable:$true] %s45
      %s47 = sshll.u32 [#allocation9], 4
      %s48 = int_to_ptr.vmem [resolvable:$true] %s47
      %53 = dma.hbm_to_vmem [thread:$0]  %s46, 9216, %s48, [#allocation10], 128, 128, 8
    $region33: #{bombus_forward.1} parent=1 // pred_fallthru
      _
    // Predicated region
    $region34: #{bombus_forward.1} parent=1 // pred_check
      _
    $region35: #{bombus_forward.1} parent=1 // pred_check_branch
      %55 = sbr.rel (0) target = $region37
    $region36: #{bombus_forward.1} parent=1 // pred_region
      _
    $region37: #{bombus_forward.1} parent=1 // pred_fallthru
      _
    // Predicated region
    $region38: #{bombus_forward.1} parent=1 // pred_check
      _
    $region39: #{bombus_forward.1} parent=1 // pred_check_branch
      %57 = sbr.rel (0) target = $region41
    $region40: #{bombus_forward.1} parent=1 // pred_region
      _
    $region41: #{bombus_forward.1} parent=1 // pred_fallthru
      _
    // Predicated region
    $region42: #{bombus_forward.1} parent=1 // pred_check
      _
    $region43: #{bombus_forward.1} parent=1 // pred_check_branch
      %59 = sbr.rel (0) target = $region45
    $region44: #{bombus_forward.1} parent=1 // pred_region
      _
    $region45: #{bombus_forward.1} parent=1 // pred_fallthru
      _
    // Predicated region
    $region46: #{bombus_forward.1} parent=1 // pred_check
      _
    $region47: #{bombus_forward.1} parent=1 // pred_check_branch
      %61 = sbr.rel (0) target = $region49
    $region48: #{bombus_forward.1} parent=1 // pred_region
      _
    $region49: #{bombus_forward.1} parent=1 // pred_fallthru
      _
    // Predicated region
    $region50: #{bombus_forward.1} parent=1 // pred_check
      _
    $region51: #{bombus_forward.1} parent=1 // pred_check_branch
      %63 = sbr.rel (0) target = $region53
    $region52: #{bombus_forward.1} parent=1 // pred_region
      _
    $region53: #{bombus_forward.1} parent=1 // pred_fallthru
      _
    // Predicated region
    $region54: #{bombus_forward.1} parent=1 // pred_check
      _
    $region55: #{bombus_forward.1} parent=1 // pred_check_branch
      %65 = sbr.rel (0) target = $region57
    $region56: #{bombus_forward.1} parent=1 // pred_region
      %67 = vsyncadd [#allocation13], 0
      %s68 = sshll.u32 %s13, 4
      %s69 = int_to_ptr.hbm [resolvable:$true] %s68
      %s70 = sshll.u32 [#allocation12], 4
      %s71 = int_to_ptr.vmem [resolvable:$true] %s70
      %76 = dma.hbm_to_vmem [thread:$0]  %s69, 16384, %s71, [#allocation13], 512, 512, 32
    $region57: #{bombus_forward.1} parent=1 // pred_fallthru
      _
    // Predicated region
    $region58: #{bombus_forward.1} parent=1 // pred_check
      _
    $region59: #{bombus_forward.1} parent=1 // pred_check_branch
      %78 = sbr.rel (0) target = $region61
    $region60: #{bombus_forward.1} parent=1 // pred_region
      _
    $region61: #{bombus_forward.1} parent=1 // pred_fallthru
      _
    // Predicated region
    $region62: #{bombus_forward.1} parent=1 // pred_check
      _
    $region63: #{bombus_forward.1} parent=1 // pred_check_branch
      %80 = sbr.rel (0) target = $region65
    $region64: #{bombus_forward.1} parent=1 // pred_region
      %82 = vsyncadd [#allocation13], 0
      %s83 = sshll.u32 %s15, 4
      %s84 = int_to_ptr.hbm [resolvable:$true] %s83
      %s85 = sshll.u32 [#allocation14], 4
      %s86 = int_to_ptr.vmem [resolvable:$true] %s85
      %91 = dma.hbm_to_vmem [thread:$0]  %s84, 16384, %s86, [#allocation13], 256, 256, 16
    $region65: #{bombus_forward.1} parent=1 // pred_fallthru
      _
    // Predicated region
    $region66: #{bombus_forward.1} parent=1 // pred_check
      _
    $region67: #{bombus_forward.1} parent=1 // pred_check_branch
      %93 = sbr.rel (0) target = $region69
    $region68: #{bombus_forward.1} parent=1 // pred_region
      _
    $region69: #{bombus_forward.1} parent=1 // pred_fallthru
      _
    // Predicated region
    $region70: #{bombus_forward.1} parent=1 // pred_check
      _
    $region71: #{bombus_forward.1} parent=1 // pred_check_branch
      %95 = sbr.rel (0) target = $region73
    $region72: #{bombus_forward.1} parent=1 // pred_region
      _
    $region73: #{bombus_forward.1} parent=1 // pred_fallthru
      _
    // Predicated region
    $region74: #{bombus_forward.1} parent=1 // pred_check
      _
    $region75: #{bombus_forward.1} parent=1 // pred_check_branch
      %97 = sbr.rel (0) target = $region77
    $region76: #{bombus_forward.1} parent=1 // pred_region
      _
    $region77: #{bombus_forward.1} parent=1 // pred_fallthru
      _
    // Predicated region
    $region78: #{bombus_forward.1} parent=1 // pred_check
      _
    $region79: #{bombus_forward.1} parent=1 // pred_check_branch
      %99 = sbr.rel (0) target = $region81
    $region80: #{bombus_forward.1} parent=1 // pred_region
      %101 = dma.done [#allocation10], 9216
    $region81: #{bombus_forward.1} parent=1 // pred_fallthru
      _
    // Predicated region
    $region82: #{bombus_forward.1} parent=1 // pred_check
      _
    $region83: #{bombus_forward.1} parent=1 // pred_check_branch
      %103 = sbr.rel (0) target = $region85
    $region84: #{bombus_forward.1} parent=1 // pred_region
      %105 = dma.done [#allocation13], 16384
    $region85: #{bombus_forward.1} parent=1 // pred_fallthru
      _
    // Predicated region
    $region86: #{bombus_forward.1} parent=1 // pred_check
      _
    $region87: #{bombus_forward.1} parent=1 // pred_check_branch
      %107 = sbr.rel (0) target = $region89
    $region88: #{bombus_forward.1} parent=1 // pred_region
      %109 = dma.done [#allocation13], 16384
    $region89: #{bombus_forward.1} parent=1 // pred_fallthru
      _
    %v110 = vld [vmem:[%s0] sm:$0xff]
    %v111 = vld [vmem:[%s0 + $0x8] sm:$0xff]
    %v112 = vld [vmem:[%s0 + $0x10] sm:$0xff]
    %v113 = vld [vmem:[%s0 + $0x18] sm:$0xff]
    %v114 = vld [vmem:[%s0 + $0x20] sm:$0xff]
    %v115 = vld [vmem:[%s0 + $0x28] sm:$0xff]
    %v116 = vld [vmem:[%s0 + $0x30] sm:$0xff]
    %v117 = vld [vmem:[%s0 + $0x38] sm:$0xff]
    %v118 = vld [vmem:[%s0 + $0x40] sm:$0xff]
    %v119 = vld [vmem:[%s0 + $0x48] sm:$0xff]
    %v120 = vld [vmem:[%s0 + $0x50] sm:$0xff]
    %v121 = vld [vmem:[%s0 + $0x58] sm:$0xff]
    %v122 = vld [vmem:[%s0 + $0x60] sm:$0xff]
    %v123 = vld [vmem:[%s0 + $0x68] sm:$0xff]
    %v124 = vld [vmem:[%s0 + $0x70] sm:$0xff]
    %v125 = vld [vmem:[%s0 + $0x78] sm:$0xff]
    %v126 = vld [vmem:[%s0 + $0x80] sm:$0xff]
    %v127 = vld [vmem:[%s0 + $0x88] sm:$0xff]
    %v128 = vld [vmem:[%s0 + $0x90] sm:$0xff]
    %v129 = vld [vmem:[%s0 + $0x98] sm:$0xff]
    %v130 = vld [vmem:[%s0 + $0xa0] sm:$0xff]
    %v131 = vld [vmem:[%s0 + $0xa8] sm:$0xff]
    %v132 = vld [vmem:[%s0 + $0xb0] sm:$0xff]
    %v133 = vld [vmem:[%s0 + $0xb8] sm:$0xff]
    %v134 = vld [vmem:[%s0 + $0xc0] sm:$0xff]
    %v135 = vld [vmem:[%s0 + $0xc8] sm:$0xff]
    %v136 = vld [vmem:[%s0 + $0xd0] sm:$0xff]
    %v137 = vld [vmem:[%s0 + $0xd8] sm:$0xff]
    %v138 = vld [vmem:[%s0 + $0xe0] sm:$0xff]
    %v139 = vld [vmem:[%s0 + $0xe8] sm:$0xff]
    %v140 = vld [vmem:[%s0 + $0xf0] sm:$0xff]
    %v141 = vld [vmem:[%s0 + $0xf8] sm:$0xff]
    %v142 = vld [vmem:[%s0 + $0x100] sm:$0xff]
    %v143 = vld [vmem:[%s0 + $0x108] sm:$0xff]
    %v144 = vld [vmem:[%s0 + $0x110] sm:$0xff]
    %v145 = vld [vmem:[%s0 + $0x118] sm:$0xff]
    %v146 = vld [vmem:[%s0 + $0x120] sm:$0xff]
    %v147 = vld [vmem:[%s0 + $0x128] sm:$0xff]
    %v148 = vld [vmem:[%s0 + $0x130] sm:$0xff]
    %v149 = vld [vmem:[%s0 + $0x138] sm:$0xff]
    %v150 = vld [vmem:[%s0 + $0x140] sm:$0xff]
    %v151 = vld [vmem:[%s0 + $0x148] sm:$0xff]
    %v152 = vld [vmem:[%s0 + $0x150] sm:$0xff]
    %v153 = vld [vmem:[%s0 + $0x158] sm:$0xff]
    %v154 = vld [vmem:[%s0 + $0x160] sm:$0xff]
    %v155 = vld [vmem:[%s0 + $0x168] sm:$0xff]
    %v156 = vld [vmem:[%s0 + $0x170] sm:$0xff]
    %v157 = vld [vmem:[%s0 + $0x178] sm:$0xff]
    %v158 = vld [vmem:[%s0 + $0x180] sm:$0xff]
    %v159 = vld [vmem:[%s0 + $0x188] sm:$0xff]
    %v160 = vld [vmem:[%s0 + $0x190] sm:$0xff]
    %v161 = vld [vmem:[%s0 + $0x198] sm:$0xff]
    %v162 = vld [vmem:[%s0 + $0x1a0] sm:$0xff]
    %v163 = vld [vmem:[%s0 + $0x1a8] sm:$0xff]
    %v164 = vld [vmem:[%s0 + $0x1b0] sm:$0xff]
    %v165 = vld [vmem:[%s0 + $0x1b8] sm:$0xff]
    %v166 = vld [vmem:[%s0 + $0x1c0] sm:$0xff]
    %v167 = vld [vmem:[%s0 + $0x1c8] sm:$0xff]
    %v168 = vld [vmem:[%s0 + $0x1d0] sm:$0xff]
    %v169 = vld [vmem:[%s0 + $0x1d8] sm:$0xff]
    %v170 = vld [vmem:[%s0 + $0x1e0] sm:$0xff]
    %v171 = vld [vmem:[%s0 + $0x1e8] sm:$0xff]
    %v172 = vld [vmem:[%s0 + $0x1f0] sm:$0xff]
    %v173 = vld [vmem:[%s0 + $0x1f8] sm:$0xff]
    %v174 = vld [vmem:[%s0 + $0x200] sm:$0xff]
    %v175 = vld [vmem:[%s0 + $0x208] sm:$0xff]
    %v176 = vld [vmem:[%s0 + $0x210] sm:$0xff]
    %v177 = vld [vmem:[%s0 + $0x218] sm:$0xff]
    %v178 = vld [vmem:[%s0 + $0x220] sm:$0xff]
    %v179 = vld [vmem:[%s0 + $0x228] sm:$0xff]
    %v180 = vld [vmem:[%s0 + $0x230] sm:$0xff]
    %v181 = vld [vmem:[%s0 + $0x238] sm:$0xff]
    %v182 = vld [vmem:[%s0 + $0x240] sm:$0xff]
    %v183 = vld [vmem:[%s0 + $0x248] sm:$0xff]
    %v184 = vld [vmem:[%s0 + $0x250] sm:$0xff]
    %v185 = vld [vmem:[%s0 + $0x258] sm:$0xff]
    %v186 = vld [vmem:[%s0 + $0x260] sm:$0x3]
    %v187 = vld [vmem:[%s1] sm:$0x7]
    %v188 = vld [vmem:[%s0 + $0x1] sm:$0xff]
    %v189 = vld [vmem:[%s0 + $0x9] sm:$0xff]
    %v190 = vld [vmem:[%s0 + $0x11] sm:$0xff]
    %v191 = vld [vmem:[%s0 + $0x19] sm:$0xff]
    %v192 = vld [vmem:[%s0 + $0x21] sm:$0xff]
    %v193 = vld [vmem:[%s0 + $0x29] sm:$0xff]
    %v194 = vld [vmem:[%s0 + $0x31] sm:$0xff]
    %v195 = vld [vmem:[%s0 + $0x39] sm:$0xff]
    %v196 = vld [vmem:[%s0 + $0x41] sm:$0xff]
    %v197 = vld [vmem:[%s0 + $0x49] sm:$0xff]
    %v198 = vld [vmem:[%s0 + $0x51] sm:$0xff]
    %v199 = vld [vmem:[%s0 + $0x59] sm:$0xff]
    %v200 = vld [vmem:[%s0 + $0x61] sm:$0xff]
    %v201 = vld [vmem:[%s0 + $0x69] sm:$0xff]
    %v202 = vld [vmem:[%s0 + $0x71] sm:$0xff]
    %v203 = vld [vmem:[%s0 + $0x79] sm:$0xff]
    %v204 = vld [vmem:[%s0 + $0x81] sm:$0xff]
    %v205 = vld [vmem:[%s0 + $0x89] sm:$0xff]
    %v206 = vld [vmem:[%s0 + $0x91] sm:$0xff]
    %v207 = vld [vmem:[%s0 + $0x99] sm:$0xff]
    %v208 = vld [vmem:[%s0 + $0xa1] sm:$0xff]
    %v209 = vld [vmem:[%s0 + $0xa9] sm:$0xff]
    %v210 = vld [vmem:[%s0 + $0xb1] sm:$0xff]
    %v211 = vld [vmem:[%s0 + $0xb9] sm:$0xff]
    %v212 = vld [vmem:[%s0 + $0xc1] sm:$0xff]
    %v213 = vld [vmem:[%s0 + $0xc9] sm:$0xff]
    %v214 = vld [vmem:[%s0 + $0xd1] sm:$0xff]
    %v215 = vld [vmem:[%s0 + $0xd9] sm:$0xff]
    %v216 = vld [vmem:[%s0 + $0xe1] sm:$0xff]
    %v217 = vld [vmem:[%s0 + $0xe9] sm:$0xff]
    %v218 = vld [vmem:[%s0 + $0xf1] sm:$0xff]
    %v219 = vld [vmem:[%s0 + $0xf9] sm:$0xff]
    %v220 = vld [vmem:[%s0 + $0x101] sm:$0xff]
    %v221 = vld [vmem:[%s0 + $0x109] sm:$0xff]
    %v222 = vld [vmem:[%s0 + $0x111] sm:$0xff]
    %v223 = vld [vmem:[%s0 + $0x119] sm:$0xff]
    %v224 = vld [vmem:[%s0 + $0x121] sm:$0xff]
    %v225 = vld [vmem:[%s0 + $0x129] sm:$0xff]
    %v226 = vld [vmem:[%s0 + $0x131] sm:$0xff]
    %v227 = vld [vmem:[%s0 + $0x139] sm:$0xff]
    %v228 = vld [vmem:[%s0 + $0x141] sm:$0xff]
    %v229 = vld [vmem:[%s0 + $0x149] sm:$0xff]
    %v230 = vld [vmem:[%s0 + $0x151] sm:$0xff]
    %v231 = vld [vmem:[%s0 + $0x159] sm:$0xff]
    %v232 = vld [vmem:[%s0 + $0x161] sm:$0xff]
    %v233 = vld [vmem:[%s0 + $0x169] sm:$0xff]
    %v234 = vld [vmem:[%s0 + $0x171] sm:$0xff]
    %v235 = vld [vmem:[%s0 + $0x179] sm:$0xff]
    %v236 = vld [vmem:[%s0 + $0x181] sm:$0xff]
    %v237 = vld [vmem:[%s0 + $0x189] sm:$0xff]
    %v238 = vld [vmem:[%s0 + $0x191] sm:$0xff]
    %v239 = vld [vmem:[%s0 + $0x199] sm:$0xff]
    %v240 = vld [vmem:[%s0 + $0x1a1] sm:$0xff]
    %v241 = vld [vmem:[%s0 + $0x1a9] sm:$0xff]
    %v242 = vld [vmem:[%s0 + $0x1b1] sm:$0xff]
    %v243 = vld [vmem:[%s0 + $0x1b9] sm:$0xff]
    %v244 = vld [vmem:[%s0 + $0x1c1] sm:$0xff]
    %v245 = vld [vmem:[%s0 + $0x1c9] sm:$0xff]
    %v246 = vld [vmem:[%s0 + $0x1d1] sm:$0xff]
    %v247 = vld [vmem:[%s0 + $0x1d9] sm:$0xff]
    %v248 = vld [vmem:[%s0 + $0x1e1] sm:$0xff]
    %v249 = vld [vmem:[%s0 + $0x1e9] sm:$0xff]
    %v250 = vld [vmem:[%s0 + $0x1f1] sm:$0xff]
    %v251 = vld [vmem:[%s0 + $0x1f9] sm:$0xff]
    %v252 = vld [vmem:[%s0 + $0x201] sm:$0xff]
    %v253 = vld [vmem:[%s0 + $0x209] sm:$0xff]
    %v254 = vld [vmem:[%s0 + $0x211] sm:$0xff]
    %v255 = vld [vmem:[%s0 + $0x219] sm:$0xff]
    %v256 = vld [vmem:[%s0 + $0x221] sm:$0xff]
    %v257 = vld [vmem:[%s0 + $0x229] sm:$0xff]
    %v258 = vld [vmem:[%s0 + $0x231] sm:$0xff]
    %v259 = vld [vmem:[%s0 + $0x239] sm:$0xff]
    %v260 = vld [vmem:[%s0 + $0x241] sm:$0xff]
    %v261 = vld [vmem:[%s0 + $0x249] sm:$0xff]
    %v262 = vld [vmem:[%s0 + $0x251] sm:$0xff]
    %v263 = vld [vmem:[%s0 + $0x259] sm:$0xff]
    %v264 = vld [vmem:[%s0 + $0x261] sm:$0x3]
    %s265 = scalar_lea.vmem %s1, 4
    %v266 = vld [vmem:[%s265] sm:$0x7]
    %vm267 = vcmask 23552
    %v269 = vsel %vm267, %v188, 0
    %v272 = vsel %vm267, %v189, 0
    %v275 = vsel %vm267, %v190, 0
    %v278 = vsel %vm267, %v191, 0
    %v281 = vsel %vm267, %v192, 0
    %v284 = vsel %vm267, %v193, 0
    %v287 = vsel %vm267, %v194, 0
    %v290 = vsel %vm267, %v195, 0
    %v293 = vsel %vm267, %v196, 0
    %v296 = vsel %vm267, %v197, 0
    %v299 = vsel %vm267, %v198, 0
    %v302 = vsel %vm267, %v199, 0
    %v305 = vsel %vm267, %v200, 0
    %v308 = vsel %vm267, %v201, 0
    %v311 = vsel %vm267, %v202, 0
    %v314 = vsel %vm267, %v203, 0
    %v317 = vsel %vm267, %v204, 0
    %v320 = vsel %vm267, %v205, 0
    %v323 = vsel %vm267, %v206, 0
    %v326 = vsel %vm267, %v207, 0
    %v329 = vsel %vm267, %v208, 0
    %v332 = vsel %vm267, %v209, 0
    %v335 = vsel %vm267, %v210, 0
    %v338 = vsel %vm267, %v211, 0
    %v341 = vsel %vm267, %v212, 0
    %v344 = vsel %vm267, %v213, 0
    %v347 = vsel %vm267, %v214, 0
    %v350 = vsel %vm267, %v215, 0
    %v353 = vsel %vm267, %v216, 0
    %v356 = vsel %vm267, %v217, 0
    %v359 = vsel %vm267, %v218, 0
    %v362 = vsel %vm267, %v219, 0
    %v365 = vsel %vm267, %v220, 0
    %v368 = vsel %vm267, %v221, 0
    %v371 = vsel %vm267, %v222, 0
    %v374 = vsel %vm267, %v223, 0
    %v377 = vsel %vm267, %v224, 0
    %v380 = vsel %vm267, %v225, 0
    %v383 = vsel %vm267, %v226, 0
    %v386 = vsel %vm267, %v227, 0
    %v389 = vsel %vm267, %v228, 0
    %v392 = vsel %vm267, %v229, 0
    %v395 = vsel %vm267, %v230, 0
    %v398 = vsel %vm267, %v231, 0
    %v401 = vsel %vm267, %v232, 0
    %v404 = vsel %vm267, %v233, 0
    %v407 = vsel %vm267, %v234, 0
    %v410 = vsel %vm267, %v235, 0
    %v413 = vsel %vm267, %v236, 0
    %v416 = vsel %vm267, %v237, 0
    %v419 = vsel %vm267, %v238, 0
    %v422 = vsel %vm267, %v239, 0
    %v425 = vsel %vm267, %v240, 0
    %v428 = vsel %vm267, %v241, 0
    %v431 = vsel %vm267, %v242, 0
    %v434 = vsel %vm267, %v243, 0
    %v437 = vsel %vm267, %v244, 0
    %v440 = vsel %vm267, %v245, 0
    %v443 = vsel %vm267, %v246, 0
    %v446 = vsel %vm267, %v247, 0
    %v449 = vsel %vm267, %v248, 0
    %v452 = vsel %vm267, %v249, 0
    %v455 = vsel %vm267, %v250, 0
    %v458 = vsel %vm267, %v251, 0
    %v461 = vsel %vm267, %v252, 0
    %v464 = vsel %vm267, %v253, 0
    %v467 = vsel %vm267, %v254, 0
    %v470 = vsel %vm267, %v255, 0
    %v473 = vsel %vm267, %v256, 0
    %v476 = vsel %vm267, %v257, 0
    %v479 = vsel %vm267, %v258, 0
    %v482 = vsel %vm267, %v259, 0
    %v485 = vsel %vm267, %v260, 0
    %v488 = vsel %vm267, %v261, 0
    %v491 = vsel %vm267, %v262, 0
    %v494 = vsel %vm267, %v263, 0
    %v497 = vsel %vm267, %v264, 0
    %vm499 = vcmask 1042432
    %v501 = vsel %vm499, %v266, 0
    %503 = vmatpush.msra.mxu0 0.0
    %504 = vmatpush.msra.mxu0 0.0
    %505 = vmatpush.msra.mxu0 0.0
    %506 = vmatpush.msra.mxu0 0.0
    %507 = vmatpush.msra.mxu0 0.0
    %508 = vmatpush.msra.mxu0 0.0
    %509 = vmatpush.msra.mxu0 0.0
    %510 = vmatpush.msra.mxu0 0.0
    %511 = vmatpush.msra.mxu0 0.0
    %512 = vmatpush.msra.mxu0 0.0
    %513 = vmatpush.msra.mxu0 0.0
    %514 = vmatpush.msra.mxu0 0.0
    %515 = vmatpush.msra.mxu0 0.0
    %516 = vmatpush.msra.mxu0 0.0
    %517 = vmatpush.msra.mxu0 0.0
    %518 = vmatpush.msra.mxu0 %v501
    %519 = vmatmul.f32.gmra.mxu0 %v269
    %v520 = vpop.f32.mrf.mxu0
    %v521 = vadd.f32 0.0, %v520
    %522 = vmatmul.f32.gmra.mxu0 %v272
    %v523 = vpop.f32.mrf.mxu0
    %v524 = vadd.f32 0.0, %v523
    %525 = vmatmul.f32.gmra.mxu0 %v275
    %v526 = vpop.f32.mrf.mxu0
    %v527 = vadd.f32 0.0, %v526
    %528 = vmatmul.f32.gmra.mxu0 %v278
    %v529 = vpop.f32.mrf.mxu0
    %v530 = vadd.f32 0.0, %v529
    %531 = vmatmul.f32.gmra.mxu0 %v281
    %v532 = vpop.f32.mrf.mxu0
    %v533 = vadd.f32 0.0, %v532
    %534 = vmatmul.f32.gmra.mxu0 %v284
    %v535 = vpop.f32.mrf.mxu0
    %v536 = vadd.f32 0.0, %v535
    %537 = vmatmul.f32.gmra.mxu0 %v287
    %v538 = vpop.f32.mrf.mxu0
    %v539 = vadd.f32 0.0, %v538
    %540 = vmatmul.f32.gmra.mxu0 %v290
    %v541 = vpop.f32.mrf.mxu0
    %v542 = vadd.f32 0.0, %v541
    %543 = vmatmul.f32.gmra.mxu0 %v293
    %v544 = vpop.f32.mrf.mxu0
    %v545 = vadd.f32 0.0, %v544
    %546 = vmatmul.f32.gmra.mxu0 %v296
    %v547 = vpop.f32.mrf.mxu0
    %v548 = vadd.f32 0.0, %v547
    %549 = vmatmul.f32.gmra.mxu0 %v299
    %v550 = vpop.f32.mrf.mxu0
    %v551 = vadd.f32 0.0, %v550
    %552 = vmatmul.f32.gmra.mxu0 %v302
    %v553 = vpop.f32.mrf.mxu0
    %v554 = vadd.f32 0.0, %v553
    %555 = vmatmul.f32.gmra.mxu0 %v305
    %v556 = vpop.f32.mrf.mxu0
    %v557 = vadd.f32 0.0, %v556
    %558 = vmatmul.f32.gmra.mxu0 %v308
    %v559 = vpop.f32.mrf.mxu0
    %v560 = vadd.f32 0.0, %v559
    %561 = vmatmul.f32.gmra.mxu0 %v311
    %v562 = vpop.f32.mrf.mxu0
    %v563 = vadd.f32 0.0, %v562
    %564 = vmatmul.f32.gmra.mxu0 %v314
    %v565 = vpop.f32.mrf.mxu0
    %v566 = vadd.f32 0.0, %v565
    %567 = vmatmul.f32.gmra.mxu0 %v317
    %v568 = vpop.f32.mrf.mxu0
    %v569 = vadd.f32 0.0, %v568
    %570 = vmatmul.f32.gmra.mxu0 %v320
    %v571 = vpop.f32.mrf.mxu0
    %v572 = vadd.f32 0.0, %v571
    %573 = vmatmul.f32.gmra.mxu0 %v323
    %v574 = vpop.f32.mrf.mxu0
    %v575 = vadd.f32 0.0, %v574
    %576 = vmatmul.f32.gmra.mxu0 %v326
    %v577 = vpop.f32.mrf.mxu0
    %v578 = vadd.f32 0.0, %v577
    %579 = vmatmul.f32.gmra.mxu0 %v329
    %v580 = vpop.f32.mrf.mxu0
    %v581 = vadd.f32 0.0, %v580
    %582 = vmatmul.f32.gmra.mxu0 %v332
    %v583 = vpop.f32.mrf.mxu0
    %v584 = vadd.f32 0.0, %v583
    %585 = vmatmul.f32.gmra.mxu0 %v335
    %v586 = vpop.f32.mrf.mxu0
    %v587 = vadd.f32 0.0, %v586
    %588 = vmatmul.f32.gmra.mxu0 %v338
    %v589 = vpop.f32.mrf.mxu0
    %v590 = vadd.f32 0.0, %v589
    %591 = vmatmul.f32.gmra.mxu0 %v341
    %v592 = vpop.f32.mrf.mxu0
    %v593 = vadd.f32 0.0, %v592
    %594 = vmatmul.f32.gmra.mxu0 %v344
    %v595 = vpop.f32.mrf.mxu0
    %v596 = vadd.f32 0.0, %v595
    %597 = vmatmul.f32.gmra.mxu0 %v347
    %v598 = vpop.f32.mrf.mxu0
    %v599 = vadd.f32 0.0, %v598
    %600 = vmatmul.f32.gmra.mxu0 %v350
    %v601 = vpop.f32.mrf.mxu0
    %v602 = vadd.f32 0.0, %v601
    %603 = vmatmul.f32.gmra.mxu0 %v353
    %v604 = vpop.f32.mrf.mxu0
    %v605 = vadd.f32 0.0, %v604
    %606 = vmatmul.f32.gmra.mxu0 %v356
    %v607 = vpop.f32.mrf.mxu0
    %v608 = vadd.f32 0.0, %v607
    %609 = vmatmul.f32.gmra.mxu0 %v359
    %v610 = vpop.f32.mrf.mxu0
    %v611 = vadd.f32 0.0, %v610
    %612 = vmatmul.f32.gmra.mxu0 %v362
    %v613 = vpop.f32.mrf.mxu0
    %v614 = vadd.f32 0.0, %v613
    %615 = vmatmul.f32.gmra.mxu0 %v365
    %v616 = vpop.f32.mrf.mxu0
    %v617 = vadd.f32 0.0, %v616
    %618 = vmatmul.f32.gmra.mxu0 %v368
    %v619 = vpop.f32.mrf.mxu0
    %v620 = vadd.f32 0.0, %v619
    %621 = vmatmul.f32.gmra.mxu0 %v371
    %v622 = vpop.f32.mrf.mxu0
    %v623 = vadd.f32 0.0, %v622
    %624 = vmatmul.f32.gmra.mxu0 %v374
    %v625 = vpop.f32.mrf.mxu0
    %v626 = vadd.f32 0.0, %v625
    %627 = vmatmul.f32.gmra.mxu0 %v377
    %v628 = vpop.f32.mrf.mxu0
    %v629 = vadd.f32 0.0, %v628
    %630 = vmatmul.f32.gmra.mxu0 %v380
    %v631 = vpop.f32.mrf.mxu0
    %v632 = vadd.f32 0.0, %v631
    %633 = vmatmul.f32.gmra.mxu0 %v383
    %v634 = vpop.f32.mrf.mxu0
    %v635 = vadd.f32 0.0, %v634
    %636 = vmatmul.f32.gmra.mxu0 %v386
    %v637 = vpop.f32.mrf.mxu0
    %v638 = vadd.f32 0.0, %v637
    %639 = vmatmul.f32.gmra.mxu0 %v389
    %v640 = vpop.f32.mrf.mxu0
    %v641 = vadd.f32 0.0, %v640
    %642 = vmatmul.f32.gmra.mxu0 %v392
    %v643 = vpop.f32.mrf.mxu0
    %v644 = vadd.f32 0.0, %v643
    %645 = vmatmul.f32.gmra.mxu0 %v395
    %v646 = vpop.f32.mrf.mxu0
    %v647 = vadd.f32 0.0, %v646
    %648 = vmatmul.f32.gmra.mxu0 %v398
    %v649 = vpop.f32.mrf.mxu0
    %v650 = vadd.f32 0.0, %v649
    %651 = vmatmul.f32.gmra.mxu0 %v401
    %v652 = vpop.f32.mrf.mxu0
    %v653 = vadd.f32 0.0, %v652
    %654 = vmatmul.f32.gmra.mxu0 %v404
    %v655 = vpop.f32.mrf.mxu0
    %v656 = vadd.f32 0.0, %v655
    %657 = vmatmul.f32.gmra.mxu0 %v407
    %v658 = vpop.f32.mrf.mxu0
    %v659 = vadd.f32 0.0, %v658
    %660 = vmatmul.f32.gmra.mxu0 %v410
    %v661 = vpop.f32.mrf.mxu0
    %v662 = vadd.f32 0.0, %v661
    %663 = vmatmul.f32.gmra.mxu0 %v413
    %v664 = vpop.f32.mrf.mxu0
    %v665 = vadd.f32 0.0, %v664
    %666 = vmatmul.f32.gmra.mxu0 %v416
    %v667 = vpop.f32.mrf.mxu0
    %v668 = vadd.f32 0.0, %v667
    %669 = vmatmul.f32.gmra.mxu0 %v419
    %v670 = vpop.f32.mrf.mxu0
    %v671 = vadd.f32 0.0, %v670
    %672 = vmatmul.f32.gmra.mxu0 %v422
    %v673 = vpop.f32.mrf.mxu0
    %v674 = vadd.f32 0.0, %v673
    %675 = vmatmul.f32.gmra.mxu0 %v425
    %v676 = vpop.f32.mrf.mxu0
    %v677 = vadd.f32 0.0, %v676
    %678 = vmatmul.f32.gmra.mxu0 %v428
    %v679 = vpop.f32.mrf.mxu0
    %v680 = vadd.f32 0.0, %v679
    %681 = vmatmul.f32.gmra.mxu0 %v431
    %v682 = vpop.f32.mrf.mxu0
    %v683 = vadd.f32 0.0, %v682
    %684 = vmatmul.f32.gmra.mxu0 %v434
    %v685 = vpop.f32.mrf.mxu0
    %v686 = vadd.f32 0.0, %v685
    %687 = vmatmul.f32.gmra.mxu0 %v437
    %v688 = vpop.f32.mrf.mxu0
    %v689 = vadd.f32 0.0, %v688
    %690 = vmatmul.f32.gmra.mxu0 %v440
    %v691 = vpop.f32.mrf.mxu0
    %v692 = vadd.f32 0.0, %v691
    %693 = vmatmul.f32.gmra.mxu0 %v443
    %v694 = vpop.f32.mrf.mxu0
    %v695 = vadd.f32 0.0, %v694
    %696 = vmatmul.f32.gmra.mxu0 %v446
    %v697 = vpop.f32.mrf.mxu0
    %v698 = vadd.f32 0.0, %v697
    %699 = vmatmul.f32.gmra.mxu0 %v449
    %v700 = vpop.f32.mrf.mxu0
    %v701 = vadd.f32 0.0, %v700
    %702 = vmatmul.f32.gmra.mxu0 %v452
    %v703 = vpop.f32.mrf.mxu0
    %v704 = vadd.f32 0.0, %v703
    %705 = vmatmul.f32.gmra.mxu0 %v455
    %v706 = vpop.f32.mrf.mxu0
    %v707 = vadd.f32 0.0, %v706
    %708 = vmatmul.f32.gmra.mxu0 %v458
    %v709 = vpop.f32.mrf.mxu0
    %v710 = vadd.f32 0.0, %v709
    %711 = vmatmul.f32.gmra.mxu0 %v461
    %v712 = vpop.f32.mrf.mxu0
    %v713 = vadd.f32 0.0, %v712
    %714 = vmatmul.f32.gmra.mxu0 %v464
    %v715 = vpop.f32.mrf.mxu0
    %v716 = vadd.f32 0.0, %v715
    %717 = vmatmul.f32.gmra.mxu0 %v467
    %v718 = vpop.f32.mrf.mxu0
    %v719 = vadd.f32 0.0, %v718
    %720 = vmatmul.f32.gmra.mxu0 %v470
    %v721 = vpop.f32.mrf.mxu0
    %v722 = vadd.f32 0.0, %v721
    %723 = vmatmul.f32.gmra.mxu0 %v473
    %v724 = vpop.f32.mrf.mxu0
    %v725 = vadd.f32 0.0, %v724
    %726 = vmatmul.f32.gmra.mxu0 %v476
    %v727 = vpop.f32.mrf.mxu0
    %v728 = vadd.f32 0.0, %v727
    %729 = vmatmul.f32.gmra.mxu0 %v479
    %v730 = vpop.f32.mrf.mxu0
    %v731 = vadd.f32 0.0, %v730
    %732 = vmatmul.f32.gmra.mxu0 %v482
    %v733 = vpop.f32.mrf.mxu0
    %v734 = vadd.f32 0.0, %v733
    %735 = vmatmul.f32.gmra.mxu0 %v485
    %v736 = vpop.f32.mrf.mxu0
    %v737 = vadd.f32 0.0, %v736
    %738 = vmatmul.f32.gmra.mxu0 %v488
    %v739 = vpop.f32.mrf.mxu0
    %v740 = vadd.f32 0.0, %v739
    %741 = vmatmul.f32.gmra.mxu0 %v491
    %v742 = vpop.f32.mrf.mxu0
    %v743 = vadd.f32 0.0, %v742
    %744 = vmatmul.f32.gmra.mxu0 %v494
    %v745 = vpop.f32.mrf.mxu0
    %v746 = vadd.f32 0.0, %v745
    %747 = vmatmul.f32.gmra.mxu0 %v497
    %v748 = vpop.f32.mrf.mxu0
    %v749 = vadd.f32 0.0, %v748
    %750 = vdwg.mxu0
    %v752 = vsel %vm267, %v110, 0
    %v755 = vsel %vm267, %v111, 0
    %v758 = vsel %vm267, %v112, 0
    %v761 = vsel %vm267, %v113, 0
    %v764 = vsel %vm267, %v114, 0
    %v767 = vsel %vm267, %v115, 0
    %v770 = vsel %vm267, %v116, 0
    %v773 = vsel %vm267, %v117, 0
    %v776 = vsel %vm267, %v118, 0
    %v779 = vsel %vm267, %v119, 0
    %v782 = vsel %vm267, %v120, 0
    %v785 = vsel %vm267, %v121, 0
    %v788 = vsel %vm267, %v122, 0
    %v791 = vsel %vm267, %v123, 0
    %v794 = vsel %vm267, %v124, 0
    %v797 = vsel %vm267, %v125, 0
    %v800 = vsel %vm267, %v126, 0
    %v803 = vsel %vm267, %v127, 0
    %v806 = vsel %vm267, %v128, 0
    %v809 = vsel %vm267, %v129, 0
    %v812 = vsel %vm267, %v130, 0
    %v815 = vsel %vm267, %v131, 0
    %v818 = vsel %vm267, %v132, 0
    %v821 = vsel %vm267, %v133, 0
    %v824 = vsel %vm267, %v134, 0
    %v827 = vsel %vm267, %v135, 0
    %v830 = vsel %vm267, %v136, 0
    %v833 = vsel %vm267, %v137, 0
    %v836 = vsel %vm267, %v138, 0
    %v839 = vsel %vm267, %v139, 0
    %v842 = vsel %vm267, %v140, 0
    %v845 = vsel %vm267, %v141, 0
    %v848 = vsel %vm267, %v142, 0
    %v851 = vsel %vm267, %v143, 0
    %v854 = vsel %vm267, %v144, 0
    %v857 = vsel %vm267, %v145, 0
    %v860 = vsel %vm267, %v146, 0
    %v863 = vsel %vm267, %v147, 0
    %v866 = vsel %vm267, %v148, 0
    %v869 = vsel %vm267, %v149, 0
    %v872 = vsel %vm267, %v150, 0
    %v875 = vsel %vm267, %v151, 0
    %v878 = vsel %vm267, %v152, 0
    %v881 = vsel %vm267, %v153, 0
    %v884 = vsel %vm267, %v154, 0
    %v887 = vsel %vm267, %v155, 0
    %v890 = vsel %vm267, %v156, 0
    %v893 = vsel %vm267, %v157, 0
    %v896 = vsel %vm267, %v158, 0
    %v899 = vsel %vm267, %v159, 0
    %v902 = vsel %vm267, %v160, 0
    %v905 = vsel %vm267, %v161, 0
    %v908 = vsel %vm267, %v162, 0
    %v911 = vsel %vm267, %v163, 0
    %v914 = vsel %vm267, %v164, 0
    %v917 = vsel %vm267, %v165, 0
    %v920 = vsel %vm267, %v166, 0
    %v923 = vsel %vm267, %v167, 0
    %v926 = vsel %vm267, %v168, 0
    %v929 = vsel %vm267, %v169, 0
    %v932 = vsel %vm267, %v170, 0
    %v935 = vsel %vm267, %v171, 0
    %v938 = vsel %vm267, %v172, 0
    %v941 = vsel %vm267, %v173, 0
    %v944 = vsel %vm267, %v174, 0
    %v947 = vsel %vm267, %v175, 0
    %v950 = vsel %vm267, %v176, 0
    %v953 = vsel %vm267, %v177, 0
    %v956 = vsel %vm267, %v178, 0
    %v959 = vsel %vm267, %v179, 0
    %v962 = vsel %vm267, %v180, 0
    %v965 = vsel %vm267, %v181, 0
    %v968 = vsel %vm267, %v182, 0
    %v971 = vsel %vm267, %v183, 0
    %v974 = vsel %vm267, %v184, 0
    %v977 = vsel %vm267, %v185, 0
    %v980 = vsel %vm267, %v186, 0
    %v983 = vsel %vm499, %v187, 0
    %985 = vmatpush.msra.mxu0 0.0
    %986 = vmatpush.msra.mxu0 0.0
    %987 = vmatpush.msra.mxu0 0.0
    %988 = vmatpush.msra.mxu0 0.0
    %989 = vmatpush.msra.mxu0 0.0
    %990 = vmatpush.msra.mxu0 0.0
    %991 = vmatpush.msra.mxu0 0.0
    %992 = vmatpush.msra.mxu0 0.0
    %993 = vmatpush.msra.mxu0 0.0
    %994 = vmatpush.msra.mxu0 0.0
    %995 = vmatpush.msra.mxu0 0.0
    %996 = vmatpush.msra.mxu0 0.0
    %997 = vmatpush.msra.mxu0 0.0
    %998 = vmatpush.msra.mxu0 0.0
    %999 = vmatpush.msra.mxu0 0.0
    %1000 = vmatpush.msra.mxu0 %v983
    %1001 = vmatmul.f32.gmra.mxu0 %v752
    %v1002 = vpop.f32.mrf.mxu0
    %v1003 = vadd.f32 %v521, %v1002
    %1004 = vmatmul.f32.gmra.mxu0 %v755
    %v1005 = vpop.f32.mrf.mxu0
    %v1006 = vadd.f32 %v524, %v1005
    %1007 = vmatmul.f32.gmra.mxu0 %v758
    %v1008 = vpop.f32.mrf.mxu0
    %v1009 = vadd.f32 %v527, %v1008
    %1010 = vmatmul.f32.gmra.mxu0 %v761
    %v1011 = vpop.f32.mrf.mxu0
    %v1012 = vadd.f32 %v530, %v1011
    %1013 = vmatmul.f32.gmra.mxu0 %v764
    %v1014 = vpop.f32.mrf.mxu0
    %v1015 = vadd.f32 %v533, %v1014
    %1016 = vmatmul.f32.gmra.mxu0 %v767
    %v1017 = vpop.f32.mrf.mxu0
    %v1018 = vadd.f32 %v536, %v1017
    %1019 = vmatmul.f32.gmra.mxu0 %v770
    %v1020 = vpop.f32.mrf.mxu0
    %v1021 = vadd.f32 %v539, %v1020
    %1022 = vmatmul.f32.gmra.mxu0 %v773
    %v1023 = vpop.f32.mrf.mxu0
    %v1024 = vadd.f32 %v542, %v1023
    %1025 = vmatmul.f32.gmra.mxu0 %v776
    %v1026 = vpop.f32.mrf.mxu0
    %v1027 = vadd.f32 %v545, %v1026
    %1028 = vmatmul.f32.gmra.mxu0 %v779
    %v1029 = vpop.f32.mrf.mxu0
    %v1030 = vadd.f32 %v548, %v1029
    %1031 = vmatmul.f32.gmra.mxu0 %v782
    %v1032 = vpop.f32.mrf.mxu0
    %v1033 = vadd.f32 %v551, %v1032
    %1034 = vmatmul.f32.gmra.mxu0 %v785
    %v1035 = vpop.f32.mrf.mxu0
    %v1036 = vadd.f32 %v554, %v1035
    %1037 = vmatmul.f32.gmra.mxu0 %v788
    %v1038 = vpop.f32.mrf.mxu0
    %v1039 = vadd.f32 %v557, %v1038
    %1040 = vmatmul.f32.gmra.mxu0 %v791
    %v1041 = vpop.f32.mrf.mxu0
    %v1042 = vadd.f32 %v560, %v1041
    %1043 = vmatmul.f32.gmra.mxu0 %v794
    %v1044 = vpop.f32.mrf.mxu0
    %v1045 = vadd.f32 %v563, %v1044
    %1046 = vmatmul.f32.gmra.mxu0 %v797
    %v1047 = vpop.f32.mrf.mxu0
    %v1048 = vadd.f32 %v566, %v1047
    %1049 = vmatmul.f32.gmra.mxu0 %v800
    %v1050 = vpop.f32.mrf.mxu0
    %v1051 = vadd.f32 %v569, %v1050
    %1052 = vmatmul.f32.gmra.mxu0 %v803
    %v1053 = vpop.f32.mrf.mxu0
    %v1054 = vadd.f32 %v572, %v1053
    %1055 = vmatmul.f32.gmra.mxu0 %v806
    %v1056 = vpop.f32.mrf.mxu0
    %v1057 = vadd.f32 %v575, %v1056
    %1058 = vmatmul.f32.gmra.mxu0 %v809
    %v1059 = vpop.f32.mrf.mxu0
    %v1060 = vadd.f32 %v578, %v1059
    %1061 = vmatmul.f32.gmra.mxu0 %v812
    %v1062 = vpop.f32.mrf.mxu0
    %v1063 = vadd.f32 %v581, %v1062
    %1064 = vmatmul.f32.gmra.mxu0 %v815
    %v1065 = vpop.f32.mrf.mxu0
    %v1066 = vadd.f32 %v584, %v1065
    %1067 = vmatmul.f32.gmra.mxu0 %v818
    %v1068 = vpop.f32.mrf.mxu0
    %v1069 = vadd.f32 %v587, %v1068
    %1070 = vmatmul.f32.gmra.mxu0 %v821
    %v1071 = vpop.f32.mrf.mxu0
    %v1072 = vadd.f32 %v590, %v1071
    %1073 = vmatmul.f32.gmra.mxu0 %v824
    %v1074 = vpop.f32.mrf.mxu0
    %v1075 = vadd.f32 %v593, %v1074
    %1076 = vmatmul.f32.gmra.mxu0 %v827
    %v1077 = vpop.f32.mrf.mxu0
    %v1078 = vadd.f32 %v596, %v1077
    %1079 = vmatmul.f32.gmra.mxu0 %v830
    %v1080 = vpop.f32.mrf.mxu0
    %v1081 = vadd.f32 %v599, %v1080
    %1082 = vmatmul.f32.gmra.mxu0 %v833
    %v1083 = vpop.f32.mrf.mxu0
    %v1084 = vadd.f32 %v602, %v1083
    %1085 = vmatmul.f32.gmra.mxu0 %v836
    %v1086 = vpop.f32.mrf.mxu0
    %v1087 = vadd.f32 %v605, %v1086
    %1088 = vmatmul.f32.gmra.mxu0 %v839
    %v1089 = vpop.f32.mrf.mxu0
    %v1090 = vadd.f32 %v608, %v1089
    %1091 = vmatmul.f32.gmra.mxu0 %v842
    %v1092 = vpop.f32.mrf.mxu0
    %v1093 = vadd.f32 %v611, %v1092
    %1094 = vmatmul.f32.gmra.mxu0 %v845
    %v1095 = vpop.f32.mrf.mxu0
    %v1096 = vadd.f32 %v614, %v1095
    %1097 = vmatmul.f32.gmra.mxu0 %v848
    %v1098 = vpop.f32.mrf.mxu0
    %v1099 = vadd.f32 %v617, %v1098
    %1100 = vmatmul.f32.gmra.mxu0 %v851
    %v1101 = vpop.f32.mrf.mxu0
    %v1102 = vadd.f32 %v620, %v1101
    %1103 = vmatmul.f32.gmra.mxu0 %v854
    %v1104 = vpop.f32.mrf.mxu0
    %v1105 = vadd.f32 %v623, %v1104
    %1106 = vmatmul.f32.gmra.mxu0 %v857
    %v1107 = vpop.f32.mrf.mxu0
    %v1108 = vadd.f32 %v626, %v1107
    %1109 = vmatmul.f32.gmra.mxu0 %v860
    %v1110 = vpop.f32.mrf.mxu0
    %v1111 = vadd.f32 %v629, %v1110
    %1112 = vmatmul.f32.gmra.mxu0 %v863
    %v1113 = vpop.f32.mrf.mxu0
    %v1114 = vadd.f32 %v632, %v1113
    %1115 = vmatmul.f32.gmra.mxu0 %v866
    %v1116 = vpop.f32.mrf.mxu0
    %v1117 = vadd.f32 %v635, %v1116
    %1118 = vmatmul.f32.gmra.mxu0 %v869
    %v1119 = vpop.f32.mrf.mxu0
    %v1120 = vadd.f32 %v638, %v1119
    %1121 = vmatmul.f32.gmra.mxu0 %v872
    %v1122 = vpop.f32.mrf.mxu0
    %v1123 = vadd.f32 %v641, %v1122
    %1124 = vmatmul.f32.gmra.mxu0 %v875
    %v1125 = vpop.f32.mrf.mxu0
    %v1126 = vadd.f32 %v644, %v1125
    %1127 = vmatmul.f32.gmra.mxu0 %v878
    %v1128 = vpop.f32.mrf.mxu0
    %v1129 = vadd.f32 %v647, %v1128
    %1130 = vmatmul.f32.gmra.mxu0 %v881
    %v1131 = vpop.f32.mrf.mxu0
    %v1132 = vadd.f32 %v650, %v1131
    %1133 = vmatmul.f32.gmra.mxu0 %v884
    %v1134 = vpop.f32.mrf.mxu0
    %v1135 = vadd.f32 %v653, %v1134
    %1136 = vmatmul.f32.gmra.mxu0 %v887
    %v1137 = vpop.f32.mrf.mxu0
    %v1138 = vadd.f32 %v656, %v1137
    %1139 = vmatmul.f32.gmra.mxu0 %v890
    %v1140 = vpop.f32.mrf.mxu0
    %v1141 = vadd.f32 %v659, %v1140
    %1142 = vmatmul.f32.gmra.mxu0 %v893
    %v1143 = vpop.f32.mrf.mxu0
    %v1144 = vadd.f32 %v662, %v1143
    %1145 = vmatmul.f32.gmra.mxu0 %v896
    %v1146 = vpop.f32.mrf.mxu0
    %v1147 = vadd.f32 %v665, %v1146
    %1148 = vmatmul.f32.gmra.mxu0 %v899
    %v1149 = vpop.f32.mrf.mxu0
    %v1150 = vadd.f32 %v668, %v1149
    %1151 = vmatmul.f32.gmra.mxu0 %v902
    %v1152 = vpop.f32.mrf.mxu0
    %v1153 = vadd.f32 %v671, %v1152
    %1154 = vmatmul.f32.gmra.mxu0 %v905
    %v1155 = vpop.f32.mrf.mxu0
    %v1156 = vadd.f32 %v674, %v1155
    %1157 = vmatmul.f32.gmra.mxu0 %v908
    %v1158 = vpop.f32.mrf.mxu0
    %v1159 = vadd.f32 %v677, %v1158
    %1160 = vmatmul.f32.gmra.mxu0 %v911
    %v1161 = vpop.f32.mrf.mxu0
    %v1162 = vadd.f32 %v680, %v1161
    %1163 = vmatmul.f32.gmra.mxu0 %v914
    %v1164 = vpop.f32.mrf.mxu0
    %v1165 = vadd.f32 %v683, %v1164
    %1166 = vmatmul.f32.gmra.mxu0 %v917
    %v1167 = vpop.f32.mrf.mxu0
    %v1168 = vadd.f32 %v686, %v1167
    %1169 = vmatmul.f32.gmra.mxu0 %v920
    %v1170 = vpop.f32.mrf.mxu0
    %v1171 = vadd.f32 %v689, %v1170
    %1172 = vmatmul.f32.gmra.mxu0 %v923
    %v1173 = vpop.f32.mrf.mxu0
    %v1174 = vadd.f32 %v692, %v1173
    %1175 = vmatmul.f32.gmra.mxu0 %v926
    %v1176 = vpop.f32.mrf.mxu0
    %v1177 = vadd.f32 %v695, %v1176
    %1178 = vmatmul.f32.gmra.mxu0 %v929
    %v1179 = vpop.f32.mrf.mxu0
    %v1180 = vadd.f32 %v698, %v1179
    %1181 = vmatmul.f32.gmra.mxu0 %v932
    %v1182 = vpop.f32.mrf.mxu0
    %v1183 = vadd.f32 %v701, %v1182
    %1184 = vmatmul.f32.gmra.mxu0 %v935
    %v1185 = vpop.f32.mrf.mxu0
    %v1186 = vadd.f32 %v704, %v1185
    %1187 = vmatmul.f32.gmra.mxu0 %v938
    %v1188 = vpop.f32.mrf.mxu0
    %v1189 = vadd.f32 %v707, %v1188
    %1190 = vmatmul.f32.gmra.mxu0 %v941
    %v1191 = vpop.f32.mrf.mxu0
    %v1192 = vadd.f32 %v710, %v1191
    %1193 = vmatmul.f32.gmra.mxu0 %v944
    %v1194 = vpop.f32.mrf.mxu0
    %v1195 = vadd.f32 %v713, %v1194
    %1196 = vmatmul.f32.gmra.mxu0 %v947
    %v1197 = vpop.f32.mrf.mxu0
    %v1198 = vadd.f32 %v716, %v1197
    %1199 = vmatmul.f32.gmra.mxu0 %v950
    %v1200 = vpop.f32.mrf.mxu0
    %v1201 = vadd.f32 %v719, %v1200
    %1202 = vmatmul.f32.gmra.mxu0 %v953
    %v1203 = vpop.f32.mrf.mxu0
    %v1204 = vadd.f32 %v722, %v1203
    %1205 = vmatmul.f32.gmra.mxu0 %v956
    %v1206 = vpop.f32.mrf.mxu0
    %v1207 = vadd.f32 %v725, %v1206
    %1208 = vmatmul.f32.gmra.mxu0 %v959
    %v1209 = vpop.f32.mrf.mxu0
    %v1210 = vadd.f32 %v728, %v1209
    %1211 = vmatmul.f32.gmra.mxu0 %v962
    %v1212 = vpop.f32.mrf.mxu0
    %v1213 = vadd.f32 %v731, %v1212
    %1214 = vmatmul.f32.gmra.mxu0 %v965
    %v1215 = vpop.f32.mrf.mxu0
    %v1216 = vadd.f32 %v734, %v1215
    %1217 = vmatmul.f32.gmra.mxu0 %v968
    %v1218 = vpop.f32.mrf.mxu0
    %v1219 = vadd.f32 %v737, %v1218
    %1220 = vmatmul.f32.gmra.mxu0 %v971
    %v1221 = vpop.f32.mrf.mxu0
    %v1222 = vadd.f32 %v740, %v1221
    %1223 = vmatmul.f32.gmra.mxu0 %v974
    %v1224 = vpop.f32.mrf.mxu0
    %v1225 = vadd.f32 %v743, %v1224
    %1226 = vmatmul.f32.gmra.mxu0 %v977
    %v1227 = vpop.f32.mrf.mxu0
    %v1228 = vadd.f32 %v746, %v1227
    %1229 = vmatmul.f32.gmra.mxu0 %v980
    %v1230 = vpop.f32.mrf.mxu0
    %v1231 = vadd.f32 %v749, %v1230
    %1232 = vdwg.mxu0
    %v1233 = vld [vmem:[%s0 + $0x2] sm:$0xff]
    %v1234 = vld [vmem:[%s0 + $0xa] sm:$0xff]
    %v1235 = vld [vmem:[%s0 + $0x12] sm:$0xff]
    %v1236 = vld [vmem:[%s0 + $0x1a] sm:$0xff]
    %v1237 = vld [vmem:[%s0 + $0x22] sm:$0xff]
    %v1238 = vld [vmem:[%s0 + $0x2a] sm:$0xff]
    %v1239 = vld [vmem:[%s0 + $0x32] sm:$0xff]
    %v1240 = vld [vmem:[%s0 + $0x3a] sm:$0xff]
    %v1241 = vld [vmem:[%s0 + $0x42] sm:$0xff]
    %v1242 = vld [vmem:[%s0 + $0x4a] sm:$0xff]
    %v1243 = vld [vmem:[%s0 + $0x52] sm:$0xff]
    %v1244 = vld [vmem:[%s0 + $0x5a] sm:$0xff]
    %v1245 = vld [vmem:[%s0 + $0x62] sm:$0xff]
    %v1246 = vld [vmem:[%s0 + $0x6a] sm:$0xff]
    %v1247 = vld [vmem:[%s0 + $0x72] sm:$0xff]
    %v1248 = vld [vmem:[%s0 + $0x7a] sm:$0xff]
    %v1249 = vld [vmem:[%s0 + $0x82] sm:$0xff]
    %v1250 = vld [vmem:[%s0 + $0x8a] sm:$0xff]
    %v1251 = vld [vmem:[%s0 + $0x92] sm:$0xff]
    %v1252 = vld [vmem:[%s0 + $0x9a] sm:$0xff]
    %v1253 = vld [vmem:[%s0 + $0xa2] sm:$0xff]
    %v1254 = vld [vmem:[%s0 + $0xaa] sm:$0xff]
    %v1255 = vld [vmem:[%s0 + $0xb2] sm:$0xff]
    %v1256 = vld [vmem:[%s0 + $0xba] sm:$0xff]
    %v1257 = vld [vmem:[%s0 + $0xc2] sm:$0xff]
    %v1258 = vld [vmem:[%s0 + $0xca] sm:$0xff]
    %v1259 = vld [vmem:[%s0 + $0xd2] sm:$0xff]
    %v1260 = vld [vmem:[%s0 + $0xda] sm:$0xff]
    %v1261 = vld [vmem:[%s0 + $0xe2] sm:$0xff]
    %v1262 = vld [vmem:[%s0 + $0xea] sm:$0xff]
    %v1263 = vld [vmem:[%s0 + $0xf2] sm:$0xff]
    %v1264 = vld [vmem:[%s0 + $0xfa] sm:$0xff]
    %v1265 = vld [vmem:[%s0 + $0x102] sm:$0xff]
    %v1266 = vld [vmem:[%s0 + $0x10a] sm:$0xff]
    %v1267 = vld [vmem:[%s0 + $0x112] sm:$0xff]
    %v1268 = vld [vmem:[%s0 + $0x11a] sm:$0xff]
    %v1269 = vld [vmem:[%s0 + $0x122] sm:$0xff]
    %v1270 = vld [vmem:[%s0 + $0x12a] sm:$0xff]
    %v1271 = vld [vmem:[%s0 + $0x132] sm:$0xff]
    %v1272 = vld [vmem:[%s0 + $0x13a] sm:$0xff]
    %v1273 = vld [vmem:[%s0 + $0x142] sm:$0xff]
    %v1274 = vld [vmem:[%s0 + $0x14a] sm:$0xff]
    %v1275 = vld [vmem:[%s0 + $0x152] sm:$0xff]
    %v1276 = vld [vmem:[%s0 + $0x15a] sm:$0xff]
    %v1277 = vld [vmem:[%s0 + $0x162] sm:$0xff]
    %v1278 = vld [vmem:[%s0 + $0x16a] sm:$0xff]
    %v1279 = vld [vmem:[%s0 + $0x172] sm:$0xff]
    %v1280 = vld [vmem:[%s0 + $0x17a] sm:$0xff]
    %v1281 = vld [vmem:[%s0 + $0x182] sm:$0xff]
    %v1282 = vld [vmem:[%s0 + $0x18a] sm:$0xff]
    %v1283 = vld [vmem:[%s0 + $0x192] sm:$0xff]
    %v1284 = vld [vmem:[%s0 + $0x19a] sm:$0xff]
    %v1285 = vld [vmem:[%s0 + $0x1a2] sm:$0xff]
    %v1286 = vld [vmem:[%s0 + $0x1aa] sm:$0xff]
    %v1287 = vld [vmem:[%s0 + $0x1b2] sm:$0xff]
    %v1288 = vld [vmem:[%s0 + $0x1ba] sm:$0xff]
    %v1289 = vld [vmem:[%s0 + $0x1c2] sm:$0xff]
    %v1290 = vld [vmem:[%s0 + $0x1ca] sm:$0xff]
    %v1291 = vld [vmem:[%s0 + $0x1d2] sm:$0xff]
    %v1292 = vld [vmem:[%s0 + $0x1da] sm:$0xff]
    %v1293 = vld [vmem:[%s0 + $0x1e2] sm:$0xff]
    %v1294 = vld [vmem:[%s0 + $0x1ea] sm:$0xff]
    %v1295 = vld [vmem:[%s0 + $0x1f2] sm:$0xff]
    %v1296 = vld [vmem:[%s0 + $0x1fa] sm:$0xff]
    %v1297 = vld [vmem:[%s0 + $0x202] sm:$0xff]
    %v1298 = vld [vmem:[%s0 + $0x20a] sm:$0xff]
    %v1299 = vld [vmem:[%s0 + $0x212] sm:$0xff]
    %v1300 = vld [vmem:[%s0 + $0x21a] sm:$0xff]
    %v1301 = vld [vmem:[%s0 + $0x222] sm:$0xff]
    %v1302 = vld [vmem:[%s0 + $0x22a] sm:$0xff]
    %v1303 = vld [vmem:[%s0 + $0x232] sm:$0xff]
    %v1304 = vld [vmem:[%s0 + $0x23a] sm:$0xff]
    %v1305 = vld [vmem:[%s0 + $0x242] sm:$0xff]
    %v1306 = vld [vmem:[%s0 + $0x24a] sm:$0xff]
    %v1307 = vld [vmem:[%s0 + $0x252] sm:$0xff]
    %v1308 = vld [vmem:[%s0 + $0x25a] sm:$0xff]
    %v1309 = vld [vmem:[%s0 + $0x262] sm:$0x3]
    %s1310 = scalar_lea.vmem %s1, 8
    %v1311 = vld [vmem:[%s1310] sm:$0x7]
    %v1313 = vsel %vm267, %v1233, 0
    %v1316 = vsel %vm267, %v1234, 0
    %v1319 = vsel %vm267, %v1235, 0
    %v1322 = vsel %vm267, %v1236, 0
    %v1325 = vsel %vm267, %v1237, 0
    %v1328 = vsel %vm267, %v1238, 0
    %v1331 = vsel %vm267, %v1239, 0
    %v1334 = vsel %vm267, %v1240, 0
    %v1337 = vsel %vm267, %v1241, 0
    %v1340 = vsel %vm267, %v1242, 0
    %v1343 = vsel %vm267, %v1243, 0
    %v1346 = vsel %vm267, %v1244, 0
    %v1349 = vsel %vm267, %v1245, 0
    %v1352 = vsel %vm267, %v1246, 0
    %v1355 = vsel %vm267, %v1247, 0
    %v1358 = vsel %vm267, %v1248, 0
    %v1361 = vsel %vm267, %v1249, 0
    %v1364 = vsel %vm267, %v1250, 0
    %v1367 = vsel %vm267, %v1251, 0
    %v1370 = vsel %vm267, %v1252, 0
    %v1373 = vsel %vm267, %v1253, 0
    %v1376 = vsel %vm267, %v1254, 0
    %v1379 = vsel %vm267, %v1255, 0
    %v1382 = vsel %vm267, %v1256, 0
    %v1385 = vsel %vm267, %v1257, 0
    %v1388 = vsel %vm267, %v1258, 0
    %v1391 = vsel %vm267, %v1259, 0
    %v1394 = vsel %vm267, %v1260, 0
    %v1397 = vsel %vm267, %v1261, 0
    %v1400 = vsel %vm267, %v1262, 0
    %v1403 = vsel %vm267, %v1263, 0
    %v1406 = vsel %vm267, %v1264, 0
    %v1409 = vsel %vm267, %v1265, 0
    %v1412 = vsel %vm267, %v1266, 0
    %v1415 = vsel %vm267, %v1267, 0
    %v1418 = vsel %vm267, %v1268, 0
    %v1421 = vsel %vm267, %v1269, 0
    %v1424 = vsel %vm267, %v1270, 0
    %v1427 = vsel %vm267, %v1271, 0
    %v1430 = vsel %vm267, %v1272, 0
    %v1433 = vsel %vm267, %v1273, 0
    %v1436 = vsel %vm267, %v1274, 0
    %v1439 = vsel %vm267, %v1275, 0
    %v1442 = vsel %vm267, %v1276, 0
    %v1445 = vsel %vm267, %v1277, 0
    %v1448 = vsel %vm267, %v1278, 0
    %v1451 = vsel %vm267, %v1279, 0
    %v1454 = vsel %vm267, %v1280, 0
    %v1457 = vsel %vm267, %v1281, 0
    %v1460 = vsel %vm267, %v1282, 0
    %v1463 = vsel %vm267, %v1283, 0
    %v1466 = vsel %vm267, %v1284, 0
    %v1469 = vsel %vm267, %v1285, 0
    %v1472 = vsel %vm267, %v1286, 0
    %v1475 = vsel %vm267, %v1287, 0
    %v1478 = vsel %vm267, %v1288, 0
    %v1481 = vsel %vm267, %v1289, 0
    %v1484 = vsel %vm267, %v1290, 0
    %v1487 = vsel %vm267, %v1291, 0
    %v1490 = vsel %vm267, %v1292, 0
    %v1493 = vsel %vm267, %v1293, 0
    %v1496 = vsel %vm267, %v1294, 0
    %v1499 = vsel %vm267, %v1295, 0
    %v1502 = vsel %vm267, %v1296, 0
    %v1505 = vsel %vm267, %v1297, 0
    %v1508 = vsel %vm267, %v1298, 0
    %v1511 = vsel %vm267, %v1299, 0
    %v1514 = vsel %vm267, %v1300, 0
    %v1517 = vsel %vm267, %v1301, 0
    %v1520 = vsel %vm267, %v1302, 0
    %v1523 = vsel %vm267, %v1303, 0
    %v1526 = vsel %vm267, %v1304, 0
    %v1529 = vsel %vm267, %v1305, 0
    %v1532 = vsel %vm267, %v1306, 0
    %v1535 = vsel %vm267, %v1307, 0
    %v1538 = vsel %vm267, %v1308, 0
    %v1541 = vsel %vm267, %v1309, 0
    %v1544 = vsel %vm499, %v1311, 0
    %1546 = vmatpush.msra.mxu0 0.0
    %1547 = vmatpush.msra.mxu0 0.0
    %1548 = vmatpush.msra.mxu0 0.0
    %1549 = vmatpush.msra.mxu0 0.0
    %1550 = vmatpush.msra.mxu0 0.0
    %1551 = vmatpush.msra.mxu0 0.0
    %1552 = vmatpush.msra.mxu0 0.0
    %1553 = vmatpush.msra.mxu0 0.0
    %1554 = vmatpush.msra.mxu0 0.0
    %1555 = vmatpush.msra.mxu0 0.0
    %1556 = vmatpush.msra.mxu0 0.0
    %1557 = vmatpush.msra.mxu0 0.0
    %1558 = vmatpush.msra.mxu0 0.0
    %1559 = vmatpush.msra.mxu0 0.0
    %1560 = vmatpush.msra.mxu0 0.0
    %1561 = vmatpush.msra.mxu0 %v1544
    %1562 = vmatmul.f32.gmra.mxu0 %v1313
    %v1563 = vpop.f32.mrf.mxu0
    %v1564 = vadd.f32 0.0, %v1563
    %1565 = vmatmul.f32.gmra.mxu0 %v1316
    %v1566 = vpop.f32.mrf.mxu0
    %v1567 = vadd.f32 0.0, %v1566
    %1568 = vmatmul.f32.gmra.mxu0 %v1319
    %v1569 = vpop.f32.mrf.mxu0
    %v1570 = vadd.f32 0.0, %v1569
    %1571 = vmatmul.f32.gmra.mxu0 %v1322
    %v1572 = vpop.f32.mrf.mxu0
    %v1573 = vadd.f32 0.0, %v1572
    %1574 = vmatmul.f32.gmra.mxu0 %v1325
    %v1575 = vpop.f32.mrf.mxu0
    %v1576 = vadd.f32 0.0, %v1575
    %1577 = vmatmul.f32.gmra.mxu0 %v1328
    %v1578 = vpop.f32.mrf.mxu0
    %v1579 = vadd.f32 0.0, %v1578
    %1580 = vmatmul.f32.gmra.mxu0 %v1331
    %v1581 = vpop.f32.mrf.mxu0
    %v1582 = vadd.f32 0.0, %v1581
    %1583 = vmatmul.f32.gmra.mxu0 %v1334
    %v1584 = vpop.f32.mrf.mxu0
    %v1585 = vadd.f32 0.0, %v1584
    %1586 = vmatmul.f32.gmra.mxu0 %v1337
    %v1587 = vpop.f32.mrf.mxu0
    %v1588 = vadd.f32 0.0, %v1587
    %1589 = vmatmul.f32.gmra.mxu0 %v1340
    %v1590 = vpop.f32.mrf.mxu0
    %v1591 = vadd.f32 0.0, %v1590
    %1592 = vmatmul.f32.gmra.mxu0 %v1343
    %v1593 = vpop.f32.mrf.mxu0
    %v1594 = vadd.f32 0.0, %v1593
    %1595 = vmatmul.f32.gmra.mxu0 %v1346
    %v1596 = vpop.f32.mrf.mxu0
    %v1597 = vadd.f32 0.0, %v1596
    %1598 = vmatmul.f32.gmra.mxu0 %v1349
    %v1599 = vpop.f32.mrf.mxu0
    %v1600 = vadd.f32 0.0, %v1599
    %1601 = vmatmul.f32.gmra.mxu0 %v1352
    %v1602 = vpop.f32.mrf.mxu0
    %v1603 = vadd.f32 0.0, %v1602
    %1604 = vmatmul.f32.gmra.mxu0 %v1355
    %v1605 = vpop.f32.mrf.mxu0
    %v1606 = vadd.f32 0.0, %v1605
    %1607 = vmatmul.f32.gmra.mxu0 %v1358
    %v1608 = vpop.f32.mrf.mxu0
    %v1609 = vadd.f32 0.0, %v1608
    %1610 = vmatmul.f32.gmra.mxu0 %v1361
    %v1611 = vpop.f32.mrf.mxu0
    %v1612 = vadd.f32 0.0, %v1611
    %1613 = vmatmul.f32.gmra.mxu0 %v1364
    %v1614 = vpop.f32.mrf.mxu0
    %v1615 = vadd.f32 0.0, %v1614
    %1616 = vmatmul.f32.gmra.mxu0 %v1367
    %v1617 = vpop.f32.mrf.mxu0
    %v1618 = vadd.f32 0.0, %v1617
    %1619 = vmatmul.f32.gmra.mxu0 %v1370
    %v1620 = vpop.f32.mrf.mxu0
    %v1621 = vadd.f32 0.0, %v1620
    %1622 = vmatmul.f32.gmra.mxu0 %v1373
    %v1623 = vpop.f32.mrf.mxu0
    %v1624 = vadd.f32 0.0, %v1623
    %1625 = vmatmul.f32.gmra.mxu0 %v1376
    %v1626 = vpop.f32.mrf.mxu0
    %v1627 = vadd.f32 0.0, %v1626
    %1628 = vmatmul.f32.gmra.mxu0 %v1379
    %v1629 = vpop.f32.mrf.mxu0
    %v1630 = vadd.f32 0.0, %v1629
    %1631 = vmatmul.f32.gmra.mxu0 %v1382
    %v1632 = vpop.f32.mrf.mxu0
    %v1633 = vadd.f32 0.0, %v1632
    %1634 = vmatmul.f32.gmra.mxu0 %v1385
    %v1635 = vpop.f32.mrf.mxu0
    %v1636 = vadd.f32 0.0, %v1635
    %1637 = vmatmul.f32.gmra.mxu0 %v1388
    %v1638 = vpop.f32.mrf.mxu0
    %v1639 = vadd.f32 0.0, %v1638
    %1640 = vmatmul.f32.gmra.mxu0 %v1391
    %v1641 = vpop.f32.mrf.mxu0
    %v1642 = vadd.f32 0.0, %v1641
    %1643 = vmatmul.f32.gmra.mxu0 %v1394
    %v1644 = vpop.f32.mrf.mxu0
    %v1645 = vadd.f32 0.0, %v1644
    %1646 = vmatmul.f32.gmra.mxu0 %v1397
    %v1647 = vpop.f32.mrf.mxu0
    %v1648 = vadd.f32 0.0, %v1647
    %1649 = vmatmul.f32.gmra.mxu0 %v1400
    %v1650 = vpop.f32.mrf.mxu0
    %v1651 = vadd.f32 0.0, %v1650
    %1652 = vmatmul.f32.gmra.mxu0 %v1403
    %v1653 = vpop.f32.mrf.mxu0
    %v1654 = vadd.f32 0.0, %v1653
    %1655 = vmatmul.f32.gmra.mxu0 %v1406
    %v1656 = vpop.f32.mrf.mxu0
    %v1657 = vadd.f32 0.0, %v1656
    %1658 = vmatmul.f32.gmra.mxu0 %v1409
    %v1659 = vpop.f32.mrf.mxu0
    %v1660 = vadd.f32 0.0, %v1659
    %1661 = vmatmul.f32.gmra.mxu0 %v1412
    %v1662 = vpop.f32.mrf.mxu0
    %v1663 = vadd.f32 0.0, %v1662
    %1664 = vmatmul.f32.gmra.mxu0 %v1415
    %v1665 = vpop.f32.mrf.mxu0
    %v1666 = vadd.f32 0.0, %v1665
    %1667 = vmatmul.f32.gmra.mxu0 %v1418
    %v1668 = vpop.f32.mrf.mxu0
    %v1669 = vadd.f32 0.0, %v1668
    %1670 = vmatmul.f32.gmra.mxu0 %v1421
    %v1671 = vpop.f32.mrf.mxu0
    %v1672 = vadd.f32 0.0, %v1671
    %1673 = vmatmul.f32.gmra.mxu0 %v1424
    %v1674 = vpop.f32.mrf.mxu0
    %v1675 = vadd.f32 0.0, %v1674
    %1676 = vmatmul.f32.gmra.mxu0 %v1427
    %v1677 = vpop.f32.mrf.mxu0
    %v1678 = vadd.f32 0.0, %v1677
    %1679 = vmatmul.f32.gmra.mxu0 %v1430
    %v1680 = vpop.f32.mrf.mxu0
    %v1681 = vadd.f32 0.0, %v1680
    %1682 = vmatmul.f32.gmra.mxu0 %v1433
    %v1683 = vpop.f32.mrf.mxu0
    %v1684 = vadd.f32 0.0, %v1683
    %1685 = vmatmul.f32.gmra.mxu0 %v1436
    %v1686 = vpop.f32.mrf.mxu0
    %v1687 = vadd.f32 0.0, %v1686
    %1688 = vmatmul.f32.gmra.mxu0 %v1439
    %v1689 = vpop.f32.mrf.mxu0
    %v1690 = vadd.f32 0.0, %v1689
    %1691 = vmatmul.f32.gmra.mxu0 %v1442
    %v1692 = vpop.f32.mrf.mxu0
    %v1693 = vadd.f32 0.0, %v1692
    %1694 = vmatmul.f32.gmra.mxu0 %v1445
    %v1695 = vpop.f32.mrf.mxu0
    %v1696 = vadd.f32 0.0, %v1695
    %1697 = vmatmul.f32.gmra.mxu0 %v1448
    %v1698 = vpop.f32.mrf.mxu0
    %v1699 = vadd.f32 0.0, %v1698
    %1700 = vmatmul.f32.gmra.mxu0 %v1451
    %v1701 = vpop.f32.mrf.mxu0
    %v1702 = vadd.f32 0.0, %v1701
    %1703 = vmatmul.f32.gmra.mxu0 %v1454
    %v1704 = vpop.f32.mrf.mxu0
    %v1705 = vadd.f32 0.0, %v1704
    %1706 = vmatmul.f32.gmra.mxu0 %v1457
    %v1707 = vpop.f32.mrf.mxu0
    %v1708 = vadd.f32 0.0, %v1707
    %1709 = vmatmul.f32.gmra.mxu0 %v1460
    %v1710 = vpop.f32.mrf.mxu0
    %v1711 = vadd.f32 0.0, %v1710
    %1712 = vmatmul.f32.gmra.mxu0 %v1463
    %v1713 = vpop.f32.mrf.mxu0
    %v1714 = vadd.f32 0.0, %v1713
    %1715 = vmatmul.f32.gmra.mxu0 %v1466
    %v1716 = vpop.f32.mrf.mxu0
    %v1717 = vadd.f32 0.0, %v1716
    %1718 = vmatmul.f32.gmra.mxu0 %v1469
    %v1719 = vpop.f32.mrf.mxu0
    %v1720 = vadd.f32 0.0, %v1719
    %1721 = vmatmul.f32.gmra.mxu0 %v1472
    %v1722 = vpop.f32.mrf.mxu0
    %v1723 = vadd.f32 0.0, %v1722
    %1724 = vmatmul.f32.gmra.mxu0 %v1475
    %v1725 = vpop.f32.mrf.mxu0
    %v1726 = vadd.f32 0.0, %v1725
    %1727 = vmatmul.f32.gmra.mxu0 %v1478
    %v1728 = vpop.f32.mrf.mxu0
    %v1729 = vadd.f32 0.0, %v1728
    %1730 = vmatmul.f32.gmra.mxu0 %v1481
    %v1731 = vpop.f32.mrf.mxu0
    %v1732 = vadd.f32 0.0, %v1731
    %1733 = vmatmul.f32.gmra.mxu0 %v1484
    %v1734 = vpop.f32.mrf.mxu0
    %v1735 = vadd.f32 0.0, %v1734
    %1736 = vmatmul.f32.gmra.mxu0 %v1487
    %v1737 = vpop.f32.mrf.mxu0
    %v1738 = vadd.f32 0.0, %v1737
    %1739 = vmatmul.f32.gmra.mxu0 %v1490
    %v1740 = vpop.f32.mrf.mxu0
    %v1741 = vadd.f32 0.0, %v1740
    %1742 = vmatmul.f32.gmra.mxu0 %v1493
    %v1743 = vpop.f32.mrf.mxu0
    %v1744 = vadd.f32 0.0, %v1743
    %1745 = vmatmul.f32.gmra.mxu0 %v1496
    %v1746 = vpop.f32.mrf.mxu0
    %v1747 = vadd.f32 0.0, %v1746
    %1748 = vmatmul.f32.gmra.mxu0 %v1499
    %v1749 = vpop.f32.mrf.mxu0
    %v1750 = vadd.f32 0.0, %v1749
    %1751 = vmatmul.f32.gmra.mxu0 %v1502
    %v1752 = vpop.f32.mrf.mxu0
    %v1753 = vadd.f32 0.0, %v1752
    %1754 = vmatmul.f32.gmra.mxu0 %v1505
    %v1755 = vpop.f32.mrf.mxu0
    %v1756 = vadd.f32 0.0, %v1755
    %1757 = vmatmul.f32.gmra.mxu0 %v1508
    %v1758 = vpop.f32.mrf.mxu0
    %v1759 = vadd.f32 0.0, %v1758
    %1760 = vmatmul.f32.gmra.mxu0 %v1511
    %v1761 = vpop.f32.mrf.mxu0
    %v1762 = vadd.f32 0.0, %v1761
    %1763 = vmatmul.f32.gmra.mxu0 %v1514
    %v1764 = vpop.f32.mrf.mxu0
    %v1765 = vadd.f32 0.0, %v1764
    %1766 = vmatmul.f32.gmra.mxu0 %v1517
    %v1767 = vpop.f32.mrf.mxu0
    %v1768 = vadd.f32 0.0, %v1767
    %1769 = vmatmul.f32.gmra.mxu0 %v1520
    %v1770 = vpop.f32.mrf.mxu0
    %v1771 = vadd.f32 0.0, %v1770
    %1772 = vmatmul.f32.gmra.mxu0 %v1523
    %v1773 = vpop.f32.mrf.mxu0
    %v1774 = vadd.f32 0.0, %v1773
    %1775 = vmatmul.f32.gmra.mxu0 %v1526
    %v1776 = vpop.f32.mrf.mxu0
    %v1777 = vadd.f32 0.0, %v1776
    %1778 = vmatmul.f32.gmra.mxu0 %v1529
    %v1779 = vpop.f32.mrf.mxu0
    %v1780 = vadd.f32 0.0, %v1779
    %1781 = vmatmul.f32.gmra.mxu0 %v1532
    %v1782 = vpop.f32.mrf.mxu0
    %v1783 = vadd.f32 0.0, %v1782
    %1784 = vmatmul.f32.gmra.mxu0 %v1535
    %v1785 = vpop.f32.mrf.mxu0
    %v1786 = vadd.f32 0.0, %v1785
    %1787 = vmatmul.f32.gmra.mxu0 %v1538
    %v1788 = vpop.f32.mrf.mxu0
    %v1789 = vadd.f32 0.0, %v1788
    %1790 = vmatmul.f32.gmra.mxu0 %v1541
    %v1791 = vpop.f32.mrf.mxu0
    %v1792 = vadd.f32 0.0, %v1791
    %1793 = vdwg.mxu0
    %v1794 = vadd.f32 %v1003, %v1564
    %v1795 = vadd.f32 %v1006, %v1567
    %v1796 = vadd.f32 %v1009, %v1570
    %v1797 = vadd.f32 %v1012, %v1573
    %v1798 = vadd.f32 %v1015, %v1576
    %v1799 = vadd.f32 %v1018, %v1579
    %v1800 = vadd.f32 %v1021, %v1582
    %v1801 = vadd.f32 %v1024, %v1585
    %v1802 = vadd.f32 %v1027, %v1588
    %v1803 = vadd.f32 %v1030, %v1591
    %v1804 = vadd.f32 %v1033, %v1594
    %v1805 = vadd.f32 %v1036, %v1597
    %v1806 = vadd.f32 %v1039, %v1600
    %v1807 = vadd.f32 %v1042, %v1603
    %v1808 = vadd.f32 %v1045, %v1606
    %v1809 = vadd.f32 %v1048, %v1609
    %v1810 = vadd.f32 %v1051, %v1612
    %v1811 = vadd.f32 %v1054, %v1615
    %v1812 = vadd.f32 %v1057, %v1618
    %v1813 = vadd.f32 %v1060, %v1621
    %v1814 = vadd.f32 %v1063, %v1624
    %v1815 = vadd.f32 %v1066, %v1627
    %v1816 = vadd.f32 %v1069, %v1630
    %v1817 = vadd.f32 %v1072, %v1633
    %v1818 = vadd.f32 %v1075, %v1636
    %v1819 = vadd.f32 %v1078, %v1639
    %v1820 = vadd.f32 %v1081, %v1642
    %v1821 = vadd.f32 %v1084, %v1645
    %v1822 = vadd.f32 %v1087, %v1648
    %v1823 = vadd.f32 %v1090, %v1651
    %v1824 = vadd.f32 %v1093, %v1654
    %v1825 = vadd.f32 %v1096, %v1657
    %v1826 = vadd.f32 %v1099, %v1660
    %v1827 = vadd.f32 %v1102, %v1663
    %v1828 = vadd.f32 %v1105, %v1666
    %v1829 = vadd.f32 %v1108, %v1669
    %v1830 = vadd.f32 %v1111, %v1672
    %v1831 = vadd.f32 %v1114, %v1675
    %v1832 = vadd.f32 %v1117, %v1678
    %v1833 = vadd.f32 %v1120, %v1681
    %v1834 = vadd.f32 %v1123, %v1684
    %v1835 = vadd.f32 %v1126, %v1687
    %v1836 = vadd.f32 %v1129, %v1690
    %v1837 = vadd.f32 %v1132, %v1693
    %v1838 = vadd.f32 %v1135, %v1696
    %v1839 = vadd.f32 %v1138, %v1699
    %v1840 = vadd.f32 %v1141, %v1702
    %v1841 = vadd.f32 %v1144, %v1705
    %v1842 = vadd.f32 %v1147, %v1708
    %v1843 = vadd.f32 %v1150, %v1711
    %v1844 = vadd.f32 %v1153, %v1714
    %v1845 = vadd.f32 %v1156, %v1717
    %v1846 = vadd.f32 %v1159, %v1720
    %v1847 = vadd.f32 %v1162, %v1723
    %v1848 = vadd.f32 %v1165, %v1726
    %v1849 = vadd.f32 %v1168, %v1729
    %v1850 = vadd.f32 %v1171, %v1732
    %v1851 = vadd.f32 %v1174, %v1735
    %v1852 = vadd.f32 %v1177, %v1738
    %v1853 = vadd.f32 %v1180, %v1741
    %v1854 = vadd.f32 %v1183, %v1744
    %v1855 = vadd.f32 %v1186, %v1747
    %v1856 = vadd.f32 %v1189, %v1750
    %v1857 = vadd.f32 %v1192, %v1753
    %v1858 = vadd.f32 %v1195, %v1756
    %v1859 = vadd.f32 %v1198, %v1759
    %v1860 = vadd.f32 %v1201, %v1762
    %v1861 = vadd.f32 %v1204, %v1765
    %v1862 = vadd.f32 %v1207, %v1768
    %v1863 = vadd.f32 %v1210, %v1771
    %v1864 = vadd.f32 %v1213, %v1774
    %v1865 = vadd.f32 %v1216, %v1777
    %v1866 = vadd.f32 %v1219, %v1780
    %v1867 = vadd.f32 %v1222, %v1783
    %v1868 = vadd.f32 %v1225, %v1786
    %v1869 = vadd.f32 %v1228, %v1789
    %v1870 = vadd.f32 %v1231, %v1792
    %v1871 = vld [vmem:[%s0 + $0x12] sm:$0xff]
    %v1872 = vld [vmem:[%s0 + $0x1a] sm:$0xff]
    %v1873 = vld [vmem:[%s0 + $0x22] sm:$0xff]
    %v1874 = vld [vmem:[%s0 + $0x2a] sm:$0xff]
    %v1875 = vld [vmem:[%s0 + $0x32] sm:$0xff]
    %v1876 = vld [vmem:[%s0 + $0x3a] sm:$0xff]
    %v1877 = vld [vmem:[%s0 + $0x42] sm:$0xff]
    %v1878 = vld [vmem:[%s0 + $0x4a] sm:$0xff]
    %v1879 = vld [vmem:[%s0 + $0x52] sm:$0xff]
    %v1880 = vld [vmem:[%s0 + $0x5a] sm:$0xff]
    %v1881 = vld [vmem:[%s0 + $0x62] sm:$0xff]
    %v1882 = vld [vmem:[%s0 + $0x6a] sm:$0xff]
    %v1883 = vld [vmem:[%s0 + $0x72] sm:$0xff]
    %v1884 = vld [vmem:[%s0 + $0x7a] sm:$0xff]
    %v1885 = vld [vmem:[%s0 + $0x82] sm:$0xff]
    %v1886 = vld [vmem:[%s0 + $0x8a] sm:$0xff]
    %v1887 = vld [vmem:[%s0 + $0x92] sm:$0xff]
    %v1888 = vld [vmem:[%s0 + $0x9a] sm:$0xff]
    %v1889 = vld [vmem:[%s0 + $0xa2] sm:$0xff]
    %v1890 = vld [vmem:[%s0 + $0xaa] sm:$0xff]
    %v1891 = vld [vmem:[%s0 + $0xb2] sm:$0xff]
    %v1892 = vld [vmem:[%s0 + $0xba] sm:$0xff]
    %v1893 = vld [vmem:[%s0 + $0xc2] sm:$0xff]
    %v1894 = vld [vmem:[%s0 + $0xca] sm:$0xff]
    %v1895 = vld [vmem:[%s0 + $0xd2] sm:$0xff]
    %v1896 = vld [vmem:[%s0 + $0xda] sm:$0xff]
    %v1897 = vld [vmem:[%s0 + $0xe2] sm:$0xff]
    %v1898 = vld [vmem:[%s0 + $0xea] sm:$0xff]
    %v1899 = vld [vmem:[%s0 + $0xf2] sm:$0xff]
    %v1900 = vld [vmem:[%s0 + $0xfa] sm:$0xff]
    %v1901 = vld [vmem:[%s0 + $0x102] sm:$0xff]
    %v1902 = vld [vmem:[%s0 + $0x10a] sm:$0xff]
    %v1903 = vld [vmem:[%s0 + $0x112] sm:$0xff]
    %v1904 = vld [vmem:[%s0 + $0x11a] sm:$0xff]
    %v1905 = vld [vmem:[%s0 + $0x122] sm:$0xff]
    %v1906 = vld [vmem:[%s0 + $0x12a] sm:$0xff]
    %v1907 = vld [vmem:[%s0 + $0x132] sm:$0xff]
    %v1908 = vld [vmem:[%s0 + $0x13a] sm:$0xff]
    %v1909 = vld [vmem:[%s0 + $0x142] sm:$0xff]
    %v1910 = vld [vmem:[%s0 + $0x14a] sm:$0xff]
    %v1911 = vld [vmem:[%s0 + $0x152] sm:$0xff]
    %v1912 = vld [vmem:[%s0 + $0x15a] sm:$0xff]
    %v1913 = vld [vmem:[%s0 + $0x162] sm:$0xff]
    %v1914 = vld [vmem:[%s0 + $0x16a] sm:$0xff]
    %v1915 = vld [vmem:[%s0 + $0x172] sm:$0xff]
    %v1916 = vld [vmem:[%s0 + $0x17a] sm:$0xff]
    %v1917 = vld [vmem:[%s0 + $0x182] sm:$0xff]
    %v1918 = vld [vmem:[%s0 + $0x18a] sm:$0xff]
    %v1919 = vld [vmem:[%s0 + $0x192] sm:$0xff]
    %v1920 = vld [vmem:[%s0 + $0x19a] sm:$0xff]
    %v1921 = vld [vmem:[%s0 + $0x1a2] sm:$0xff]
    %v1922 = vld [vmem:[%s0 + $0x1aa] sm:$0xff]
    %v1923 = vld [vmem:[%s0 + $0x1b2] sm:$0xff]
    %v1924 = vld [vmem:[%s0 + $0x1ba] sm:$0xff]
    %v1925 = vld [vmem:[%s0 + $0x1c2] sm:$0xff]
    %v1926 = vld [vmem:[%s0 + $0x1ca] sm:$0xff]
    %v1927 = vld [vmem:[%s0 + $0x1d2] sm:$0xff]
    %v1928 = vld [vmem:[%s0 + $0x1da] sm:$0xff]
    %v1929 = vld [vmem:[%s0 + $0x1e2] sm:$0xff]
    %v1930 = vld [vmem:[%s0 + $0x1ea] sm:$0xff]
    %v1931 = vld [vmem:[%s0 + $0x1f2] sm:$0xff]
    %v1932 = vld [vmem:[%s0 + $0x1fa] sm:$0xff]
    %v1933 = vld [vmem:[%s0 + $0x202] sm:$0xff]
    %v1934 = vld [vmem:[%s0 + $0x20a] sm:$0xff]
    %v1935 = vld [vmem:[%s0 + $0x212] sm:$0xff]
    %v1936 = vld [vmem:[%s0 + $0x21a] sm:$0xff]
    %v1937 = vld [vmem:[%s0 + $0x222] sm:$0xff]
    %v1938 = vld [vmem:[%s0 + $0x22a] sm:$0xff]
    %v1939 = vld [vmem:[%s0 + $0x232] sm:$0xff]
    %v1940 = vld [vmem:[%s0 + $0x23a] sm:$0xff]
    %v1941 = vld [vmem:[%s0 + $0x242] sm:$0xff]
    %v1942 = vld [vmem:[%s0 + $0x24a] sm:$0xff]
    %v1943 = vld [vmem:[%s0 + $0x252] sm:$0xff]
    %v1944 = vld [vmem:[%s0 + $0x25a] sm:$0xff]
    %v1945 = vld [vmem:[%s0 + $0x262] sm:$0xff]
    %v1946 = vld [vmem:[%s0 + $0x26a] sm:$0xff]
    %v1947 = vld [vmem:[%s0 + $0x272] sm:$0x3]
    %s1948 = scalar_lea.vmem %s1, 12
    %v1949 = vld [vmem:[%s1948] sm:$0x7]
    %v1951 = vsel %vm267, %v1871, 0
    %v1954 = vsel %vm267, %v1872, 0
    %v1957 = vsel %vm267, %v1873, 0
    %v1960 = vsel %vm267, %v1874, 0
    %v1963 = vsel %vm267, %v1875, 0
    %v1966 = vsel %vm267, %v1876, 0
    %v1969 = vsel %vm267, %v1877, 0
    %v1972 = vsel %vm267, %v1878, 0
    %v1975 = vsel %vm267, %v1879, 0
    %v1978 = vsel %vm267, %v1880, 0
    %v1981 = vsel %vm267, %v1881, 0
    %v1984 = vsel %vm267, %v1882, 0
    %v1987 = vsel %vm267, %v1883, 0
    %v1990 = vsel %vm267, %v1884, 0
    %v1993 = vsel %vm267, %v1885, 0
    %v1996 = vsel %vm267, %v1886, 0
    %v1999 = vsel %vm267, %v1887, 0
    %v2002 = vsel %vm267, %v1888, 0
    %v2005 = vsel %vm267, %v1889, 0
    %v2008 = vsel %vm267, %v1890, 0
    %v2011 = vsel %vm267, %v1891, 0
    %v2014 = vsel %vm267, %v1892, 0
    %v2017 = vsel %vm267, %v1893, 0
    %v2020 = vsel %vm267, %v1894, 0
    %v2023 = vsel %vm267, %v1895, 0
    %v2026 = vsel %vm267, %v1896, 0
    %v2029 = vsel %vm267, %v1897, 0
    %v2032 = vsel %vm267, %v1898, 0
    %v2035 = vsel %vm267, %v1899, 0
    %v2038 = vsel %vm267, %v1900, 0
    %v2041 = vsel %vm267, %v1901, 0
    %v2044 = vsel %vm267, %v1902, 0
    %v2047 = vsel %vm267, %v1903, 0
    %v2050 = vsel %vm267, %v1904, 0
    %v2053 = vsel %vm267, %v1905, 0
    %v2056 = vsel %vm267, %v1906, 0
    %v2059 = vsel %vm267, %v1907, 0
    %v2062 = vsel %vm267, %v1908, 0
    %v2065 = vsel %vm267, %v1909, 0
    %v2068 = vsel %vm267, %v1910, 0
    %v2071 = vsel %vm267, %v1911, 0
    %v2074 = vsel %vm267, %v1912, 0
    %v2077 = vsel %vm267, %v1913, 0
    %v2080 = vsel %vm267, %v1914, 0
    %v2083 = vsel %vm267, %v1915, 0
    %v2086 = vsel %vm267, %v1916, 0
    %v2089 = vsel %vm267, %v1917, 0
    %v2092 = vsel %vm267, %v1918, 0
    %v2095 = vsel %vm267, %v1919, 0
    %v2098 = vsel %vm267, %v1920, 0
    %v2101 = vsel %vm267, %v1921, 0
    %v2104 = vsel %vm267, %v1922, 0
    %v2107 = vsel %vm267, %v1923, 0
    %v2110 = vsel %vm267, %v1924, 0
    %v2113 = vsel %vm267, %v1925, 0
    %v2116 = vsel %vm267, %v1926, 0
    %v2119 = vsel %vm267, %v1927, 0
    %v2122 = vsel %vm267, %v1928, 0
    %v2125 = vsel %vm267, %v1929, 0
    %v2128 = vsel %vm267, %v1930, 0
    %v2131 = vsel %vm267, %v1931, 0
    %v2134 = vsel %vm267, %v1932, 0
    %v2137 = vsel %vm267, %v1933, 0
    %v2140 = vsel %vm267, %v1934, 0
    %v2143 = vsel %vm267, %v1935, 0
    %v2146 = vsel %vm267, %v1936, 0
    %v2149 = vsel %vm267, %v1937, 0
    %v2152 = vsel %vm267, %v1938, 0
    %v2155 = vsel %vm267, %v1939, 0
    %v2158 = vsel %vm267, %v1940, 0
    %v2161 = vsel %vm267, %v1941, 0
    %v2164 = vsel %vm267, %v1942, 0
    %v2167 = vsel %vm267, %v1943, 0
    %v2170 = vsel %vm267, %v1944, 0
    %v2173 = vsel %vm267, %v1945, 0
    %v2176 = vsel %vm267, %v1946, 0
    %v2179 = vsel %vm267, %v1947, 0
    %v2182 = vsel %vm499, %v1949, 0
    %2184 = vmatpush.msra.mxu0 0.0
    %2185 = vmatpush.msra.mxu0 0.0
    %2186 = vmatpush.msra.mxu0 0.0
    %2187 = vmatpush.msra.mxu0 0.0
    %2188 = vmatpush.msra.mxu0 0.0
    %2189 = vmatpush.msra.mxu0 0.0
    %2190 = vmatpush.msra.mxu0 0.0
    %2191 = vmatpush.msra.mxu0 0.0
    %2192 = vmatpush.msra.mxu0 0.0
    %2193 = vmatpush.msra.mxu0 0.0
    %2194 = vmatpush.msra.mxu0 0.0
    %2195 = vmatpush.msra.mxu0 0.0
    %2196 = vmatpush.msra.mxu0 0.0
    %2197 = vmatpush.msra.mxu0 0.0
    %2198 = vmatpush.msra.mxu0 0.0
    %2199 = vmatpush.msra.mxu0 %v2182
    %2200 = vmatmul.f32.gmra.mxu0 %v1951
    %v2201 = vpop.f32.mrf.mxu0
    %v2202 = vadd.f32 0.0, %v2201
    %2203 = vmatmul.f32.gmra.mxu0 %v1954
    %v2204 = vpop.f32.mrf.mxu0
    %v2205 = vadd.f32 0.0, %v2204
    %2206 = vmatmul.f32.gmra.mxu0 %v1957
    %v2207 = vpop.f32.mrf.mxu0
    %v2208 = vadd.f32 0.0, %v2207
    %2209 = vmatmul.f32.gmra.mxu0 %v1960
    %v2210 = vpop.f32.mrf.mxu0
    %v2211 = vadd.f32 0.0, %v2210
    %2212 = vmatmul.f32.gmra.mxu0 %v1963
    %v2213 = vpop.f32.mrf.mxu0
    %v2214 = vadd.f32 0.0, %v2213
    %2215 = vmatmul.f32.gmra.mxu0 %v1966
    %v2216 = vpop.f32.mrf.mxu0
    %v2217 = vadd.f32 0.0, %v2216
    %2218 = vmatmul.f32.gmra.mxu0 %v1969
    %v2219 = vpop.f32.mrf.mxu0
    %v2220 = vadd.f32 0.0, %v2219
    %2221 = vmatmul.f32.gmra.mxu0 %v1972
    %v2222 = vpop.f32.mrf.mxu0
    %v2223 = vadd.f32 0.0, %v2222
    %2224 = vmatmul.f32.gmra.mxu0 %v1975
    %v2225 = vpop.f32.mrf.mxu0
    %v2226 = vadd.f32 0.0, %v2225
    %2227 = vmatmul.f32.gmra.mxu0 %v1978
    %v2228 = vpop.f32.mrf.mxu0
    %v2229 = vadd.f32 0.0, %v2228
    %2230 = vmatmul.f32.gmra.mxu0 %v1981
    %v2231 = vpop.f32.mrf.mxu0
    %v2232 = vadd.f32 0.0, %v2231
    %2233 = vmatmul.f32.gmra.mxu0 %v1984
    %v2234 = vpop.f32.mrf.mxu0
    %v2235 = vadd.f32 0.0, %v2234
    %2236 = vmatmul.f32.gmra.mxu0 %v1987
    %v2237 = vpop.f32.mrf.mxu0
    %v2238 = vadd.f32 0.0, %v2237
    %2239 = vmatmul.f32.gmra.mxu0 %v1990
    %v2240 = vpop.f32.mrf.mxu0
    %v2241 = vadd.f32 0.0, %v2240
    %2242 = vmatmul.f32.gmra.mxu0 %v1993
    %v2243 = vpop.f32.mrf.mxu0
    %v2244 = vadd.f32 0.0, %v2243
    %2245 = vmatmul.f32.gmra.mxu0 %v1996
    %v2246 = vpop.f32.mrf.mxu0
    %v2247 = vadd.f32 0.0, %v2246
    %2248 = vmatmul.f32.gmra.mxu0 %v1999
    %v2249 = vpop.f32.mrf.mxu0
    %v2250 = vadd.f32 0.0, %v2249
    %2251 = vmatmul.f32.gmra.mxu0 %v2002
    %v2252 = vpop.f32.mrf.mxu0
    %v2253 = vadd.f32 0.0, %v2252
    %2254 = vmatmul.f32.gmra.mxu0 %v2005
    %v2255 = vpop.f32.mrf.mxu0
    %v2256 = vadd.f32 0.0, %v2255
    %2257 = vmatmul.f32.gmra.mxu0 %v2008
    %v2258 = vpop.f32.mrf.mxu0
    %v2259 = vadd.f32 0.0, %v2258
    %2260 = vmatmul.f32.gmra.mxu0 %v2011
    %v2261 = vpop.f32.mrf.mxu0
    %v2262 = vadd.f32 0.0, %v2261
    %2263 = vmatmul.f32.gmra.mxu0 %v2014
    %v2264 = vpop.f32.mrf.mxu0
    %v2265 = vadd.f32 0.0, %v2264
    %2266 = vmatmul.f32.gmra.mxu0 %v2017
    %v2267 = vpop.f32.mrf.mxu0
    %v2268 = vadd.f32 0.0, %v2267
    %2269 = vmatmul.f32.gmra.mxu0 %v2020
    %v2270 = vpop.f32.mrf.mxu0
    %v2271 = vadd.f32 0.0, %v2270
    %2272 = vmatmul.f32.gmra.mxu0 %v2023
    %v2273 = vpop.f32.mrf.mxu0
    %v2274 = vadd.f32 0.0, %v2273
    %2275 = vmatmul.f32.gmra.mxu0 %v2026
    %v2276 = vpop.f32.mrf.mxu0
    %v2277 = vadd.f32 0.0, %v2276
    %2278 = vmatmul.f32.gmra.mxu0 %v2029
    %v2279 = vpop.f32.mrf.mxu0
    %v2280 = vadd.f32 0.0, %v2279
    %2281 = vmatmul.f32.gmra.mxu0 %v2032
    %v2282 = vpop.f32.mrf.mxu0
    %v2283 = vadd.f32 0.0, %v2282
    %2284 = vmatmul.f32.gmra.mxu0 %v2035
    %v2285 = vpop.f32.mrf.mxu0
    %v2286 = vadd.f32 0.0, %v2285
    %2287 = vmatmul.f32.gmra.mxu0 %v2038
    %v2288 = vpop.f32.mrf.mxu0
    %v2289 = vadd.f32 0.0, %v2288
    %2290 = vmatmul.f32.gmra.mxu0 %v2041
    %v2291 = vpop.f32.mrf.mxu0
    %v2292 = vadd.f32 0.0, %v2291
    %2293 = vmatmul.f32.gmra.mxu0 %v2044
    %v2294 = vpop.f32.mrf.mxu0
    %v2295 = vadd.f32 0.0, %v2294
    %2296 = vmatmul.f32.gmra.mxu0 %v2047
    %v2297 = vpop.f32.mrf.mxu0
    %v2298 = vadd.f32 0.0, %v2297
    %2299 = vmatmul.f32.gmra.mxu0 %v2050
    %v2300 = vpop.f32.mrf.mxu0
    %v2301 = vadd.f32 0.0, %v2300
    %2302 = vmatmul.f32.gmra.mxu0 %v2053
    %v2303 = vpop.f32.mrf.mxu0
    %v2304 = vadd.f32 0.0, %v2303
    %2305 = vmatmul.f32.gmra.mxu0 %v2056
    %v2306 = vpop.f32.mrf.mxu0
    %v2307 = vadd.f32 0.0, %v2306
    %2308 = vmatmul.f32.gmra.mxu0 %v2059
    %v2309 = vpop.f32.mrf.mxu0
    %v2310 = vadd.f32 0.0, %v2309
    %2311 = vmatmul.f32.gmra.mxu0 %v2062
    %v2312 = vpop.f32.mrf.mxu0
    %v2313 = vadd.f32 0.0, %v2312
    %2314 = vmatmul.f32.gmra.mxu0 %v2065
    %v2315 = vpop.f32.mrf.mxu0
    %v2316 = vadd.f32 0.0, %v2315
    %2317 = vmatmul.f32.gmra.mxu0 %v2068
    %v2318 = vpop.f32.mrf.mxu0
    %v2319 = vadd.f32 0.0, %v2318
    %2320 = vmatmul.f32.gmra.mxu0 %v2071
    %v2321 = vpop.f32.mrf.mxu0
    %v2322 = vadd.f32 0.0, %v2321
    %2323 = vmatmul.f32.gmra.mxu0 %v2074
    %v2324 = vpop.f32.mrf.mxu0
    %v2325 = vadd.f32 0.0, %v2324
    %2326 = vmatmul.f32.gmra.mxu0 %v2077
    %v2327 = vpop.f32.mrf.mxu0
    %v2328 = vadd.f32 0.0, %v2327
    %2329 = vmatmul.f32.gmra.mxu0 %v2080
    %v2330 = vpop.f32.mrf.mxu0
    %v2331 = vadd.f32 0.0, %v2330
    %2332 = vmatmul.f32.gmra.mxu0 %v2083
    %v2333 = vpop.f32.mrf.mxu0
    %v2334 = vadd.f32 0.0, %v2333
    %2335 = vmatmul.f32.gmra.mxu0 %v2086
    %v2336 = vpop.f32.mrf.mxu0
    %v2337 = vadd.f32 0.0, %v2336
    %2338 = vmatmul.f32.gmra.mxu0 %v2089
    %v2339 = vpop.f32.mrf.mxu0
    %v2340 = vadd.f32 0.0, %v2339
    %2341 = vmatmul.f32.gmra.mxu0 %v2092
    %v2342 = vpop.f32.mrf.mxu0
    %v2343 = vadd.f32 0.0, %v2342
    %2344 = vmatmul.f32.gmra.mxu0 %v2095
    %v2345 = vpop.f32.mrf.mxu0
    %v2346 = vadd.f32 0.0, %v2345
    %2347 = vmatmul.f32.gmra.mxu0 %v2098
    %v2348 = vpop.f32.mrf.mxu0
    %v2349 = vadd.f32 0.0, %v2348
    %2350 = vmatmul.f32.gmra.mxu0 %v2101
    %v2351 = vpop.f32.mrf.mxu0
    %v2352 = vadd.f32 0.0, %v2351
    %2353 = vmatmul.f32.gmra.mxu0 %v2104
    %v2354 = vpop.f32.mrf.mxu0
    %v2355 = vadd.f32 0.0, %v2354
    %2356 = vmatmul.f32.gmra.mxu0 %v2107
    %v2357 = vpop.f32.mrf.mxu0
    %v2358 = vadd.f32 0.0, %v2357
    %2359 = vmatmul.f32.gmra.mxu0 %v2110
    %v2360 = vpop.f32.mrf.mxu0
    %v2361 = vadd.f32 0.0, %v2360
    %2362 = vmatmul.f32.gmra.mxu0 %v2113
    %v2363 = vpop.f32.mrf.mxu0
    %v2364 = vadd.f32 0.0, %v2363
    %2365 = vmatmul.f32.gmra.mxu0 %v2116
    %v2366 = vpop.f32.mrf.mxu0
    %v2367 = vadd.f32 0.0, %v2366
    %2368 = vmatmul.f32.gmra.mxu0 %v2119
    %v2369 = vpop.f32.mrf.mxu0
    %v2370 = vadd.f32 0.0, %v2369
    %2371 = vmatmul.f32.gmra.mxu0 %v2122
    %v2372 = vpop.f32.mrf.mxu0
    %v2373 = vadd.f32 0.0, %v2372
    %2374 = vmatmul.f32.gmra.mxu0 %v2125
    %v2375 = vpop.f32.mrf.mxu0
    %v2376 = vadd.f32 0.0, %v2375
    %2377 = vmatmul.f32.gmra.mxu0 %v2128
    %v2378 = vpop.f32.mrf.mxu0
    %v2379 = vadd.f32 0.0, %v2378
    %2380 = vmatmul.f32.gmra.mxu0 %v2131
    %v2381 = vpop.f32.mrf.mxu0
    %v2382 = vadd.f32 0.0, %v2381
    %2383 = vmatmul.f32.gmra.mxu0 %v2134
    %v2384 = vpop.f32.mrf.mxu0
    %v2385 = vadd.f32 0.0, %v2384
    %2386 = vmatmul.f32.gmra.mxu0 %v2137
    %v2387 = vpop.f32.mrf.mxu0
    %v2388 = vadd.f32 0.0, %v2387
    %2389 = vmatmul.f32.gmra.mxu0 %v2140
    %v2390 = vpop.f32.mrf.mxu0
    %v2391 = vadd.f32 0.0, %v2390
    %2392 = vmatmul.f32.gmra.mxu0 %v2143
    %v2393 = vpop.f32.mrf.mxu0
    %v2394 = vadd.f32 0.0, %v2393
    %2395 = vmatmul.f32.gmra.mxu0 %v2146
    %v2396 = vpop.f32.mrf.mxu0
    %v2397 = vadd.f32 0.0, %v2396
    %2398 = vmatmul.f32.gmra.mxu0 %v2149
    %v2399 = vpop.f32.mrf.mxu0
    %v2400 = vadd.f32 0.0, %v2399
    %2401 = vmatmul.f32.gmra.mxu0 %v2152
    %v2402 = vpop.f32.mrf.mxu0
    %v2403 = vadd.f32 0.0, %v2402
    %2404 = vmatmul.f32.gmra.mxu0 %v2155
    %v2405 = vpop.f32.mrf.mxu0
    %v2406 = vadd.f32 0.0, %v2405
    %2407 = vmatmul.f32.gmra.mxu0 %v2158
    %v2408 = vpop.f32.mrf.mxu0
    %v2409 = vadd.f32 0.0, %v2408
    %2410 = vmatmul.f32.gmra.mxu0 %v2161
    %v2411 = vpop.f32.mrf.mxu0
    %v2412 = vadd.f32 0.0, %v2411
    %2413 = vmatmul.f32.gmra.mxu0 %v2164
    %v2414 = vpop.f32.mrf.mxu0
    %v2415 = vadd.f32 0.0, %v2414
    %2416 = vmatmul.f32.gmra.mxu0 %v2167
    %v2417 = vpop.f32.mrf.mxu0
    %v2418 = vadd.f32 0.0, %v2417
    %2419 = vmatmul.f32.gmra.mxu0 %v2170
    %v2420 = vpop.f32.mrf.mxu0
    %v2421 = vadd.f32 0.0, %v2420
    %2422 = vmatmul.f32.gmra.mxu0 %v2173
    %v2423 = vpop.f32.mrf.mxu0
    %v2424 = vadd.f32 0.0, %v2423
    %2425 = vmatmul.f32.gmra.mxu0 %v2176
    %v2426 = vpop.f32.mrf.mxu0
    %v2427 = vadd.f32 0.0, %v2426
    %2428 = vmatmul.f32.gmra.mxu0 %v2179
    %v2429 = vpop.f32.mrf.mxu0
    %v2430 = vadd.f32 0.0, %v2429
    %2431 = vdwg.mxu0
    %v2432 = vadd.f32 %v1794, %v2202
    %v2433 = vadd.f32 %v1795, %v2205
    %v2434 = vadd.f32 %v1796, %v2208
    %v2435 = vadd.f32 %v1797, %v2211
    %v2436 = vadd.f32 %v1798, %v2214
    %v2437 = vadd.f32 %v1799, %v2217
    %v2438 = vadd.f32 %v1800, %v2220
    %v2439 = vadd.f32 %v1801, %v2223
    %v2440 = vadd.f32 %v1802, %v2226
    %v2441 = vadd.f32 %v1803, %v2229
    %v2442 = vadd.f32 %v1804, %v2232
    %v2443 = vadd.f32 %v1805, %v2235
    %v2444 = vadd.f32 %v1806, %v2238
    %v2445 = vadd.f32 %v1807, %v2241
    %v2446 = vadd.f32 %v1808, %v2244
    %v2447 = vadd.f32 %v1809, %v2247
    %v2448 = vadd.f32 %v1810, %v2250
    %v2449 = vadd.f32 %v1811, %v2253
    %v2450 = vadd.f32 %v1812, %v2256
    %v2451 = vadd.f32 %v1813, %v2259
    %v2452 = vadd.f32 %v1814, %v2262
    %v2453 = vadd.f32 %v1815, %v2265
    %v2454 = vadd.f32 %v1816, %v2268
    %v2455 = vadd.f32 %v1817, %v2271
    %v2456 = vadd.f32 %v1818, %v2274
    %v2457 = vadd.f32 %v1819, %v2277
    %v2458 = vadd.f32 %v1820, %v2280
    %v2459 = vadd.f32 %v1821, %v2283
    %v2460 = vadd.f32 %v1822, %v2286
    %v2461 = vadd.f32 %v1823, %v2289
    %v2462 = vadd.f32 %v1824, %v2292
    %v2463 = vadd.f32 %v1825, %v2295
    %v2464 = vadd.f32 %v1826, %v2298
    %v2465 = vadd.f32 %v1827, %v2301
    %v2466 = vadd.f32 %v1828, %v2304
    %v2467 = vadd.f32 %v1829, %v2307
    %v2468 = vadd.f32 %v1830, %v2310
    %v2469 = vadd.f32 %v1831, %v2313
    %v2470 = vadd.f32 %v1832, %v2316
    %v2471 = vadd.f32 %v1833, %v2319
    %v2472 = vadd.f32 %v1834, %v2322
    %v2473 = vadd.f32 %v1835, %v2325
    %v2474 = vadd.f32 %v1836, %v2328
    %v2475 = vadd.f32 %v1837, %v2331
    %v2476 = vadd.f32 %v1838, %v2334
    %v2477 = vadd.f32 %v1839, %v2337
    %v2478 = vadd.f32 %v1840, %v2340
    %v2479 = vadd.f32 %v1841, %v2343
    %v2480 = vadd.f32 %v1842, %v2346
    %v2481 = vadd.f32 %v1843, %v2349
    %v2482 = vadd.f32 %v1844, %v2352
    %v2483 = vadd.f32 %v1845, %v2355
    %v2484 = vadd.f32 %v1846, %v2358
    %v2485 = vadd.f32 %v1847, %v2361
    %v2486 = vadd.f32 %v1848, %v2364
    %v2487 = vadd.f32 %v1849, %v2367
    %v2488 = vadd.f32 %v1850, %v2370
    %v2489 = vadd.f32 %v1851, %v2373
    %v2490 = vadd.f32 %v1852, %v2376
    %v2491 = vadd.f32 %v1853, %v2379
    %v2492 = vadd.f32 %v1854, %v2382
    %v2493 = vadd.f32 %v1855, %v2385
    %v2494 = vadd.f32 %v1856, %v2388
    %v2495 = vadd.f32 %v1857, %v2391
    %v2496 = vadd.f32 %v1858, %v2394
    %v2497 = vadd.f32 %v1859, %v2397
    %v2498 = vadd.f32 %v1860, %v2400
    %v2499 = vadd.f32 %v1861, %v2403
    %v2500 = vadd.f32 %v1862, %v2406
    %v2501 = vadd.f32 %v1863, %v2409
    %v2502 = vadd.f32 %v1864, %v2412
    %v2503 = vadd.f32 %v1865, %v2415
    %v2504 = vadd.f32 %v1866, %v2418
    %v2505 = vadd.f32 %v1867, %v2421
    %v2506 = vadd.f32 %v1868, %v2424
    %v2507 = vadd.f32 %v1869, %v2427
    %v2508 = vadd.f32 %v1870, %v2430
    %v2509 = vld [vmem:[%s0 + $0x13] sm:$0xff]
    %v2510 = vld [vmem:[%s0 + $0x1b] sm:$0xff]
    %v2511 = vld [vmem:[%s0 + $0x23] sm:$0xff]
    %v2512 = vld [vmem:[%s0 + $0x2b] sm:$0xff]
    %v2513 = vld [vmem:[%s0 + $0x33] sm:$0xff]
    %v2514 = vld [vmem:[%s0 + $0x3b] sm:$0xff]
    %v2515 = vld [vmem:[%s0 + $0x43] sm:$0xff]
    %v2516 = vld [vmem:[%s0 + $0x4b] sm:$0xff]
    %v2517 = vld [vmem:[%s0 + $0x53] sm:$0xff]
    %v2518 = vld [vmem:[%s0 + $0x5b] sm:$0xff]
    %v2519 = vld [vmem:[%s0 + $0x63] sm:$0xff]
    %v2520 = vld [vmem:[%s0 + $0x6b] sm:$0xff]
    %v2521 = vld [vmem:[%s0 + $0x73] sm:$0xff]
    %v2522 = vld [vmem:[%s0 + $0x7b] sm:$0xff]
    %v2523 = vld [vmem:[%s0 + $0x83] sm:$0xff]
    %v2524 = vld [vmem:[%s0 + $0x8b] sm:$0xff]
    %v2525 = vld [vmem:[%s0 + $0x93] sm:$0xff]
    %v2526 = vld [vmem:[%s0 + $0x9b] sm:$0xff]
    %v2527 = vld [vmem:[%s0 + $0xa3] sm:$0xff]
    %v2528 = vld [vmem:[%s0 + $0xab] sm:$0xff]
    %v2529 = vld [vmem:[%s0 + $0xb3] sm:$0xff]
    %v2530 = vld [vmem:[%s0 + $0xbb] sm:$0xff]
    %v2531 = vld [vmem:[%s0 + $0xc3] sm:$0xff]
    %v2532 = vld [vmem:[%s0 + $0xcb] sm:$0xff]
    %v2533 = vld [vmem:[%s0 + $0xd3] sm:$0xff]
    %v2534 = vld [vmem:[%s0 + $0xdb] sm:$0xff]
    %v2535 = vld [vmem:[%s0 + $0xe3] sm:$0xff]
    %v2536 = vld [vmem:[%s0 + $0xeb] sm:$0xff]
    %v2537 = vld [vmem:[%s0 + $0xf3] sm:$0xff]
    %v2538 = vld [vmem:[%s0 + $0xfb] sm:$0xff]
    %v2539 = vld [vmem:[%s0 + $0x103] sm:$0xff]
    %v2540 = vld [vmem:[%s0 + $0x10b] sm:$0xff]
    %v2541 = vld [vmem:[%s0 + $0x113] sm:$0xff]
    %v2542 = vld [vmem:[%s0 + $0x11b] sm:$0xff]
    %v2543 = vld [vmem:[%s0 + $0x123] sm:$0xff]
    %v2544 = vld [vmem:[%s0 + $0x12b] sm:$0xff]
    %v2545 = vld [vmem:[%s0 + $0x133] sm:$0xff]
    %v2546 = vld [vmem:[%s0 + $0x13b] sm:$0xff]
    %v2547 = vld [vmem:[%s0 + $0x143] sm:$0xff]
    %v2548 = vld [vmem:[%s0 + $0x14b] sm:$0xff]
    %v2549 = vld [vmem:[%s0 + $0x153] sm:$0xff]
    %v2550 = vld [vmem:[%s0 + $0x15b] sm:$0xff]
    %v2551 = vld [vmem:[%s0 + $0x163] sm:$0xff]
    %v2552 = vld [vmem:[%s0 + $0x16b] sm:$0xff]
    %v2553 = vld [vmem:[%s0 + $0x173] sm:$0xff]
    %v2554 = vld [vmem:[%s0 + $0x17b] sm:$0xff]
    %v2555 = vld [vmem:[%s0 + $0x183] sm:$0xff]
    %v2556 = vld [vmem:[%s0 + $0x18b] sm:$0xff]
    %v2557 = vld [vmem:[%s0 + $0x193] sm:$0xff]
    %v2558 = vld [vmem:[%s0 + $0x19b] sm:$0xff]
    %v2559 = vld [vmem:[%s0 + $0x1a3] sm:$0xff]
    %v2560 = vld [vmem:[%s0 + $0x1ab] sm:$0xff]
    %v2561 = vld [vmem:[%s0 + $0x1b3] sm:$0xff]
    %v2562 = vld [vmem:[%s0 + $0x1bb] sm:$0xff]
    %v2563 = vld [vmem:[%s0 + $0x1c3] sm:$0xff]
    %v2564 = vld [vmem:[%s0 + $0x1cb] sm:$0xff]
    %v2565 = vld [vmem:[%s0 + $0x1d3] sm:$0xff]
    %v2566 = vld [vmem:[%s0 + $0x1db] sm:$0xff]
    %v2567 = vld [vmem:[%s0 + $0x1e3] sm:$0xff]
    %v2568 = vld [vmem:[%s0 + $0x1eb] sm:$0xff]
    %v2569 = vld [vmem:[%s0 + $0x1f3] sm:$0xff]
    %v2570 = vld [vmem:[%s0 + $0x1fb] sm:$0xff]
    %v2571 = vld [vmem:[%s0 + $0x203] sm:$0xff]
    %v2572 = vld [vmem:[%s0 + $0x20b] sm:$0xff]
    %v2573 = vld [vmem:[%s0 + $0x213] sm:$0xff]
    %v2574 = vld [vmem:[%s0 + $0x21b] sm:$0xff]
    %v2575 = vld [vmem:[%s0 + $0x223] sm:$0xff]
    %v2576 = vld [vmem:[%s0 + $0x22b] sm:$0xff]
    %v2577 = vld [vmem:[%s0 + $0x233] sm:$0xff]
    %v2578 = vld [vmem:[%s0 + $0x23b] sm:$0xff]
    %v2579 = vld [vmem:[%s0 + $0x243] sm:$0xff]
    %v2580 = vld [vmem:[%s0 + $0x24b] sm:$0xff]
    %v2581 = vld [vmem:[%s0 + $0x253] sm:$0xff]
    %v2582 = vld [vmem:[%s0 + $0x25b] sm:$0xff]
    %v2583 = vld [vmem:[%s0 + $0x263] sm:$0xff]
    %v2584 = vld [vmem:[%s0 + $0x26b] sm:$0xff]
    %v2585 = vld [vmem:[%s0 + $0x273] sm:$0x3]
    %s2586 = scalar_lea.vmem %s1, 16
    %v2587 = vld [vmem:[%s2586] sm:$0x7]
    %v2589 = vsel %vm267, %v2509, 0
    %v2592 = vsel %vm267, %v2510, 0
    %v2595 = vsel %vm267, %v2511, 0
    %v2598 = vsel %vm267, %v2512, 0
    %v2601 = vsel %vm267, %v2513, 0
    %v2604 = vsel %vm267, %v2514, 0
    %v2607 = vsel %vm267, %v2515, 0
    %v2610 = vsel %vm267, %v2516, 0
    %v2613 = vsel %vm267, %v2517, 0
    %v2616 = vsel %vm267, %v2518, 0
    %v2619 = vsel %vm267, %v2519, 0
    %v2622 = vsel %vm267, %v2520, 0
    %v2625 = vsel %vm267, %v2521, 0
    %v2628 = vsel %vm267, %v2522, 0
    %v2631 = vsel %vm267, %v2523, 0
    %v2634 = vsel %vm267, %v2524, 0
    %v2637 = vsel %vm267, %v2525, 0
    %v2640 = vsel %vm267, %v2526, 0
    %v2643 = vsel %vm267, %v2527, 0
    %v2646 = vsel %vm267, %v2528, 0
    %v2649 = vsel %vm267, %v2529, 0
    %v2652 = vsel %vm267, %v2530, 0
    %v2655 = vsel %vm267, %v2531, 0
    %v2658 = vsel %vm267, %v2532, 0
    %v2661 = vsel %vm267, %v2533, 0
    %v2664 = vsel %vm267, %v2534, 0
    %v2667 = vsel %vm267, %v2535, 0
    %v2670 = vsel %vm267, %v2536, 0
    %v2673 = vsel %vm267, %v2537, 0
    %v2676 = vsel %vm267, %v2538, 0
    %v2679 = vsel %vm267, %v2539, 0
    %v2682 = vsel %vm267, %v2540, 0
    %v2685 = vsel %vm267, %v2541, 0
    %v2688 = vsel %vm267, %v2542, 0
    %v2691 = vsel %vm267, %v2543, 0
    %v2694 = vsel %vm267, %v2544, 0
    %v2697 = vsel %vm267, %v2545, 0
    %v2700 = vsel %vm267, %v2546, 0
    %v2703 = vsel %vm267, %v2547, 0
    %v2706 = vsel %vm267, %v2548, 0
    %v2709 = vsel %vm267, %v2549, 0
    %v2712 = vsel %vm267, %v2550, 0
    %v2715 = vsel %vm267, %v2551, 0
    %v2718 = vsel %vm267, %v2552, 0
    %v2721 = vsel %vm267, %v2553, 0
    %v2724 = vsel %vm267, %v2554, 0
    %v2727 = vsel %vm267, %v2555, 0
    %v2730 = vsel %vm267, %v2556, 0
    %v2733 = vsel %vm267, %v2557, 0
    %v2736 = vsel %vm267, %v2558, 0
    %v2739 = vsel %vm267, %v2559, 0
    %v2742 = vsel %vm267, %v2560, 0
    %v2745 = vsel %vm267, %v2561, 0
    %v2748 = vsel %vm267, %v2562, 0
    %v2751 = vsel %vm267, %v2563, 0
    %v2754 = vsel %vm267, %v2564, 0
    %v2757 = vsel %vm267, %v2565, 0
    %v2760 = vsel %vm267, %v2566, 0
    %v2763 = vsel %vm267, %v2567, 0
    %v2766 = vsel %vm267, %v2568, 0
    %v2769 = vsel %vm267, %v2569, 0
    %v2772 = vsel %vm267, %v2570, 0
    %v2775 = vsel %vm267, %v2571, 0
    %v2778 = vsel %vm267, %v2572, 0
    %v2781 = vsel %vm267, %v2573, 0
    %v2784 = vsel %vm267, %v2574, 0
    %v2787 = vsel %vm267, %v2575, 0
    %v2790 = vsel %vm267, %v2576, 0
    %v2793 = vsel %vm267, %v2577, 0
    %v2796 = vsel %vm267, %v2578, 0
    %v2799 = vsel %vm267, %v2579, 0
    %v2802 = vsel %vm267, %v2580, 0
    %v2805 = vsel %vm267, %v2581, 0
    %v2808 = vsel %vm267, %v2582, 0
    %v2811 = vsel %vm267, %v2583, 0
    %v2814 = vsel %vm267, %v2584, 0
    %v2817 = vsel %vm267, %v2585, 0
    %v2820 = vsel %vm499, %v2587, 0
    %2822 = vmatpush.msra.mxu0 0.0
    %2823 = vmatpush.msra.mxu0 0.0
    %2824 = vmatpush.msra.mxu0 0.0
    %2825 = vmatpush.msra.mxu0 0.0
    %2826 = vmatpush.msra.mxu0 0.0
    %2827 = vmatpush.msra.mxu0 0.0
    %2828 = vmatpush.msra.mxu0 0.0
    %2829 = vmatpush.msra.mxu0 0.0
    %2830 = vmatpush.msra.mxu0 0.0
    %2831 = vmatpush.msra.mxu0 0.0
    %2832 = vmatpush.msra.mxu0 0.0
    %2833 = vmatpush.msra.mxu0 0.0
    %2834 = vmatpush.msra.mxu0 0.0
    %2835 = vmatpush.msra.mxu0 0.0
    %2836 = vmatpush.msra.mxu0 0.0
    %2837 = vmatpush.msra.mxu0 %v2820
    %2838 = vmatmul.f32.gmra.mxu0 %v2589
    %v2839 = vpop.f32.mrf.mxu0
    %v2840 = vadd.f32 0.0, %v2839
    %2841 = vmatmul.f32.gmra.mxu0 %v2592
    %v2842 = vpop.f32.mrf.mxu0
    %v2843 = vadd.f32 0.0, %v2842
    %2844 = vmatmul.f32.gmra.mxu0 %v2595
    %v2845 = vpop.f32.mrf.mxu0
    %v2846 = vadd.f32 0.0, %v2845
    %2847 = vmatmul.f32.gmra.mxu0 %v2598
    %v2848 = vpop.f32.mrf.mxu0
    %v2849 = vadd.f32 0.0, %v2848
    %2850 = vmatmul.f32.gmra.mxu0 %v2601
    %v2851 = vpop.f32.mrf.mxu0
    %v2852 = vadd.f32 0.0, %v2851
    %2853 = vmatmul.f32.gmra.mxu0 %v2604
    %v2854 = vpop.f32.mrf.mxu0
    %v2855 = vadd.f32 0.0, %v2854
    %2856 = vmatmul.f32.gmra.mxu0 %v2607
    %v2857 = vpop.f32.mrf.mxu0
    %v2858 = vadd.f32 0.0, %v2857
    %2859 = vmatmul.f32.gmra.mxu0 %v2610
    %v2860 = vpop.f32.mrf.mxu0
    %v2861 = vadd.f32 0.0, %v2860
    %2862 = vmatmul.f32.gmra.mxu0 %v2613
    %v2863 = vpop.f32.mrf.mxu0
    %v2864 = vadd.f32 0.0, %v2863
    %2865 = vmatmul.f32.gmra.mxu0 %v2616
    %v2866 = vpop.f32.mrf.mxu0
    %v2867 = vadd.f32 0.0, %v2866
    %2868 = vmatmul.f32.gmra.mxu0 %v2619
    %v2869 = vpop.f32.mrf.mxu0
    %v2870 = vadd.f32 0.0, %v2869
    %2871 = vmatmul.f32.gmra.mxu0 %v2622
    %v2872 = vpop.f32.mrf.mxu0
    %v2873 = vadd.f32 0.0, %v2872
    %2874 = vmatmul.f32.gmra.mxu0 %v2625
    %v2875 = vpop.f32.mrf.mxu0
    %v2876 = vadd.f32 0.0, %v2875
    %2877 = vmatmul.f32.gmra.mxu0 %v2628
    %v2878 = vpop.f32.mrf.mxu0
    %v2879 = vadd.f32 0.0, %v2878
    %2880 = vmatmul.f32.gmra.mxu0 %v2631
    %v2881 = vpop.f32.mrf.mxu0
    %v2882 = vadd.f32 0.0, %v2881
    %2883 = vmatmul.f32.gmra.mxu0 %v2634
    %v2884 = vpop.f32.mrf.mxu0
    %v2885 = vadd.f32 0.0, %v2884
    %2886 = vmatmul.f32.gmra.mxu0 %v2637
    %v2887 = vpop.f32.mrf.mxu0
    %v2888 = vadd.f32 0.0, %v2887
    %2889 = vmatmul.f32.gmra.mxu0 %v2640
    %v2890 = vpop.f32.mrf.mxu0
    %v2891 = vadd.f32 0.0, %v2890
    %2892 = vmatmul.f32.gmra.mxu0 %v2643
    %v2893 = vpop.f32.mrf.mxu0
    %v2894 = vadd.f32 0.0, %v2893
    %2895 = vmatmul.f32.gmra.mxu0 %v2646
    %v2896 = vpop.f32.mrf.mxu0
    %v2897 = vadd.f32 0.0, %v2896
    %2898 = vmatmul.f32.gmra.mxu0 %v2649
    %v2899 = vpop.f32.mrf.mxu0
    %v2900 = vadd.f32 0.0, %v2899
    %2901 = vmatmul.f32.gmra.mxu0 %v2652
    %v2902 = vpop.f32.mrf.mxu0
    %v2903 = vadd.f32 0.0, %v2902
    %2904 = vmatmul.f32.gmra.mxu0 %v2655
    %v2905 = vpop.f32.mrf.mxu0
    %v2906 = vadd.f32 0.0, %v2905
    %2907 = vmatmul.f32.gmra.mxu0 %v2658
    %v2908 = vpop.f32.mrf.mxu0
    %v2909 = vadd.f32 0.0, %v2908
    %2910 = vmatmul.f32.gmra.mxu0 %v2661
    %v2911 = vpop.f32.mrf.mxu0
    %v2912 = vadd.f32 0.0, %v2911
    %2913 = vmatmul.f32.gmra.mxu0 %v2664
    %v2914 = vpop.f32.mrf.mxu0
    %v2915 = vadd.f32 0.0, %v2914
    %2916 = vmatmul.f32.gmra.mxu0 %v2667
    %v2917 = vpop.f32.mrf.mxu0
    %v2918 = vadd.f32 0.0, %v2917
    %2919 = vmatmul.f32.gmra.mxu0 %v2670
    %v2920 = vpop.f32.mrf.mxu0
    %v2921 = vadd.f32 0.0, %v2920
    %2922 = vmatmul.f32.gmra.mxu0 %v2673
    %v2923 = vpop.f32.mrf.mxu0
    %v2924 = vadd.f32 0.0, %v2923
    %2925 = vmatmul.f32.gmra.mxu0 %v2676
    %v2926 = vpop.f32.mrf.mxu0
    %v2927 = vadd.f32 0.0, %v2926
    %2928 = vmatmul.f32.gmra.mxu0 %v2679
    %v2929 = vpop.f32.mrf.mxu0
    %v2930 = vadd.f32 0.0, %v2929
    %2931 = vmatmul.f32.gmra.mxu0 %v2682
    %v2932 = vpop.f32.mrf.mxu0
    %v2933 = vadd.f32 0.0, %v2932
    %2934 = vmatmul.f32.gmra.mxu0 %v2685
    %v2935 = vpop.f32.mrf.mxu0
    %v2936 = vadd.f32 0.0, %v2935
    %2937 = vmatmul.f32.gmra.mxu0 %v2688
    %v2938 = vpop.f32.mrf.mxu0
    %v2939 = vadd.f32 0.0, %v2938
    %2940 = vmatmul.f32.gmra.mxu0 %v2691
    %v2941 = vpop.f32.mrf.mxu0
    %v2942 = vadd.f32 0.0, %v2941
    %2943 = vmatmul.f32.gmra.mxu0 %v2694
    %v2944 = vpop.f32.mrf.mxu0
    %v2945 = vadd.f32 0.0, %v2944
    %2946 = vmatmul.f32.gmra.mxu0 %v2697
    %v2947 = vpop.f32.mrf.mxu0
    %v2948 = vadd.f32 0.0, %v2947
    %2949 = vmatmul.f32.gmra.mxu0 %v2700
    %v2950 = vpop.f32.mrf.mxu0
    %v2951 = vadd.f32 0.0, %v2950
    %2952 = vmatmul.f32.gmra.mxu0 %v2703
    %v2953 = vpop.f32.mrf.mxu0
    %v2954 = vadd.f32 0.0, %v2953
    %2955 = vmatmul.f32.gmra.mxu0 %v2706
    %v2956 = vpop.f32.mrf.mxu0
    %v2957 = vadd.f32 0.0, %v2956
    %2958 = vmatmul.f32.gmra.mxu0 %v2709
    %v2959 = vpop.f32.mrf.mxu0
    %v2960 = vadd.f32 0.0, %v2959
    %2961 = vmatmul.f32.gmra.mxu0 %v2712
    %v2962 = vpop.f32.mrf.mxu0
    %v2963 = vadd.f32 0.0, %v2962
    %2964 = vmatmul.f32.gmra.mxu0 %v2715
    %v2965 = vpop.f32.mrf.mxu0
    %v2966 = vadd.f32 0.0, %v2965
    %2967 = vmatmul.f32.gmra.mxu0 %v2718
    %v2968 = vpop.f32.mrf.mxu0
    %v2969 = vadd.f32 0.0, %v2968
    %2970 = vmatmul.f32.gmra.mxu0 %v2721
    %v2971 = vpop.f32.mrf.mxu0
    %v2972 = vadd.f32 0.0, %v2971
    %2973 = vmatmul.f32.gmra.mxu0 %v2724
    %v2974 = vpop.f32.mrf.mxu0
    %v2975 = vadd.f32 0.0, %v2974
    %2976 = vmatmul.f32.gmra.mxu0 %v2727
    %v2977 = vpop.f32.mrf.mxu0
    %v2978 = vadd.f32 0.0, %v2977
    %2979 = vmatmul.f32.gmra.mxu0 %v2730
    %v2980 = vpop.f32.mrf.mxu0
    %v2981 = vadd.f32 0.0, %v2980
    %2982 = vmatmul.f32.gmra.mxu0 %v2733
    %v2983 = vpop.f32.mrf.mxu0
    %v2984 = vadd.f32 0.0, %v2983
    %2985 = vmatmul.f32.gmra.mxu0 %v2736
    %v2986 = vpop.f32.mrf.mxu0
    %v2987 = vadd.f32 0.0, %v2986
    %2988 = vmatmul.f32.gmra.mxu0 %v2739
    %v2989 = vpop.f32.mrf.mxu0
    %v2990 = vadd.f32 0.0, %v2989
    %2991 = vmatmul.f32.gmra.mxu0 %v2742
    %v2992 = vpop.f32.mrf.mxu0
    %v2993 = vadd.f32 0.0, %v2992
    %2994 = vmatmul.f32.gmra.mxu0 %v2745
    %v2995 = vpop.f32.mrf.mxu0
    %v2996 = vadd.f32 0.0, %v2995
    %2997 = vmatmul.f32.gmra.mxu0 %v2748
    %v2998 = vpop.f32.mrf.mxu0
    %v2999 = vadd.f32 0.0, %v2998
    %3000 = vmatmul.f32.gmra.mxu0 %v2751
    %v3001 = vpop.f32.mrf.mxu0
    %v3002 = vadd.f32 0.0, %v3001
    %3003 = vmatmul.f32.gmra.mxu0 %v2754
    %v3004 = vpop.f32.mrf.mxu0
    %v3005 = vadd.f32 0.0, %v3004
    %3006 = vmatmul.f32.gmra.mxu0 %v2757
    %v3007 = vpop.f32.mrf.mxu0
    %v3008 = vadd.f32 0.0, %v3007
    %3009 = vmatmul.f32.gmra.mxu0 %v2760
    %v3010 = vpop.f32.mrf.mxu0
    %v3011 = vadd.f32 0.0, %v3010
    %3012 = vmatmul.f32.gmra.mxu0 %v2763
    %v3013 = vpop.f32.mrf.mxu0
    %v3014 = vadd.f32 0.0, %v3013
    %3015 = vmatmul.f32.gmra.mxu0 %v2766
    %v3016 = vpop.f32.mrf.mxu0
    %v3017 = vadd.f32 0.0, %v3016
    %3018 = vmatmul.f32.gmra.mxu0 %v2769
    %v3019 = vpop.f32.mrf.mxu0
    %v3020 = vadd.f32 0.0, %v3019
    %3021 = vmatmul.f32.gmra.mxu0 %v2772
    %v3022 = vpop.f32.mrf.mxu0
    %v3023 = vadd.f32 0.0, %v3022
    %3024 = vmatmul.f32.gmra.mxu0 %v2775
    %v3025 = vpop.f32.mrf.mxu0
    %v3026 = vadd.f32 0.0, %v3025
    %3027 = vmatmul.f32.gmra.mxu0 %v2778
    %v3028 = vpop.f32.mrf.mxu0
    %v3029 = vadd.f32 0.0, %v3028
    %3030 = vmatmul.f32.gmra.mxu0 %v2781
    %v3031 = vpop.f32.mrf.mxu0
    %v3032 = vadd.f32 0.0, %v3031
    %3033 = vmatmul.f32.gmra.mxu0 %v2784
    %v3034 = vpop.f32.mrf.mxu0
    %v3035 = vadd.f32 0.0, %v3034
    %3036 = vmatmul.f32.gmra.mxu0 %v2787
    %v3037 = vpop.f32.mrf.mxu0
    %v3038 = vadd.f32 0.0, %v3037
    %3039 = vmatmul.f32.gmra.mxu0 %v2790
    %v3040 = vpop.f32.mrf.mxu0
    %v3041 = vadd.f32 0.0, %v3040
    %3042 = vmatmul.f32.gmra.mxu0 %v2793
    %v3043 = vpop.f32.mrf.mxu0
    %v3044 = vadd.f32 0.0, %v3043
    %3045 = vmatmul.f32.gmra.mxu0 %v2796
    %v3046 = vpop.f32.mrf.mxu0
    %v3047 = vadd.f32 0.0, %v3046
    %3048 = vmatmul.f32.gmra.mxu0 %v2799
    %v3049 = vpop.f32.mrf.mxu0
    %v3050 = vadd.f32 0.0, %v3049
    %3051 = vmatmul.f32.gmra.mxu0 %v2802
    %v3052 = vpop.f32.mrf.mxu0
    %v3053 = vadd.f32 0.0, %v3052
    %3054 = vmatmul.f32.gmra.mxu0 %v2805
    %v3055 = vpop.f32.mrf.mxu0
    %v3056 = vadd.f32 0.0, %v3055
    %3057 = vmatmul.f32.gmra.mxu0 %v2808
    %v3058 = vpop.f32.mrf.mxu0
    %v3059 = vadd.f32 0.0, %v3058
    %3060 = vmatmul.f32.gmra.mxu0 %v2811
    %v3061 = vpop.f32.mrf.mxu0
    %v3062 = vadd.f32 0.0, %v3061
    %3063 = vmatmul.f32.gmra.mxu0 %v2814
    %v3064 = vpop.f32.mrf.mxu0
    %v3065 = vadd.f32 0.0, %v3064
    %3066 = vmatmul.f32.gmra.mxu0 %v2817
    %v3067 = vpop.f32.mrf.mxu0
    %v3068 = vadd.f32 0.0, %v3067
    %3069 = vdwg.mxu0
    %v3070 = vadd.f32 %v2432, %v2840
    %v3071 = vadd.f32 %v2433, %v2843
    %v3072 = vadd.f32 %v2434, %v2846
    %v3073 = vadd.f32 %v2435, %v2849
    %v3074 = vadd.f32 %v2436, %v2852
    %v3075 = vadd.f32 %v2437, %v2855
    %v3076 = vadd.f32 %v2438, %v2858
    %v3077 = vadd.f32 %v2439, %v2861
    %v3078 = vadd.f32 %v2440, %v2864
    %v3079 = vadd.f32 %v2441, %v2867
    %v3080 = vadd.f32 %v2442, %v2870
    %v3081 = vadd.f32 %v2443, %v2873
    %v3082 = vadd.f32 %v2444, %v2876
    %v3083 = vadd.f32 %v2445, %v2879
    %v3084 = vadd.f32 %v2446, %v2882
    %v3085 = vadd.f32 %v2447, %v2885
    %v3086 = vadd.f32 %v2448, %v2888
    %v3087 = vadd.f32 %v2449, %v2891
    %v3088 = vadd.f32 %v2450, %v2894
    %v3089 = vadd.f32 %v2451, %v2897
    %v3090 = vadd.f32 %v2452, %v2900
    %v3091 = vadd.f32 %v2453, %v2903
    %v3092 = vadd.f32 %v2454, %v2906
    %v3093 = vadd.f32 %v2455, %v2909
    %v3094 = vadd.f32 %v2456, %v2912
    %v3095 = vadd.f32 %v2457, %v2915
    %v3096 = vadd.f32 %v2458, %v2918
    %v3097 = vadd.f32 %v2459, %v2921
    %v3098 = vadd.f32 %v2460, %v2924
    %v3099 = vadd.f32 %v2461, %v2927
    %v3100 = vadd.f32 %v2462, %v2930
    %v3101 = vadd.f32 %v2463, %v2933
    %v3102 = vadd.f32 %v2464, %v2936
    %v3103 = vadd.f32 %v2465, %v2939
    %v3104 = vadd.f32 %v2466, %v2942
    %v3105 = vadd.f32 %v2467, %v2945
    %v3106 = vadd.f32 %v2468, %v2948
    %v3107 = vadd.f32 %v2469, %v2951
    %v3108 = vadd.f32 %v2470, %v2954
    %v3109 = vadd.f32 %v2471, %v2957
    %v3110 = vadd.f32 %v2472, %v2960
    %v3111 = vadd.f32 %v2473, %v2963
    %v3112 = vadd.f32 %v2474, %v2966
    %v3113 = vadd.f32 %v2475, %v2969
    %v3114 = vadd.f32 %v2476, %v2972
    %v3115 = vadd.f32 %v2477, %v2975
    %v3116 = vadd.f32 %v2478, %v2978
    %v3117 = vadd.f32 %v2479, %v2981
    %v3118 = vadd.f32 %v2480, %v2984
    %v3119 = vadd.f32 %v2481, %v2987
    %v3120 = vadd.f32 %v2482, %v2990
    %v3121 = vadd.f32 %v2483, %v2993
    %v3122 = vadd.f32 %v2484, %v2996
    %v3123 = vadd.f32 %v2485, %v2999
    %v3124 = vadd.f32 %v2486, %v3002
    %v3125 = vadd.f32 %v2487, %v3005
    %v3126 = vadd.f32 %v2488, %v3008
    %v3127 = vadd.f32 %v2489, %v3011
    %v3128 = vadd.f32 %v2490, %v3014
    %v3129 = vadd.f32 %v2491, %v3017
    %v3130 = vadd.f32 %v2492, %v3020
    %v3131 = vadd.f32 %v2493, %v3023
    %v3132 = vadd.f32 %v2494, %v3026
    %v3133 = vadd.f32 %v2495, %v3029
    %v3134 = vadd.f32 %v2496, %v3032
    %v3135 = vadd.f32 %v2497, %v3035
    %v3136 = vadd.f32 %v2498, %v3038
    %v3137 = vadd.f32 %v2499, %v3041
    %v3138 = vadd.f32 %v2500, %v3044
    %v3139 = vadd.f32 %v2501, %v3047
    %v3140 = vadd.f32 %v2502, %v3050
    %v3141 = vadd.f32 %v2503, %v3053
    %v3142 = vadd.f32 %v2504, %v3056
    %v3143 = vadd.f32 %v2505, %v3059
    %v3144 = vadd.f32 %v2506, %v3062
    %v3145 = vadd.f32 %v2507, %v3065
    %v3146 = vadd.f32 %v2508, %v3068
    %v3147 = vld [vmem:[%s0 + $0x14] sm:$0xff]
    %v3148 = vld [vmem:[%s0 + $0x1c] sm:$0xff]
    %v3149 = vld [vmem:[%s0 + $0x24] sm:$0xff]
    %v3150 = vld [vmem:[%s0 + $0x2c] sm:$0xff]
    %v3151 = vld [vmem:[%s0 + $0x34] sm:$0xff]
    %v3152 = vld [vmem:[%s0 + $0x3c] sm:$0xff]
    %v3153 = vld [vmem:[%s0 + $0x44] sm:$0xff]
    %v3154 = vld [vmem:[%s0 + $0x4c] sm:$0xff]
    %v3155 = vld [vmem:[%s0 + $0x54] sm:$0xff]
    %v3156 = vld [vmem:[%s0 + $0x5c] sm:$0xff]
    %v3157 = vld [vmem:[%s0 + $0x64] sm:$0xff]
    %v3158 = vld [vmem:[%s0 + $0x6c] sm:$0xff]
    %v3159 = vld [vmem:[%s0 + $0x74] sm:$0xff]
    %v3160 = vld [vmem:[%s0 + $0x7c] sm:$0xff]
    %v3161 = vld [vmem:[%s0 + $0x84] sm:$0xff]
    %v3162 = vld [vmem:[%s0 + $0x8c] sm:$0xff]
    %v3163 = vld [vmem:[%s0 + $0x94] sm:$0xff]
    %v3164 = vld [vmem:[%s0 + $0x9c] sm:$0xff]
    %v3165 = vld [vmem:[%s0 + $0xa4] sm:$0xff]
    %v3166 = vld [vmem:[%s0 + $0xac] sm:$0xff]
    %v3167 = vld [vmem:[%s0 + $0xb4] sm:$0xff]
    %v3168 = vld [vmem:[%s0 + $0xbc] sm:$0xff]
    %v3169 = vld [vmem:[%s0 + $0xc4] sm:$0xff]
    %v3170 = vld [vmem:[%s0 + $0xcc] sm:$0xff]
    %v3171 = vld [vmem:[%s0 + $0xd4] sm:$0xff]
    %v3172 = vld [vmem:[%s0 + $0xdc] sm:$0xff]
    %v3173 = vld [vmem:[%s0 + $0xe4] sm:$0xff]
    %v3174 = vld [vmem:[%s0 + $0xec] sm:$0xff]
    %v3175 = vld [vmem:[%s0 + $0xf4] sm:$0xff]
    %v3176 = vld [vmem:[%s0 + $0xfc] sm:$0xff]
    %v3177 = vld [vmem:[%s0 + $0x104] sm:$0xff]
    %v3178 = vld [vmem:[%s0 + $0x10c] sm:$0xff]
    %v3179 = vld [vmem:[%s0 + $0x114] sm:$0xff]
    %v3180 = vld [vmem:[%s0 + $0x11c] sm:$0xff]
    %v3181 = vld [vmem:[%s0 + $0x124] sm:$0xff]
    %v3182 = vld [vmem:[%s0 + $0x12c] sm:$0xff]
    %v3183 = vld [vmem:[%s0 + $0x134] sm:$0xff]
    %v3184 = vld [vmem:[%s0 + $0x13c] sm:$0xff]
    %v3185 = vld [vmem:[%s0 + $0x144] sm:$0xff]
    %v3186 = vld [vmem:[%s0 + $0x14c] sm:$0xff]
    %v3187 = vld [vmem:[%s0 + $0x154] sm:$0xff]
    %v3188 = vld [vmem:[%s0 + $0x15c] sm:$0xff]
    %v3189 = vld [vmem:[%s0 + $0x164] sm:$0xff]
    %v3190 = vld [vmem:[%s0 + $0x16c] sm:$0xff]
    %v3191 = vld [vmem:[%s0 + $0x174] sm:$0xff]
    %v3192 = vld [vmem:[%s0 + $0x17c] sm:$0xff]
    %v3193 = vld [vmem:[%s0 + $0x184] sm:$0xff]
    %v3194 = vld [vmem:[%s0 + $0x18c] sm:$0xff]
    %v3195 = vld [vmem:[%s0 + $0x194] sm:$0xff]
    %v3196 = vld [vmem:[%s0 + $0x19c] sm:$0xff]
    %v3197 = vld [vmem:[%s0 + $0x1a4] sm:$0xff]
    %v3198 = vld [vmem:[%s0 + $0x1ac] sm:$0xff]
    %v3199 = vld [vmem:[%s0 + $0x1b4] sm:$0xff]
    %v3200 = vld [vmem:[%s0 + $0x1bc] sm:$0xff]
    %v3201 = vld [vmem:[%s0 + $0x1c4] sm:$0xff]
    %v3202 = vld [vmem:[%s0 + $0x1cc] sm:$0xff]
    %v3203 = vld [vmem:[%s0 + $0x1d4] sm:$0xff]
    %v3204 = vld [vmem:[%s0 + $0x1dc] sm:$0xff]
    %v3205 = vld [vmem:[%s0 + $0x1e4] sm:$0xff]
    %v3206 = vld [vmem:[%s0 + $0x1ec] sm:$0xff]
    %v3207 = vld [vmem:[%s0 + $0x1f4] sm:$0xff]
    %v3208 = vld [vmem:[%s0 + $0x1fc] sm:$0xff]
    %v3209 = vld [vmem:[%s0 + $0x204] sm:$0xff]
    %v3210 = vld [vmem:[%s0 + $0x20c] sm:$0xff]
    %v3211 = vld [vmem:[%s0 + $0x214] sm:$0xff]
    %v3212 = vld [vmem:[%s0 + $0x21c] sm:$0xff]
    %v3213 = vld [vmem:[%s0 + $0x224] sm:$0xff]
    %v3214 = vld [vmem:[%s0 + $0x22c] sm:$0xff]
    %v3215 = vld [vmem:[%s0 + $0x234] sm:$0xff]
    %v3216 = vld [vmem:[%s0 + $0x23c] sm:$0xff]
    %v3217 = vld [vmem:[%s0 + $0x244] sm:$0xff]
    %v3218 = vld [vmem:[%s0 + $0x24c] sm:$0xff]
    %v3219 = vld [vmem:[%s0 + $0x254] sm:$0xff]
    %v3220 = vld [vmem:[%s0 + $0x25c] sm:$0xff]
    %v3221 = vld [vmem:[%s0 + $0x264] sm:$0xff]
    %v3222 = vld [vmem:[%s0 + $0x26c] sm:$0xff]
    %v3223 = vld [vmem:[%s0 + $0x274] sm:$0x3]
    %s3224 = scalar_lea.vmem %s1, 20
    %v3225 = vld [vmem:[%s3224] sm:$0x7]
    %v3227 = vsel %vm267, %v3147, 0
    %v3230 = vsel %vm267, %v3148, 0
    %v3233 = vsel %vm267, %v3149, 0
    %v3236 = vsel %vm267, %v3150, 0
    %v3239 = vsel %vm267, %v3151, 0
    %v3242 = vsel %vm267, %v3152, 0
    %v3245 = vsel %vm267, %v3153, 0
    %v3248 = vsel %vm267, %v3154, 0
    %v3251 = vsel %vm267, %v3155, 0
    %v3254 = vsel %vm267, %v3156, 0
    %v3257 = vsel %vm267, %v3157, 0
    %v3260 = vsel %vm267, %v3158, 0
    %v3263 = vsel %vm267, %v3159, 0
    %v3266 = vsel %vm267, %v3160, 0
    %v3269 = vsel %vm267, %v3161, 0
    %v3272 = vsel %vm267, %v3162, 0
    %v3275 = vsel %vm267, %v3163, 0
    %v3278 = vsel %vm267, %v3164, 0
    %v3281 = vsel %vm267, %v3165, 0
    %v3284 = vsel %vm267, %v3166, 0
    %v3287 = vsel %vm267, %v3167, 0
    %v3290 = vsel %vm267, %v3168, 0
    %v3293 = vsel %vm267, %v3169, 0
    %v3296 = vsel %vm267, %v3170, 0
    %v3299 = vsel %vm267, %v3171, 0
    %v3302 = vsel %vm267, %v3172, 0
    %v3305 = vsel %vm267, %v3173, 0
    %v3308 = vsel %vm267, %v3174, 0
    %v3311 = vsel %vm267, %v3175, 0
    %v3314 = vsel %vm267, %v3176, 0
    %v3317 = vsel %vm267, %v3177, 0
    %v3320 = vsel %vm267, %v3178, 0
    %v3323 = vsel %vm267, %v3179, 0
    %v3326 = vsel %vm267, %v3180, 0
    %v3329 = vsel %vm267, %v3181, 0
    %v3332 = vsel %vm267, %v3182, 0
    %v3335 = vsel %vm267, %v3183, 0
    %v3338 = vsel %vm267, %v3184, 0
    %v3341 = vsel %vm267, %v3185, 0
    %v3344 = vsel %vm267, %v3186, 0
    %v3347 = vsel %vm267, %v3187, 0
    %v3350 = vsel %vm267, %v3188, 0
    %v3353 = vsel %vm267, %v3189, 0
    %v3356 = vsel %vm267, %v3190, 0
    %v3359 = vsel %vm267, %v3191, 0
    %v3362 = vsel %vm267, %v3192, 0
    %v3365 = vsel %vm267, %v3193, 0
    %v3368 = vsel %vm267, %v3194, 0
    %v3371 = vsel %vm267, %v3195, 0
    %v3374 = vsel %vm267, %v3196, 0
    %v3377 = vsel %vm267, %v3197, 0
    %v3380 = vsel %vm267, %v3198, 0
    %v3383 = vsel %vm267, %v3199, 0
    %v3386 = vsel %vm267, %v3200, 0
    %v3389 = vsel %vm267, %v3201, 0
    %v3392 = vsel %vm267, %v3202, 0
    %v3395 = vsel %vm267, %v3203, 0
    %v3398 = vsel %vm267, %v3204, 0
    %v3401 = vsel %vm267, %v3205, 0
    %v3404 = vsel %vm267, %v3206, 0
    %v3407 = vsel %vm267, %v3207, 0
    %v3410 = vsel %vm267, %v3208, 0
    %v3413 = vsel %vm267, %v3209, 0
    %v3416 = vsel %vm267, %v3210, 0
    %v3419 = vsel %vm267, %v3211, 0
    %v3422 = vsel %vm267, %v3212, 0
    %v3425 = vsel %vm267, %v3213, 0
    %v3428 = vsel %vm267, %v3214, 0
    %v3431 = vsel %vm267, %v3215, 0
    %v3434 = vsel %vm267, %v3216, 0
    %v3437 = vsel %vm267, %v3217, 0
    %v3440 = vsel %vm267, %v3218, 0
    %v3443 = vsel %vm267, %v3219, 0
    %v3446 = vsel %vm267, %v3220, 0
    %v3449 = vsel %vm267, %v3221, 0
    %v3452 = vsel %vm267, %v3222, 0
    %v3455 = vsel %vm267, %v3223, 0
    %v3458 = vsel %vm499, %v3225, 0
    %3460 = vmatpush.msra.mxu0 0.0
    %3461 = vmatpush.msra.mxu0 0.0
    %3462 = vmatpush.msra.mxu0 0.0
    %3463 = vmatpush.msra.mxu0 0.0
    %3464 = vmatpush.msra.mxu0 0.0
    %3465 = vmatpush.msra.mxu0 0.0
    %3466 = vmatpush.msra.mxu0 0.0
    %3467 = vmatpush.msra.mxu0 0.0
    %3468 = vmatpush.msra.mxu0 0.0
    %3469 = vmatpush.msra.mxu0 0.0
    %3470 = vmatpush.msra.mxu0 0.0
    %3471 = vmatpush.msra.mxu0 0.0
    %3472 = vmatpush.msra.mxu0 0.0
    %3473 = vmatpush.msra.mxu0 0.0
    %3474 = vmatpush.msra.mxu0 0.0
    %3475 = vmatpush.msra.mxu0 %v3458
    %3476 = vmatmul.f32.gmra.mxu0 %v3227
    %v3477 = vpop.f32.mrf.mxu0
    %v3478 = vadd.f32 0.0, %v3477
    %3479 = vmatmul.f32.gmra.mxu0 %v3230
    %v3480 = vpop.f32.mrf.mxu0
    %v3481 = vadd.f32 0.0, %v3480
    %3482 = vmatmul.f32.gmra.mxu0 %v3233
    %v3483 = vpop.f32.mrf.mxu0
    %v3484 = vadd.f32 0.0, %v3483
    %3485 = vmatmul.f32.gmra.mxu0 %v3236
    %v3486 = vpop.f32.mrf.mxu0
    %v3487 = vadd.f32 0.0, %v3486
    %3488 = vmatmul.f32.gmra.mxu0 %v3239
    %v3489 = vpop.f32.mrf.mxu0
    %v3490 = vadd.f32 0.0, %v3489
    %3491 = vmatmul.f32.gmra.mxu0 %v3242
    %v3492 = vpop.f32.mrf.mxu0
    %v3493 = vadd.f32 0.0, %v3492
    %3494 = vmatmul.f32.gmra.mxu0 %v3245
    %v3495 = vpop.f32.mrf.mxu0
    %v3496 = vadd.f32 0.0, %v3495
    %3497 = vmatmul.f32.gmra.mxu0 %v3248
    %v3498 = vpop.f32.mrf.mxu0
    %v3499 = vadd.f32 0.0, %v3498
    %3500 = vmatmul.f32.gmra.mxu0 %v3251
    %v3501 = vpop.f32.mrf.mxu0
    %v3502 = vadd.f32 0.0, %v3501
    %3503 = vmatmul.f32.gmra.mxu0 %v3254
    %v3504 = vpop.f32.mrf.mxu0
    %v3505 = vadd.f32 0.0, %v3504
    %3506 = vmatmul.f32.gmra.mxu0 %v3257
    %v3507 = vpop.f32.mrf.mxu0
    %v3508 = vadd.f32 0.0, %v3507
    %3509 = vmatmul.f32.gmra.mxu0 %v3260
    %v3510 = vpop.f32.mrf.mxu0
    %v3511 = vadd.f32 0.0, %v3510
    %3512 = vmatmul.f32.gmra.mxu0 %v3263
    %v3513 = vpop.f32.mrf.mxu0
    %v3514 = vadd.f32 0.0, %v3513
    %3515 = vmatmul.f32.gmra.mxu0 %v3266
    %v3516 = vpop.f32.mrf.mxu0
    %v3517 = vadd.f32 0.0, %v3516
    %3518 = vmatmul.f32.gmra.mxu0 %v3269
    %v3519 = vpop.f32.mrf.mxu0
    %v3520 = vadd.f32 0.0, %v3519
    %3521 = vmatmul.f32.gmra.mxu0 %v3272
    %v3522 = vpop.f32.mrf.mxu0
    %v3523 = vadd.f32 0.0, %v3522
    %3524 = vmatmul.f32.gmra.mxu0 %v3275
    %v3525 = vpop.f32.mrf.mxu0
    %v3526 = vadd.f32 0.0, %v3525
    %3527 = vmatmul.f32.gmra.mxu0 %v3278
    %v3528 = vpop.f32.mrf.mxu0
    %v3529 = vadd.f32 0.0, %v3528
    %3530 = vmatmul.f32.gmra.mxu0 %v3281
    %v3531 = vpop.f32.mrf.mxu0
    %v3532 = vadd.f32 0.0, %v3531
    %3533 = vmatmul.f32.gmra.mxu0 %v3284
    %v3534 = vpop.f32.mrf.mxu0
    %v3535 = vadd.f32 0.0, %v3534
    %3536 = vmatmul.f32.gmra.mxu0 %v3287
    %v3537 = vpop.f32.mrf.mxu0
    %v3538 = vadd.f32 0.0, %v3537
    %3539 = vmatmul.f32.gmra.mxu0 %v3290
    %v3540 = vpop.f32.mrf.mxu0
    %v3541 = vadd.f32 0.0, %v3540
    %3542 = vmatmul.f32.gmra.mxu0 %v3293
    %v3543 = vpop.f32.mrf.mxu0
    %v3544 = vadd.f32 0.0, %v3543
    %3545 = vmatmul.f32.gmra.mxu0 %v3296
    %v3546 = vpop.f32.mrf.mxu0
    %v3547 = vadd.f32 0.0, %v3546
    %3548 = vmatmul.f32.gmra.mxu0 %v3299
    %v3549 = vpop.f32.mrf.mxu0
    %v3550 = vadd.f32 0.0, %v3549
    %3551 = vmatmul.f32.gmra.mxu0 %v3302
    %v3552 = vpop.f32.mrf.mxu0
    %v3553 = vadd.f32 0.0, %v3552
    %3554 = vmatmul.f32.gmra.mxu0 %v3305
    %v3555 = vpop.f32.mrf.mxu0
    %v3556 = vadd.f32 0.0, %v3555
    %3557 = vmatmul.f32.gmra.mxu0 %v3308
    %v3558 = vpop.f32.mrf.mxu0
    %v3559 = vadd.f32 0.0, %v3558
    %3560 = vmatmul.f32.gmra.mxu0 %v3311
    %v3561 = vpop.f32.mrf.mxu0
    %v3562 = vadd.f32 0.0, %v3561
    %3563 = vmatmul.f32.gmra.mxu0 %v3314
    %v3564 = vpop.f32.mrf.mxu0
    %v3565 = vadd.f32 0.0, %v3564
    %3566 = vmatmul.f32.gmra.mxu0 %v3317
    %v3567 = vpop.f32.mrf.mxu0
    %v3568 = vadd.f32 0.0, %v3567
    %3569 = vmatmul.f32.gmra.mxu0 %v3320
    %v3570 = vpop.f32.mrf.mxu0
    %v3571 = vadd.f32 0.0, %v3570
    %3572 = vmatmul.f32.gmra.mxu0 %v3323
    %v3573 = vpop.f32.mrf.mxu0
    %v3574 = vadd.f32 0.0, %v3573
    %3575 = vmatmul.f32.gmra.mxu0 %v3326
    %v3576 = vpop.f32.mrf.mxu0
    %v3577 = vadd.f32 0.0, %v3576
    %3578 = vmatmul.f32.gmra.mxu0 %v3329
    %v3579 = vpop.f32.mrf.mxu0
    %v3580 = vadd.f32 0.0, %v3579
    %3581 = vmatmul.f32.gmra.mxu0 %v3332
    %v3582 = vpop.f32.mrf.mxu0
    %v3583 = vadd.f32 0.0, %v3582
    %3584 = vmatmul.f32.gmra.mxu0 %v3335
    %v3585 = vpop.f32.mrf.mxu0
    %v3586 = vadd.f32 0.0, %v3585
    %3587 = vmatmul.f32.gmra.mxu0 %v3338
    %v3588 = vpop.f32.mrf.mxu0
    %v3589 = vadd.f32 0.0, %v3588
    %3590 = vmatmul.f32.gmra.mxu0 %v3341
    %v3591 = vpop.f32.mrf.mxu0
    %v3592 = vadd.f32 0.0, %v3591
    %3593 = vmatmul.f32.gmra.mxu0 %v3344
    %v3594 = vpop.f32.mrf.mxu0
    %v3595 = vadd.f32 0.0, %v3594
    %3596 = vmatmul.f32.gmra.mxu0 %v3347
    %v3597 = vpop.f32.mrf.mxu0
    %v3598 = vadd.f32 0.0, %v3597
    %3599 = vmatmul.f32.gmra.mxu0 %v3350
    %v3600 = vpop.f32.mrf.mxu0
    %v3601 = vadd.f32 0.0, %v3600
    %3602 = vmatmul.f32.gmra.mxu0 %v3353
    %v3603 = vpop.f32.mrf.mxu0
    %v3604 = vadd.f32 0.0, %v3603
    %3605 = vmatmul.f32.gmra.mxu0 %v3356
    %v3606 = vpop.f32.mrf.mxu0
    %v3607 = vadd.f32 0.0, %v3606
    %3608 = vmatmul.f32.gmra.mxu0 %v3359
    %v3609 = vpop.f32.mrf.mxu0
    %v3610 = vadd.f32 0.0, %v3609
    %3611 = vmatmul.f32.gmra.mxu0 %v3362
    %v3612 = vpop.f32.mrf.mxu0
    %v3613 = vadd.f32 0.0, %v3612
    %3614 = vmatmul.f32.gmra.mxu0 %v3365
    %v3615 = vpop.f32.mrf.mxu0
    %v3616 = vadd.f32 0.0, %v3615
    %3617 = vmatmul.f32.gmra.mxu0 %v3368
    %v3618 = vpop.f32.mrf.mxu0
    %v3619 = vadd.f32 0.0, %v3618
    %3620 = vmatmul.f32.gmra.mxu0 %v3371
    %v3621 = vpop.f32.mrf.mxu0
    %v3622 = vadd.f32 0.0, %v3621
    %3623 = vmatmul.f32.gmra.mxu0 %v3374
    %v3624 = vpop.f32.mrf.mxu0
    %v3625 = vadd.f32 0.0, %v3624
    %3626 = vmatmul.f32.gmra.mxu0 %v3377
    %v3627 = vpop.f32.mrf.mxu0
    %v3628 = vadd.f32 0.0, %v3627
    %3629 = vmatmul.f32.gmra.mxu0 %v3380
    %v3630 = vpop.f32.mrf.mxu0
    %v3631 = vadd.f32 0.0, %v3630
    %3632 = vmatmul.f32.gmra.mxu0 %v3383
    %v3633 = vpop.f32.mrf.mxu0
    %v3634 = vadd.f32 0.0, %v3633
    %3635 = vmatmul.f32.gmra.mxu0 %v3386
    %v3636 = vpop.f32.mrf.mxu0
    %v3637 = vadd.f32 0.0, %v3636
    %3638 = vmatmul.f32.gmra.mxu0 %v3389
    %v3639 = vpop.f32.mrf.mxu0
    %v3640 = vadd.f32 0.0, %v3639
    %3641 = vmatmul.f32.gmra.mxu0 %v3392
    %v3642 = vpop.f32.mrf.mxu0
    %v3643 = vadd.f32 0.0, %v3642
    %3644 = vmatmul.f32.gmra.mxu0 %v3395
    %v3645 = vpop.f32.mrf.mxu0
    %v3646 = vadd.f32 0.0, %v3645
    %3647 = vmatmul.f32.gmra.mxu0 %v3398
    %v3648 = vpop.f32.mrf.mxu0
    %v3649 = vadd.f32 0.0, %v3648
    %3650 = vmatmul.f32.gmra.mxu0 %v3401
    %v3651 = vpop.f32.mrf.mxu0
    %v3652 = vadd.f32 0.0, %v3651
    %3653 = vmatmul.f32.gmra.mxu0 %v3404
    %v3654 = vpop.f32.mrf.mxu0
    %v3655 = vadd.f32 0.0, %v3654
    %3656 = vmatmul.f32.gmra.mxu0 %v3407
    %v3657 = vpop.f32.mrf.mxu0
    %v3658 = vadd.f32 0.0, %v3657
    %3659 = vmatmul.f32.gmra.mxu0 %v3410
    %v3660 = vpop.f32.mrf.mxu0
    %v3661 = vadd.f32 0.0, %v3660
    %3662 = vmatmul.f32.gmra.mxu0 %v3413
    %v3663 = vpop.f32.mrf.mxu0
    %v3664 = vadd.f32 0.0, %v3663
    %3665 = vmatmul.f32.gmra.mxu0 %v3416
    %v3666 = vpop.f32.mrf.mxu0
    %v3667 = vadd.f32 0.0, %v3666
    %3668 = vmatmul.f32.gmra.mxu0 %v3419
    %v3669 = vpop.f32.mrf.mxu0
    %v3670 = vadd.f32 0.0, %v3669
    %3671 = vmatmul.f32.gmra.mxu0 %v3422
    %v3672 = vpop.f32.mrf.mxu0
    %v3673 = vadd.f32 0.0, %v3672
    %3674 = vmatmul.f32.gmra.mxu0 %v3425
    %v3675 = vpop.f32.mrf.mxu0
    %v3676 = vadd.f32 0.0, %v3675
    %3677 = vmatmul.f32.gmra.mxu0 %v3428
    %v3678 = vpop.f32.mrf.mxu0
    %v3679 = vadd.f32 0.0, %v3678
    %3680 = vmatmul.f32.gmra.mxu0 %v3431
    %v3681 = vpop.f32.mrf.mxu0
    %v3682 = vadd.f32 0.0, %v3681
    %3683 = vmatmul.f32.gmra.mxu0 %v3434
    %v3684 = vpop.f32.mrf.mxu0
    %v3685 = vadd.f32 0.0, %v3684
    %3686 = vmatmul.f32.gmra.mxu0 %v3437
    %v3687 = vpop.f32.mrf.mxu0
    %v3688 = vadd.f32 0.0, %v3687
    %3689 = vmatmul.f32.gmra.mxu0 %v3440
    %v3690 = vpop.f32.mrf.mxu0
    %v3691 = vadd.f32 0.0, %v3690
    %3692 = vmatmul.f32.gmra.mxu0 %v3443
    %v3693 = vpop.f32.mrf.mxu0
    %v3694 = vadd.f32 0.0, %v3693
    %3695 = vmatmul.f32.gmra.mxu0 %v3446
    %v3696 = vpop.f32.mrf.mxu0
    %v3697 = vadd.f32 0.0, %v3696
    %3698 = vmatmul.f32.gmra.mxu0 %v3449
    %v3699 = vpop.f32.mrf.mxu0
    %v3700 = vadd.f32 0.0, %v3699
    %3701 = vmatmul.f32.gmra.mxu0 %v3452
    %v3702 = vpop.f32.mrf.mxu0
    %v3703 = vadd.f32 0.0, %v3702
    %3704 = vmatmul.f32.gmra.mxu0 %v3455
    %v3705 = vpop.f32.mrf.mxu0
    %v3706 = vadd.f32 0.0, %v3705
    %3707 = vdwg.mxu0
    %v3708 = vadd.f32 %v3070, %v3478
    %v3709 = vadd.f32 %v3071, %v3481
    %v3710 = vadd.f32 %v3072, %v3484
    %v3711 = vadd.f32 %v3073, %v3487
    %v3712 = vadd.f32 %v3074, %v3490
    %v3713 = vadd.f32 %v3075, %v3493
    %v3714 = vadd.f32 %v3076, %v3496
    %v3715 = vadd.f32 %v3077, %v3499
    %v3716 = vadd.f32 %v3078, %v3502
    %v3717 = vadd.f32 %v3079, %v3505
    %v3718 = vadd.f32 %v3080, %v3508
    %v3719 = vadd.f32 %v3081, %v3511
    %v3720 = vadd.f32 %v3082, %v3514
    %v3721 = vadd.f32 %v3083, %v3517
    %v3722 = vadd.f32 %v3084, %v3520
    %v3723 = vadd.f32 %v3085, %v3523
    %v3724 = vadd.f32 %v3086, %v3526
    %v3725 = vadd.f32 %v3087, %v3529
    %v3726 = vadd.f32 %v3088, %v3532
    %v3727 = vadd.f32 %v3089, %v3535
    %v3728 = vadd.f32 %v3090, %v3538
    %v3729 = vadd.f32 %v3091, %v3541
    %v3730 = vadd.f32 %v3092, %v3544
    %v3731 = vadd.f32 %v3093, %v3547
    %v3732 = vadd.f32 %v3094, %v3550
    %v3733 = vadd.f32 %v3095, %v3553
    %v3734 = vadd.f32 %v3096, %v3556
    %v3735 = vadd.f32 %v3097, %v3559
    %v3736 = vadd.f32 %v3098, %v3562
    %v3737 = vadd.f32 %v3099, %v3565
    %v3738 = vadd.f32 %v3100, %v3568
    %v3739 = vadd.f32 %v3101, %v3571
    %v3740 = vadd.f32 %v3102, %v3574
    %v3741 = vadd.f32 %v3103, %v3577
    %v3742 = vadd.f32 %v3104, %v3580
    %v3743 = vadd.f32 %v3105, %v3583
    %v3744 = vadd.f32 %v3106, %v3586
    %v3745 = vadd.f32 %v3107, %v3589
    %v3746 = vadd.f32 %v3108, %v3592
    %v3747 = vadd.f32 %v3109, %v3595
    %v3748 = vadd.f32 %v3110, %v3598
    %v3749 = vadd.f32 %v3111, %v3601
    %v3750 = vadd.f32 %v3112, %v3604
    %v3751 = vadd.f32 %v3113, %v3607
    %v3752 = vadd.f32 %v3114, %v3610
    %v3753 = vadd.f32 %v3115, %v3613
    %v3754 = vadd.f32 %v3116, %v3616
    %v3755 = vadd.f32 %v3117, %v3619
    %v3756 = vadd.f32 %v3118, %v3622
    %v3757 = vadd.f32 %v3119, %v3625
    %v3758 = vadd.f32 %v3120, %v3628
    %v3759 = vadd.f32 %v3121, %v3631
    %v3760 = vadd.f32 %v3122, %v3634
    %v3761 = vadd.f32 %v3123, %v3637
    %v3762 = vadd.f32 %v3124, %v3640
    %v3763 = vadd.f32 %v3125, %v3643
    %v3764 = vadd.f32 %v3126, %v3646
    %v3765 = vadd.f32 %v3127, %v3649
    %v3766 = vadd.f32 %v3128, %v3652
    %v3767 = vadd.f32 %v3129, %v3655
    %v3768 = vadd.f32 %v3130, %v3658
    %v3769 = vadd.f32 %v3131, %v3661
    %v3770 = vadd.f32 %v3132, %v3664
    %v3771 = vadd.f32 %v3133, %v3667
    %v3772 = vadd.f32 %v3134, %v3670
    %v3773 = vadd.f32 %v3135, %v3673
    %v3774 = vadd.f32 %v3136, %v3676
    %v3775 = vadd.f32 %v3137, %v3679
    %v3776 = vadd.f32 %v3138, %v3682
    %v3777 = vadd.f32 %v3139, %v3685
    %v3778 = vadd.f32 %v3140, %v3688
    %v3779 = vadd.f32 %v3141, %v3691
    %v3780 = vadd.f32 %v3142, %v3694
    %v3781 = vadd.f32 %v3143, %v3697
    %v3782 = vadd.f32 %v3144, %v3700
    %v3783 = vadd.f32 %v3145, %v3703
    %v3784 = vadd.f32 %v3146, %v3706
    %v3785 = vld [vmem:[%s0 + $0x24] sm:$0xff]
    %v3786 = vld [vmem:[%s0 + $0x2c] sm:$0xff]
    %v3787 = vld [vmem:[%s0 + $0x34] sm:$0xff]
    %v3788 = vld [vmem:[%s0 + $0x3c] sm:$0xff]
    %v3789 = vld [vmem:[%s0 + $0x44] sm:$0xff]
    %v3790 = vld [vmem:[%s0 + $0x4c] sm:$0xff]
    %v3791 = vld [vmem:[%s0 + $0x54] sm:$0xff]
    %v3792 = vld [vmem:[%s0 + $0x5c] sm:$0xff]
    %v3793 = vld [vmem:[%s0 + $0x64] sm:$0xff]
    %v3794 = vld [vmem:[%s0 + $0x6c] sm:$0xff]
    %v3795 = vld [vmem:[%s0 + $0x74] sm:$0xff]
    %v3796 = vld [vmem:[%s0 + $0x7c] sm:$0xff]
    %v3797 = vld [vmem:[%s0 + $0x84] sm:$0xff]
    %v3798 = vld [vmem:[%s0 + $0x8c] sm:$0xff]
    %v3799 = vld [vmem:[%s0 + $0x94] sm:$0xff]
    %v3800 = vld [vmem:[%s0 + $0x9c] sm:$0xff]
    %v3801 = vld [vmem:[%s0 + $0xa4] sm:$0xff]
    %v3802 = vld [vmem:[%s0 + $0xac] sm:$0xff]
    %v3803 = vld [vmem:[%s0 + $0xb4] sm:$0xff]
    %v3804 = vld [vmem:[%s0 + $0xbc] sm:$0xff]
    %v3805 = vld [vmem:[%s0 + $0xc4] sm:$0xff]
    %v3806 = vld [vmem:[%s0 + $0xcc] sm:$0xff]
    %v3807 = vld [vmem:[%s0 + $0xd4] sm:$0xff]
    %v3808 = vld [vmem:[%s0 + $0xdc] sm:$0xff]
    %v3809 = vld [vmem:[%s0 + $0xe4] sm:$0xff]
    %v3810 = vld [vmem:[%s0 + $0xec] sm:$0xff]
    %v3811 = vld [vmem:[%s0 + $0xf4] sm:$0xff]
    %v3812 = vld [vmem:[%s0 + $0xfc] sm:$0xff]
    %v3813 = vld [vmem:[%s0 + $0x104] sm:$0xff]
    %v3814 = vld [vmem:[%s0 + $0x10c] sm:$0xff]
    %v3815 = vld [vmem:[%s0 + $0x114] sm:$0xff]
    %v3816 = vld [vmem:[%s0 + $0x11c] sm:$0xff]
    %v3817 = vld [vmem:[%s0 + $0x124] sm:$0xff]
    %v3818 = vld [vmem:[%s0 + $0x12c] sm:$0xff]
    %v3819 = vld [vmem:[%s0 + $0x134] sm:$0xff]
    %v3820 = vld [vmem:[%s0 + $0x13c] sm:$0xff]
    %v3821 = vld [vmem:[%s0 + $0x144] sm:$0xff]
    %v3822 = vld [vmem:[%s0 + $0x14c] sm:$0xff]
    %v3823 = vld [vmem:[%s0 + $0x154] sm:$0xff]
    %v3824 = vld [vmem:[%s0 + $0x15c] sm:$0xff]
    %v3825 = vld [vmem:[%s0 + $0x164] sm:$0xff]
    %v3826 = vld [vmem:[%s0 + $0x16c] sm:$0xff]
    %v3827 = vld [vmem:[%s0 + $0x174] sm:$0xff]
    %v3828 = vld [vmem:[%s0 + $0x17c] sm:$0xff]
    %v3829 = vld [vmem:[%s0 + $0x184] sm:$0xff]
    %v3830 = vld [vmem:[%s0 + $0x18c] sm:$0xff]
    %v3831 = vld [vmem:[%s0 + $0x194] sm:$0xff]
    %v3832 = vld [vmem:[%s0 + $0x19c] sm:$0xff]
    %v3833 = vld [vmem:[%s0 + $0x1a4] sm:$0xff]
    %v3834 = vld [vmem:[%s0 + $0x1ac] sm:$0xff]
    %v3835 = vld [vmem:[%s0 + $0x1b4] sm:$0xff]
    %v3836 = vld [vmem:[%s0 + $0x1bc] sm:$0xff]
    %v3837 = vld [vmem:[%s0 + $0x1c4] sm:$0xff]
    %v3838 = vld [vmem:[%s0 + $0x1cc] sm:$0xff]
    %v3839 = vld [vmem:[%s0 + $0x1d4] sm:$0xff]
    %v3840 = vld [vmem:[%s0 + $0x1dc] sm:$0xff]
    %v3841 = vld [vmem:[%s0 + $0x1e4] sm:$0xff]
    %v3842 = vld [vmem:[%s0 + $0x1ec] sm:$0xff]
    %v3843 = vld [vmem:[%s0 + $0x1f4] sm:$0xff]
    %v3844 = vld [vmem:[%s0 + $0x1fc] sm:$0xff]
    %v3845 = vld [vmem:[%s0 + $0x204] sm:$0xff]
    %v3846 = vld [vmem:[%s0 + $0x20c] sm:$0xff]
    %v3847 = vld [vmem:[%s0 + $0x214] sm:$0xff]
    %v3848 = vld [vmem:[%s0 + $0x21c] sm:$0xff]
    %v3849 = vld [vmem:[%s0 + $0x224] sm:$0xff]
    %v3850 = vld [vmem:[%s0 + $0x22c] sm:$0xff]
    %v3851 = vld [vmem:[%s0 + $0x234] sm:$0xff]
    %v3852 = vld [vmem:[%s0 + $0x23c] sm:$0xff]
    %v3853 = vld [vmem:[%s0 + $0x244] sm:$0xff]
    %v3854 = vld [vmem:[%s0 + $0x24c] sm:$0xff]
    %v3855 = vld [vmem:[%s0 + $0x254] sm:$0xff]
    %v3856 = vld [vmem:[%s0 + $0x25c] sm:$0xff]
    %v3857 = vld [vmem:[%s0 + $0x264] sm:$0xff]
    %v3858 = vld [vmem:[%s0 + $0x26c] sm:$0xff]
    %v3859 = vld [vmem:[%s0 + $0x274] sm:$0xff]
    %v3860 = vld [vmem:[%s0 + $0x27c] sm:$0xff]
    %v3861 = vld [vmem:[%s0 + $0x284] sm:$0x3]
    %s3862 = scalar_lea.vmem %s1, 24
    %v3863 = vld [vmem:[%s3862] sm:$0x7]
    %v3865 = vsel %vm267, %v3785, 0
    %v3868 = vsel %vm267, %v3786, 0
    %v3871 = vsel %vm267, %v3787, 0
    %v3874 = vsel %vm267, %v3788, 0
    %v3877 = vsel %vm267, %v3789, 0
    %v3880 = vsel %vm267, %v3790, 0
    %v3883 = vsel %vm267, %v3791, 0
    %v3886 = vsel %vm267, %v3792, 0
    %v3889 = vsel %vm267, %v3793, 0
    %v3892 = vsel %vm267, %v3794, 0
    %v3895 = vsel %vm267, %v3795, 0
    %v3898 = vsel %vm267, %v3796, 0
    %v3901 = vsel %vm267, %v3797, 0
    %v3904 = vsel %vm267, %v3798, 0
    %v3907 = vsel %vm267, %v3799, 0
    %v3910 = vsel %vm267, %v3800, 0
    %v3913 = vsel %vm267, %v3801, 0
    %v3916 = vsel %vm267, %v3802, 0
    %v3919 = vsel %vm267, %v3803, 0
    %v3922 = vsel %vm267, %v3804, 0
    %v3925 = vsel %vm267, %v3805, 0
    %v3928 = vsel %vm267, %v3806, 0
    %v3931 = vsel %vm267, %v3807, 0
    %v3934 = vsel %vm267, %v3808, 0
    %v3937 = vsel %vm267, %v3809, 0
    %v3940 = vsel %vm267, %v3810, 0
    %v3943 = vsel %vm267, %v3811, 0
    %v3946 = vsel %vm267, %v3812, 0
    %v3949 = vsel %vm267, %v3813, 0
    %v3952 = vsel %vm267, %v3814, 0
    %v3955 = vsel %vm267, %v3815, 0
    %v3958 = vsel %vm267, %v3816, 0
    %v3961 = vsel %vm267, %v3817, 0
    %v3964 = vsel %vm267, %v3818, 0
    %v3967 = vsel %vm267, %v3819, 0
    %v3970 = vsel %vm267, %v3820, 0
    %v3973 = vsel %vm267, %v3821, 0
    %v3976 = vsel %vm267, %v3822, 0
    %v3979 = vsel %vm267, %v3823, 0
    %v3982 = vsel %vm267, %v3824, 0
    %v3985 = vsel %vm267, %v3825, 0
    %v3988 = vsel %vm267, %v3826, 0
    %v3991 = vsel %vm267, %v3827, 0
    %v3994 = vsel %vm267, %v3828, 0
    %v3997 = vsel %vm267, %v3829, 0
    %v4000 = vsel %vm267, %v3830, 0
    %v4003 = vsel %vm267, %v3831, 0
    %v4006 = vsel %vm267, %v3832, 0
    %v4009 = vsel %vm267, %v3833, 0
    %v4012 = vsel %vm267, %v3834, 0
    %v4015 = vsel %vm267, %v3835, 0
    %v4018 = vsel %vm267, %v3836, 0
    %v4021 = vsel %vm267, %v3837, 0
    %v4024 = vsel %vm267, %v3838, 0
    %v4027 = vsel %vm267, %v3839, 0
    %v4030 = vsel %vm267, %v3840, 0
    %v4033 = vsel %vm267, %v3841, 0
    %v4036 = vsel %vm267, %v3842, 0
    %v4039 = vsel %vm267, %v3843, 0
    %v4042 = vsel %vm267, %v3844, 0
    %v4045 = vsel %vm267, %v3845, 0
    %v4048 = vsel %vm267, %v3846, 0
    %v4051 = vsel %vm267, %v3847, 0
    %v4054 = vsel %vm267, %v3848, 0
    %v4057 = vsel %vm267, %v3849, 0
    %v4060 = vsel %vm267, %v3850, 0
    %v4063 = vsel %vm267, %v3851, 0
    %v4066 = vsel %vm267, %v3852, 0
    %v4069 = vsel %vm267, %v3853, 0
    %v4072 = vsel %vm267, %v3854, 0
    %v4075 = vsel %vm267, %v3855, 0
    %v4078 = vsel %vm267, %v3856, 0
    %v4081 = vsel %vm267, %v3857, 0
    %v4084 = vsel %vm267, %v3858, 0
    %v4087 = vsel %vm267, %v3859, 0
    %v4090 = vsel %vm267, %v3860, 0
    %v4093 = vsel %vm267, %v3861, 0
    %v4096 = vsel %vm499, %v3863, 0
    %4098 = vmatpush.msra.mxu0 0.0
    %4099 = vmatpush.msra.mxu0 0.0
    %4100 = vmatpush.msra.mxu0 0.0
    %4101 = vmatpush.msra.mxu0 0.0
    %4102 = vmatpush.msra.mxu0 0.0
    %4103 = vmatpush.msra.mxu0 0.0
    %4104 = vmatpush.msra.mxu0 0.0
    %4105 = vmatpush.msra.mxu0 0.0
    %4106 = vmatpush.msra.mxu0 0.0
    %4107 = vmatpush.msra.mxu0 0.0
    %4108 = vmatpush.msra.mxu0 0.0
    %4109 = vmatpush.msra.mxu0 0.0
    %4110 = vmatpush.msra.mxu0 0.0
    %4111 = vmatpush.msra.mxu0 0.0
    %4112 = vmatpush.msra.mxu0 0.0
    %4113 = vmatpush.msra.mxu0 %v4096
    %4114 = vmatmul.f32.gmra.mxu0 %v3865
    %v4115 = vpop.f32.mrf.mxu0
    %v4116 = vadd.f32 0.0, %v4115
    %4117 = vmatmul.f32.gmra.mxu0 %v3868
    %v4118 = vpop.f32.mrf.mxu0
    %v4119 = vadd.f32 0.0, %v4118
    %4120 = vmatmul.f32.gmra.mxu0 %v3871
    %v4121 = vpop.f32.mrf.mxu0
    %v4122 = vadd.f32 0.0, %v4121
    %4123 = vmatmul.f32.gmra.mxu0 %v3874
    %v4124 = vpop.f32.mrf.mxu0
    %v4125 = vadd.f32 0.0, %v4124
    %4126 = vmatmul.f32.gmra.mxu0 %v3877
    %v4127 = vpop.f32.mrf.mxu0
    %v4128 = vadd.f32 0.0, %v4127
    %4129 = vmatmul.f32.gmra.mxu0 %v3880
    %v4130 = vpop.f32.mrf.mxu0
    %v4131 = vadd.f32 0.0, %v4130
    %4132 = vmatmul.f32.gmra.mxu0 %v3883
    %v4133 = vpop.f32.mrf.mxu0
    %v4134 = vadd.f32 0.0, %v4133
    %4135 = vmatmul.f32.gmra.mxu0 %v3886
    %v4136 = vpop.f32.mrf.mxu0
    %v4137 = vadd.f32 0.0, %v4136
    %4138 = vmatmul.f32.gmra.mxu0 %v3889
    %v4139 = vpop.f32.mrf.mxu0
    %v4140 = vadd.f32 0.0, %v4139
    %4141 = vmatmul.f32.gmra.mxu0 %v3892
    %v4142 = vpop.f32.mrf.mxu0
    %v4143 = vadd.f32 0.0, %v4142
    %4144 = vmatmul.f32.gmra.mxu0 %v3895
    %v4145 = vpop.f32.mrf.mxu0
    %v4146 = vadd.f32 0.0, %v4145
    %4147 = vmatmul.f32.gmra.mxu0 %v3898
    %v4148 = vpop.f32.mrf.mxu0
    %v4149 = vadd.f32 0.0, %v4148
    %4150 = vmatmul.f32.gmra.mxu0 %v3901
    %v4151 = vpop.f32.mrf.mxu0
    %v4152 = vadd.f32 0.0, %v4151
    %4153 = vmatmul.f32.gmra.mxu0 %v3904
    %v4154 = vpop.f32.mrf.mxu0
    %v4155 = vadd.f32 0.0, %v4154
    %4156 = vmatmul.f32.gmra.mxu0 %v3907
    %v4157 = vpop.f32.mrf.mxu0
    %v4158 = vadd.f32 0.0, %v4157
    %4159 = vmatmul.f32.gmra.mxu0 %v3910
    %v4160 = vpop.f32.mrf.mxu0
    %v4161 = vadd.f32 0.0, %v4160
    %4162 = vmatmul.f32.gmra.mxu0 %v3913
    %v4163 = vpop.f32.mrf.mxu0
    %v4164 = vadd.f32 0.0, %v4163
    %4165 = vmatmul.f32.gmra.mxu0 %v3916
    %v4166 = vpop.f32.mrf.mxu0
    %v4167 = vadd.f32 0.0, %v4166
    %4168 = vmatmul.f32.gmra.mxu0 %v3919
    %v4169 = vpop.f32.mrf.mxu0
    %v4170 = vadd.f32 0.0, %v4169
    %4171 = vmatmul.f32.gmra.mxu0 %v3922
    %v4172 = vpop.f32.mrf.mxu0
    %v4173 = vadd.f32 0.0, %v4172
    %4174 = vmatmul.f32.gmra.mxu0 %v3925
    %v4175 = vpop.f32.mrf.mxu0
    %v4176 = vadd.f32 0.0, %v4175
    %4177 = vmatmul.f32.gmra.mxu0 %v3928
    %v4178 = vpop.f32.mrf.mxu0
    %v4179 = vadd.f32 0.0, %v4178
    %4180 = vmatmul.f32.gmra.mxu0 %v3931
    %v4181 = vpop.f32.mrf.mxu0
    %v4182 = vadd.f32 0.0, %v4181
    %4183 = vmatmul.f32.gmra.mxu0 %v3934
    %v4184 = vpop.f32.mrf.mxu0
    %v4185 = vadd.f32 0.0, %v4184
    %4186 = vmatmul.f32.gmra.mxu0 %v3937
    %v4187 = vpop.f32.mrf.mxu0
    %v4188 = vadd.f32 0.0, %v4187
    %4189 = vmatmul.f32.gmra.mxu0 %v3940
    %v4190 = vpop.f32.mrf.mxu0
    %v4191 = vadd.f32 0.0, %v4190
    %4192 = vmatmul.f32.gmra.mxu0 %v3943
    %v4193 = vpop.f32.mrf.mxu0
    %v4194 = vadd.f32 0.0, %v4193
    %4195 = vmatmul.f32.gmra.mxu0 %v3946
    %v4196 = vpop.f32.mrf.mxu0
    %v4197 = vadd.f32 0.0, %v4196
    %4198 = vmatmul.f32.gmra.mxu0 %v3949
    %v4199 = vpop.f32.mrf.mxu0
    %v4200 = vadd.f32 0.0, %v4199
    %4201 = vmatmul.f32.gmra.mxu0 %v3952
    %v4202 = vpop.f32.mrf.mxu0
    %v4203 = vadd.f32 0.0, %v4202
    %4204 = vmatmul.f32.gmra.mxu0 %v3955
    %v4205 = vpop.f32.mrf.mxu0
    %v4206 = vadd.f32 0.0, %v4205
    %4207 = vmatmul.f32.gmra.mxu0 %v3958
    %v4208 = vpop.f32.mrf.mxu0
    %v4209 = vadd.f32 0.0, %v4208
    %4210 = vmatmul.f32.gmra.mxu0 %v3961
    %v4211 = vpop.f32.mrf.mxu0
    %v4212 = vadd.f32 0.0, %v4211
    %4213 = vmatmul.f32.gmra.mxu0 %v3964
    %v4214 = vpop.f32.mrf.mxu0
    %v4215 = vadd.f32 0.0, %v4214
    %4216 = vmatmul.f32.gmra.mxu0 %v3967
    %v4217 = vpop.f32.mrf.mxu0
    %v4218 = vadd.f32 0.0, %v4217
    %4219 = vmatmul.f32.gmra.mxu0 %v3970
    %v4220 = vpop.f32.mrf.mxu0
    %v4221 = vadd.f32 0.0, %v4220
    %4222 = vmatmul.f32.gmra.mxu0 %v3973
    %v4223 = vpop.f32.mrf.mxu0
    %v4224 = vadd.f32 0.0, %v4223
    %4225 = vmatmul.f32.gmra.mxu0 %v3976
    %v4226 = vpop.f32.mrf.mxu0
    %v4227 = vadd.f32 0.0, %v4226
    %4228 = vmatmul.f32.gmra.mxu0 %v3979
    %v4229 = vpop.f32.mrf.mxu0
    %v4230 = vadd.f32 0.0, %v4229
    %4231 = vmatmul.f32.gmra.mxu0 %v3982
    %v4232 = vpop.f32.mrf.mxu0
    %v4233 = vadd.f32 0.0, %v4232
    %4234 = vmatmul.f32.gmra.mxu0 %v3985
    %v4235 = vpop.f32.mrf.mxu0
    %v4236 = vadd.f32 0.0, %v4235
    %4237 = vmatmul.f32.gmra.mxu0 %v3988
    %v4238 = vpop.f32.mrf.mxu0
    %v4239 = vadd.f32 0.0, %v4238
    %4240 = vmatmul.f32.gmra.mxu0 %v3991
    %v4241 = vpop.f32.mrf.mxu0
    %v4242 = vadd.f32 0.0, %v4241
    %4243 = vmatmul.f32.gmra.mxu0 %v3994
    %v4244 = vpop.f32.mrf.mxu0
    %v4245 = vadd.f32 0.0, %v4244
    %4246 = vmatmul.f32.gmra.mxu0 %v3997
    %v4247 = vpop.f32.mrf.mxu0
    %v4248 = vadd.f32 0.0, %v4247
    %4249 = vmatmul.f32.gmra.mxu0 %v4000
    %v4250 = vpop.f32.mrf.mxu0
    %v4251 = vadd.f32 0.0, %v4250
    %4252 = vmatmul.f32.gmra.mxu0 %v4003
    %v4253 = vpop.f32.mrf.mxu0
    %v4254 = vadd.f32 0.0, %v4253
    %4255 = vmatmul.f32.gmra.mxu0 %v4006
    %v4256 = vpop.f32.mrf.mxu0
    %v4257 = vadd.f32 0.0, %v4256
    %4258 = vmatmul.f32.gmra.mxu0 %v4009
    %v4259 = vpop.f32.mrf.mxu0
    %v4260 = vadd.f32 0.0, %v4259
    %4261 = vmatmul.f32.gmra.mxu0 %v4012
    %v4262 = vpop.f32.mrf.mxu0
    %v4263 = vadd.f32 0.0, %v4262
    %4264 = vmatmul.f32.gmra.mxu0 %v4015
    %v4265 = vpop.f32.mrf.mxu0
    %v4266 = vadd.f32 0.0, %v4265
    %4267 = vmatmul.f32.gmra.mxu0 %v4018
    %v4268 = vpop.f32.mrf.mxu0
    %v4269 = vadd.f32 0.0, %v4268
    %4270 = vmatmul.f32.gmra.mxu0 %v4021
    %v4271 = vpop.f32.mrf.mxu0
    %v4272 = vadd.f32 0.0, %v4271
    %4273 = vmatmul.f32.gmra.mxu0 %v4024
    %v4274 = vpop.f32.mrf.mxu0
    %v4275 = vadd.f32 0.0, %v4274
    %4276 = vmatmul.f32.gmra.mxu0 %v4027
    %v4277 = vpop.f32.mrf.mxu0
    %v4278 = vadd.f32 0.0, %v4277
    %4279 = vmatmul.f32.gmra.mxu0 %v4030
    %v4280 = vpop.f32.mrf.mxu0
    %v4281 = vadd.f32 0.0, %v4280
    %4282 = vmatmul.f32.gmra.mxu0 %v4033
    %v4283 = vpop.f32.mrf.mxu0
    %v4284 = vadd.f32 0.0, %v4283
    %4285 = vmatmul.f32.gmra.mxu0 %v4036
    %v4286 = vpop.f32.mrf.mxu0
    %v4287 = vadd.f32 0.0, %v4286
    %4288 = vmatmul.f32.gmra.mxu0 %v4039
    %v4289 = vpop.f32.mrf.mxu0
    %v4290 = vadd.f32 0.0, %v4289
    %4291 = vmatmul.f32.gmra.mxu0 %v4042
    %v4292 = vpop.f32.mrf.mxu0
    %v4293 = vadd.f32 0.0, %v4292
    %4294 = vmatmul.f32.gmra.mxu0 %v4045
    %v4295 = vpop.f32.mrf.mxu0
    %v4296 = vadd.f32 0.0, %v4295
    %4297 = vmatmul.f32.gmra.mxu0 %v4048
    %v4298 = vpop.f32.mrf.mxu0
    %v4299 = vadd.f32 0.0, %v4298
    %4300 = vmatmul.f32.gmra.mxu0 %v4051
    %v4301 = vpop.f32.mrf.mxu0
    %v4302 = vadd.f32 0.0, %v4301
    %4303 = vmatmul.f32.gmra.mxu0 %v4054
    %v4304 = vpop.f32.mrf.mxu0
    %v4305 = vadd.f32 0.0, %v4304
    %4306 = vmatmul.f32.gmra.mxu0 %v4057
    %v4307 = vpop.f32.mrf.mxu0
    %v4308 = vadd.f32 0.0, %v4307
    %4309 = vmatmul.f32.gmra.mxu0 %v4060
    %v4310 = vpop.f32.mrf.mxu0
    %v4311 = vadd.f32 0.0, %v4310
    %4312 = vmatmul.f32.gmra.mxu0 %v4063
    %v4313 = vpop.f32.mrf.mxu0
    %v4314 = vadd.f32 0.0, %v4313
    %4315 = vmatmul.f32.gmra.mxu0 %v4066
    %v4316 = vpop.f32.mrf.mxu0
    %v4317 = vadd.f32 0.0, %v4316
    %4318 = vmatmul.f32.gmra.mxu0 %v4069
    %v4319 = vpop.f32.mrf.mxu0
    %v4320 = vadd.f32 0.0, %v4319
    %4321 = vmatmul.f32.gmra.mxu0 %v4072
    %v4322 = vpop.f32.mrf.mxu0
    %v4323 = vadd.f32 0.0, %v4322
    %4324 = vmatmul.f32.gmra.mxu0 %v4075
    %v4325 = vpop.f32.mrf.mxu0
    %v4326 = vadd.f32 0.0, %v4325
    %4327 = vmatmul.f32.gmra.mxu0 %v4078
    %v4328 = vpop.f32.mrf.mxu0
    %v4329 = vadd.f32 0.0, %v4328
    %4330 = vmatmul.f32.gmra.mxu0 %v4081
    %v4331 = vpop.f32.mrf.mxu0
    %v4332 = vadd.f32 0.0, %v4331
    %4333 = vmatmul.f32.gmra.mxu0 %v4084
    %v4334 = vpop.f32.mrf.mxu0
    %v4335 = vadd.f32 0.0, %v4334
    %4336 = vmatmul.f32.gmra.mxu0 %v4087
    %v4337 = vpop.f32.mrf.mxu0
    %v4338 = vadd.f32 0.0, %v4337
    %4339 = vmatmul.f32.gmra.mxu0 %v4090
    %v4340 = vpop.f32.mrf.mxu0
    %v4341 = vadd.f32 0.0, %v4340
    %4342 = vmatmul.f32.gmra.mxu0 %v4093
    %v4343 = vpop.f32.mrf.mxu0
    %v4344 = vadd.f32 0.0, %v4343
    %4345 = vdwg.mxu0
    %v4346 = vadd.f32 %v3708, %v4116
    %v4347 = vadd.f32 %v3709, %v4119
    %v4348 = vadd.f32 %v3710, %v4122
    %v4349 = vadd.f32 %v3711, %v4125
    %v4350 = vadd.f32 %v3712, %v4128
    %v4351 = vadd.f32 %v3713, %v4131
    %v4352 = vadd.f32 %v3714, %v4134
    %v4353 = vadd.f32 %v3715, %v4137
    %v4354 = vadd.f32 %v3716, %v4140
    %v4355 = vadd.f32 %v3717, %v4143
    %v4356 = vadd.f32 %v3718, %v4146
    %v4357 = vadd.f32 %v3719, %v4149
    %v4358 = vadd.f32 %v3720, %v4152
    %v4359 = vadd.f32 %v3721, %v4155
    %v4360 = vadd.f32 %v3722, %v4158
    %v4361 = vadd.f32 %v3723, %v4161
    %v4362 = vadd.f32 %v3724, %v4164
    %v4363 = vadd.f32 %v3725, %v4167
    %v4364 = vadd.f32 %v3726, %v4170
    %v4365 = vadd.f32 %v3727, %v4173
    %v4366 = vadd.f32 %v3728, %v4176
    %v4367 = vadd.f32 %v3729, %v4179
    %v4368 = vadd.f32 %v3730, %v4182
    %v4369 = vadd.f32 %v3731, %v4185
    %v4370 = vadd.f32 %v3732, %v4188
    %v4371 = vadd.f32 %v3733, %v4191
    %v4372 = vadd.f32 %v3734, %v4194
    %v4373 = vadd.f32 %v3735, %v4197
    %v4374 = vadd.f32 %v3736, %v4200
    %v4375 = vadd.f32 %v3737, %v4203
    %v4376 = vadd.f32 %v3738, %v4206
    %v4377 = vadd.f32 %v3739, %v4209
    %v4378 = vadd.f32 %v3740, %v4212
    %v4379 = vadd.f32 %v3741, %v4215
    %v4380 = vadd.f32 %v3742, %v4218
    %v4381 = vadd.f32 %v3743, %v4221
    %v4382 = vadd.f32 %v3744, %v4224
    %v4383 = vadd.f32 %v3745, %v4227
    %v4384 = vadd.f32 %v3746, %v4230
    %v4385 = vadd.f32 %v3747, %v4233
    %v4386 = vadd.f32 %v3748, %v4236
    %v4387 = vadd.f32 %v3749, %v4239
    %v4388 = vadd.f32 %v3750, %v4242
    %v4389 = vadd.f32 %v3751, %v4245
    %v4390 = vadd.f32 %v3752, %v4248
    %v4391 = vadd.f32 %v3753, %v4251
    %v4392 = vadd.f32 %v3754, %v4254
    %v4393 = vadd.f32 %v3755, %v4257
    %v4394 = vadd.f32 %v3756, %v4260
    %v4395 = vadd.f32 %v3757, %v4263
    %v4396 = vadd.f32 %v3758, %v4266
    %v4397 = vadd.f32 %v3759, %v4269
    %v4398 = vadd.f32 %v3760, %v4272
    %v4399 = vadd.f32 %v3761, %v4275
    %v4400 = vadd.f32 %v3762, %v4278
    %v4401 = vadd.f32 %v3763, %v4281
    %v4402 = vadd.f32 %v3764, %v4284
    %v4403 = vadd.f32 %v3765, %v4287
    %v4404 = vadd.f32 %v3766, %v4290
    %v4405 = vadd.f32 %v3767, %v4293
    %v4406 = vadd.f32 %v3768, %v4296
    %v4407 = vadd.f32 %v3769, %v4299
    %v4408 = vadd.f32 %v3770, %v4302
    %v4409 = vadd.f32 %v3771, %v4305
    %v4410 = vadd.f32 %v3772, %v4308
    %v4411 = vadd.f32 %v3773, %v4311
    %v4412 = vadd.f32 %v3774, %v4314
    %v4413 = vadd.f32 %v3775, %v4317
    %v4414 = vadd.f32 %v3776, %v4320
    %v4415 = vadd.f32 %v3777, %v4323
    %v4416 = vadd.f32 %v3778, %v4326
    %v4417 = vadd.f32 %v3779, %v4329
    %v4418 = vadd.f32 %v3780, %v4332
    %v4419 = vadd.f32 %v3781, %v4335
    %v4420 = vadd.f32 %v3782, %v4338
    %v4421 = vadd.f32 %v3783, %v4341
    %v4422 = vadd.f32 %v3784, %v4344
    %v4423 = vld [vmem:[%s0 + $0x25] sm:$0xff]
    %v4424 = vld [vmem:[%s0 + $0x2d] sm:$0xff]
    %v4425 = vld [vmem:[%s0 + $0x35] sm:$0xff]
    %v4426 = vld [vmem:[%s0 + $0x3d] sm:$0xff]
    %v4427 = vld [vmem:[%s0 + $0x45] sm:$0xff]
    %v4428 = vld [vmem:[%s0 + $0x4d] sm:$0xff]
    %v4429 = vld [vmem:[%s0 + $0x55] sm:$0xff]
    %v4430 = vld [vmem:[%s0 + $0x5d] sm:$0xff]
    %v4431 = vld [vmem:[%s0 + $0x65] sm:$0xff]
    %v4432 = vld [vmem:[%s0 + $0x6d] sm:$0xff]
    %v4433 = vld [vmem:[%s0 + $0x75] sm:$0xff]
    %v4434 = vld [vmem:[%s0 + $0x7d] sm:$0xff]
    %v4435 = vld [vmem:[%s0 + $0x85] sm:$0xff]
    %v4436 = vld [vmem:[%s0 + $0x8d] sm:$0xff]
    %v4437 = vld [vmem:[%s0 + $0x95] sm:$0xff]
    %v4438 = vld [vmem:[%s0 + $0x9d] sm:$0xff]
    %v4439 = vld [vmem:[%s0 + $0xa5] sm:$0xff]
    %v4440 = vld [vmem:[%s0 + $0xad] sm:$0xff]
    %v4441 = vld [vmem:[%s0 + $0xb5] sm:$0xff]
    %v4442 = vld [vmem:[%s0 + $0xbd] sm:$0xff]
    %v4443 = vld [vmem:[%s0 + $0xc5] sm:$0xff]
    %v4444 = vld [vmem:[%s0 + $0xcd] sm:$0xff]
    %v4445 = vld [vmem:[%s0 + $0xd5] sm:$0xff]
    %v4446 = vld [vmem:[%s0 + $0xdd] sm:$0xff]
    %v4447 = vld [vmem:[%s0 + $0xe5] sm:$0xff]
    %v4448 = vld [vmem:[%s0 + $0xed] sm:$0xff]
    %v4449 = vld [vmem:[%s0 + $0xf5] sm:$0xff]
    %v4450 = vld [vmem:[%s0 + $0xfd] sm:$0xff]
    %v4451 = vld [vmem:[%s0 + $0x105] sm:$0xff]
    %v4452 = vld [vmem:[%s0 + $0x10d] sm:$0xff]
    %v4453 = vld [vmem:[%s0 + $0x115] sm:$0xff]
    %v4454 = vld [vmem:[%s0 + $0x11d] sm:$0xff]
    %v4455 = vld [vmem:[%s0 + $0x125] sm:$0xff]
    %v4456 = vld [vmem:[%s0 + $0x12d] sm:$0xff]
    %v4457 = vld [vmem:[%s0 + $0x135] sm:$0xff]
    %v4458 = vld [vmem:[%s0 + $0x13d] sm:$0xff]
    %v4459 = vld [vmem:[%s0 + $0x145] sm:$0xff]
    %v4460 = vld [vmem:[%s0 + $0x14d] sm:$0xff]
    %v4461 = vld [vmem:[%s0 + $0x155] sm:$0xff]
    %v4462 = vld [vmem:[%s0 + $0x15d] sm:$0xff]
    %v4463 = vld [vmem:[%s0 + $0x165] sm:$0xff]
    %v4464 = vld [vmem:[%s0 + $0x16d] sm:$0xff]
    %v4465 = vld [vmem:[%s0 + $0x175] sm:$0xff]
    %v4466 = vld [vmem:[%s0 + $0x17d] sm:$0xff]
    %v4467 = vld [vmem:[%s0 + $0x185] sm:$0xff]
    %v4468 = vld [vmem:[%s0 + $0x18d] sm:$0xff]
    %v4469 = vld [vmem:[%s0 + $0x195] sm:$0xff]
    %v4470 = vld [vmem:[%s0 + $0x19d] sm:$0xff]
    %v4471 = vld [vmem:[%s0 + $0x1a5] sm:$0xff]
    %v4472 = vld [vmem:[%s0 + $0x1ad] sm:$0xff]
    %v4473 = vld [vmem:[%s0 + $0x1b5] sm:$0xff]
    %v4474 = vld [vmem:[%s0 + $0x1bd] sm:$0xff]
    %v4475 = vld [vmem:[%s0 + $0x1c5] sm:$0xff]
    %v4476 = vld [vmem:[%s0 + $0x1cd] sm:$0xff]
    %v4477 = vld [vmem:[%s0 + $0x1d5] sm:$0xff]
    %v4478 = vld [vmem:[%s0 + $0x1dd] sm:$0xff]
    %v4479 = vld [vmem:[%s0 + $0x1e5] sm:$0xff]
    %v4480 = vld [vmem:[%s0 + $0x1ed] sm:$0xff]
    %v4481 = vld [vmem:[%s0 + $0x1f5] sm:$0xff]
    %v4482 = vld [vmem:[%s0 + $0x1fd] sm:$0xff]
    %v4483 = vld [vmem:[%s0 + $0x205] sm:$0xff]
    %v4484 = vld [vmem:[%s0 + $0x20d] sm:$0xff]
    %v4485 = vld [vmem:[%s0 + $0x215] sm:$0xff]
    %v4486 = vld [vmem:[%s0 + $0x21d] sm:$0xff]
    %v4487 = vld [vmem:[%s0 + $0x225] sm:$0xff]
    %v4488 = vld [vmem:[%s0 + $0x22d] sm:$0xff]
    %v4489 = vld [vmem:[%s0 + $0x235] sm:$0xff]
    %v4490 = vld [vmem:[%s0 + $0x23d] sm:$0xff]
    %v4491 = vld [vmem:[%s0 + $0x245] sm:$0xff]
    %v4492 = vld [vmem:[%s0 + $0x24d] sm:$0xff]
    %v4493 = vld [vmem:[%s0 + $0x255] sm:$0xff]
    %v4494 = vld [vmem:[%s0 + $0x25d] sm:$0xff]
    %v4495 = vld [vmem:[%s0 + $0x265] sm:$0xff]
    %v4496 = vld [vmem:[%s0 + $0x26d] sm:$0xff]
    %v4497 = vld [vmem:[%s0 + $0x275] sm:$0xff]
    %v4498 = vld [vmem:[%s0 + $0x27d] sm:$0xff]
    %v4499 = vld [vmem:[%s0 + $0x285] sm:$0x3]
    %s4500 = scalar_lea.vmem %s1, 28
    %v4501 = vld [vmem:[%s4500] sm:$0x7]
    %v4503 = vsel %vm267, %v4423, 0
    %v4506 = vsel %vm267, %v4424, 0
    %v4509 = vsel %vm267, %v4425, 0
    %v4512 = vsel %vm267, %v4426, 0
    %v4515 = vsel %vm267, %v4427, 0
    %v4518 = vsel %vm267, %v4428, 0
    %v4521 = vsel %vm267, %v4429, 0
    %v4524 = vsel %vm267, %v4430, 0
    %v4527 = vsel %vm267, %v4431, 0
    %v4530 = vsel %vm267, %v4432, 0
    %v4533 = vsel %vm267, %v4433, 0
    %v4536 = vsel %vm267, %v4434, 0
    %v4539 = vsel %vm267, %v4435, 0
    %v4542 = vsel %vm267, %v4436, 0
    %v4545 = vsel %vm267, %v4437, 0
    %v4548 = vsel %vm267, %v4438, 0
    %v4551 = vsel %vm267, %v4439, 0
    %v4554 = vsel %vm267, %v4440, 0
    %v4557 = vsel %vm267, %v4441, 0
    %v4560 = vsel %vm267, %v4442, 0
    %v4563 = vsel %vm267, %v4443, 0
    %v4566 = vsel %vm267, %v4444, 0
    %v4569 = vsel %vm267, %v4445, 0
    %v4572 = vsel %vm267, %v4446, 0
    %v4575 = vsel %vm267, %v4447, 0
    %v4578 = vsel %vm267, %v4448, 0
    %v4581 = vsel %vm267, %v4449, 0
    %v4584 = vsel %vm267, %v4450, 0
    %v4587 = vsel %vm267, %v4451, 0
    %v4590 = vsel %vm267, %v4452, 0
    %v4593 = vsel %vm267, %v4453, 0
    %v4596 = vsel %vm267, %v4454, 0
    %v4599 = vsel %vm267, %v4455, 0
    %v4602 = vsel %vm267, %v4456, 0
    %v4605 = vsel %vm267, %v4457, 0
    %v4608 = vsel %vm267, %v4458, 0
    %v4611 = vsel %vm267, %v4459, 0
    %v4614 = vsel %vm267, %v4460, 0
    %v4617 = vsel %vm267, %v4461, 0
    %v4620 = vsel %vm267, %v4462, 0
    %v4623 = vsel %vm267, %v4463, 0
    %v4626 = vsel %vm267, %v4464, 0
    %v4629 = vsel %vm267, %v4465, 0
    %v4632 = vsel %vm267, %v4466, 0
    %v4635 = vsel %vm267, %v4467, 0
    %v4638 = vsel %vm267, %v4468, 0
    %v4641 = vsel %vm267, %v4469, 0
    %v4644 = vsel %vm267, %v4470, 0
    %v4647 = vsel %vm267, %v4471, 0
    %v4650 = vsel %vm267, %v4472, 0
    %v4653 = vsel %vm267, %v4473, 0
    %v4656 = vsel %vm267, %v4474, 0
    %v4659 = vsel %vm267, %v4475, 0
    %v4662 = vsel %vm267, %v4476, 0
    %v4665 = vsel %vm267, %v4477, 0
    %v4668 = vsel %vm267, %v4478, 0
    %v4671 = vsel %vm267, %v4479, 0
    %v4674 = vsel %vm267, %v4480, 0
    %v4677 = vsel %vm267, %v4481, 0
    %v4680 = vsel %vm267, %v4482, 0
    %v4683 = vsel %vm267, %v4483, 0
    %v4686 = vsel %vm267, %v4484, 0
    %v4689 = vsel %vm267, %v4485, 0
    %v4692 = vsel %vm267, %v4486, 0
    %v4695 = vsel %vm267, %v4487, 0
    %v4698 = vsel %vm267, %v4488, 0
    %v4701 = vsel %vm267, %v4489, 0
    %v4704 = vsel %vm267, %v4490, 0
    %v4707 = vsel %vm267, %v4491, 0
    %v4710 = vsel %vm267, %v4492, 0
    %v4713 = vsel %vm267, %v4493, 0
    %v4716 = vsel %vm267, %v4494, 0
    %v4719 = vsel %vm267, %v4495, 0
    %v4722 = vsel %vm267, %v4496, 0
    %v4725 = vsel %vm267, %v4497, 0
    %v4728 = vsel %vm267, %v4498, 0
    %v4731 = vsel %vm267, %v4499, 0
    %v4734 = vsel %vm499, %v4501, 0
    %4736 = vmatpush.msra.mxu0 0.0
    %4737 = vmatpush.msra.mxu0 0.0
    %4738 = vmatpush.msra.mxu0 0.0
    %4739 = vmatpush.msra.mxu0 0.0
    %4740 = vmatpush.msra.mxu0 0.0
    %4741 = vmatpush.msra.mxu0 0.0
    %4742 = vmatpush.msra.mxu0 0.0
    %4743 = vmatpush.msra.mxu0 0.0
    %4744 = vmatpush.msra.mxu0 0.0
    %4745 = vmatpush.msra.mxu0 0.0
    %4746 = vmatpush.msra.mxu0 0.0
    %4747 = vmatpush.msra.mxu0 0.0
    %4748 = vmatpush.msra.mxu0 0.0
    %4749 = vmatpush.msra.mxu0 0.0
    %4750 = vmatpush.msra.mxu0 0.0
    %4751 = vmatpush.msra.mxu0 %v4734
    %4752 = vmatmul.f32.gmra.mxu0 %v4503
    %v4753 = vpop.f32.mrf.mxu0
    %v4754 = vadd.f32 0.0, %v4753
    %4755 = vmatmul.f32.gmra.mxu0 %v4506
    %v4756 = vpop.f32.mrf.mxu0
    %v4757 = vadd.f32 0.0, %v4756
    %4758 = vmatmul.f32.gmra.mxu0 %v4509
    %v4759 = vpop.f32.mrf.mxu0
    %v4760 = vadd.f32 0.0, %v4759
    %4761 = vmatmul.f32.gmra.mxu0 %v4512
    %v4762 = vpop.f32.mrf.mxu0
    %v4763 = vadd.f32 0.0, %v4762
    %4764 = vmatmul.f32.gmra.mxu0 %v4515
    %v4765 = vpop.f32.mrf.mxu0
    %v4766 = vadd.f32 0.0, %v4765
    %4767 = vmatmul.f32.gmra.mxu0 %v4518
    %v4768 = vpop.f32.mrf.mxu0
    %v4769 = vadd.f32 0.0, %v4768
    %4770 = vmatmul.f32.gmra.mxu0 %v4521
    %v4771 = vpop.f32.mrf.mxu0
    %v4772 = vadd.f32 0.0, %v4771
    %4773 = vmatmul.f32.gmra.mxu0 %v4524
    %v4774 = vpop.f32.mrf.mxu0
    %v4775 = vadd.f32 0.0, %v4774
    %4776 = vmatmul.f32.gmra.mxu0 %v4527
    %v4777 = vpop.f32.mrf.mxu0
    %v4778 = vadd.f32 0.0, %v4777
    %4779 = vmatmul.f32.gmra.mxu0 %v4530
    %v4780 = vpop.f32.mrf.mxu0
    %v4781 = vadd.f32 0.0, %v4780
    %4782 = vmatmul.f32.gmra.mxu0 %v4533
    %v4783 = vpop.f32.mrf.mxu0
    %v4784 = vadd.f32 0.0, %v4783
    %4785 = vmatmul.f32.gmra.mxu0 %v4536
    %v4786 = vpop.f32.mrf.mxu0
    %v4787 = vadd.f32 0.0, %v4786
    %4788 = vmatmul.f32.gmra.mxu0 %v4539
    %v4789 = vpop.f32.mrf.mxu0
    %v4790 = vadd.f32 0.0, %v4789
    %4791 = vmatmul.f32.gmra.mxu0 %v4542
    %v4792 = vpop.f32.mrf.mxu0
    %v4793 = vadd.f32 0.0, %v4792
    %4794 = vmatmul.f32.gmra.mxu0 %v4545
    %v4795 = vpop.f32.mrf.mxu0
    %v4796 = vadd.f32 0.0, %v4795
    %4797 = vmatmul.f32.gmra.mxu0 %v4548
    %v4798 = vpop.f32.mrf.mxu0
    %v4799 = vadd.f32 0.0, %v4798
    %4800 = vmatmul.f32.gmra.mxu0 %v4551
    %v4801 = vpop.f32.mrf.mxu0
    %v4802 = vadd.f32 0.0, %v4801
    %4803 = vmatmul.f32.gmra.mxu0 %v4554
    %v4804 = vpop.f32.mrf.mxu0
    %v4805 = vadd.f32 0.0, %v4804
    %4806 = vmatmul.f32.gmra.mxu0 %v4557
    %v4807 = vpop.f32.mrf.mxu0
    %v4808 = vadd.f32 0.0, %v4807
    %4809 = vmatmul.f32.gmra.mxu0 %v4560
    %v4810 = vpop.f32.mrf.mxu0
    %v4811 = vadd.f32 0.0, %v4810
    %4812 = vmatmul.f32.gmra.mxu0 %v4563
    %v4813 = vpop.f32.mrf.mxu0
    %v4814 = vadd.f32 0.0, %v4813
    %4815 = vmatmul.f32.gmra.mxu0 %v4566
    %v4816 = vpop.f32.mrf.mxu0
    %v4817 = vadd.f32 0.0, %v4816
    %4818 = vmatmul.f32.gmra.mxu0 %v4569
    %v4819 = vpop.f32.mrf.mxu0
    %v4820 = vadd.f32 0.0, %v4819
    %4821 = vmatmul.f32.gmra.mxu0 %v4572
    %v4822 = vpop.f32.mrf.mxu0
    %v4823 = vadd.f32 0.0, %v4822
    %4824 = vmatmul.f32.gmra.mxu0 %v4575
    %v4825 = vpop.f32.mrf.mxu0
    %v4826 = vadd.f32 0.0, %v4825
    %4827 = vmatmul.f32.gmra.mxu0 %v4578
    %v4828 = vpop.f32.mrf.mxu0
    %v4829 = vadd.f32 0.0, %v4828
    %4830 = vmatmul.f32.gmra.mxu0 %v4581
    %v4831 = vpop.f32.mrf.mxu0
    %v4832 = vadd.f32 0.0, %v4831
    %4833 = vmatmul.f32.gmra.mxu0 %v4584
    %v4834 = vpop.f32.mrf.mxu0
    %v4835 = vadd.f32 0.0, %v4834
    %4836 = vmatmul.f32.gmra.mxu0 %v4587
    %v4837 = vpop.f32.mrf.mxu0
    %v4838 = vadd.f32 0.0, %v4837
    %4839 = vmatmul.f32.gmra.mxu0 %v4590
    %v4840 = vpop.f32.mrf.mxu0
    %v4841 = vadd.f32 0.0, %v4840
    %4842 = vmatmul.f32.gmra.mxu0 %v4593
    %v4843 = vpop.f32.mrf.mxu0
    %v4844 = vadd.f32 0.0, %v4843
    %4845 = vmatmul.f32.gmra.mxu0 %v4596
    %v4846 = vpop.f32.mrf.mxu0
    %v4847 = vadd.f32 0.0, %v4846
    %4848 = vmatmul.f32.gmra.mxu0 %v4599
    %v4849 = vpop.f32.mrf.mxu0
    %v4850 = vadd.f32 0.0, %v4849
    %4851 = vmatmul.f32.gmra.mxu0 %v4602
    %v4852 = vpop.f32.mrf.mxu0
    %v4853 = vadd.f32 0.0, %v4852
    %4854 = vmatmul.f32.gmra.mxu0 %v4605
    %v4855 = vpop.f32.mrf.mxu0
    %v4856 = vadd.f32 0.0, %v4855
    %4857 = vmatmul.f32.gmra.mxu0 %v4608
    %v4858 = vpop.f32.mrf.mxu0
    %v4859 = vadd.f32 0.0, %v4858
    %4860 = vmatmul.f32.gmra.mxu0 %v4611
    %v4861 = vpop.f32.mrf.mxu0
    %v4862 = vadd.f32 0.0, %v4861
    %4863 = vmatmul.f32.gmra.mxu0 %v4614
    %v4864 = vpop.f32.mrf.mxu0
    %v4865 = vadd.f32 0.0, %v4864
    %4866 = vmatmul.f32.gmra.mxu0 %v4617
    %v4867 = vpop.f32.mrf.mxu0
    %v4868 = vadd.f32 0.0, %v4867
    %4869 = vmatmul.f32.gmra.mxu0 %v4620
    %v4870 = vpop.f32.mrf.mxu0
    %v4871 = vadd.f32 0.0, %v4870
    %4872 = vmatmul.f32.gmra.mxu0 %v4623
    %v4873 = vpop.f32.mrf.mxu0
    %v4874 = vadd.f32 0.0, %v4873
    %4875 = vmatmul.f32.gmra.mxu0 %v4626
    %v4876 = vpop.f32.mrf.mxu0
    %v4877 = vadd.f32 0.0, %v4876
    %4878 = vmatmul.f32.gmra.mxu0 %v4629
    %v4879 = vpop.f32.mrf.mxu0
    %v4880 = vadd.f32 0.0, %v4879
    %4881 = vmatmul.f32.gmra.mxu0 %v4632
    %v4882 = vpop.f32.mrf.mxu0
    %v4883 = vadd.f32 0.0, %v4882
    %4884 = vmatmul.f32.gmra.mxu0 %v4635
    %v4885 = vpop.f32.mrf.mxu0
    %v4886 = vadd.f32 0.0, %v4885
    %4887 = vmatmul.f32.gmra.mxu0 %v4638
    %v4888 = vpop.f32.mrf.mxu0
    %v4889 = vadd.f32 0.0, %v4888
    %4890 = vmatmul.f32.gmra.mxu0 %v4641
    %v4891 = vpop.f32.mrf.mxu0
    %v4892 = vadd.f32 0.0, %v4891
    %4893 = vmatmul.f32.gmra.mxu0 %v4644
    %v4894 = vpop.f32.mrf.mxu0
    %v4895 = vadd.f32 0.0, %v4894
    %4896 = vmatmul.f32.gmra.mxu0 %v4647
    %v4897 = vpop.f32.mrf.mxu0
    %v4898 = vadd.f32 0.0, %v4897
    %4899 = vmatmul.f32.gmra.mxu0 %v4650
    %v4900 = vpop.f32.mrf.mxu0
    %v4901 = vadd.f32 0.0, %v4900
    %4902 = vmatmul.f32.gmra.mxu0 %v4653
    %v4903 = vpop.f32.mrf.mxu0
    %v4904 = vadd.f32 0.0, %v4903
    %4905 = vmatmul.f32.gmra.mxu0 %v4656
    %v4906 = vpop.f32.mrf.mxu0
    %v4907 = vadd.f32 0.0, %v4906
    %4908 = vmatmul.f32.gmra.mxu0 %v4659
    %v4909 = vpop.f32.mrf.mxu0
    %v4910 = vadd.f32 0.0, %v4909
    %4911 = vmatmul.f32.gmra.mxu0 %v4662
    %v4912 = vpop.f32.mrf.mxu0
    %v4913 = vadd.f32 0.0, %v4912
    %4914 = vmatmul.f32.gmra.mxu0 %v4665
    %v4915 = vpop.f32.mrf.mxu0
    %v4916 = vadd.f32 0.0, %v4915
    %4917 = vmatmul.f32.gmra.mxu0 %v4668
    %v4918 = vpop.f32.mrf.mxu0
    %v4919 = vadd.f32 0.0, %v4918
    %4920 = vmatmul.f32.gmra.mxu0 %v4671
    %v4921 = vpop.f32.mrf.mxu0
    %v4922 = vadd.f32 0.0, %v4921
    %4923 = vmatmul.f32.gmra.mxu0 %v4674
    %v4924 = vpop.f32.mrf.mxu0
    %v4925 = vadd.f32 0.0, %v4924
    %4926 = vmatmul.f32.gmra.mxu0 %v4677
    %v4927 = vpop.f32.mrf.mxu0
    %v4928 = vadd.f32 0.0, %v4927
    %4929 = vmatmul.f32.gmra.mxu0 %v4680
    %v4930 = vpop.f32.mrf.mxu0
    %v4931 = vadd.f32 0.0, %v4930
    %4932 = vmatmul.f32.gmra.mxu0 %v4683
    %v4933 = vpop.f32.mrf.mxu0
    %v4934 = vadd.f32 0.0, %v4933
    %4935 = vmatmul.f32.gmra.mxu0 %v4686
    %v4936 = vpop.f32.mrf.mxu0
    %v4937 = vadd.f32 0.0, %v4936
    %4938 = vmatmul.f32.gmra.mxu0 %v4689
    %v4939 = vpop.f32.mrf.mxu0
    %v4940 = vadd.f32 0.0, %v4939
    %4941 = vmatmul.f32.gmra.mxu0 %v4692
    %v4942 = vpop.f32.mrf.mxu0
    %v4943 = vadd.f32 0.0, %v4942
    %4944 = vmatmul.f32.gmra.mxu0 %v4695
    %v4945 = vpop.f32.mrf.mxu0
    %v4946 = vadd.f32 0.0, %v4945
    %4947 = vmatmul.f32.gmra.mxu0 %v4698
    %v4948 = vpop.f32.mrf.mxu0
    %v4949 = vadd.f32 0.0, %v4948
    %4950 = vmatmul.f32.gmra.mxu0 %v4701
    %v4951 = vpop.f32.mrf.mxu0
    %v4952 = vadd.f32 0.0, %v4951
    %4953 = vmatmul.f32.gmra.mxu0 %v4704
    %v4954 = vpop.f32.mrf.mxu0
    %v4955 = vadd.f32 0.0, %v4954
    %4956 = vmatmul.f32.gmra.mxu0 %v4707
    %v4957 = vpop.f32.mrf.mxu0
    %v4958 = vadd.f32 0.0, %v4957
    %4959 = vmatmul.f32.gmra.mxu0 %v4710
    %v4960 = vpop.f32.mrf.mxu0
    %v4961 = vadd.f32 0.0, %v4960
    %4962 = vmatmul.f32.gmra.mxu0 %v4713
    %v4963 = vpop.f32.mrf.mxu0
    %v4964 = vadd.f32 0.0, %v4963
    %4965 = vmatmul.f32.gmra.mxu0 %v4716
    %v4966 = vpop.f32.mrf.mxu0
    %v4967 = vadd.f32 0.0, %v4966
    %4968 = vmatmul.f32.gmra.mxu0 %v4719
    %v4969 = vpop.f32.mrf.mxu0
    %v4970 = vadd.f32 0.0, %v4969
    %4971 = vmatmul.f32.gmra.mxu0 %v4722
    %v4972 = vpop.f32.mrf.mxu0
    %v4973 = vadd.f32 0.0, %v4972
    %4974 = vmatmul.f32.gmra.mxu0 %v4725
    %v4975 = vpop.f32.mrf.mxu0
    %v4976 = vadd.f32 0.0, %v4975
    %4977 = vmatmul.f32.gmra.mxu0 %v4728
    %v4978 = vpop.f32.mrf.mxu0
    %v4979 = vadd.f32 0.0, %v4978
    %4980 = vmatmul.f32.gmra.mxu0 %v4731
    %v4981 = vpop.f32.mrf.mxu0
    %v4982 = vadd.f32 0.0, %v4981
    %4983 = vdwg.mxu0
    %v4984 = vadd.f32 %v4346, %v4754
    %v4985 = vadd.f32 %v4347, %v4757
    %v4986 = vadd.f32 %v4348, %v4760
    %v4987 = vadd.f32 %v4349, %v4763
    %v4988 = vadd.f32 %v4350, %v4766
    %v4989 = vadd.f32 %v4351, %v4769
    %v4990 = vadd.f32 %v4352, %v4772
    %v4991 = vadd.f32 %v4353, %v4775
    %v4992 = vadd.f32 %v4354, %v4778
    %v4993 = vadd.f32 %v4355, %v4781
    %v4994 = vadd.f32 %v4356, %v4784
    %v4995 = vadd.f32 %v4357, %v4787
    %v4996 = vadd.f32 %v4358, %v4790
    %v4997 = vadd.f32 %v4359, %v4793
    %v4998 = vadd.f32 %v4360, %v4796
    %v4999 = vadd.f32 %v4361, %v4799
    %v5000 = vadd.f32 %v4362, %v4802
    %v5001 = vadd.f32 %v4363, %v4805
    %v5002 = vadd.f32 %v4364, %v4808
    %v5003 = vadd.f32 %v4365, %v4811
    %v5004 = vadd.f32 %v4366, %v4814
    %v5005 = vadd.f32 %v4367, %v4817
    %v5006 = vadd.f32 %v4368, %v4820
    %v5007 = vadd.f32 %v4369, %v4823
    %v5008 = vadd.f32 %v4370, %v4826
    %v5009 = vadd.f32 %v4371, %v4829
    %v5010 = vadd.f32 %v4372, %v4832
    %v5011 = vadd.f32 %v4373, %v4835
    %v5012 = vadd.f32 %v4374, %v4838
    %v5013 = vadd.f32 %v4375, %v4841
    %v5014 = vadd.f32 %v4376, %v4844
    %v5015 = vadd.f32 %v4377, %v4847
    %v5016 = vadd.f32 %v4378, %v4850
    %v5017 = vadd.f32 %v4379, %v4853
    %v5018 = vadd.f32 %v4380, %v4856
    %v5019 = vadd.f32 %v4381, %v4859
    %v5020 = vadd.f32 %v4382, %v4862
    %v5021 = vadd.f32 %v4383, %v4865
    %v5022 = vadd.f32 %v4384, %v4868
    %v5023 = vadd.f32 %v4385, %v4871
    %v5024 = vadd.f32 %v4386, %v4874
    %v5025 = vadd.f32 %v4387, %v4877
    %v5026 = vadd.f32 %v4388, %v4880
    %v5027 = vadd.f32 %v4389, %v4883
    %v5028 = vadd.f32 %v4390, %v4886
    %v5029 = vadd.f32 %v4391, %v4889
    %v5030 = vadd.f32 %v4392, %v4892
    %v5031 = vadd.f32 %v4393, %v4895
    %v5032 = vadd.f32 %v4394, %v4898
    %v5033 = vadd.f32 %v4395, %v4901
    %v5034 = vadd.f32 %v4396, %v4904
    %v5035 = vadd.f32 %v4397, %v4907
    %v5036 = vadd.f32 %v4398, %v4910
    %v5037 = vadd.f32 %v4399, %v4913
    %v5038 = vadd.f32 %v4400, %v4916
    %v5039 = vadd.f32 %v4401, %v4919
    %v5040 = vadd.f32 %v4402, %v4922
    %v5041 = vadd.f32 %v4403, %v4925
    %v5042 = vadd.f32 %v4404, %v4928
    %v5043 = vadd.f32 %v4405, %v4931
    %v5044 = vadd.f32 %v4406, %v4934
    %v5045 = vadd.f32 %v4407, %v4937
    %v5046 = vadd.f32 %v4408, %v4940
    %v5047 = vadd.f32 %v4409, %v4943
    %v5048 = vadd.f32 %v4410, %v4946
    %v5049 = vadd.f32 %v4411, %v4949
    %v5050 = vadd.f32 %v4412, %v4952
    %v5051 = vadd.f32 %v4413, %v4955
    %v5052 = vadd.f32 %v4414, %v4958
    %v5053 = vadd.f32 %v4415, %v4961
    %v5054 = vadd.f32 %v4416, %v4964
    %v5055 = vadd.f32 %v4417, %v4967
    %v5056 = vadd.f32 %v4418, %v4970
    %v5057 = vadd.f32 %v4419, %v4973
    %v5058 = vadd.f32 %v4420, %v4976
    %v5059 = vadd.f32 %v4421, %v4979
    %v5060 = vadd.f32 %v4422, %v4982
    %v5061 = vld [vmem:[%s0 + $0x26] sm:$0xff]
    %v5062 = vld [vmem:[%s0 + $0x2e] sm:$0xff]
    %v5063 = vld [vmem:[%s0 + $0x36] sm:$0xff]
    %v5064 = vld [vmem:[%s0 + $0x3e] sm:$0xff]
    %v5065 = vld [vmem:[%s0 + $0x46] sm:$0xff]
    %v5066 = vld [vmem:[%s0 + $0x4e] sm:$0xff]
    %v5067 = vld [vmem:[%s0 + $0x56] sm:$0xff]
    %v5068 = vld [vmem:[%s0 + $0x5e] sm:$0xff]
    %v5069 = vld [vmem:[%s0 + $0x66] sm:$0xff]
    %v5070 = vld [vmem:[%s0 + $0x6e] sm:$0xff]
    %v5071 = vld [vmem:[%s0 + $0x76] sm:$0xff]
    %v5072 = vld [vmem:[%s0 + $0x7e] sm:$0xff]
    %v5073 = vld [vmem:[%s0 + $0x86] sm:$0xff]
    %v5074 = vld [vmem:[%s0 + $0x8e] sm:$0xff]
    %v5075 = vld [vmem:[%s0 + $0x96] sm:$0xff]
    %v5076 = vld [vmem:[%s0 + $0x9e] sm:$0xff]
    %v5077 = vld [vmem:[%s0 + $0xa6] sm:$0xff]
    %v5078 = vld [vmem:[%s0 + $0xae] sm:$0xff]
    %v5079 = vld [vmem:[%s0 + $0xb6] sm:$0xff]
    %v5080 = vld [vmem:[%s0 + $0xbe] sm:$0xff]
    %v5081 = vld [vmem:[%s0 + $0xc6] sm:$0xff]
    %v5082 = vld [vmem:[%s0 + $0xce] sm:$0xff]
    %v5083 = vld [vmem:[%s0 + $0xd6] sm:$0xff]
    %v5084 = vld [vmem:[%s0 + $0xde] sm:$0xff]
    %v5085 = vld [vmem:[%s0 + $0xe6] sm:$0xff]
    %v5086 = vld [vmem:[%s0 + $0xee] sm:$0xff]
    %v5087 = vld [vmem:[%s0 + $0xf6] sm:$0xff]
    %v5088 = vld [vmem:[%s0 + $0xfe] sm:$0xff]
    %v5089 = vld [vmem:[%s0 + $0x106] sm:$0xff]
    %v5090 = vld [vmem:[%s0 + $0x10e] sm:$0xff]
    %v5091 = vld [vmem:[%s0 + $0x116] sm:$0xff]
    %v5092 = vld [vmem:[%s0 + $0x11e] sm:$0xff]
    %v5093 = vld [vmem:[%s0 + $0x126] sm:$0xff]
    %v5094 = vld [vmem:[%s0 + $0x12e] sm:$0xff]
    %v5095 = vld [vmem:[%s0 + $0x136] sm:$0xff]
    %v5096 = vld [vmem:[%s0 + $0x13e] sm:$0xff]
    %v5097 = vld [vmem:[%s0 + $0x146] sm:$0xff]
    %v5098 = vld [vmem:[%s0 + $0x14e] sm:$0xff]
    %v5099 = vld [vmem:[%s0 + $0x156] sm:$0xff]
    %v5100 = vld [vmem:[%s0 + $0x15e] sm:$0xff]
    %v5101 = vld [vmem:[%s0 + $0x166] sm:$0xff]
    %v5102 = vld [vmem:[%s0 + $0x16e] sm:$0xff]
    %v5103 = vld [vmem:[%s0 + $0x176] sm:$0xff]
    %v5104 = vld [vmem:[%s0 + $0x17e] sm:$0xff]
    %v5105 = vld [vmem:[%s0 + $0x186] sm:$0xff]
    %v5106 = vld [vmem:[%s0 + $0x18e] sm:$0xff]
    %v5107 = vld [vmem:[%s0 + $0x196] sm:$0xff]
    %v5108 = vld [vmem:[%s0 + $0x19e] sm:$0xff]
    %v5109 = vld [vmem:[%s0 + $0x1a6] sm:$0xff]
    %v5110 = vld [vmem:[%s0 + $0x1ae] sm:$0xff]
    %v5111 = vld [vmem:[%s0 + $0x1b6] sm:$0xff]
    %v5112 = vld [vmem:[%s0 + $0x1be] sm:$0xff]
    %v5113 = vld [vmem:[%s0 + $0x1c6] sm:$0xff]
    %v5114 = vld [vmem:[%s0 + $0x1ce] sm:$0xff]
    %v5115 = vld [vmem:[%s0 + $0x1d6] sm:$0xff]
    %v5116 = vld [vmem:[%s0 + $0x1de] sm:$0xff]
    %v5117 = vld [vmem:[%s0 + $0x1e6] sm:$0xff]
    %v5118 = vld [vmem:[%s0 + $0x1ee] sm:$0xff]
    %v5119 = vld [vmem:[%s0 + $0x1f6] sm:$0xff]
    %v5120 = vld [vmem:[%s0 + $0x1fe] sm:$0xff]
    %v5121 = vld [vmem:[%s0 + $0x206] sm:$0xff]
    %v5122 = vld [vmem:[%s0 + $0x20e] sm:$0xff]
    %v5123 = vld [vmem:[%s0 + $0x216] sm:$0xff]
    %v5124 = vld [vmem:[%s0 + $0x21e] sm:$0xff]
    %v5125 = vld [vmem:[%s0 + $0x226] sm:$0xff]
    %v5126 = vld [vmem:[%s0 + $0x22e] sm:$0xff]
    %v5127 = vld [vmem:[%s0 + $0x236] sm:$0xff]
    %v5128 = vld [vmem:[%s0 + $0x23e] sm:$0xff]
    %v5129 = vld [vmem:[%s0 + $0x246] sm:$0xff]
    %v5130 = vld [vmem:[%s0 + $0x24e] sm:$0xff]
    %v5131 = vld [vmem:[%s0 + $0x256] sm:$0xff]
    %v5132 = vld [vmem:[%s0 + $0x25e] sm:$0xff]
    %v5133 = vld [vmem:[%s0 + $0x266] sm:$0xff]
    %v5134 = vld [vmem:[%s0 + $0x26e] sm:$0xff]
    %v5135 = vld [vmem:[%s0 + $0x276] sm:$0xff]
    %v5136 = vld [vmem:[%s0 + $0x27e] sm:$0xff]
    %v5137 = vld [vmem:[%s0 + $0x286] sm:$0x3]
    %s5138 = scalar_lea.vmem %s1, 32
    %v5139 = vld [vmem:[%s5138] sm:$0x7]
    %v5141 = vsel %vm267, %v5061, 0
    %v5144 = vsel %vm267, %v5062, 0
    %v5147 = vsel %vm267, %v5063, 0
    %v5150 = vsel %vm267, %v5064, 0
    %v5153 = vsel %vm267, %v5065, 0
    %v5156 = vsel %vm267, %v5066, 0
    %v5159 = vsel %vm267, %v5067, 0
    %v5162 = vsel %vm267, %v5068, 0
    %v5165 = vsel %vm267, %v5069, 0
    %v5168 = vsel %vm267, %v5070, 0
    %v5171 = vsel %vm267, %v5071, 0
    %v5174 = vsel %vm267, %v5072, 0
    %v5177 = vsel %vm267, %v5073, 0
    %v5180 = vsel %vm267, %v5074, 0
    %v5183 = vsel %vm267, %v5075, 0
    %v5186 = vsel %vm267, %v5076, 0
    %v5189 = vsel %vm267, %v5077, 0
    %v5192 = vsel %vm267, %v5078, 0
    %v5195 = vsel %vm267, %v5079, 0
    %v5198 = vsel %vm267, %v5080, 0
    %v5201 = vsel %vm267, %v5081, 0
    %v5204 = vsel %vm267, %v5082, 0
    %v5207 = vsel %vm267, %v5083, 0
    %v5210 = vsel %vm267, %v5084, 0
    %v5213 = vsel %vm267, %v5085, 0
    %v5216 = vsel %vm267, %v5086, 0
    %v5219 = vsel %vm267, %v5087, 0
    %v5222 = vsel %vm267, %v5088, 0
    %v5225 = vsel %vm267, %v5089, 0
    %v5228 = vsel %vm267, %v5090, 0
    %v5231 = vsel %vm267, %v5091, 0
    %v5234 = vsel %vm267, %v5092, 0
    %v5237 = vsel %vm267, %v5093, 0
    %v5240 = vsel %vm267, %v5094, 0
    %v5243 = vsel %vm267, %v5095, 0
    %v5246 = vsel %vm267, %v5096, 0
    %v5249 = vsel %vm267, %v5097, 0
    %v5252 = vsel %vm267, %v5098, 0
    %v5255 = vsel %vm267, %v5099, 0
    %v5258 = vsel %vm267, %v5100, 0
    %v5261 = vsel %vm267, %v5101, 0
    %v5264 = vsel %vm267, %v5102, 0
    %v5267 = vsel %vm267, %v5103, 0
    %v5270 = vsel %vm267, %v5104, 0
    %v5273 = vsel %vm267, %v5105, 0
    %v5276 = vsel %vm267, %v5106, 0
    %v5279 = vsel %vm267, %v5107, 0
    %v5282 = vsel %vm267, %v5108, 0
    %v5285 = vsel %vm267, %v5109, 0
    %v5288 = vsel %vm267, %v5110, 0
    %v5291 = vsel %vm267, %v5111, 0
    %v5294 = vsel %vm267, %v5112, 0
    %v5297 = vsel %vm267, %v5113, 0
    %v5300 = vsel %vm267, %v5114, 0
    %v5303 = vsel %vm267, %v5115, 0
    %v5306 = vsel %vm267, %v5116, 0
    %v5309 = vsel %vm267, %v5117, 0
    %v5312 = vsel %vm267, %v5118, 0
    %v5315 = vsel %vm267, %v5119, 0
    %v5318 = vsel %vm267, %v5120, 0
    %v5321 = vsel %vm267, %v5121, 0
    %v5324 = vsel %vm267, %v5122, 0
    %v5327 = vsel %vm267, %v5123, 0
    %v5330 = vsel %vm267, %v5124, 0
    %v5333 = vsel %vm267, %v5125, 0
    %v5336 = vsel %vm267, %v5126, 0
    %v5339 = vsel %vm267, %v5127, 0
    %v5342 = vsel %vm267, %v5128, 0
    %v5345 = vsel %vm267, %v5129, 0
    %v5348 = vsel %vm267, %v5130, 0
    %v5351 = vsel %vm267, %v5131, 0
    %v5354 = vsel %vm267, %v5132, 0
    %v5357 = vsel %vm267, %v5133, 0
    %v5360 = vsel %vm267, %v5134, 0
    %v5363 = vsel %vm267, %v5135, 0
    %v5366 = vsel %vm267, %v5136, 0
    %v5369 = vsel %vm267, %v5137, 0
    %v5372 = vsel %vm499, %v5139, 0
    %5374 = vmatpush.msra.mxu0 0.0
    %5375 = vmatpush.msra.mxu0 0.0
    %5376 = vmatpush.msra.mxu0 0.0
    %5377 = vmatpush.msra.mxu0 0.0
    %5378 = vmatpush.msra.mxu0 0.0
    %5379 = vmatpush.msra.mxu0 0.0
    %5380 = vmatpush.msra.mxu0 0.0
    %5381 = vmatpush.msra.mxu0 0.0
    %5382 = vmatpush.msra.mxu0 0.0
    %5383 = vmatpush.msra.mxu0 0.0
    %5384 = vmatpush.msra.mxu0 0.0
    %5385 = vmatpush.msra.mxu0 0.0
    %5386 = vmatpush.msra.mxu0 0.0
    %5387 = vmatpush.msra.mxu0 0.0
    %5388 = vmatpush.msra.mxu0 0.0
    %5389 = vmatpush.msra.mxu0 %v5372
    %5390 = vmatmul.f32.gmra.mxu0 %v5141
    %v5391 = vpop.f32.mrf.mxu0
    %v5392 = vadd.f32 0.0, %v5391
    %5393 = vmatmul.f32.gmra.mxu0 %v5144
    %v5394 = vpop.f32.mrf.mxu0
    %v5395 = vadd.f32 0.0, %v5394
    %5396 = vmatmul.f32.gmra.mxu0 %v5147
    %v5397 = vpop.f32.mrf.mxu0
    %v5398 = vadd.f32 0.0, %v5397
    %5399 = vmatmul.f32.gmra.mxu0 %v5150
    %v5400 = vpop.f32.mrf.mxu0
    %v5401 = vadd.f32 0.0, %v5400
    %5402 = vmatmul.f32.gmra.mxu0 %v5153
    %v5403 = vpop.f32.mrf.mxu0
    %v5404 = vadd.f32 0.0, %v5403
    %5405 = vmatmul.f32.gmra.mxu0 %v5156
    %v5406 = vpop.f32.mrf.mxu0
    %v5407 = vadd.f32 0.0, %v5406
    %5408 = vmatmul.f32.gmra.mxu0 %v5159
    %v5409 = vpop.f32.mrf.mxu0
    %v5410 = vadd.f32 0.0, %v5409
    %5411 = vmatmul.f32.gmra.mxu0 %v5162
    %v5412 = vpop.f32.mrf.mxu0
    %v5413 = vadd.f32 0.0, %v5412
    %5414 = vmatmul.f32.gmra.mxu0 %v5165
    %v5415 = vpop.f32.mrf.mxu0
    %v5416 = vadd.f32 0.0, %v5415
    %5417 = vmatmul.f32.gmra.mxu0 %v5168
    %v5418 = vpop.f32.mrf.mxu0
    %v5419 = vadd.f32 0.0, %v5418
    %5420 = vmatmul.f32.gmra.mxu0 %v5171
    %v5421 = vpop.f32.mrf.mxu0
    %v5422 = vadd.f32 0.0, %v5421
    %5423 = vmatmul.f32.gmra.mxu0 %v5174
    %v5424 = vpop.f32.mrf.mxu0
    %v5425 = vadd.f32 0.0, %v5424
    %5426 = vmatmul.f32.gmra.mxu0 %v5177
    %v5427 = vpop.f32.mrf.mxu0
    %v5428 = vadd.f32 0.0, %v5427
    %5429 = vmatmul.f32.gmra.mxu0 %v5180
    %v5430 = vpop.f32.mrf.mxu0
    %v5431 = vadd.f32 0.0, %v5430
    %5432 = vmatmul.f32.gmra.mxu0 %v5183
    %v5433 = vpop.f32.mrf.mxu0
    %v5434 = vadd.f32 0.0, %v5433
    %5435 = vmatmul.f32.gmra.mxu0 %v5186
    %v5436 = vpop.f32.mrf.mxu0
    %v5437 = vadd.f32 0.0, %v5436
    %5438 = vmatmul.f32.gmra.mxu0 %v5189
    %v5439 = vpop.f32.mrf.mxu0
    %v5440 = vadd.f32 0.0, %v5439
    %5441 = vmatmul.f32.gmra.mxu0 %v5192
    %v5442 = vpop.f32.mrf.mxu0
    %v5443 = vadd.f32 0.0, %v5442
    %5444 = vmatmul.f32.gmra.mxu0 %v5195
    %v5445 = vpop.f32.mrf.mxu0
    %v5446 = vadd.f32 0.0, %v5445
    %5447 = vmatmul.f32.gmra.mxu0 %v5198
    %v5448 = vpop.f32.mrf.mxu0
    %v5449 = vadd.f32 0.0, %v5448
    %5450 = vmatmul.f32.gmra.mxu0 %v5201
    %v5451 = vpop.f32.mrf.mxu0
    %v5452 = vadd.f32 0.0, %v5451
    %5453 = vmatmul.f32.gmra.mxu0 %v5204
    %v5454 = vpop.f32.mrf.mxu0
    %v5455 = vadd.f32 0.0, %v5454
    %5456 = vmatmul.f32.gmra.mxu0 %v5207
    %v5457 = vpop.f32.mrf.mxu0
    %v5458 = vadd.f32 0.0, %v5457
    %5459 = vmatmul.f32.gmra.mxu0 %v5210
    %v5460 = vpop.f32.mrf.mxu0
    %v5461 = vadd.f32 0.0, %v5460
    %5462 = vmatmul.f32.gmra.mxu0 %v5213
    %v5463 = vpop.f32.mrf.mxu0
    %v5464 = vadd.f32 0.0, %v5463
    %5465 = vmatmul.f32.gmra.mxu0 %v5216
    %v5466 = vpop.f32.mrf.mxu0
    %v5467 = vadd.f32 0.0, %v5466
    %5468 = vmatmul.f32.gmra.mxu0 %v5219
    %v5469 = vpop.f32.mrf.mxu0
    %v5470 = vadd.f32 0.0, %v5469
    %5471 = vmatmul.f32.gmra.mxu0 %v5222
    %v5472 = vpop.f32.mrf.mxu0
    %v5473 = vadd.f32 0.0, %v5472
    %5474 = vmatmul.f32.gmra.mxu0 %v5225
    %v5475 = vpop.f32.mrf.mxu0
    %v5476 = vadd.f32 0.0, %v5475
    %5477 = vmatmul.f32.gmra.mxu0 %v5228
    %v5478 = vpop.f32.mrf.mxu0
    %v5479 = vadd.f32 0.0, %v5478
    %5480 = vmatmul.f32.gmra.mxu0 %v5231
    %v5481 = vpop.f32.mrf.mxu0
    %v5482 = vadd.f32 0.0, %v5481
    %5483 = vmatmul.f32.gmra.mxu0 %v5234
    %v5484 = vpop.f32.mrf.mxu0
    %v5485 = vadd.f32 0.0, %v5484
    %5486 = vmatmul.f32.gmra.mxu0 %v5237
    %v5487 = vpop.f32.mrf.mxu0
    %v5488 = vadd.f32 0.0, %v5487
    %5489 = vmatmul.f32.gmra.mxu0 %v5240
    %v5490 = vpop.f32.mrf.mxu0
    %v5491 = vadd.f32 0.0, %v5490
    %5492 = vmatmul.f32.gmra.mxu0 %v5243
    %v5493 = vpop.f32.mrf.mxu0
    %v5494 = vadd.f32 0.0, %v5493
    %5495 = vmatmul.f32.gmra.mxu0 %v5246
    %v5496 = vpop.f32.mrf.mxu0
    %v5497 = vadd.f32 0.0, %v5496
    %5498 = vmatmul.f32.gmra.mxu0 %v5249
    %v5499 = vpop.f32.mrf.mxu0
    %v5500 = vadd.f32 0.0, %v5499
    %5501 = vmatmul.f32.gmra.mxu0 %v5252
    %v5502 = vpop.f32.mrf.mxu0
    %v5503 = vadd.f32 0.0, %v5502
    %5504 = vmatmul.f32.gmra.mxu0 %v5255
    %v5505 = vpop.f32.mrf.mxu0
    %v5506 = vadd.f32 0.0, %v5505
    %5507 = vmatmul.f32.gmra.mxu0 %v5258
    %v5508 = vpop.f32.mrf.mxu0
    %v5509 = vadd.f32 0.0, %v5508
    %5510 = vmatmul.f32.gmra.mxu0 %v5261
    %v5511 = vpop.f32.mrf.mxu0
    %v5512 = vadd.f32 0.0, %v5511
    %5513 = vmatmul.f32.gmra.mxu0 %v5264
    %v5514 = vpop.f32.mrf.mxu0
    %v5515 = vadd.f32 0.0, %v5514
    %5516 = vmatmul.f32.gmra.mxu0 %v5267
    %v5517 = vpop.f32.mrf.mxu0
    %v5518 = vadd.f32 0.0, %v5517
    %5519 = vmatmul.f32.gmra.mxu0 %v5270
    %v5520 = vpop.f32.mrf.mxu0
    %v5521 = vadd.f32 0.0, %v5520
    %5522 = vmatmul.f32.gmra.mxu0 %v5273
    %v5523 = vpop.f32.mrf.mxu0
    %v5524 = vadd.f32 0.0, %v5523
    %5525 = vmatmul.f32.gmra.mxu0 %v5276
    %v5526 = vpop.f32.mrf.mxu0
    %v5527 = vadd.f32 0.0, %v5526
    %5528 = vmatmul.f32.gmra.mxu0 %v5279
    %v5529 = vpop.f32.mrf.mxu0
    %v5530 = vadd.f32 0.0, %v5529
    %5531 = vmatmul.f32.gmra.mxu0 %v5282
    %v5532 = vpop.f32.mrf.mxu0
    %v5533 = vadd.f32 0.0, %v5532
    %5534 = vmatmul.f32.gmra.mxu0 %v5285
    %v5535 = vpop.f32.mrf.mxu0
    %v5536 = vadd.f32 0.0, %v5535
    %5537 = vmatmul.f32.gmra.mxu0 %v5288
    %v5538 = vpop.f32.mrf.mxu0
    %v5539 = vadd.f32 0.0, %v5538
    %5540 = vmatmul.f32.gmra.mxu0 %v5291
    %v5541 = vpop.f32.mrf.mxu0
    %v5542 = vadd.f32 0.0, %v5541
    %5543 = vmatmul.f32.gmra.mxu0 %v5294
    %v5544 = vpop.f32.mrf.mxu0
    %v5545 = vadd.f32 0.0, %v5544
    %5546 = vmatmul.f32.gmra.mxu0 %v5297
    %v5547 = vpop.f32.mrf.mxu0
    %v5548 = vadd.f32 0.0, %v5547
    %5549 = vmatmul.f32.gmra.mxu0 %v5300
    %v5550 = vpop.f32.mrf.mxu0
    %v5551 = vadd.f32 0.0, %v5550
    %5552 = vmatmul.f32.gmra.mxu0 %v5303
    %v5553 = vpop.f32.mrf.mxu0
    %v5554 = vadd.f32 0.0, %v5553
    %5555 = vmatmul.f32.gmra.mxu0 %v5306
    %v5556 = vpop.f32.mrf.mxu0
    %v5557 = vadd.f32 0.0, %v5556
    %5558 = vmatmul.f32.gmra.mxu0 %v5309
    %v5559 = vpop.f32.mrf.mxu0
    %v5560 = vadd.f32 0.0, %v5559
    %5561 = vmatmul.f32.gmra.mxu0 %v5312
    %v5562 = vpop.f32.mrf.mxu0
    %v5563 = vadd.f32 0.0, %v5562
    %5564 = vmatmul.f32.gmra.mxu0 %v5315
    %v5565 = vpop.f32.mrf.mxu0
    %v5566 = vadd.f32 0.0, %v5565
    %5567 = vmatmul.f32.gmra.mxu0 %v5318
    %v5568 = vpop.f32.mrf.mxu0
    %v5569 = vadd.f32 0.0, %v5568
    %5570 = vmatmul.f32.gmra.mxu0 %v5321
    %v5571 = vpop.f32.mrf.mxu0
    %v5572 = vadd.f32 0.0, %v5571
    %5573 = vmatmul.f32.gmra.mxu0 %v5324
    %v5574 = vpop.f32.mrf.mxu0
    %v5575 = vadd.f32 0.0, %v5574
    %5576 = vmatmul.f32.gmra.mxu0 %v5327
    %v5577 = vpop.f32.mrf.mxu0
    %v5578 = vadd.f32 0.0, %v5577
    %5579 = vmatmul.f32.gmra.mxu0 %v5330
    %v5580 = vpop.f32.mrf.mxu0
    %v5581 = vadd.f32 0.0, %v5580
    %5582 = vmatmul.f32.gmra.mxu0 %v5333
    %v5583 = vpop.f32.mrf.mxu0
    %v5584 = vadd.f32 0.0, %v5583
    %5585 = vmatmul.f32.gmra.mxu0 %v5336
    %v5586 = vpop.f32.mrf.mxu0
    %v5587 = vadd.f32 0.0, %v5586
    %5588 = vmatmul.f32.gmra.mxu0 %v5339
    %v5589 = vpop.f32.mrf.mxu0
    %v5590 = vadd.f32 0.0, %v5589
    %5591 = vmatmul.f32.gmra.mxu0 %v5342
    %v5592 = vpop.f32.mrf.mxu0
    %v5593 = vadd.f32 0.0, %v5592
    %5594 = vmatmul.f32.gmra.mxu0 %v5345
    %v5595 = vpop.f32.mrf.mxu0
    %v5596 = vadd.f32 0.0, %v5595
    %5597 = vmatmul.f32.gmra.mxu0 %v5348
    %v5598 = vpop.f32.mrf.mxu0
    %v5599 = vadd.f32 0.0, %v5598
    %5600 = vmatmul.f32.gmra.mxu0 %v5351
    %v5601 = vpop.f32.mrf.mxu0
    %v5602 = vadd.f32 0.0, %v5601
    %5603 = vmatmul.f32.gmra.mxu0 %v5354
    %v5604 = vpop.f32.mrf.mxu0
    %v5605 = vadd.f32 0.0, %v5604
    %5606 = vmatmul.f32.gmra.mxu0 %v5357
    %v5607 = vpop.f32.mrf.mxu0
    %v5608 = vadd.f32 0.0, %v5607
    %5609 = vmatmul.f32.gmra.mxu0 %v5360
    %v5610 = vpop.f32.mrf.mxu0
    %v5611 = vadd.f32 0.0, %v5610
    %5612 = vmatmul.f32.gmra.mxu0 %v5363
    %v5613 = vpop.f32.mrf.mxu0
    %v5614 = vadd.f32 0.0, %v5613
    %5615 = vmatmul.f32.gmra.mxu0 %v5366
    %v5616 = vpop.f32.mrf.mxu0
    %v5617 = vadd.f32 0.0, %v5616
    %5618 = vmatmul.f32.gmra.mxu0 %v5369
    %v5619 = vpop.f32.mrf.mxu0
    %v5620 = vadd.f32 0.0, %v5619
    %5621 = vdwg.mxu0
    %v5622 = vadd.f32 %v4984, %v5392
    %v5623 = vadd.f32 %v4985, %v5395
    %v5624 = vadd.f32 %v4986, %v5398
    %v5625 = vadd.f32 %v4987, %v5401
    %v5626 = vadd.f32 %v4988, %v5404
    %v5627 = vadd.f32 %v4989, %v5407
    %v5628 = vadd.f32 %v4990, %v5410
    %v5629 = vadd.f32 %v4991, %v5413
    %v5630 = vadd.f32 %v4992, %v5416
    %v5631 = vadd.f32 %v4993, %v5419
    %v5632 = vadd.f32 %v4994, %v5422
    %v5633 = vadd.f32 %v4995, %v5425
    %v5634 = vadd.f32 %v4996, %v5428
    %v5635 = vadd.f32 %v4997, %v5431
    %v5636 = vadd.f32 %v4998, %v5434
    %v5637 = vadd.f32 %v4999, %v5437
    %v5638 = vadd.f32 %v5000, %v5440
    %v5639 = vadd.f32 %v5001, %v5443
    %v5640 = vadd.f32 %v5002, %v5446
    %v5641 = vadd.f32 %v5003, %v5449
    %v5642 = vadd.f32 %v5004, %v5452
    %v5643 = vadd.f32 %v5005, %v5455
    %v5644 = vadd.f32 %v5006, %v5458
    %v5645 = vadd.f32 %v5007, %v5461
    %v5646 = vadd.f32 %v5008, %v5464
    %v5647 = vadd.f32 %v5009, %v5467
    %v5648 = vadd.f32 %v5010, %v5470
    %v5649 = vadd.f32 %v5011, %v5473
    %v5650 = vadd.f32 %v5012, %v5476
    %v5651 = vadd.f32 %v5013, %v5479
    %v5652 = vadd.f32 %v5014, %v5482
    %v5653 = vadd.f32 %v5015, %v5485
    %v5654 = vadd.f32 %v5016, %v5488
    %v5655 = vadd.f32 %v5017, %v5491
    %v5656 = vadd.f32 %v5018, %v5494
    %v5657 = vadd.f32 %v5019, %v5497
    %v5658 = vadd.f32 %v5020, %v5500
    %v5659 = vadd.f32 %v5021, %v5503
    %v5660 = vadd.f32 %v5022, %v5506
    %v5661 = vadd.f32 %v5023, %v5509
    %v5662 = vadd.f32 %v5024, %v5512
    %v5663 = vadd.f32 %v5025, %v5515
    %v5664 = vadd.f32 %v5026, %v5518
    %v5665 = vadd.f32 %v5027, %v5521
    %v5666 = vadd.f32 %v5028, %v5524
    %v5667 = vadd.f32 %v5029, %v5527
    %v5668 = vadd.f32 %v5030, %v5530
    %v5669 = vadd.f32 %v5031, %v5533
    %v5670 = vadd.f32 %v5032, %v5536
    %v5671 = vadd.f32 %v5033, %v5539
    %v5672 = vadd.f32 %v5034, %v5542
    %v5673 = vadd.f32 %v5035, %v5545
    %v5674 = vadd.f32 %v5036, %v5548
    %v5675 = vadd.f32 %v5037, %v5551
    %v5676 = vadd.f32 %v5038, %v5554
    %v5677 = vadd.f32 %v5039, %v5557
    %v5678 = vadd.f32 %v5040, %v5560
    %v5679 = vadd.f32 %v5041, %v5563
    %v5680 = vadd.f32 %v5042, %v5566
    %v5681 = vadd.f32 %v5043, %v5569
    %v5682 = vadd.f32 %v5044, %v5572
    %v5683 = vadd.f32 %v5045, %v5575
    %v5684 = vadd.f32 %v5046, %v5578
    %v5685 = vadd.f32 %v5047, %v5581
    %v5686 = vadd.f32 %v5048, %v5584
    %v5687 = vadd.f32 %v5049, %v5587
    %v5688 = vadd.f32 %v5050, %v5590
    %v5689 = vadd.f32 %v5051, %v5593
    %v5690 = vadd.f32 %v5052, %v5596
    %v5691 = vadd.f32 %v5053, %v5599
    %v5692 = vadd.f32 %v5054, %v5602
    %v5693 = vadd.f32 %v5055, %v5605
    %v5694 = vadd.f32 %v5056, %v5608
    %v5695 = vadd.f32 %v5057, %v5611
    %v5696 = vadd.f32 %v5058, %v5614
    %v5697 = vadd.f32 %v5059, %v5617
    %v5698 = vadd.f32 %v5060, %v5620
    %v5699 = vld [vmem:[%s2] sm:$0x1]
    %v5701 = vperm.slane %v5699, 0
    %v5703 = vadd.f32 %v5622, %v5701
    %v5704 = vadd.f32 %v5623, %v5701
    %v5705 = vadd.f32 %v5624, %v5701
    %v5706 = vadd.f32 %v5625, %v5701
    %v5707 = vadd.f32 %v5626, %v5701
    %v5708 = vadd.f32 %v5627, %v5701
    %v5709 = vadd.f32 %v5628, %v5701
    %v5710 = vadd.f32 %v5629, %v5701
    %v5711 = vadd.f32 %v5630, %v5701
    %v5712 = vadd.f32 %v5631, %v5701
    %v5713 = vadd.f32 %v5632, %v5701
    %v5714 = vadd.f32 %v5633, %v5701
    %v5715 = vadd.f32 %v5634, %v5701
    %v5716 = vadd.f32 %v5635, %v5701
    %v5717 = vadd.f32 %v5636, %v5701
    %v5718 = vadd.f32 %v5637, %v5701
    %v5719 = vadd.f32 %v5638, %v5701
    %v5720 = vadd.f32 %v5639, %v5701
    %v5721 = vadd.f32 %v5640, %v5701
    %v5722 = vadd.f32 %v5641, %v5701
    %v5723 = vadd.f32 %v5642, %v5701
    %v5724 = vadd.f32 %v5643, %v5701
    %v5725 = vadd.f32 %v5644, %v5701
    %v5726 = vadd.f32 %v5645, %v5701
    %v5727 = vadd.f32 %v5646, %v5701
    %v5728 = vadd.f32 %v5647, %v5701
    %v5729 = vadd.f32 %v5648, %v5701
    %v5730 = vadd.f32 %v5649, %v5701
    %v5731 = vadd.f32 %v5650, %v5701
    %v5732 = vadd.f32 %v5651, %v5701
    %v5733 = vadd.f32 %v5652, %v5701
    %v5734 = vadd.f32 %v5653, %v5701
    %v5735 = vadd.f32 %v5654, %v5701
    %v5736 = vadd.f32 %v5655, %v5701
    %v5737 = vadd.f32 %v5656, %v5701
    %v5738 = vadd.f32 %v5657, %v5701
    %v5739 = vadd.f32 %v5658, %v5701
    %v5740 = vadd.f32 %v5659, %v5701
    %v5741 = vadd.f32 %v5660, %v5701
    %v5742 = vadd.f32 %v5661, %v5701
    %v5743 = vadd.f32 %v5662, %v5701
    %v5744 = vadd.f32 %v5663, %v5701
    %v5745 = vadd.f32 %v5664, %v5701
    %v5746 = vadd.f32 %v5665, %v5701
    %v5747 = vadd.f32 %v5666, %v5701
    %v5748 = vadd.f32 %v5667, %v5701
    %v5749 = vadd.f32 %v5668, %v5701
    %v5750 = vadd.f32 %v5669, %v5701
    %v5751 = vadd.f32 %v5670, %v5701
    %v5752 = vadd.f32 %v5671, %v5701
    %v5753 = vadd.f32 %v5672, %v5701
    %v5754 = vadd.f32 %v5673, %v5701
    %v5755 = vadd.f32 %v5674, %v5701
    %v5756 = vadd.f32 %v5675, %v5701
    %v5757 = vadd.f32 %v5676, %v5701
    %v5758 = vadd.f32 %v5677, %v5701
    %v5759 = vadd.f32 %v5678, %v5701
    %v5760 = vadd.f32 %v5679, %v5701
    %v5761 = vadd.f32 %v5680, %v5701
    %v5762 = vadd.f32 %v5681, %v5701
    %v5763 = vadd.f32 %v5682, %v5701
    %v5764 = vadd.f32 %v5683, %v5701
    %v5765 = vadd.f32 %v5684, %v5701
    %v5766 = vadd.f32 %v5685, %v5701
    %v5767 = vadd.f32 %v5686, %v5701
    %v5768 = vadd.f32 %v5687, %v5701
    %v5769 = vadd.f32 %v5688, %v5701
    %v5770 = vadd.f32 %v5689, %v5701
    %v5771 = vadd.f32 %v5690, %v5701
    %v5772 = vadd.f32 %v5691, %v5701
    %v5773 = vadd.f32 %v5692, %v5701
    %v5774 = vadd.f32 %v5693, %v5701
    %v5775 = vadd.f32 %v5694, %v5701
    %v5776 = vadd.f32 %v5695, %v5701
    %v5777 = vadd.f32 %v5696, %v5701
    %v5778 = vadd.f32 %v5697, %v5701
    %v5779 = vadd.f32 %v5698, %v5701
    %v5780 = vmax.f32 %v5703, 0.0
    %v5781 = vmax.f32 %v5704, 0.0
    %v5782 = vmax.f32 %v5705, 0.0
    %v5783 = vmax.f32 %v5706, 0.0
    %v5784 = vmax.f32 %v5707, 0.0
    %v5785 = vmax.f32 %v5708, 0.0
    %v5786 = vmax.f32 %v5709, 0.0
    %v5787 = vmax.f32 %v5710, 0.0
    %v5788 = vmax.f32 %v5711, 0.0
    %v5789 = vmax.f32 %v5712, 0.0
    %v5790 = vmax.f32 %v5713, 0.0
    %v5791 = vmax.f32 %v5714, 0.0
    %v5792 = vmax.f32 %v5715, 0.0
    %v5793 = vmax.f32 %v5716, 0.0
    %v5794 = vmax.f32 %v5717, 0.0
    %v5795 = vmax.f32 %v5718, 0.0
    %v5796 = vmax.f32 %v5719, 0.0
    %v5797 = vmax.f32 %v5720, 0.0
    %v5798 = vmax.f32 %v5721, 0.0
    %v5799 = vmax.f32 %v5722, 0.0
    %v5800 = vmax.f32 %v5723, 0.0
    %v5801 = vmax.f32 %v5724, 0.0
    %v5802 = vmax.f32 %v5725, 0.0
    %v5803 = vmax.f32 %v5726, 0.0
    %v5804 = vmax.f32 %v5727, 0.0
    %v5805 = vmax.f32 %v5728, 0.0
    %v5806 = vmax.f32 %v5729, 0.0
    %v5807 = vmax.f32 %v5730, 0.0
    %v5808 = vmax.f32 %v5731, 0.0
    %v5809 = vmax.f32 %v5732, 0.0
    %v5810 = vmax.f32 %v5733, 0.0
    %v5811 = vmax.f32 %v5734, 0.0
    %v5812 = vmax.f32 %v5735, 0.0
    %v5813 = vmax.f32 %v5736, 0.0
    %v5814 = vmax.f32 %v5737, 0.0
    %v5815 = vmax.f32 %v5738, 0.0
    %v5816 = vmax.f32 %v5739, 0.0
    %v5817 = vmax.f32 %v5740, 0.0
    %v5818 = vmax.f32 %v5741, 0.0
    %v5819 = vmax.f32 %v5742, 0.0
    %v5820 = vmax.f32 %v5743, 0.0
    %v5821 = vmax.f32 %v5744, 0.0
    %v5822 = vmax.f32 %v5745, 0.0
    %v5823 = vmax.f32 %v5746, 0.0
    %v5824 = vmax.f32 %v5747, 0.0
    %v5825 = vmax.f32 %v5748, 0.0
    %v5826 = vmax.f32 %v5749, 0.0
    %v5827 = vmax.f32 %v5750, 0.0
    %v5828 = vmax.f32 %v5751, 0.0
    %v5829 = vmax.f32 %v5752, 0.0
    %v5830 = vmax.f32 %v5753, 0.0
    %v5831 = vmax.f32 %v5754, 0.0
    %v5832 = vmax.f32 %v5755, 0.0
    %v5833 = vmax.f32 %v5756, 0.0
    %v5834 = vmax.f32 %v5757, 0.0
    %v5835 = vmax.f32 %v5758, 0.0
    %v5836 = vmax.f32 %v5759, 0.0
    %v5837 = vmax.f32 %v5760, 0.0
    %v5838 = vmax.f32 %v5761, 0.0
    %v5839 = vmax.f32 %v5762, 0.0
    %v5840 = vmax.f32 %v5763, 0.0
    %v5841 = vmax.f32 %v5764, 0.0
    %v5842 = vmax.f32 %v5765, 0.0
    %v5843 = vmax.f32 %v5766, 0.0
    %v5844 = vmax.f32 %v5767, 0.0
    %v5845 = vmax.f32 %v5768, 0.0
    %v5846 = vmax.f32 %v5769, 0.0
    %v5847 = vmax.f32 %v5770, 0.0
    %v5848 = vmax.f32 %v5771, 0.0
    %v5849 = vmax.f32 %v5772, 0.0
    %v5850 = vmax.f32 %v5773, 0.0
    %v5851 = vmax.f32 %v5774, 0.0
    %v5852 = vmax.f32 %v5775, 0.0
    %v5853 = vmax.f32 %v5776, 0.0
    %v5854 = vmax.f32 %v5777, 0.0
    %v5855 = vmax.f32 %v5778, 0.0
    %v5856 = vmax.f32 %v5779, 0.0
    %vm5857 = vcmask 261120
    %5858 = vst.msk [vmem:[#allocation2] sm:$0xff] %vm5857, %v5780
    %5859 = vst.msk [vmem:[#allocation2 + $0x8] sm:$0xff] %vm5857, %v5781
    %5860 = vst.msk [vmem:[#allocation2 + $0x10] sm:$0xff] %vm5857, %v5782
    %5861 = vst.msk [vmem:[#allocation2 + $0x18] sm:$0xff] %vm5857, %v5783
    %5862 = vst.msk [vmem:[#allocation2 + $0x20] sm:$0xff] %vm5857, %v5784
    %5863 = vst.msk [vmem:[#allocation2 + $0x28] sm:$0xff] %vm5857, %v5785
    %5864 = vst.msk [vmem:[#allocation2 + $0x30] sm:$0xff] %vm5857, %v5786
    %5865 = vst.msk [vmem:[#allocation2 + $0x38] sm:$0xff] %vm5857, %v5787
    %5866 = vst.msk [vmem:[#allocation2 + $0x40] sm:$0xff] %vm5857, %v5788
    %5867 = vst.msk [vmem:[#allocation2 + $0x48] sm:$0xff] %vm5857, %v5789
    %5868 = vst.msk [vmem:[#allocation2 + $0x50] sm:$0xff] %vm5857, %v5790
    %5869 = vst.msk [vmem:[#allocation2 + $0x58] sm:$0xff] %vm5857, %v5791
    %5870 = vst.msk [vmem:[#allocation2 + $0x60] sm:$0xff] %vm5857, %v5792
    %5871 = vst.msk [vmem:[#allocation2 + $0x68] sm:$0xff] %vm5857, %v5793
    %5872 = vst.msk [vmem:[#allocation2 + $0x70] sm:$0xff] %vm5857, %v5794
    %5873 = vst.msk [vmem:[#allocation2 + $0x78] sm:$0xff] %vm5857, %v5795
    %5874 = vst.msk [vmem:[#allocation2 + $0x80] sm:$0xff] %vm5857, %v5796
    %5875 = vst.msk [vmem:[#allocation2 + $0x88] sm:$0xff] %vm5857, %v5797
    %5876 = vst.msk [vmem:[#allocation2 + $0x90] sm:$0xff] %vm5857, %v5798
    %5877 = vst.msk [vmem:[#allocation2 + $0x98] sm:$0xff] %vm5857, %v5799
    %5878 = vst.msk [vmem:[#allocation2 + $0xa0] sm:$0xff] %vm5857, %v5800
    %5879 = vst.msk [vmem:[#allocation2 + $0xa8] sm:$0xff] %vm5857, %v5801
    %5880 = vst.msk [vmem:[#allocation2 + $0xb0] sm:$0xff] %vm5857, %v5802
    %5881 = vst.msk [vmem:[#allocation2 + $0xb8] sm:$0xff] %vm5857, %v5803
    %5882 = vst.msk [vmem:[#allocation2 + $0xc0] sm:$0xff] %vm5857, %v5804
    %5883 = vst.msk [vmem:[#allocation2 + $0xc8] sm:$0xff] %vm5857, %v5805
    %5884 = vst.msk [vmem:[#allocation2 + $0xd0] sm:$0xff] %vm5857, %v5806
    %5885 = vst.msk [vmem:[#allocation2 + $0xd8] sm:$0xff] %vm5857, %v5807
    %5886 = vst.msk [vmem:[#allocation2 + $0xe0] sm:$0xff] %vm5857, %v5808
    %5887 = vst.msk [vmem:[#allocation2 + $0xe8] sm:$0xff] %vm5857, %v5809
    %5888 = vst.msk [vmem:[#allocation2 + $0xf0] sm:$0xff] %vm5857, %v5810
    %5889 = vst.msk [vmem:[#allocation2 + $0xf8] sm:$0xff] %vm5857, %v5811
    %5890 = vst.msk [vmem:[#allocation2 + $0x100] sm:$0xff] %vm5857, %v5812
    %5891 = vst.msk [vmem:[#allocation2 + $0x108] sm:$0xff] %vm5857, %v5813
    %5892 = vst.msk [vmem:[#allocation2 + $0x110] sm:$0xff] %vm5857, %v5814
    %5893 = vst.msk [vmem:[#allocation2 + $0x118] sm:$0xff] %vm5857, %v5815
    %5894 = vst.msk [vmem:[#allocation2 + $0x120] sm:$0xff] %vm5857, %v5816
    %5895 = vst.msk [vmem:[#allocation2 + $0x128] sm:$0xff] %vm5857, %v5817
    %5896 = vst.msk [vmem:[#allocation2 + $0x130] sm:$0xff] %vm5857, %v5818
    %5897 = vst.msk [vmem:[#allocation2 + $0x138] sm:$0xff] %vm5857, %v5819
    %5898 = vst.msk [vmem:[#allocation2 + $0x140] sm:$0xff] %vm5857, %v5820
    %5899 = vst.msk [vmem:[#allocation2 + $0x148] sm:$0xff] %vm5857, %v5821
    %5900 = vst.msk [vmem:[#allocation2 + $0x150] sm:$0xff] %vm5857, %v5822
    %5901 = vst.msk [vmem:[#allocation2 + $0x158] sm:$0xff] %vm5857, %v5823
    %5902 = vst.msk [vmem:[#allocation2 + $0x160] sm:$0xff] %vm5857, %v5824
    %5903 = vst.msk [vmem:[#allocation2 + $0x168] sm:$0xff] %vm5857, %v5825
    %5904 = vst.msk [vmem:[#allocation2 + $0x170] sm:$0xff] %vm5857, %v5826
    %5905 = vst.msk [vmem:[#allocation2 + $0x178] sm:$0xff] %vm5857, %v5827
    %5906 = vst.msk [vmem:[#allocation2 + $0x180] sm:$0xff] %vm5857, %v5828
    %5907 = vst.msk [vmem:[#allocation2 + $0x188] sm:$0xff] %vm5857, %v5829
    %5908 = vst.msk [vmem:[#allocation2 + $0x190] sm:$0xff] %vm5857, %v5830
    %5909 = vst.msk [vmem:[#allocation2 + $0x198] sm:$0xff] %vm5857, %v5831
    %5910 = vst.msk [vmem:[#allocation2 + $0x1a0] sm:$0xff] %vm5857, %v5832
    %5911 = vst.msk [vmem:[#allocation2 + $0x1a8] sm:$0xff] %vm5857, %v5833
    %5912 = vst.msk [vmem:[#allocation2 + $0x1b0] sm:$0xff] %vm5857, %v5834
    %5913 = vst.msk [vmem:[#allocation2 + $0x1b8] sm:$0xff] %vm5857, %v5835
    %5914 = vst.msk [vmem:[#allocation2 + $0x1c0] sm:$0xff] %vm5857, %v5836
    %5915 = vst.msk [vmem:[#allocation2 + $0x1c8] sm:$0xff] %vm5857, %v5837
    %5916 = vst.msk [vmem:[#allocation2 + $0x1d0] sm:$0xff] %vm5857, %v5838
    %5917 = vst.msk [vmem:[#allocation2 + $0x1d8] sm:$0xff] %vm5857, %v5839
    %5918 = vst.msk [vmem:[#allocation2 + $0x1e0] sm:$0xff] %vm5857, %v5840
    %5919 = vst.msk [vmem:[#allocation2 + $0x1e8] sm:$0xff] %vm5857, %v5841
    %5920 = vst.msk [vmem:[#allocation2 + $0x1f0] sm:$0xff] %vm5857, %v5842
    %5921 = vst.msk [vmem:[#allocation2 + $0x1f8] sm:$0xff] %vm5857, %v5843
    %5922 = vst.msk [vmem:[#allocation2 + $0x200] sm:$0xff] %vm5857, %v5844
    %5923 = vst.msk [vmem:[#allocation2 + $0x208] sm:$0xff] %vm5857, %v5845
    %5924 = vst.msk [vmem:[#allocation2 + $0x210] sm:$0xff] %vm5857, %v5846
    %5925 = vst.msk [vmem:[#allocation2 + $0x218] sm:$0xff] %vm5857, %v5847
    %5926 = vst.msk [vmem:[#allocation2 + $0x220] sm:$0xff] %vm5857, %v5848
    %5927 = vst.msk [vmem:[#allocation2 + $0x228] sm:$0xff] %vm5857, %v5849
    %5928 = vst.msk [vmem:[#allocation2 + $0x230] sm:$0xff] %vm5857, %v5850
    %5929 = vst.msk [vmem:[#allocation2 + $0x238] sm:$0xff] %vm5857, %v5851
    %5930 = vst.msk [vmem:[#allocation2 + $0x240] sm:$0xff] %vm5857, %v5852
    %5931 = vst.msk [vmem:[#allocation2 + $0x248] sm:$0xff] %vm5857, %v5853
    %5932 = vst.msk [vmem:[#allocation2 + $0x250] sm:$0xff] %vm5857, %v5854
    %5933 = vst.msk [vmem:[#allocation2 + $0x258] sm:$0xff] %vm5857, %v5855
    %vm5934 = vcmask 254976
    %5935 = vst.msk [vmem:[#allocation2 + $0x260] sm:$0x3] %vm5934, %v5856
    %v5936 = vld [vmem:[#allocation2] sm:$0xff]
    %v5937 = vld [vmem:[#allocation2 + $0x8] sm:$0xff]
    %v5938 = vld [vmem:[#allocation2 + $0x10] sm:$0xff]
    %v5939 = vld [vmem:[#allocation2 + $0x18] sm:$0xff]
    %v5940 = vld [vmem:[#allocation2 + $0x20] sm:$0xff]
    %v5941 = vld [vmem:[#allocation2 + $0x28] sm:$0xff]
    %v5942 = vld [vmem:[#allocation2 + $0x30] sm:$0xff]
    %v5943 = vld [vmem:[#allocation2 + $0x38] sm:$0xff]
    %v5944 = vld [vmem:[#allocation2 + $0x40] sm:$0xff]
    %v5945 = vld [vmem:[#allocation2 + $0x48] sm:$0xff]
    %v5946 = vld [vmem:[#allocation2 + $0x50] sm:$0xff]
    %v5947 = vld [vmem:[#allocation2 + $0x58] sm:$0xff]
    %v5948 = vld [vmem:[#allocation2 + $0x60] sm:$0xff]
    %v5949 = vld [vmem:[#allocation2 + $0x68] sm:$0xff]
    %v5950 = vld [vmem:[#allocation2 + $0x70] sm:$0xff]
    %v5951 = vld [vmem:[#allocation2 + $0x78] sm:$0xff]
    %v5952 = vld [vmem:[#allocation2 + $0x80] sm:$0xff]
    %v5953 = vld [vmem:[#allocation2 + $0x88] sm:$0xff]
    %v5954 = vld [vmem:[#allocation2 + $0x90] sm:$0xff]
    %v5955 = vld [vmem:[#allocation2 + $0x98] sm:$0xff]
    %v5956 = vld [vmem:[#allocation2 + $0xa0] sm:$0xff]
    %v5957 = vld [vmem:[#allocation2 + $0xa8] sm:$0xff]
    %v5958 = vld [vmem:[#allocation2 + $0xb0] sm:$0xff]
    %v5959 = vld [vmem:[#allocation2 + $0xb8] sm:$0xff]
    %v5960 = vld [vmem:[#allocation2 + $0xc0] sm:$0xff]
    %v5961 = vld [vmem:[#allocation2 + $0xc8] sm:$0xff]
    %v5962 = vld [vmem:[#allocation2 + $0xd0] sm:$0xff]
    %v5963 = vld [vmem:[#allocation2 + $0xd8] sm:$0xff]
    %v5964 = vld [vmem:[#allocation2 + $0xe0] sm:$0xff]
    %v5965 = vld [vmem:[#allocation2 + $0xe8] sm:$0xff]
    %v5966 = vld [vmem:[#allocation2 + $0xf0] sm:$0xff]
    %v5967 = vld [vmem:[#allocation2 + $0xf8] sm:$0xff]
    %v5968 = vld [vmem:[#allocation2 + $0x100] sm:$0xff]
    %v5969 = vld [vmem:[#allocation2 + $0x108] sm:$0xff]
    %v5970 = vld [vmem:[#allocation2 + $0x110] sm:$0xff]
    %v5971 = vld [vmem:[#allocation2 + $0x118] sm:$0xff]
    %v5972 = vld [vmem:[#allocation2 + $0x120] sm:$0xff]
    %v5973 = vld [vmem:[#allocation2 + $0x128] sm:$0xff]
    %v5974 = vld [vmem:[#allocation2 + $0x130] sm:$0xff]
    %v5975 = vld [vmem:[#allocation2 + $0x138] sm:$0xff]
    %v5976 = vld [vmem:[#allocation2 + $0x140] sm:$0xff]
    %v5977 = vld [vmem:[#allocation2 + $0x148] sm:$0xff]
    %v5978 = vld [vmem:[#allocation2 + $0x150] sm:$0xff]
    %v5979 = vld [vmem:[#allocation2 + $0x158] sm:$0xff]
    %v5980 = vld [vmem:[#allocation2 + $0x160] sm:$0xff]
    %v5981 = vld [vmem:[#allocation2 + $0x168] sm:$0xff]
    %v5982 = vld [vmem:[#allocation2 + $0x170] sm:$0xff]
    %v5983 = vld [vmem:[#allocation2 + $0x178] sm:$0xff]
    %v5984 = vld [vmem:[#allocation2 + $0x180] sm:$0xff]
    %v5985 = vld [vmem:[#allocation2 + $0x188] sm:$0xff]
    %v5986 = vld [vmem:[#allocation2 + $0x190] sm:$0xff]
    %v5987 = vld [vmem:[#allocation2 + $0x198] sm:$0xff]
    %v5988 = vld [vmem:[#allocation2 + $0x1a0] sm:$0xff]
    %v5989 = vld [vmem:[#allocation2 + $0x1a8] sm:$0xff]
    %v5990 = vld [vmem:[#allocation2 + $0x1b0] sm:$0xff]
    %v5991 = vld [vmem:[#allocation2 + $0x1b8] sm:$0xff]
    %v5992 = vld [vmem:[#allocation2 + $0x1c0] sm:$0xff]
    %v5993 = vld [vmem:[#allocation2 + $0x1c8] sm:$0xff]
    %v5994 = vld [vmem:[#allocation2 + $0x1d0] sm:$0xff]
    %v5995 = vld [vmem:[#allocation2 + $0x1d8] sm:$0xff]
    %v5996 = vld [vmem:[#allocation2 + $0x1e0] sm:$0xff]
    %v5997 = vld [vmem:[#allocation2 + $0x1e8] sm:$0xff]
    %v5998 = vld [vmem:[#allocation2 + $0x1f0] sm:$0xff]
    %v5999 = vld [vmem:[#allocation2 + $0x1f8] sm:$0xff]
    %v6000 = vld [vmem:[#allocation2 + $0x200] sm:$0xff]
    %v6001 = vld [vmem:[#allocation2 + $0x208] sm:$0xff]
    %v6002 = vld [vmem:[#allocation2 + $0x210] sm:$0xff]
    %v6003 = vld [vmem:[#allocation2 + $0x218] sm:$0xff]
    %v6004 = vld [vmem:[#allocation2 + $0x220] sm:$0xff]
    %v6005 = vld [vmem:[#allocation2 + $0x228] sm:$0xff]
    %v6006 = vld [vmem:[#allocation2 + $0x230] sm:$0xff]
    %v6007 = vld [vmem:[#allocation2 + $0x238] sm:$0xff]
    %v6008 = vld [vmem:[#allocation2 + $0x240] sm:$0xff]
    %v6009 = vld [vmem:[#allocation2 + $0x248] sm:$0x7f]
    %v6010 = vld [vmem:[#allocation2 + $0x1] sm:$0xff]
    %v6011 = vld [vmem:[#allocation2 + $0x9] sm:$0xff]
    %v6012 = vld [vmem:[#allocation2 + $0x11] sm:$0xff]
    %v6013 = vld [vmem:[#allocation2 + $0x19] sm:$0xff]
    %v6014 = vld [vmem:[#allocation2 + $0x21] sm:$0xff]
    %v6015 = vld [vmem:[#allocation2 + $0x29] sm:$0xff]
    %v6016 = vld [vmem:[#allocation2 + $0x31] sm:$0xff]
    %v6017 = vld [vmem:[#allocation2 + $0x39] sm:$0xff]
    %v6018 = vld [vmem:[#allocation2 + $0x41] sm:$0xff]
    %v6019 = vld [vmem:[#allocation2 + $0x49] sm:$0xff]
    %v6020 = vld [vmem:[#allocation2 + $0x51] sm:$0xff]
    %v6021 = vld [vmem:[#allocation2 + $0x59] sm:$0xff]
    %v6022 = vld [vmem:[#allocation2 + $0x61] sm:$0xff]
    %v6023 = vld [vmem:[#allocation2 + $0x69] sm:$0xff]
    %v6024 = vld [vmem:[#allocation2 + $0x71] sm:$0xff]
    %v6025 = vld [vmem:[#allocation2 + $0x79] sm:$0xff]
    %v6026 = vld [vmem:[#allocation2 + $0x81] sm:$0xff]
    %v6027 = vld [vmem:[#allocation2 + $0x89] sm:$0xff]
    %v6028 = vld [vmem:[#allocation2 + $0x91] sm:$0xff]
    %v6029 = vld [vmem:[#allocation2 + $0x99] sm:$0xff]
    %v6030 = vld [vmem:[#allocation2 + $0xa1] sm:$0xff]
    %v6031 = vld [vmem:[#allocation2 + $0xa9] sm:$0xff]
    %v6032 = vld [vmem:[#allocation2 + $0xb1] sm:$0xff]
    %v6033 = vld [vmem:[#allocation2 + $0xb9] sm:$0xff]
    %v6034 = vld [vmem:[#allocation2 + $0xc1] sm:$0xff]
    %v6035 = vld [vmem:[#allocation2 + $0xc9] sm:$0xff]
    %v6036 = vld [vmem:[#allocation2 + $0xd1] sm:$0xff]
    %v6037 = vld [vmem:[#allocation2 + $0xd9] sm:$0xff]
    %v6038 = vld [vmem:[#allocation2 + $0xe1] sm:$0xff]
    %v6039 = vld [vmem:[#allocation2 + $0xe9] sm:$0xff]
    %v6040 = vld [vmem:[#allocation2 + $0xf1] sm:$0xff]
    %v6041 = vld [vmem:[#allocation2 + $0xf9] sm:$0xff]
    %v6042 = vld [vmem:[#allocation2 + $0x101] sm:$0xff]
    %v6043 = vld [vmem:[#allocation2 + $0x109] sm:$0xff]
    %v6044 = vld [vmem:[#allocation2 + $0x111] sm:$0xff]
    %v6045 = vld [vmem:[#allocation2 + $0x119] sm:$0xff]
    %v6046 = vld [vmem:[#allocation2 + $0x121] sm:$0xff]
    %v6047 = vld [vmem:[#allocation2 + $0x129] sm:$0xff]
    %v6048 = vld [vmem:[#allocation2 + $0x131] sm:$0xff]
    %v6049 = vld [vmem:[#allocation2 + $0x139] sm:$0xff]
    %v6050 = vld [vmem:[#allocation2 + $0x141] sm:$0xff]
    %v6051 = vld [vmem:[#allocation2 + $0x149] sm:$0xff]
    %v6052 = vld [vmem:[#allocation2 + $0x151] sm:$0xff]
    %v6053 = vld [vmem:[#allocation2 + $0x159] sm:$0xff]
    %v6054 = vld [vmem:[#allocation2 + $0x161] sm:$0xff]
    %v6055 = vld [vmem:[#allocation2 + $0x169] sm:$0xff]
    %v6056 = vld [vmem:[#allocation2 + $0x171] sm:$0xff]
    %v6057 = vld [vmem:[#allocation2 + $0x179] sm:$0xff]
    %v6058 = vld [vmem:[#allocation2 + $0x181] sm:$0xff]
    %v6059 = vld [vmem:[#allocation2 + $0x189] sm:$0xff]
    %v6060 = vld [vmem:[#allocation2 + $0x191] sm:$0xff]
    %v6061 = vld [vmem:[#allocation2 + $0x199] sm:$0xff]
    %v6062 = vld [vmem:[#allocation2 + $0x1a1] sm:$0xff]
    %v6063 = vld [vmem:[#allocation2 + $0x1a9] sm:$0xff]
    %v6064 = vld [vmem:[#allocation2 + $0x1b1] sm:$0xff]
    %v6065 = vld [vmem:[#allocation2 + $0x1b9] sm:$0xff]
    %v6066 = vld [vmem:[#allocation2 + $0x1c1] sm:$0xff]
    %v6067 = vld [vmem:[#allocation2 + $0x1c9] sm:$0xff]
    %v6068 = vld [vmem:[#allocation2 + $0x1d1] sm:$0xff]
    %v6069 = vld [vmem:[#allocation2 + $0x1d9] sm:$0xff]
    %v6070 = vld [vmem:[#allocation2 + $0x1e1] sm:$0xff]
    %v6071 = vld [vmem:[#allocation2 + $0x1e9] sm:$0xff]
    %v6072 = vld [vmem:[#allocation2 + $0x1f1] sm:$0xff]
    %v6073 = vld [vmem:[#allocation2 + $0x1f9] sm:$0xff]
    %v6074 = vld [vmem:[#allocation2 + $0x201] sm:$0xff]
    %v6075 = vld [vmem:[#allocation2 + $0x209] sm:$0xff]
    %v6076 = vld [vmem:[#allocation2 + $0x211] sm:$0xff]
    %v6077 = vld [vmem:[#allocation2 + $0x219] sm:$0xff]
    %v6078 = vld [vmem:[#allocation2 + $0x221] sm:$0xff]
    %v6079 = vld [vmem:[#allocation2 + $0x229] sm:$0xff]
    %v6080 = vld [vmem:[#allocation2 + $0x231] sm:$0xff]
    %v6081 = vld [vmem:[#allocation2 + $0x239] sm:$0xff]
    %v6082 = vld [vmem:[#allocation2 + $0x241] sm:$0xff]
    %v6083 = vld [vmem:[#allocation2 + $0x249] sm:$0x7f]
    %v6084 = vmax.f32 %v5936, %v6010
    %v6085 = vmax.f32 %v5937, %v6011
    %v6086 = vmax.f32 %v5938, %v6012
    %v6087 = vmax.f32 %v5939, %v6013
    %v6088 = vmax.f32 %v5940, %v6014
    %v6089 = vmax.f32 %v5941, %v6015
    %v6090 = vmax.f32 %v5942, %v6016
    %v6091 = vmax.f32 %v5943, %v6017
    %v6092 = vmax.f32 %v5944, %v6018
    %v6093 = vmax.f32 %v5945, %v6019
    %v6094 = vmax.f32 %v5946, %v6020
    %v6095 = vmax.f32 %v5947, %v6021
    %v6096 = vmax.f32 %v5948, %v6022
    %v6097 = vmax.f32 %v5949, %v6023
    %v6098 = vmax.f32 %v5950, %v6024
    %v6099 = vmax.f32 %v5951, %v6025
    %v6100 = vmax.f32 %v5952, %v6026
    %v6101 = vmax.f32 %v5953, %v6027
    %v6102 = vmax.f32 %v5954, %v6028
    %v6103 = vmax.f32 %v5955, %v6029
    %v6104 = vmax.f32 %v5956, %v6030
    %v6105 = vmax.f32 %v5957, %v6031
    %v6106 = vmax.f32 %v5958, %v6032
    %v6107 = vmax.f32 %v5959, %v6033
    %v6108 = vmax.f32 %v5960, %v6034
    %v6109 = vmax.f32 %v5961, %v6035
    %v6110 = vmax.f32 %v5962, %v6036
    %v6111 = vmax.f32 %v5963, %v6037
    %v6112 = vmax.f32 %v5964, %v6038
    %v6113 = vmax.f32 %v5965, %v6039
    %v6114 = vmax.f32 %v5966, %v6040
    %v6115 = vmax.f32 %v5967, %v6041
    %v6116 = vmax.f32 %v5968, %v6042
    %v6117 = vmax.f32 %v5969, %v6043
    %v6118 = vmax.f32 %v5970, %v6044
    %v6119 = vmax.f32 %v5971, %v6045
    %v6120 = vmax.f32 %v5972, %v6046
    %v6121 = vmax.f32 %v5973, %v6047
    %v6122 = vmax.f32 %v5974, %v6048
    %v6123 = vmax.f32 %v5975, %v6049
    %v6124 = vmax.f32 %v5976, %v6050
    %v6125 = vmax.f32 %v5977, %v6051
    %v6126 = vmax.f32 %v5978, %v6052
    %v6127 = vmax.f32 %v5979, %v6053
    %v6128 = vmax.f32 %v5980, %v6054
    %v6129 = vmax.f32 %v5981, %v6055
    %v6130 = vmax.f32 %v5982, %v6056
    %v6131 = vmax.f32 %v5983, %v6057
    %v6132 = vmax.f32 %v5984, %v6058
    %v6133 = vmax.f32 %v5985, %v6059
    %v6134 = vmax.f32 %v5986, %v6060
    %v6135 = vmax.f32 %v5987, %v6061
    %v6136 = vmax.f32 %v5988, %v6062
    %v6137 = vmax.f32 %v5989, %v6063
    %v6138 = vmax.f32 %v5990, %v6064
    %v6139 = vmax.f32 %v5991, %v6065
    %v6140 = vmax.f32 %v5992, %v6066
    %v6141 = vmax.f32 %v5993, %v6067
    %v6142 = vmax.f32 %v5994, %v6068
    %v6143 = vmax.f32 %v5995, %v6069
    %v6144 = vmax.f32 %v5996, %v6070
    %v6145 = vmax.f32 %v5997, %v6071
    %v6146 = vmax.f32 %v5998, %v6072
    %v6147 = vmax.f32 %v5999, %v6073
    %v6148 = vmax.f32 %v6000, %v6074
    %v6149 = vmax.f32 %v6001, %v6075
    %v6150 = vmax.f32 %v6002, %v6076
    %v6151 = vmax.f32 %v6003, %v6077
    %v6152 = vmax.f32 %v6004, %v6078
    %v6153 = vmax.f32 %v6005, %v6079
    %v6154 = vmax.f32 %v6006, %v6080
    %v6155 = vmax.f32 %v6007, %v6081
    %v6156 = vmax.f32 %v6008, %v6082
    %v6157 = vmax.f32 %v6009, %v6083
    %v6158 = vld [vmem:[#allocation2 + $0x12] sm:$0xff]
    %v6159 = vld [vmem:[#allocation2 + $0x1a] sm:$0xff]
    %v6160 = vld [vmem:[#allocation2 + $0x22] sm:$0xff]
    %v6161 = vld [vmem:[#allocation2 + $0x2a] sm:$0xff]
    %v6162 = vld [vmem:[#allocation2 + $0x32] sm:$0xff]
    %v6163 = vld [vmem:[#allocation2 + $0x3a] sm:$0xff]
    %v6164 = vld [vmem:[#allocation2 + $0x42] sm:$0xff]
    %v6165 = vld [vmem:[#allocation2 + $0x4a] sm:$0xff]
    %v6166 = vld [vmem:[#allocation2 + $0x52] sm:$0xff]
    %v6167 = vld [vmem:[#allocation2 + $0x5a] sm:$0xff]
    %v6168 = vld [vmem:[#allocation2 + $0x62] sm:$0xff]
    %v6169 = vld [vmem:[#allocation2 + $0x6a] sm:$0xff]
    %v6170 = vld [vmem:[#allocation2 + $0x72] sm:$0xff]
    %v6171 = vld [vmem:[#allocation2 + $0x7a] sm:$0xff]
    %v6172 = vld [vmem:[#allocation2 + $0x82] sm:$0xff]
    %v6173 = vld [vmem:[#allocation2 + $0x8a] sm:$0xff]
    %v6174 = vld [vmem:[#allocation2 + $0x92] sm:$0xff]
    %v6175 = vld [vmem:[#allocation2 + $0x9a] sm:$0xff]
    %v6176 = vld [vmem:[#allocation2 + $0xa2] sm:$0xff]
    %v6177 = vld [vmem:[#allocation2 + $0xaa] sm:$0xff]
    %v6178 = vld [vmem:[#allocation2 + $0xb2] sm:$0xff]
    %v6179 = vld [vmem:[#allocation2 + $0xba] sm:$0xff]
    %v6180 = vld [vmem:[#allocation2 + $0xc2] sm:$0xff]
    %v6181 = vld [vmem:[#allocation2 + $0xca] sm:$0xff]
    %v6182 = vld [vmem:[#allocation2 + $0xd2] sm:$0xff]
    %v6183 = vld [vmem:[#allocation2 + $0xda] sm:$0xff]
    %v6184 = vld [vmem:[#allocation2 + $0xe2] sm:$0xff]
    %v6185 = vld [vmem:[#allocation2 + $0xea] sm:$0xff]
    %v6186 = vld [vmem:[#allocation2 + $0xf2] sm:$0xff]
    %v6187 = vld [vmem:[#allocation2 + $0xfa] sm:$0xff]
    %v6188 = vld [vmem:[#allocation2 + $0x102] sm:$0xff]
    %v6189 = vld [vmem:[#allocation2 + $0x10a] sm:$0xff]
    %v6190 = vld [vmem:[#allocation2 + $0x112] sm:$0xff]
    %v6191 = vld [vmem:[#allocation2 + $0x11a] sm:$0xff]
    %v6192 = vld [vmem:[#allocation2 + $0x122] sm:$0xff]
    %v6193 = vld [vmem:[#allocation2 + $0x12a] sm:$0xff]
    %v6194 = vld [vmem:[#allocation2 + $0x132] sm:$0xff]
    %v6195 = vld [vmem:[#allocation2 + $0x13a] sm:$0xff]
    %v6196 = vld [vmem:[#allocation2 + $0x142] sm:$0xff]
    %v6197 = vld [vmem:[#allocation2 + $0x14a] sm:$0xff]
    %v6198 = vld [vmem:[#allocation2 + $0x152] sm:$0xff]
    %v6199 = vld [vmem:[#allocation2 + $0x15a] sm:$0xff]
    %v6200 = vld [vmem:[#allocation2 + $0x162] sm:$0xff]
    %v6201 = vld [vmem:[#allocation2 + $0x16a] sm:$0xff]
    %v6202 = vld [vmem:[#allocation2 + $0x172] sm:$0xff]
    %v6203 = vld [vmem:[#allocation2 + $0x17a] sm:$0xff]
    %v6204 = vld [vmem:[#allocation2 + $0x182] sm:$0xff]
    %v6205 = vld [vmem:[#allocation2 + $0x18a] sm:$0xff]
    %v6206 = vld [vmem:[#allocation2 + $0x192] sm:$0xff]
    %v6207 = vld [vmem:[#allocation2 + $0x19a] sm:$0xff]
    %v6208 = vld [vmem:[#allocation2 + $0x1a2] sm:$0xff]
    %v6209 = vld [vmem:[#allocation2 + $0x1aa] sm:$0xff]
    %v6210 = vld [vmem:[#allocation2 + $0x1b2] sm:$0xff]
    %v6211 = vld [vmem:[#allocation2 + $0x1ba] sm:$0xff]
    %v6212 = vld [vmem:[#allocation2 + $0x1c2] sm:$0xff]
    %v6213 = vld [vmem:[#allocation2 + $0x1ca] sm:$0xff]
    %v6214 = vld [vmem:[#allocation2 + $0x1d2] sm:$0xff]
    %v6215 = vld [vmem:[#allocation2 + $0x1da] sm:$0xff]
    %v6216 = vld [vmem:[#allocation2 + $0x1e2] sm:$0xff]
    %v6217 = vld [vmem:[#allocation2 + $0x1ea] sm:$0xff]
    %v6218 = vld [vmem:[#allocation2 + $0x1f2] sm:$0xff]
    %v6219 = vld [vmem:[#allocation2 + $0x1fa] sm:$0xff]
    %v6220 = vld [vmem:[#allocation2 + $0x202] sm:$0xff]
    %v6221 = vld [vmem:[#allocation2 + $0x20a] sm:$0xff]
    %v6222 = vld [vmem:[#allocation2 + $0x212] sm:$0xff]
    %v6223 = vld [vmem:[#allocation2 + $0x21a] sm:$0xff]
    %v6224 = vld [vmem:[#allocation2 + $0x222] sm:$0xff]
    %v6225 = vld [vmem:[#allocation2 + $0x22a] sm:$0xff]
    %v6226 = vld [vmem:[#allocation2 + $0x232] sm:$0xff]
    %v6227 = vld [vmem:[#allocation2 + $0x23a] sm:$0xff]
    %v6228 = vld [vmem:[#allocation2 + $0x242] sm:$0xff]
    %v6229 = vld [vmem:[#allocation2 + $0x24a] sm:$0xff]
    %v6230 = vld [vmem:[#allocation2 + $0x252] sm:$0xff]
    %v6231 = vld [vmem:[#allocation2 + $0x25a] sm:$0x7f]
    %v6232 = vld [vmem:[#allocation2 + $0x13] sm:$0xff]
    %v6233 = vld [vmem:[#allocation2 + $0x1b] sm:$0xff]
    %v6234 = vld [vmem:[#allocation2 + $0x23] sm:$0xff]
    %v6235 = vld [vmem:[#allocation2 + $0x2b] sm:$0xff]
    %v6236 = vld [vmem:[#allocation2 + $0x33] sm:$0xff]
    %v6237 = vld [vmem:[#allocation2 + $0x3b] sm:$0xff]
    %v6238 = vld [vmem:[#allocation2 + $0x43] sm:$0xff]
    %v6239 = vld [vmem:[#allocation2 + $0x4b] sm:$0xff]
    %v6240 = vld [vmem:[#allocation2 + $0x53] sm:$0xff]
    %v6241 = vld [vmem:[#allocation2 + $0x5b] sm:$0xff]
    %v6242 = vld [vmem:[#allocation2 + $0x63] sm:$0xff]
    %v6243 = vld [vmem:[#allocation2 + $0x6b] sm:$0xff]
    %v6244 = vld [vmem:[#allocation2 + $0x73] sm:$0xff]
    %v6245 = vld [vmem:[#allocation2 + $0x7b] sm:$0xff]
    %v6246 = vld [vmem:[#allocation2 + $0x83] sm:$0xff]
    %v6247 = vld [vmem:[#allocation2 + $0x8b] sm:$0xff]
    %v6248 = vld [vmem:[#allocation2 + $0x93] sm:$0xff]
    %v6249 = vld [vmem:[#allocation2 + $0x9b] sm:$0xff]
    %v6250 = vld [vmem:[#allocation2 + $0xa3] sm:$0xff]
    %v6251 = vld [vmem:[#allocation2 + $0xab] sm:$0xff]
    %v6252 = vld [vmem:[#allocation2 + $0xb3] sm:$0xff]
    %v6253 = vld [vmem:[#allocation2 + $0xbb] sm:$0xff]
    %v6254 = vld [vmem:[#allocation2 + $0xc3] sm:$0xff]
    %v6255 = vld [vmem:[#allocation2 + $0xcb] sm:$0xff]
    %v6256 = vld [vmem:[#allocation2 + $0xd3] sm:$0xff]
    %v6257 = vld [vmem:[#allocation2 + $0xdb] sm:$0xff]
    %v6258 = vld [vmem:[#allocation2 + $0xe3] sm:$0xff]
    %v6259 = vld [vmem:[#allocation2 + $0xeb] sm:$0xff]
    %v6260 = vld [vmem:[#allocation2 + $0xf3] sm:$0xff]
    %v6261 = vld [vmem:[#allocation2 + $0xfb] sm:$0xff]
    %v6262 = vld [vmem:[#allocation2 + $0x103] sm:$0xff]
    %v6263 = vld [vmem:[#allocation2 + $0x10b] sm:$0xff]
    %v6264 = vld [vmem:[#allocation2 + $0x113] sm:$0xff]
    %v6265 = vld [vmem:[#allocation2 + $0x11b] sm:$0xff]
    %v6266 = vld [vmem:[#allocation2 + $0x123] sm:$0xff]
    %v6267 = vld [vmem:[#allocation2 + $0x12b] sm:$0xff]
    %v6268 = vld [vmem:[#allocation2 + $0x133] sm:$0xff]
    %v6269 = vld [vmem:[#allocation2 + $0x13b] sm:$0xff]
    %v6270 = vld [vmem:[#allocation2 + $0x143] sm:$0xff]
    %v6271 = vld [vmem:[#allocation2 + $0x14b] sm:$0xff]
    %v6272 = vld [vmem:[#allocation2 + $0x153] sm:$0xff]
    %v6273 = vld [vmem:[#allocation2 + $0x15b] sm:$0xff]
    %v6274 = vld [vmem:[#allocation2 + $0x163] sm:$0xff]
    %v6275 = vld [vmem:[#allocation2 + $0x16b] sm:$0xff]
    %v6276 = vld [vmem:[#allocation2 + $0x173] sm:$0xff]
    %v6277 = vld [vmem:[#allocation2 + $0x17b] sm:$0xff]
    %v6278 = vld [vmem:[#allocation2 + $0x183] sm:$0xff]
    %v6279 = vld [vmem:[#allocation2 + $0x18b] sm:$0xff]
    %v6280 = vld [vmem:[#allocation2 + $0x193] sm:$0xff]
    %v6281 = vld [vmem:[#allocation2 + $0x19b] sm:$0xff]
    %v6282 = vld [vmem:[#allocation2 + $0x1a3] sm:$0xff]
    %v6283 = vld [vmem:[#allocation2 + $0x1ab] sm:$0xff]
    %v6284 = vld [vmem:[#allocation2 + $0x1b3] sm:$0xff]
    %v6285 = vld [vmem:[#allocation2 + $0x1bb] sm:$0xff]
    %v6286 = vld [vmem:[#allocation2 + $0x1c3] sm:$0xff]
    %v6287 = vld [vmem:[#allocation2 + $0x1cb] sm:$0xff]
    %v6288 = vld [vmem:[#allocation2 + $0x1d3] sm:$0xff]
    %v6289 = vld [vmem:[#allocation2 + $0x1db] sm:$0xff]
    %v6290 = vld [vmem:[#allocation2 + $0x1e3] sm:$0xff]
    %v6291 = vld [vmem:[#allocation2 + $0x1eb] sm:$0xff]
    %v6292 = vld [vmem:[#allocation2 + $0x1f3] sm:$0xff]
    %v6293 = vld [vmem:[#allocation2 + $0x1fb] sm:$0xff]
    %v6294 = vld [vmem:[#allocation2 + $0x203] sm:$0xff]
    %v6295 = vld [vmem:[#allocation2 + $0x20b] sm:$0xff]
    %v6296 = vld [vmem:[#allocation2 + $0x213] sm:$0xff]
    %v6297 = vld [vmem:[#allocation2 + $0x21b] sm:$0xff]
    %v6298 = vld [vmem:[#allocation2 + $0x223] sm:$0xff]
    %v6299 = vld [vmem:[#allocation2 + $0x22b] sm:$0xff]
    %v6300 = vld [vmem:[#allocation2 + $0x233] sm:$0xff]
    %v6301 = vld [vmem:[#allocation2 + $0x23b] sm:$0xff]
    %v6302 = vld [vmem:[#allocation2 + $0x243] sm:$0xff]
    %v6303 = vld [vmem:[#allocation2 + $0x24b] sm:$0xff]
    %v6304 = vld [vmem:[#allocation2 + $0x253] sm:$0xff]
    %v6305 = vld [vmem:[#allocation2 + $0x25b] sm:$0x7f]
    %v6306 = vmax.f32 %v6158, %v6232
    %v6307 = vmax.f32 %v6159, %v6233
    %v6308 = vmax.f32 %v6160, %v6234
    %v6309 = vmax.f32 %v6161, %v6235
    %v6310 = vmax.f32 %v6162, %v6236
    %v6311 = vmax.f32 %v6163, %v6237
    %v6312 = vmax.f32 %v6164, %v6238
    %v6313 = vmax.f32 %v6165, %v6239
    %v6314 = vmax.f32 %v6166, %v6240
    %v6315 = vmax.f32 %v6167, %v6241
    %v6316 = vmax.f32 %v6168, %v6242
    %v6317 = vmax.f32 %v6169, %v6243
    %v6318 = vmax.f32 %v6170, %v6244
    %v6319 = vmax.f32 %v6171, %v6245
    %v6320 = vmax.f32 %v6172, %v6246
    %v6321 = vmax.f32 %v6173, %v6247
    %v6322 = vmax.f32 %v6174, %v6248
    %v6323 = vmax.f32 %v6175, %v6249
    %v6324 = vmax.f32 %v6176, %v6250
    %v6325 = vmax.f32 %v6177, %v6251
    %v6326 = vmax.f32 %v6178, %v6252
    %v6327 = vmax.f32 %v6179, %v6253
    %v6328 = vmax.f32 %v6180, %v6254
    %v6329 = vmax.f32 %v6181, %v6255
    %v6330 = vmax.f32 %v6182, %v6256
    %v6331 = vmax.f32 %v6183, %v6257
    %v6332 = vmax.f32 %v6184, %v6258
    %v6333 = vmax.f32 %v6185, %v6259
    %v6334 = vmax.f32 %v6186, %v6260
    %v6335 = vmax.f32 %v6187, %v6261
    %v6336 = vmax.f32 %v6188, %v6262
    %v6337 = vmax.f32 %v6189, %v6263
    %v6338 = vmax.f32 %v6190, %v6264
    %v6339 = vmax.f32 %v6191, %v6265
    %v6340 = vmax.f32 %v6192, %v6266
    %v6341 = vmax.f32 %v6193, %v6267
    %v6342 = vmax.f32 %v6194, %v6268
    %v6343 = vmax.f32 %v6195, %v6269
    %v6344 = vmax.f32 %v6196, %v6270
    %v6345 = vmax.f32 %v6197, %v6271
    %v6346 = vmax.f32 %v6198, %v6272
    %v6347 = vmax.f32 %v6199, %v6273
    %v6348 = vmax.f32 %v6200, %v6274
    %v6349 = vmax.f32 %v6201, %v6275
    %v6350 = vmax.f32 %v6202, %v6276
    %v6351 = vmax.f32 %v6203, %v6277
    %v6352 = vmax.f32 %v6204, %v6278
    %v6353 = vmax.f32 %v6205, %v6279
    %v6354 = vmax.f32 %v6206, %v6280
    %v6355 = vmax.f32 %v6207, %v6281
    %v6356 = vmax.f32 %v6208, %v6282
    %v6357 = vmax.f32 %v6209, %v6283
    %v6358 = vmax.f32 %v6210, %v6284
    %v6359 = vmax.f32 %v6211, %v6285
    %v6360 = vmax.f32 %v6212, %v6286
    %v6361 = vmax.f32 %v6213, %v6287
    %v6362 = vmax.f32 %v6214, %v6288
    %v6363 = vmax.f32 %v6215, %v6289
    %v6364 = vmax.f32 %v6216, %v6290
    %v6365 = vmax.f32 %v6217, %v6291
    %v6366 = vmax.f32 %v6218, %v6292
    %v6367 = vmax.f32 %v6219, %v6293
    %v6368 = vmax.f32 %v6220, %v6294
    %v6369 = vmax.f32 %v6221, %v6295
    %v6370 = vmax.f32 %v6222, %v6296
    %v6371 = vmax.f32 %v6223, %v6297
    %v6372 = vmax.f32 %v6224, %v6298
    %v6373 = vmax.f32 %v6225, %v6299
    %v6374 = vmax.f32 %v6226, %v6300
    %v6375 = vmax.f32 %v6227, %v6301
    %v6376 = vmax.f32 %v6228, %v6302
    %v6377 = vmax.f32 %v6229, %v6303
    %v6378 = vmax.f32 %v6230, %v6304
    %v6379 = vmax.f32 %v6231, %v6305
    %v6380 = vmax.f32 %v6084, %v6306
    %v6381 = vmax.f32 %v6085, %v6307
    %v6382 = vmax.f32 %v6086, %v6308
    %v6383 = vmax.f32 %v6087, %v6309
    %v6384 = vmax.f32 %v6088, %v6310
    %v6385 = vmax.f32 %v6089, %v6311
    %v6386 = vmax.f32 %v6090, %v6312
    %v6387 = vmax.f32 %v6091, %v6313
    %v6388 = vmax.f32 %v6092, %v6314
    %v6389 = vmax.f32 %v6093, %v6315
    %v6390 = vmax.f32 %v6094, %v6316
    %v6391 = vmax.f32 %v6095, %v6317
    %v6392 = vmax.f32 %v6096, %v6318
    %v6393 = vmax.f32 %v6097, %v6319
    %v6394 = vmax.f32 %v6098, %v6320
    %v6395 = vmax.f32 %v6099, %v6321
    %v6396 = vmax.f32 %v6100, %v6322
    %v6397 = vmax.f32 %v6101, %v6323
    %v6398 = vmax.f32 %v6102, %v6324
    %v6399 = vmax.f32 %v6103, %v6325
    %v6400 = vmax.f32 %v6104, %v6326
    %v6401 = vmax.f32 %v6105, %v6327
    %v6402 = vmax.f32 %v6106, %v6328
    %v6403 = vmax.f32 %v6107, %v6329
    %v6404 = vmax.f32 %v6108, %v6330
    %v6405 = vmax.f32 %v6109, %v6331
    %v6406 = vmax.f32 %v6110, %v6332
    %v6407 = vmax.f32 %v6111, %v6333
    %v6408 = vmax.f32 %v6112, %v6334
    %v6409 = vmax.f32 %v6113, %v6335
    %v6410 = vmax.f32 %v6114, %v6336
    %v6411 = vmax.f32 %v6115, %v6337
    %v6412 = vmax.f32 %v6116, %v6338
    %v6413 = vmax.f32 %v6117, %v6339
    %v6414 = vmax.f32 %v6118, %v6340
    %v6415 = vmax.f32 %v6119, %v6341
    %v6416 = vmax.f32 %v6120, %v6342
    %v6417 = vmax.f32 %v6121, %v6343
    %v6418 = vmax.f32 %v6122, %v6344
    %v6419 = vmax.f32 %v6123, %v6345
    %v6420 = vmax.f32 %v6124, %v6346
    %v6421 = vmax.f32 %v6125, %v6347
    %v6422 = vmax.f32 %v6126, %v6348
    %v6423 = vmax.f32 %v6127, %v6349
    %v6424 = vmax.f32 %v6128, %v6350
    %v6425 = vmax.f32 %v6129, %v6351
    %v6426 = vmax.f32 %v6130, %v6352
    %v6427 = vmax.f32 %v6131, %v6353
    %v6428 = vmax.f32 %v6132, %v6354
    %v6429 = vmax.f32 %v6133, %v6355
    %v6430 = vmax.f32 %v6134, %v6356
    %v6431 = vmax.f32 %v6135, %v6357
    %v6432 = vmax.f32 %v6136, %v6358
    %v6433 = vmax.f32 %v6137, %v6359
    %v6434 = vmax.f32 %v6138, %v6360
    %v6435 = vmax.f32 %v6139, %v6361
    %v6436 = vmax.f32 %v6140, %v6362
    %v6437 = vmax.f32 %v6141, %v6363
    %v6438 = vmax.f32 %v6142, %v6364
    %v6439 = vmax.f32 %v6143, %v6365
    %v6440 = vmax.f32 %v6144, %v6366
    %v6441 = vmax.f32 %v6145, %v6367
    %v6442 = vmax.f32 %v6146, %v6368
    %v6443 = vmax.f32 %v6147, %v6369
    %v6444 = vmax.f32 %v6148, %v6370
    %v6445 = vmax.f32 %v6149, %v6371
    %v6446 = vmax.f32 %v6150, %v6372
    %v6447 = vmax.f32 %v6151, %v6373
    %v6448 = vmax.f32 %v6152, %v6374
    %v6449 = vmax.f32 %v6153, %v6375
    %v6450 = vmax.f32 %v6154, %v6376
    %v6451 = vmax.f32 %v6155, %v6377
    %v6452 = vmax.f32 %v6156, %v6378
    %v6453 = vmax.f32 %v6157, %v6379
    %v6454 = vld [vmem:[%s3] sm:$0xff]
    %v6455 = vld [vmem:[%s3 + $0x8] sm:$0xff]
    %v6456 = vld [vmem:[%s3 + $0x10] sm:$0xff]
    %v6457 = vld [vmem:[%s3 + $0x18] sm:$0xff]
    %v6458 = vld [vmem:[%s3 + $0x20] sm:$0xff]
    %v6459 = vld [vmem:[%s3 + $0x28] sm:$0xff]
    %v6460 = vld [vmem:[%s3 + $0x30] sm:$0xff]
    %v6461 = vld [vmem:[%s3 + $0x38] sm:$0xff]
    %v6462 = vld [vmem:[%s3 + $0x40] sm:$0xff]
    %v6463 = vld [vmem:[%s3 + $0x48] sm:$0xff]
    %v6464 = vld [vmem:[%s3 + $0x50] sm:$0xff]
    %v6465 = vld [vmem:[%s3 + $0x58] sm:$0xff]
    %v6466 = vld [vmem:[%s3 + $0x60] sm:$0xff]
    %v6467 = vld [vmem:[%s3 + $0x68] sm:$0xff]
    %v6468 = vld [vmem:[%s3 + $0x70] sm:$0xff]
    %v6469 = vld [vmem:[%s3 + $0x78] sm:$0xff]
    %v6470 = vld [vmem:[%s3 + $0x80] sm:$0xff]
    %v6471 = vld [vmem:[%s3 + $0x88] sm:$0xff]
    %v6472 = vld [vmem:[%s3 + $0x90] sm:$0xff]
    %v6473 = vld [vmem:[%s3 + $0x98] sm:$0xff]
    %v6474 = vld [vmem:[%s3 + $0xa0] sm:$0xff]
    %v6475 = vld [vmem:[%s3 + $0xa8] sm:$0xff]
    %v6476 = vld [vmem:[%s3 + $0xb0] sm:$0xff]
    %v6477 = vld [vmem:[%s3 + $0xb8] sm:$0xff]
    %v6478 = vld [vmem:[%s3 + $0xc0] sm:$0xff]
    %v6479 = vld [vmem:[%s3 + $0xc8] sm:$0xff]
    %v6480 = vld [vmem:[%s3 + $0xd0] sm:$0xff]
    %v6481 = vld [vmem:[%s3 + $0xd8] sm:$0xff]
    %v6482 = vld [vmem:[%s3 + $0xe0] sm:$0xff]
    %v6483 = vld [vmem:[%s3 + $0xe8] sm:$0xff]
    %v6484 = vld [vmem:[%s3 + $0xf0] sm:$0xff]
    %v6485 = vld [vmem:[%s3 + $0xf8] sm:$0xff]
    %v6486 = vld [vmem:[%s3 + $0x100] sm:$0xff]
    %v6487 = vld [vmem:[%s3 + $0x108] sm:$0xff]
    %v6488 = vld [vmem:[%s3 + $0x110] sm:$0xff]
    %v6489 = vld [vmem:[%s3 + $0x118] sm:$0xff]
    %v6490 = vld [vmem:[%s3 + $0x120] sm:$0xff]
    %v6491 = vld [vmem:[%s3 + $0x128] sm:$0xff]
    %v6492 = vld [vmem:[%s3 + $0x130] sm:$0xff]
    %v6493 = vld [vmem:[%s3 + $0x138] sm:$0xff]
    %v6494 = vld [vmem:[%s3 + $0x140] sm:$0xff]
    %v6495 = vld [vmem:[%s3 + $0x148] sm:$0xff]
    %v6496 = vld [vmem:[%s3 + $0x150] sm:$0xff]
    %v6497 = vld [vmem:[%s3 + $0x158] sm:$0xff]
    %v6498 = vld [vmem:[%s3 + $0x160] sm:$0xff]
    %v6499 = vld [vmem:[%s3 + $0x168] sm:$0xff]
    %v6500 = vld [vmem:[%s3 + $0x170] sm:$0xff]
    %v6501 = vld [vmem:[%s3 + $0x178] sm:$0xff]
    %v6502 = vld [vmem:[%s3 + $0x180] sm:$0xff]
    %v6503 = vld [vmem:[%s3 + $0x188] sm:$0xff]
    %v6504 = vld [vmem:[%s3 + $0x190] sm:$0xff]
    %v6505 = vld [vmem:[%s3 + $0x198] sm:$0xff]
    %v6506 = vld [vmem:[%s3 + $0x1a0] sm:$0xff]
    %v6507 = vld [vmem:[%s3 + $0x1a8] sm:$0xff]
    %v6508 = vld [vmem:[%s3 + $0x1b0] sm:$0xff]
    %v6509 = vld [vmem:[%s3 + $0x1b8] sm:$0xff]
    %v6510 = vld [vmem:[%s3 + $0x1c0] sm:$0xff]
    %v6511 = vld [vmem:[%s3 + $0x1c8] sm:$0xff]
    %v6512 = vld [vmem:[%s3 + $0x1d0] sm:$0xff]
    %v6513 = vld [vmem:[%s3 + $0x1d8] sm:$0xff]
    %v6514 = vld [vmem:[%s3 + $0x1e0] sm:$0xff]
    %v6515 = vld [vmem:[%s3 + $0x1e8] sm:$0xff]
    %v6516 = vld [vmem:[%s3 + $0x1f0] sm:$0xff]
    %v6517 = vld [vmem:[%s3 + $0x1f8] sm:$0xff]
    %v6518 = vld [vmem:[%s3 + $0x200] sm:$0xff]
    %v6519 = vld [vmem:[%s3 + $0x208] sm:$0xff]
    %v6520 = vld [vmem:[%s3 + $0x210] sm:$0xff]
    %v6521 = vld [vmem:[%s3 + $0x218] sm:$0xff]
    %v6522 = vld [vmem:[%s3 + $0x220] sm:$0xff]
    %v6523 = vld [vmem:[%s3 + $0x228] sm:$0xff]
    %v6524 = vld [vmem:[%s3 + $0x230] sm:$0xff]
    %v6525 = vld [vmem:[%s3 + $0x238] sm:$0xff]
    %v6526 = vld [vmem:[%s3 + $0x240] sm:$0xff]
    %v6527 = vld [vmem:[%s3 + $0x248] sm:$0xff]
    %v6528 = vld [vmem:[%s3 + $0x250] sm:$0xff]
    %v6529 = vld [vmem:[%s3 + $0x258] sm:$0xff]
    %v6530 = vld [vmem:[%s3 + $0x260] sm:$0xff]
    %v6531 = vld [vmem:[%s3 + $0x268] sm:$0xff]
    %v6532 = vld [vmem:[%s3 + $0x270] sm:$0xff]
    %v6533 = vld [vmem:[%s3 + $0x278] sm:$0xff]
    %v6534 = vld [vmem:[%s3 + $0x280] sm:$0xff]
    %v6535 = vld [vmem:[%s3 + $0x288] sm:$0xff]
    %v6536 = vld [vmem:[%s3 + $0x290] sm:$0xff]
    %v6537 = vld [vmem:[%s3 + $0x298] sm:$0xff]
    %v6538 = vld [vmem:[%s3 + $0x2a0] sm:$0xff]
    %v6539 = vld [vmem:[%s3 + $0x2a8] sm:$0xff]
    %v6540 = vld [vmem:[%s3 + $0x2b0] sm:$0xff]
    %v6541 = vld [vmem:[%s3 + $0x2b8] sm:$0xff]
    %v6542 = vld [vmem:[%s3 + $0x2c0] sm:$0xff]
    %v6543 = vld [vmem:[%s3 + $0x2c8] sm:$0xff]
    %v6544 = vld [vmem:[%s3 + $0x2d0] sm:$0xff]
    %v6545 = vld [vmem:[%s3 + $0x2d8] sm:$0xff]
    %v6546 = vld [vmem:[%s3 + $0x2e0] sm:$0xff]
    %v6547 = vld [vmem:[%s3 + $0x2e8] sm:$0xff]
    %v6548 = vld [vmem:[%s3 + $0x2f0] sm:$0xff]
    %v6549 = vld [vmem:[%s3 + $0x2f8] sm:$0xff]
    %v6550 = vld [vmem:[%s3 + $0x300] sm:$0xff]
    %v6551 = vld [vmem:[%s3 + $0x308] sm:$0xff]
    %v6552 = vld [vmem:[%s3 + $0x310] sm:$0xff]
    %v6553 = vld [vmem:[%s3 + $0x318] sm:$0xff]
    %v6554 = vld [vmem:[%s3 + $0x320] sm:$0xff]
    %v6555 = vld [vmem:[%s3 + $0x328] sm:$0xff]
    %v6556 = vld [vmem:[%s3 + $0x330] sm:$0xff]
    %v6557 = vld [vmem:[%s3 + $0x338] sm:$0xff]
    %v6558 = vld [vmem:[%s3 + $0x340] sm:$0xff]
    %v6559 = vld [vmem:[%s3 + $0x348] sm:$0xff]
    %v6560 = vld [vmem:[%s3 + $0x350] sm:$0xff]
    %v6561 = vld [vmem:[%s3 + $0x358] sm:$0xff]
    %v6562 = vld [vmem:[%s3 + $0x360] sm:$0xff]
    %v6563 = vld [vmem:[%s3 + $0x368] sm:$0xff]
    %v6564 = vld [vmem:[%s3 + $0x370] sm:$0xff]
    %v6565 = vld [vmem:[%s3 + $0x378] sm:$0xff]
    %v6566 = vld [vmem:[%s3 + $0x380] sm:$0xff]
    %v6567 = vld [vmem:[%s3 + $0x388] sm:$0xff]
    %v6568 = vld [vmem:[%s3 + $0x390] sm:$0xff]
    %v6569 = vld [vmem:[%s3 + $0x398] sm:$0xff]
    %v6570 = vld [vmem:[%s3 + $0x3a0] sm:$0xff]
    %v6571 = vld [vmem:[%s3 + $0x3a8] sm:$0xff]
    %v6572 = vld [vmem:[%s3 + $0x3b0] sm:$0xff]
    %v6573 = vld [vmem:[%s3 + $0x3b8] sm:$0xff]
    %v6574 = vld [vmem:[%s3 + $0x3c0] sm:$0xff]
    %v6575 = vld [vmem:[%s3 + $0x3c8] sm:$0xff]
    %v6576 = vld [vmem:[%s3 + $0x3d0] sm:$0xff]
    %v6577 = vld [vmem:[%s3 + $0x3d8] sm:$0xff]
    %v6578 = vld [vmem:[%s3 + $0x3e0] sm:$0xff]
    %vm6579 = vcmask 646144
    %v6581 = vsel %vm6579, %v6458, 0
    %v6584 = vsel %vm6579, %v6463, 0
    %v6587 = vsel %vm6579, %v6468, 0
    %v6590 = vsel %vm6579, %v6473, 0
    %v6593 = vsel %vm6579, %v6478, 0
    %v6596 = vsel %vm6579, %v6483, 0
    %v6599 = vsel %vm6579, %v6488, 0
    %v6602 = vsel %vm6579, %v6493, 0
    %v6605 = vsel %vm6579, %v6498, 0
    %v6608 = vsel %vm6579, %v6503, 0
    %v6611 = vsel %vm6579, %v6508, 0
    %v6614 = vsel %vm6579, %v6513, 0
    %v6617 = vsel %vm6579, %v6518, 0
    %v6620 = vsel %vm6579, %v6523, 0
    %v6623 = vsel %vm6579, %v6528, 0
    %v6626 = vsel %vm6579, %v6533, 0
    %v6629 = vsel %vm6579, %v6538, 0
    %v6632 = vsel %vm6579, %v6543, 0
    %v6635 = vsel %vm6579, %v6548, 0
    %v6638 = vsel %vm6579, %v6553, 0
    %v6641 = vsel %vm6579, %v6558, 0
    %v6644 = vsel %vm6579, %v6563, 0
    %v6647 = vsel %vm6579, %v6568, 0
    %v6650 = vsel %vm6579, %v6573, 0
    %v6653 = vsel %vm6579, %v6578, 0
    %vm6655 = vcmask 1046528
    %v6657 = vsel %vm6655, %v6453, 0
    %6659 = vmatpush.msra.mxu0 %v6395
    %6660 = vmatpush.msra.mxu0 %v6394
    %6661 = vmatpush.msra.mxu0 %v6393
    %6662 = vmatpush.msra.mxu0 %v6392
    %6663 = vmatpush.msra.mxu0 %v6391
    %6664 = vmatpush.msra.mxu0 %v6390
    %6665 = vmatpush.msra.mxu0 %v6389
    %6666 = vmatpush.msra.mxu0 %v6388
    %6667 = vmatpush.msra.mxu0 %v6387
    %6668 = vmatpush.msra.mxu0 %v6386
    %6669 = vmatpush.msra.mxu0 %v6385
    %6670 = vmatpush.msra.mxu0 %v6384
    %6671 = vmatpush.msra.mxu0 %v6383
    %6672 = vmatpush.msra.mxu0 %v6382
    %6673 = vmatpush.msra.mxu0 %v6381
    %6674 = vmatpush.msra.mxu0 %v6380
    %6675 = vmatmul.f32.gmra.mxu0 %v6454
    %v6676 = vpop.f32.mrf.mxu0
    %v6677 = vadd.f32 0.0, %v6676
    %6678 = vmatmul.f32.gmra.mxu0 %v6459
    %v6679 = vpop.f32.mrf.mxu0
    %v6680 = vadd.f32 0.0, %v6679
    %6681 = vmatmul.f32.gmra.mxu0 %v6464
    %v6682 = vpop.f32.mrf.mxu0
    %v6683 = vadd.f32 0.0, %v6682
    %6684 = vmatmul.f32.gmra.mxu0 %v6469
    %v6685 = vpop.f32.mrf.mxu0
    %v6686 = vadd.f32 0.0, %v6685
    %6687 = vmatmul.f32.gmra.mxu0 %v6474
    %v6688 = vpop.f32.mrf.mxu0
    %v6689 = vadd.f32 0.0, %v6688
    %6690 = vmatmul.f32.gmra.mxu0 %v6479
    %v6691 = vpop.f32.mrf.mxu0
    %v6692 = vadd.f32 0.0, %v6691
    %6693 = vmatmul.f32.gmra.mxu0 %v6484
    %v6694 = vpop.f32.mrf.mxu0
    %v6695 = vadd.f32 0.0, %v6694
    %6696 = vmatmul.f32.gmra.mxu0 %v6489
    %v6697 = vpop.f32.mrf.mxu0
    %v6698 = vadd.f32 0.0, %v6697
    %6699 = vmatmul.f32.gmra.mxu0 %v6494
    %v6700 = vpop.f32.mrf.mxu0
    %v6701 = vadd.f32 0.0, %v6700
    %6702 = vmatmul.f32.gmra.mxu0 %v6499
    %v6703 = vpop.f32.mrf.mxu0
    %v6704 = vadd.f32 0.0, %v6703
    %6705 = vmatmul.f32.gmra.mxu0 %v6504
    %v6706 = vpop.f32.mrf.mxu0
    %v6707 = vadd.f32 0.0, %v6706
    %6708 = vmatmul.f32.gmra.mxu0 %v6509
    %v6709 = vpop.f32.mrf.mxu0
    %v6710 = vadd.f32 0.0, %v6709
    %6711 = vmatmul.f32.gmra.mxu0 %v6514
    %v6712 = vpop.f32.mrf.mxu0
    %v6713 = vadd.f32 0.0, %v6712
    %6714 = vmatmul.f32.gmra.mxu0 %v6519
    %v6715 = vpop.f32.mrf.mxu0
    %v6716 = vadd.f32 0.0, %v6715
    %6717 = vmatmul.f32.gmra.mxu0 %v6524
    %v6718 = vpop.f32.mrf.mxu0
    %v6719 = vadd.f32 0.0, %v6718
    %6720 = vmatmul.f32.gmra.mxu0 %v6529
    %v6721 = vpop.f32.mrf.mxu0
    %v6722 = vadd.f32 0.0, %v6721
    %6723 = vmatmul.f32.gmra.mxu0 %v6534
    %v6724 = vpop.f32.mrf.mxu0
    %v6725 = vadd.f32 0.0, %v6724
    %6726 = vmatmul.f32.gmra.mxu0 %v6539
    %v6727 = vpop.f32.mrf.mxu0
    %v6728 = vadd.f32 0.0, %v6727
    %6729 = vmatmul.f32.gmra.mxu0 %v6544
    %v6730 = vpop.f32.mrf.mxu0
    %v6731 = vadd.f32 0.0, %v6730
    %6732 = vmatmul.f32.gmra.mxu0 %v6549
    %v6733 = vpop.f32.mrf.mxu0
    %v6734 = vadd.f32 0.0, %v6733
    %6735 = vmatmul.f32.gmra.mxu0 %v6554
    %v6736 = vpop.f32.mrf.mxu0
    %v6737 = vadd.f32 0.0, %v6736
    %6738 = vmatmul.f32.gmra.mxu0 %v6559
    %v6739 = vpop.f32.mrf.mxu0
    %v6740 = vadd.f32 0.0, %v6739
    %6741 = vmatmul.f32.gmra.mxu0 %v6564
    %v6742 = vpop.f32.mrf.mxu0
    %v6743 = vadd.f32 0.0, %v6742
    %6744 = vmatmul.f32.gmra.mxu0 %v6569
    %v6745 = vpop.f32.mrf.mxu0
    %v6746 = vadd.f32 0.0, %v6745
    %6747 = vmatmul.f32.gmra.mxu0 %v6574
    %v6748 = vpop.f32.mrf.mxu0
    %v6749 = vadd.f32 0.0, %v6748
    %6750 = vdwg.mxu0
    %6751 = vmatpush.msra.mxu0 %v6411
    %6752 = vmatpush.msra.mxu0 %v6410
    %6753 = vmatpush.msra.mxu0 %v6409
    %6754 = vmatpush.msra.mxu0 %v6408
    %6755 = vmatpush.msra.mxu0 %v6407
    %6756 = vmatpush.msra.mxu0 %v6406
    %6757 = vmatpush.msra.mxu0 %v6405
    %6758 = vmatpush.msra.mxu0 %v6404
    %6759 = vmatpush.msra.mxu0 %v6403
    %6760 = vmatpush.msra.mxu0 %v6402
    %6761 = vmatpush.msra.mxu0 %v6401
    %6762 = vmatpush.msra.mxu0 %v6400
    %6763 = vmatpush.msra.mxu0 %v6399
    %6764 = vmatpush.msra.mxu0 %v6398
    %6765 = vmatpush.msra.mxu0 %v6397
    %6766 = vmatpush.msra.mxu0 %v6396
    %6767 = vmatmul.f32.gmra.mxu0 %v6455
    %v6768 = vpop.f32.mrf.mxu0
    %v6769 = vadd.f32 %v6677, %v6768
    %6770 = vmatmul.f32.gmra.mxu0 %v6460
    %v6771 = vpop.f32.mrf.mxu0
    %v6772 = vadd.f32 %v6680, %v6771
    %6773 = vmatmul.f32.gmra.mxu0 %v6465
    %v6774 = vpop.f32.mrf.mxu0
    %v6775 = vadd.f32 %v6683, %v6774
    %6776 = vmatmul.f32.gmra.mxu0 %v6470
    %v6777 = vpop.f32.mrf.mxu0
    %v6778 = vadd.f32 %v6686, %v6777
    %6779 = vmatmul.f32.gmra.mxu0 %v6475
    %v6780 = vpop.f32.mrf.mxu0
    %v6781 = vadd.f32 %v6689, %v6780
    %6782 = vmatmul.f32.gmra.mxu0 %v6480
    %v6783 = vpop.f32.mrf.mxu0
    %v6784 = vadd.f32 %v6692, %v6783
    %6785 = vmatmul.f32.gmra.mxu0 %v6485
    %v6786 = vpop.f32.mrf.mxu0
    %v6787 = vadd.f32 %v6695, %v6786
    %6788 = vmatmul.f32.gmra.mxu0 %v6490
    %v6789 = vpop.f32.mrf.mxu0
    %v6790 = vadd.f32 %v6698, %v6789
    %6791 = vmatmul.f32.gmra.mxu0 %v6495
    %v6792 = vpop.f32.mrf.mxu0
    %v6793 = vadd.f32 %v6701, %v6792
    %6794 = vmatmul.f32.gmra.mxu0 %v6500
    %v6795 = vpop.f32.mrf.mxu0
    %v6796 = vadd.f32 %v6704, %v6795
    %6797 = vmatmul.f32.gmra.mxu0 %v6505
    %v6798 = vpop.f32.mrf.mxu0
    %v6799 = vadd.f32 %v6707, %v6798
    %6800 = vmatmul.f32.gmra.mxu0 %v6510
    %v6801 = vpop.f32.mrf.mxu0
    %v6802 = vadd.f32 %v6710, %v6801
    %6803 = vmatmul.f32.gmra.mxu0 %v6515
    %v6804 = vpop.f32.mrf.mxu0
    %v6805 = vadd.f32 %v6713, %v6804
    %6806 = vmatmul.f32.gmra.mxu0 %v6520
    %v6807 = vpop.f32.mrf.mxu0
    %v6808 = vadd.f32 %v6716, %v6807
    %6809 = vmatmul.f32.gmra.mxu0 %v6525
    %v6810 = vpop.f32.mrf.mxu0
    %v6811 = vadd.f32 %v6719, %v6810
    %6812 = vmatmul.f32.gmra.mxu0 %v6530
    %v6813 = vpop.f32.mrf.mxu0
    %v6814 = vadd.f32 %v6722, %v6813
    %6815 = vmatmul.f32.gmra.mxu0 %v6535
    %v6816 = vpop.f32.mrf.mxu0
    %v6817 = vadd.f32 %v6725, %v6816
    %6818 = vmatmul.f32.gmra.mxu0 %v6540
    %v6819 = vpop.f32.mrf.mxu0
    %v6820 = vadd.f32 %v6728, %v6819
    %6821 = vmatmul.f32.gmra.mxu0 %v6545
    %v6822 = vpop.f32.mrf.mxu0
    %v6823 = vadd.f32 %v6731, %v6822
    %6824 = vmatmul.f32.gmra.mxu0 %v6550
    %v6825 = vpop.f32.mrf.mxu0
    %v6826 = vadd.f32 %v6734, %v6825
    %6827 = vmatmul.f32.gmra.mxu0 %v6555
    %v6828 = vpop.f32.mrf.mxu0
    %v6829 = vadd.f32 %v6737, %v6828
    %6830 = vmatmul.f32.gmra.mxu0 %v6560
    %v6831 = vpop.f32.mrf.mxu0
    %v6832 = vadd.f32 %v6740, %v6831
    %6833 = vmatmul.f32.gmra.mxu0 %v6565
    %v6834 = vpop.f32.mrf.mxu0
    %v6835 = vadd.f32 %v6743, %v6834
    %6836 = vmatmul.f32.gmra.mxu0 %v6570
    %v6837 = vpop.f32.mrf.mxu0
    %v6838 = vadd.f32 %v6746, %v6837
    %6839 = vmatmul.f32.gmra.mxu0 %v6575
    %v6840 = vpop.f32.mrf.mxu0
    %v6841 = vadd.f32 %v6749, %v6840
    %6842 = vdwg.mxu0
    %6843 = vmatpush.msra.mxu0 %v6427
    %6844 = vmatpush.msra.mxu0 %v6426
    %6845 = vmatpush.msra.mxu0 %v6425
    %6846 = vmatpush.msra.mxu0 %v6424
    %6847 = vmatpush.msra.mxu0 %v6423
    %6848 = vmatpush.msra.mxu0 %v6422
    %6849 = vmatpush.msra.mxu0 %v6421
    %6850 = vmatpush.msra.mxu0 %v6420
    %6851 = vmatpush.msra.mxu0 %v6419
    %6852 = vmatpush.msra.mxu0 %v6418
    %6853 = vmatpush.msra.mxu0 %v6417
    %6854 = vmatpush.msra.mxu0 %v6416
    %6855 = vmatpush.msra.mxu0 %v6415
    %6856 = vmatpush.msra.mxu0 %v6414
    %6857 = vmatpush.msra.mxu0 %v6413
    %6858 = vmatpush.msra.mxu0 %v6412
    %6859 = vmatmul.f32.gmra.mxu0 %v6456
    %v6860 = vpop.f32.mrf.mxu0
    %v6861 = vadd.f32 %v6769, %v6860
    %6862 = vmatmul.f32.gmra.mxu0 %v6461
    %v6863 = vpop.f32.mrf.mxu0
    %v6864 = vadd.f32 %v6772, %v6863
    %6865 = vmatmul.f32.gmra.mxu0 %v6466
    %v6866 = vpop.f32.mrf.mxu0
    %v6867 = vadd.f32 %v6775, %v6866
    %6868 = vmatmul.f32.gmra.mxu0 %v6471
    %v6869 = vpop.f32.mrf.mxu0
    %v6870 = vadd.f32 %v6778, %v6869
    %6871 = vmatmul.f32.gmra.mxu0 %v6476
    %v6872 = vpop.f32.mrf.mxu0
    %v6873 = vadd.f32 %v6781, %v6872
    %6874 = vmatmul.f32.gmra.mxu0 %v6481
    %v6875 = vpop.f32.mrf.mxu0
    %v6876 = vadd.f32 %v6784, %v6875
    %6877 = vmatmul.f32.gmra.mxu0 %v6486
    %v6878 = vpop.f32.mrf.mxu0
    %v6879 = vadd.f32 %v6787, %v6878
    %6880 = vmatmul.f32.gmra.mxu0 %v6491
    %v6881 = vpop.f32.mrf.mxu0
    %v6882 = vadd.f32 %v6790, %v6881
    %6883 = vmatmul.f32.gmra.mxu0 %v6496
    %v6884 = vpop.f32.mrf.mxu0
    %v6885 = vadd.f32 %v6793, %v6884
    %6886 = vmatmul.f32.gmra.mxu0 %v6501
    %v6887 = vpop.f32.mrf.mxu0
    %v6888 = vadd.f32 %v6796, %v6887
    %6889 = vmatmul.f32.gmra.mxu0 %v6506
    %v6890 = vpop.f32.mrf.mxu0
    %v6891 = vadd.f32 %v6799, %v6890
    %6892 = vmatmul.f32.gmra.mxu0 %v6511
    %v6893 = vpop.f32.mrf.mxu0
    %v6894 = vadd.f32 %v6802, %v6893
    %6895 = vmatmul.f32.gmra.mxu0 %v6516
    %v6896 = vpop.f32.mrf.mxu0
    %v6897 = vadd.f32 %v6805, %v6896
    %6898 = vmatmul.f32.gmra.mxu0 %v6521
    %v6899 = vpop.f32.mrf.mxu0
    %v6900 = vadd.f32 %v6808, %v6899
    %6901 = vmatmul.f32.gmra.mxu0 %v6526
    %v6902 = vpop.f32.mrf.mxu0
    %v6903 = vadd.f32 %v6811, %v6902
    %6904 = vmatmul.f32.gmra.mxu0 %v6531
    %v6905 = vpop.f32.mrf.mxu0
    %v6906 = vadd.f32 %v6814, %v6905
    %6907 = vmatmul.f32.gmra.mxu0 %v6536
    %v6908 = vpop.f32.mrf.mxu0
    %v6909 = vadd.f32 %v6817, %v6908
    %6910 = vmatmul.f32.gmra.mxu0 %v6541
    %v6911 = vpop.f32.mrf.mxu0
    %v6912 = vadd.f32 %v6820, %v6911
    %6913 = vmatmul.f32.gmra.mxu0 %v6546
    %v6914 = vpop.f32.mrf.mxu0
    %v6915 = vadd.f32 %v6823, %v6914
    %6916 = vmatmul.f32.gmra.mxu0 %v6551
    %v6917 = vpop.f32.mrf.mxu0
    %v6918 = vadd.f32 %v6826, %v6917
    %6919 = vmatmul.f32.gmra.mxu0 %v6556
    %v6920 = vpop.f32.mrf.mxu0
    %v6921 = vadd.f32 %v6829, %v6920
    %6922 = vmatmul.f32.gmra.mxu0 %v6561
    %v6923 = vpop.f32.mrf.mxu0
    %v6924 = vadd.f32 %v6832, %v6923
    %6925 = vmatmul.f32.gmra.mxu0 %v6566
    %v6926 = vpop.f32.mrf.mxu0
    %v6927 = vadd.f32 %v6835, %v6926
    %6928 = vmatmul.f32.gmra.mxu0 %v6571
    %v6929 = vpop.f32.mrf.mxu0
    %v6930 = vadd.f32 %v6838, %v6929
    %6931 = vmatmul.f32.gmra.mxu0 %v6576
    %v6932 = vpop.f32.mrf.mxu0
    %v6933 = vadd.f32 %v6841, %v6932
    %6934 = vdwg.mxu0
    %6935 = vmatpush.msra.mxu0 %v6443
    %6936 = vmatpush.msra.mxu0 %v6442
    %6937 = vmatpush.msra.mxu0 %v6441
    %6938 = vmatpush.msra.mxu0 %v6440
    %6939 = vmatpush.msra.mxu0 %v6439
    %6940 = vmatpush.msra.mxu0 %v6438
    %6941 = vmatpush.msra.mxu0 %v6437
    %6942 = vmatpush.msra.mxu0 %v6436
    %6943 = vmatpush.msra.mxu0 %v6435
    %6944 = vmatpush.msra.mxu0 %v6434
    %6945 = vmatpush.msra.mxu0 %v6433
    %6946 = vmatpush.msra.mxu0 %v6432
    %6947 = vmatpush.msra.mxu0 %v6431
    %6948 = vmatpush.msra.mxu0 %v6430
    %6949 = vmatpush.msra.mxu0 %v6429
    %6950 = vmatpush.msra.mxu0 %v6428
    %6951 = vmatmul.f32.gmra.mxu0 %v6457
    %v6952 = vpop.f32.mrf.mxu0
    %v6953 = vadd.f32 %v6861, %v6952
    %6954 = vmatmul.f32.gmra.mxu0 %v6462
    %v6955 = vpop.f32.mrf.mxu0
    %v6956 = vadd.f32 %v6864, %v6955
    %6957 = vmatmul.f32.gmra.mxu0 %v6467
    %v6958 = vpop.f32.mrf.mxu0
    %v6959 = vadd.f32 %v6867, %v6958
    %6960 = vmatmul.f32.gmra.mxu0 %v6472
    %v6961 = vpop.f32.mrf.mxu0
    %v6962 = vadd.f32 %v6870, %v6961
    %6963 = vmatmul.f32.gmra.mxu0 %v6477
    %v6964 = vpop.f32.mrf.mxu0
    %v6965 = vadd.f32 %v6873, %v6964
    %6966 = vmatmul.f32.gmra.mxu0 %v6482
    %v6967 = vpop.f32.mrf.mxu0
    %v6968 = vadd.f32 %v6876, %v6967
    %6969 = vmatmul.f32.gmra.mxu0 %v6487
    %v6970 = vpop.f32.mrf.mxu0
    %v6971 = vadd.f32 %v6879, %v6970
    %6972 = vmatmul.f32.gmra.mxu0 %v6492
    %v6973 = vpop.f32.mrf.mxu0
    %v6974 = vadd.f32 %v6882, %v6973
    %6975 = vmatmul.f32.gmra.mxu0 %v6497
    %v6976 = vpop.f32.mrf.mxu0
    %v6977 = vadd.f32 %v6885, %v6976
    %6978 = vmatmul.f32.gmra.mxu0 %v6502
    %v6979 = vpop.f32.mrf.mxu0
    %v6980 = vadd.f32 %v6888, %v6979
    %6981 = vmatmul.f32.gmra.mxu0 %v6507
    %v6982 = vpop.f32.mrf.mxu0
    %v6983 = vadd.f32 %v6891, %v6982
    %6984 = vmatmul.f32.gmra.mxu0 %v6512
    %v6985 = vpop.f32.mrf.mxu0
    %v6986 = vadd.f32 %v6894, %v6985
    %6987 = vmatmul.f32.gmra.mxu0 %v6517
    %v6988 = vpop.f32.mrf.mxu0
    %v6989 = vadd.f32 %v6897, %v6988
    %6990 = vmatmul.f32.gmra.mxu0 %v6522
    %v6991 = vpop.f32.mrf.mxu0
    %v6992 = vadd.f32 %v6900, %v6991
    %6993 = vmatmul.f32.gmra.mxu0 %v6527
    %v6994 = vpop.f32.mrf.mxu0
    %v6995 = vadd.f32 %v6903, %v6994
    %6996 = vmatmul.f32.gmra.mxu0 %v6532
    %v6997 = vpop.f32.mrf.mxu0
    %v6998 = vadd.f32 %v6906, %v6997
    %6999 = vmatmul.f32.gmra.mxu0 %v6537
    %v7000 = vpop.f32.mrf.mxu0
    %v7001 = vadd.f32 %v6909, %v7000
    %7002 = vmatmul.f32.gmra.mxu0 %v6542
    %v7003 = vpop.f32.mrf.mxu0
    %v7004 = vadd.f32 %v6912, %v7003
    %7005 = vmatmul.f32.gmra.mxu0 %v6547
    %v7006 = vpop.f32.mrf.mxu0
    %v7007 = vadd.f32 %v6915, %v7006
    %7008 = vmatmul.f32.gmra.mxu0 %v6552
    %v7009 = vpop.f32.mrf.mxu0
    %v7010 = vadd.f32 %v6918, %v7009
    %7011 = vmatmul.f32.gmra.mxu0 %v6557
    %v7012 = vpop.f32.mrf.mxu0
    %v7013 = vadd.f32 %v6921, %v7012
    %7014 = vmatmul.f32.gmra.mxu0 %v6562
    %v7015 = vpop.f32.mrf.mxu0
    %v7016 = vadd.f32 %v6924, %v7015
    %7017 = vmatmul.f32.gmra.mxu0 %v6567
    %v7018 = vpop.f32.mrf.mxu0
    %v7019 = vadd.f32 %v6927, %v7018
    %7020 = vmatmul.f32.gmra.mxu0 %v6572
    %v7021 = vpop.f32.mrf.mxu0
    %v7022 = vadd.f32 %v6930, %v7021
    %7023 = vmatmul.f32.gmra.mxu0 %v6577
    %v7024 = vpop.f32.mrf.mxu0
    %v7025 = vadd.f32 %v6933, %v7024
    %7026 = vdwg.mxu0
    %7027 = vmatpush.msra.mxu0 0.0
    %7028 = vmatpush.msra.mxu0 0.0
    %7029 = vmatpush.msra.mxu0 0.0
    %7030 = vmatpush.msra.mxu0 0.0
    %7031 = vmatpush.msra.mxu0 0.0
    %7032 = vmatpush.msra.mxu0 0.0
    %7033 = vmatpush.msra.mxu0 %v6657
    %7034 = vmatpush.msra.mxu0 %v6452
    %7035 = vmatpush.msra.mxu0 %v6451
    %7036 = vmatpush.msra.mxu0 %v6450
    %7037 = vmatpush.msra.mxu0 %v6449
    %7038 = vmatpush.msra.mxu0 %v6448
    %7039 = vmatpush.msra.mxu0 %v6447
    %7040 = vmatpush.msra.mxu0 %v6446
    %7041 = vmatpush.msra.mxu0 %v6445
    %7042 = vmatpush.msra.mxu0 %v6444
    %7043 = vmatmul.f32.gmra.mxu0 %v6581
    %v7044 = vpop.f32.mrf.mxu0
    %v7045 = vadd.f32 %v6953, %v7044
    %7046 = vmatmul.f32.gmra.mxu0 %v6584
    %v7047 = vpop.f32.mrf.mxu0
    %v7048 = vadd.f32 %v6956, %v7047
    %7049 = vmatmul.f32.gmra.mxu0 %v6587
    %v7050 = vpop.f32.mrf.mxu0
    %v7051 = vadd.f32 %v6959, %v7050
    %7052 = vmatmul.f32.gmra.mxu0 %v6590
    %v7053 = vpop.f32.mrf.mxu0
    %v7054 = vadd.f32 %v6962, %v7053
    %7055 = vmatmul.f32.gmra.mxu0 %v6593
    %v7056 = vpop.f32.mrf.mxu0
    %v7057 = vadd.f32 %v6965, %v7056
    %7058 = vmatmul.f32.gmra.mxu0 %v6596
    %v7059 = vpop.f32.mrf.mxu0
    %v7060 = vadd.f32 %v6968, %v7059
    %7061 = vmatmul.f32.gmra.mxu0 %v6599
    %v7062 = vpop.f32.mrf.mxu0
    %v7063 = vadd.f32 %v6971, %v7062
    %7064 = vmatmul.f32.gmra.mxu0 %v6602
    %v7065 = vpop.f32.mrf.mxu0
    %v7066 = vadd.f32 %v6974, %v7065
    %7067 = vmatmul.f32.gmra.mxu0 %v6605
    %v7068 = vpop.f32.mrf.mxu0
    %v7069 = vadd.f32 %v6977, %v7068
    %7070 = vmatmul.f32.gmra.mxu0 %v6608
    %v7071 = vpop.f32.mrf.mxu0
    %v7072 = vadd.f32 %v6980, %v7071
    %7073 = vmatmul.f32.gmra.mxu0 %v6611
    %v7074 = vpop.f32.mrf.mxu0
    %v7075 = vadd.f32 %v6983, %v7074
    %7076 = vmatmul.f32.gmra.mxu0 %v6614
    %v7077 = vpop.f32.mrf.mxu0
    %v7078 = vadd.f32 %v6986, %v7077
    %7079 = vmatmul.f32.gmra.mxu0 %v6617
    %v7080 = vpop.f32.mrf.mxu0
    %v7081 = vadd.f32 %v6989, %v7080
    %7082 = vmatmul.f32.gmra.mxu0 %v6620
    %v7083 = vpop.f32.mrf.mxu0
    %v7084 = vadd.f32 %v6992, %v7083
    %7085 = vmatmul.f32.gmra.mxu0 %v6623
    %v7086 = vpop.f32.mrf.mxu0
    %v7087 = vadd.f32 %v6995, %v7086
    %7088 = vmatmul.f32.gmra.mxu0 %v6626
    %v7089 = vpop.f32.mrf.mxu0
    %v7090 = vadd.f32 %v6998, %v7089
    %7091 = vmatmul.f32.gmra.mxu0 %v6629
    %v7092 = vpop.f32.mrf.mxu0
    %v7093 = vadd.f32 %v7001, %v7092
    %7094 = vmatmul.f32.gmra.mxu0 %v6632
    %v7095 = vpop.f32.mrf.mxu0
    %v7096 = vadd.f32 %v7004, %v7095
    %7097 = vmatmul.f32.gmra.mxu0 %v6635
    %v7098 = vpop.f32.mrf.mxu0
    %v7099 = vadd.f32 %v7007, %v7098
    %7100 = vmatmul.f32.gmra.mxu0 %v6638
    %v7101 = vpop.f32.mrf.mxu0
    %v7102 = vadd.f32 %v7010, %v7101
    %7103 = vmatmul.f32.gmra.mxu0 %v6641
    %v7104 = vpop.f32.mrf.mxu0
    %v7105 = vadd.f32 %v7013, %v7104
    %7106 = vmatmul.f32.gmra.mxu0 %v6644
    %v7107 = vpop.f32.mrf.mxu0
    %v7108 = vadd.f32 %v7016, %v7107
    %7109 = vmatmul.f32.gmra.mxu0 %v6647
    %v7110 = vpop.f32.mrf.mxu0
    %v7111 = vadd.f32 %v7019, %v7110
    %7112 = vmatmul.f32.gmra.mxu0 %v6650
    %v7113 = vpop.f32.mrf.mxu0
    %v7114 = vadd.f32 %v7022, %v7113
    %7115 = vmatmul.f32.gmra.mxu0 %v6653
    %v7116 = vpop.f32.mrf.mxu0
    %v7117 = vadd.f32 %v7025, %v7116
    %7118 = vdwg.mxu0
    %7119 = vst.msk [vmem:[#allocation3] sm:$0xff] %vm5857, %v7045
    %7120 = vst.msk [vmem:[#allocation3 + $0x8] sm:$0xff] %vm5857, %v7048
    %7121 = vst.msk [vmem:[#allocation3 + $0x10] sm:$0xff] %vm5857, %v7051
    %7122 = vst.msk [vmem:[#allocation3 + $0x18] sm:$0xff] %vm5857, %v7054
    %7123 = vst.msk [vmem:[#allocation3 + $0x20] sm:$0xff] %vm5857, %v7057
    %7124 = vst.msk [vmem:[#allocation3 + $0x28] sm:$0xff] %vm5857, %v7060
    %7125 = vst.msk [vmem:[#allocation3 + $0x30] sm:$0xff] %vm5857, %v7063
    %7126 = vst.msk [vmem:[#allocation3 + $0x38] sm:$0xff] %vm5857, %v7066
    %7127 = vst.msk [vmem:[#allocation3 + $0x40] sm:$0xff] %vm5857, %v7069
    %7128 = vst.msk [vmem:[#allocation3 + $0x48] sm:$0xff] %vm5857, %v7072
    %7129 = vst.msk [vmem:[#allocation3 + $0x50] sm:$0xff] %vm5857, %v7075
    %7130 = vst.msk [vmem:[#allocation3 + $0x58] sm:$0xff] %vm5857, %v7078
    %7131 = vst.msk [vmem:[#allocation3 + $0x60] sm:$0xff] %vm5857, %v7081
    %7132 = vst.msk [vmem:[#allocation3 + $0x68] sm:$0xff] %vm5857, %v7084
    %7133 = vst.msk [vmem:[#allocation3 + $0x70] sm:$0xff] %vm5857, %v7087
    %7134 = vst.msk [vmem:[#allocation3 + $0x78] sm:$0xff] %vm5857, %v7090
    %7135 = vst.msk [vmem:[#allocation3 + $0x80] sm:$0xff] %vm5857, %v7093
    %7136 = vst.msk [vmem:[#allocation3 + $0x88] sm:$0xff] %vm5857, %v7096
    %7137 = vst.msk [vmem:[#allocation3 + $0x90] sm:$0xff] %vm5857, %v7099
    %7138 = vst.msk [vmem:[#allocation3 + $0x98] sm:$0xff] %vm5857, %v7102
    %7139 = vst.msk [vmem:[#allocation3 + $0xa0] sm:$0xff] %vm5857, %v7105
    %7140 = vst.msk [vmem:[#allocation3 + $0xa8] sm:$0xff] %vm5857, %v7108
    %7141 = vst.msk [vmem:[#allocation3 + $0xb0] sm:$0xff] %vm5857, %v7111
    %7142 = vst.msk [vmem:[#allocation3 + $0xb8] sm:$0xff] %vm5857, %v7114
    %7143 = vst.msk [vmem:[#allocation3 + $0xc0] sm:$0xff] %vm5857, %v7117
    %v7144 = vld [vmem:[#allocation3] sm:$0xff]
    %v7145 = vld [vmem:[#allocation3 + $0x8] sm:$0xff]
    %v7146 = vld [vmem:[#allocation3 + $0x10] sm:$0xff]
    %v7147 = vld [vmem:[#allocation3 + $0x18] sm:$0xff]
    %v7148 = vld [vmem:[#allocation3 + $0x20] sm:$0xff]
    %v7149 = vld [vmem:[#allocation3 + $0x28] sm:$0xff]
    %v7150 = vld [vmem:[#allocation3 + $0x30] sm:$0xff]
    %v7151 = vld [vmem:[#allocation3 + $0x38] sm:$0xff]
    %v7152 = vld [vmem:[#allocation3 + $0x40] sm:$0xff]
    %v7153 = vld [vmem:[#allocation3 + $0x48] sm:$0xff]
    %v7154 = vld [vmem:[#allocation3 + $0x50] sm:$0xff]
    %v7155 = vld [vmem:[#allocation3 + $0x58] sm:$0xff]
    %v7156 = vld [vmem:[#allocation3 + $0x60] sm:$0xff]
    %v7157 = vld [vmem:[#allocation3 + $0x68] sm:$0xff]
    %v7158 = vld [vmem:[#allocation3 + $0x70] sm:$0xff]
    %v7159 = vld [vmem:[#allocation3 + $0x78] sm:$0xff]
    %v7160 = vld [vmem:[#allocation3 + $0x80] sm:$0xff]
    %v7161 = vld [vmem:[#allocation3 + $0x88] sm:$0xff]
    %v7162 = vld [vmem:[#allocation3 + $0x90] sm:$0xff]
    %v7163 = vld [vmem:[#allocation3 + $0x98] sm:$0xff]
    %v7164 = vld [vmem:[#allocation3 + $0xa0] sm:$0xff]
    %v7165 = vld [vmem:[#allocation3 + $0xa8] sm:$0xff]
    %v7166 = vld [vmem:[#allocation3 + $0xb0] sm:$0x3]
    %v7167 = vld [vmem:[%s4] sm:$0xff]
    %v7168 = vld [vmem:[%s4 + $0x8] sm:$0xff]
    %v7169 = vld [vmem:[%s4 + $0x10] sm:$0xff]
    %v7170 = vld [vmem:[%s4 + $0x18] sm:$0xff]
    %v7171 = vld [vmem:[#allocation3 + $0x1] sm:$0xff]
    %v7172 = vld [vmem:[#allocation3 + $0x9] sm:$0xff]
    %v7173 = vld [vmem:[#allocation3 + $0x11] sm:$0xff]
    %v7174 = vld [vmem:[#allocation3 + $0x19] sm:$0xff]
    %v7175 = vld [vmem:[#allocation3 + $0x21] sm:$0xff]
    %v7176 = vld [vmem:[#allocation3 + $0x29] sm:$0xff]
    %v7177 = vld [vmem:[#allocation3 + $0x31] sm:$0xff]
    %v7178 = vld [vmem:[#allocation3 + $0x39] sm:$0xff]
    %v7179 = vld [vmem:[#allocation3 + $0x41] sm:$0xff]
    %v7180 = vld [vmem:[#allocation3 + $0x49] sm:$0xff]
    %v7181 = vld [vmem:[#allocation3 + $0x51] sm:$0xff]
    %v7182 = vld [vmem:[#allocation3 + $0x59] sm:$0xff]
    %v7183 = vld [vmem:[#allocation3 + $0x61] sm:$0xff]
    %v7184 = vld [vmem:[#allocation3 + $0x69] sm:$0xff]
    %v7185 = vld [vmem:[#allocation3 + $0x71] sm:$0xff]
    %v7186 = vld [vmem:[#allocation3 + $0x79] sm:$0xff]
    %v7187 = vld [vmem:[#allocation3 + $0x81] sm:$0xff]
    %v7188 = vld [vmem:[#allocation3 + $0x89] sm:$0xff]
    %v7189 = vld [vmem:[#allocation3 + $0x91] sm:$0xff]
    %v7190 = vld [vmem:[#allocation3 + $0x99] sm:$0xff]
    %v7191 = vld [vmem:[#allocation3 + $0xa1] sm:$0xff]
    %v7192 = vld [vmem:[#allocation3 + $0xa9] sm:$0xff]
    %v7193 = vld [vmem:[#allocation3 + $0xb1] sm:$0x3]
    %s7194 = scalar_lea.vmem %s4, 32
    %v7195 = vld [vmem:[%s7194] sm:$0xff]
    %v7196 = vld [vmem:[%s7194 + $0x8] sm:$0xff]
    %v7197 = vld [vmem:[%s7194 + $0x10] sm:$0xff]
    %v7198 = vld [vmem:[%s7194 + $0x18] sm:$0xff]
    %v7200 = vsel %vm5857, %v7171, 0
    %v7203 = vsel %vm5857, %v7172, 0
    %v7206 = vsel %vm5857, %v7173, 0
    %v7209 = vsel %vm5857, %v7174, 0
    %v7212 = vsel %vm5857, %v7175, 0
    %v7215 = vsel %vm5857, %v7176, 0
    %v7218 = vsel %vm5857, %v7177, 0
    %v7221 = vsel %vm5857, %v7178, 0
    %v7224 = vsel %vm5857, %v7179, 0
    %v7227 = vsel %vm5857, %v7180, 0
    %v7230 = vsel %vm5857, %v7181, 0
    %v7233 = vsel %vm5857, %v7182, 0
    %v7236 = vsel %vm5857, %v7183, 0
    %v7239 = vsel %vm5857, %v7184, 0
    %v7242 = vsel %vm5857, %v7185, 0
    %v7245 = vsel %vm5857, %v7186, 0
    %v7248 = vsel %vm5857, %v7187, 0
    %v7251 = vsel %vm5857, %v7188, 0
    %v7254 = vsel %vm5857, %v7189, 0
    %v7257 = vsel %vm5857, %v7190, 0
    %v7260 = vsel %vm5857, %v7191, 0
    %v7263 = vsel %vm5857, %v7192, 0
    %v7266 = vsel %vm5857, %v7193, 0
    %7268 = vmatpush.msra.mxu0 0.0
    %7269 = vmatpush.msra.mxu0 0.0
    %7270 = vmatpush.msra.mxu0 0.0
    %7271 = vmatpush.msra.mxu0 0.0
    %7272 = vmatpush.msra.mxu0 0.0
    %7273 = vmatpush.msra.mxu0 0.0
    %7274 = vmatpush.msra.mxu0 0.0
    %7275 = vmatpush.msra.mxu0 0.0
    %7276 = vmatpush.msra.mxu0 0.0
    %7277 = vmatpush.msra.mxu0 0.0
    %7278 = vmatpush.msra.mxu0 0.0
    %7279 = vmatpush.msra.mxu0 0.0
    %7280 = vmatpush.msra.mxu0 %v7198
    %7281 = vmatpush.msra.mxu0 %v7197
    %7282 = vmatpush.msra.mxu0 %v7196
    %7283 = vmatpush.msra.mxu0 %v7195
    %7284 = vmatmul.f32.gmra.mxu0 %v7200
    %v7285 = vpop.f32.mrf.mxu0
    %v7286 = vadd.f32 0.0, %v7285
    %7287 = vmatmul.f32.gmra.mxu0 %v7203
    %v7288 = vpop.f32.mrf.mxu0
    %v7289 = vadd.f32 0.0, %v7288
    %7290 = vmatmul.f32.gmra.mxu0 %v7206
    %v7291 = vpop.f32.mrf.mxu0
    %v7292 = vadd.f32 0.0, %v7291
    %7293 = vmatmul.f32.gmra.mxu0 %v7209
    %v7294 = vpop.f32.mrf.mxu0
    %v7295 = vadd.f32 0.0, %v7294
    %7296 = vmatmul.f32.gmra.mxu0 %v7212
    %v7297 = vpop.f32.mrf.mxu0
    %v7298 = vadd.f32 0.0, %v7297
    %7299 = vmatmul.f32.gmra.mxu0 %v7215
    %v7300 = vpop.f32.mrf.mxu0
    %v7301 = vadd.f32 0.0, %v7300
    %7302 = vmatmul.f32.gmra.mxu0 %v7218
    %v7303 = vpop.f32.mrf.mxu0
    %v7304 = vadd.f32 0.0, %v7303
    %7305 = vmatmul.f32.gmra.mxu0 %v7221
    %v7306 = vpop.f32.mrf.mxu0
    %v7307 = vadd.f32 0.0, %v7306
    %7308 = vmatmul.f32.gmra.mxu0 %v7224
    %v7309 = vpop.f32.mrf.mxu0
    %v7310 = vadd.f32 0.0, %v7309
    %7311 = vmatmul.f32.gmra.mxu0 %v7227
    %v7312 = vpop.f32.mrf.mxu0
    %v7313 = vadd.f32 0.0, %v7312
    %7314 = vmatmul.f32.gmra.mxu0 %v7230
    %v7315 = vpop.f32.mrf.mxu0
    %v7316 = vadd.f32 0.0, %v7315
    %7317 = vmatmul.f32.gmra.mxu0 %v7233
    %v7318 = vpop.f32.mrf.mxu0
    %v7319 = vadd.f32 0.0, %v7318
    %7320 = vmatmul.f32.gmra.mxu0 %v7236
    %v7321 = vpop.f32.mrf.mxu0
    %v7322 = vadd.f32 0.0, %v7321
    %7323 = vmatmul.f32.gmra.mxu0 %v7239
    %v7324 = vpop.f32.mrf.mxu0
    %v7325 = vadd.f32 0.0, %v7324
    %7326 = vmatmul.f32.gmra.mxu0 %v7242
    %v7327 = vpop.f32.mrf.mxu0
    %v7328 = vadd.f32 0.0, %v7327
    %7329 = vmatmul.f32.gmra.mxu0 %v7245
    %v7330 = vpop.f32.mrf.mxu0
    %v7331 = vadd.f32 0.0, %v7330
    %7332 = vmatmul.f32.gmra.mxu0 %v7248
    %v7333 = vpop.f32.mrf.mxu0
    %v7334 = vadd.f32 0.0, %v7333
    %7335 = vmatmul.f32.gmra.mxu0 %v7251
    %v7336 = vpop.f32.mrf.mxu0
    %v7337 = vadd.f32 0.0, %v7336
    %7338 = vmatmul.f32.gmra.mxu0 %v7254
    %v7339 = vpop.f32.mrf.mxu0
    %v7340 = vadd.f32 0.0, %v7339
    %7341 = vmatmul.f32.gmra.mxu0 %v7257
    %v7342 = vpop.f32.mrf.mxu0
    %v7343 = vadd.f32 0.0, %v7342
    %7344 = vmatmul.f32.gmra.mxu0 %v7260
    %v7345 = vpop.f32.mrf.mxu0
    %v7346 = vadd.f32 0.0, %v7345
    %7347 = vmatmul.f32.gmra.mxu0 %v7263
    %v7348 = vpop.f32.mrf.mxu0
    %v7349 = vadd.f32 0.0, %v7348
    %7350 = vmatmul.f32.gmra.mxu0 %v7266
    %v7351 = vpop.f32.mrf.mxu0
    %v7352 = vadd.f32 0.0, %v7351
    %7353 = vdwg.mxu0
    %v7355 = vsel %vm5857, %v7144, 0
    %v7358 = vsel %vm5857, %v7145, 0
    %v7361 = vsel %vm5857, %v7146, 0
    %v7364 = vsel %vm5857, %v7147, 0
    %v7367 = vsel %vm5857, %v7148, 0
    %v7370 = vsel %vm5857, %v7149, 0
    %v7373 = vsel %vm5857, %v7150, 0
    %v7376 = vsel %vm5857, %v7151, 0
    %v7379 = vsel %vm5857, %v7152, 0
    %v7382 = vsel %vm5857, %v7153, 0
    %v7385 = vsel %vm5857, %v7154, 0
    %v7388 = vsel %vm5857, %v7155, 0
    %v7391 = vsel %vm5857, %v7156, 0
    %v7394 = vsel %vm5857, %v7157, 0
    %v7397 = vsel %vm5857, %v7158, 0
    %v7400 = vsel %vm5857, %v7159, 0
    %v7403 = vsel %vm5857, %v7160, 0
    %v7406 = vsel %vm5857, %v7161, 0
    %v7409 = vsel %vm5857, %v7162, 0
    %v7412 = vsel %vm5857, %v7163, 0
    %v7415 = vsel %vm5857, %v7164, 0
    %v7418 = vsel %vm5857, %v7165, 0
    %v7421 = vsel %vm5857, %v7166, 0
    %7423 = vmatpush.msra.mxu0 0.0
    %7424 = vmatpush.msra.mxu0 0.0
    %7425 = vmatpush.msra.mxu0 0.0
    %7426 = vmatpush.msra.mxu0 0.0
    %7427 = vmatpush.msra.mxu0 0.0
    %7428 = vmatpush.msra.mxu0 0.0
    %7429 = vmatpush.msra.mxu0 0.0
    %7430 = vmatpush.msra.mxu0 0.0
    %7431 = vmatpush.msra.mxu0 0.0
    %7432 = vmatpush.msra.mxu0 0.0
    %7433 = vmatpush.msra.mxu0 0.0
    %7434 = vmatpush.msra.mxu0 0.0
    %7435 = vmatpush.msra.mxu0 %v7170
    %7436 = vmatpush.msra.mxu0 %v7169
    %7437 = vmatpush.msra.mxu0 %v7168
    %7438 = vmatpush.msra.mxu0 %v7167
    %7439 = vmatmul.f32.gmra.mxu0 %v7355
    %v7440 = vpop.f32.mrf.mxu0
    %v7441 = vadd.f32 %v7286, %v7440
    %7442 = vmatmul.f32.gmra.mxu0 %v7358
    %v7443 = vpop.f32.mrf.mxu0
    %v7444 = vadd.f32 %v7289, %v7443
    %7445 = vmatmul.f32.gmra.mxu0 %v7361
    %v7446 = vpop.f32.mrf.mxu0
    %v7447 = vadd.f32 %v7292, %v7446
    %7448 = vmatmul.f32.gmra.mxu0 %v7364
    %v7449 = vpop.f32.mrf.mxu0
    %v7450 = vadd.f32 %v7295, %v7449
    %7451 = vmatmul.f32.gmra.mxu0 %v7367
    %v7452 = vpop.f32.mrf.mxu0
    %v7453 = vadd.f32 %v7298, %v7452
    %7454 = vmatmul.f32.gmra.mxu0 %v7370
    %v7455 = vpop.f32.mrf.mxu0
    %v7456 = vadd.f32 %v7301, %v7455
    %7457 = vmatmul.f32.gmra.mxu0 %v7373
    %v7458 = vpop.f32.mrf.mxu0
    %v7459 = vadd.f32 %v7304, %v7458
    %7460 = vmatmul.f32.gmra.mxu0 %v7376
    %v7461 = vpop.f32.mrf.mxu0
    %v7462 = vadd.f32 %v7307, %v7461
    %7463 = vmatmul.f32.gmra.mxu0 %v7379
    %v7464 = vpop.f32.mrf.mxu0
    %v7465 = vadd.f32 %v7310, %v7464
    %7466 = vmatmul.f32.gmra.mxu0 %v7382
    %v7467 = vpop.f32.mrf.mxu0
    %v7468 = vadd.f32 %v7313, %v7467
    %7469 = vmatmul.f32.gmra.mxu0 %v7385
    %v7470 = vpop.f32.mrf.mxu0
    %v7471 = vadd.f32 %v7316, %v7470
    %7472 = vmatmul.f32.gmra.mxu0 %v7388
    %v7473 = vpop.f32.mrf.mxu0
    %v7474 = vadd.f32 %v7319, %v7473
    %7475 = vmatmul.f32.gmra.mxu0 %v7391
    %v7476 = vpop.f32.mrf.mxu0
    %v7477 = vadd.f32 %v7322, %v7476
    %7478 = vmatmul.f32.gmra.mxu0 %v7394
    %v7479 = vpop.f32.mrf.mxu0
    %v7480 = vadd.f32 %v7325, %v7479
    %7481 = vmatmul.f32.gmra.mxu0 %v7397
    %v7482 = vpop.f32.mrf.mxu0
    %v7483 = vadd.f32 %v7328, %v7482
    %7484 = vmatmul.f32.gmra.mxu0 %v7400
    %v7485 = vpop.f32.mrf.mxu0
    %v7486 = vadd.f32 %v7331, %v7485
    %7487 = vmatmul.f32.gmra.mxu0 %v7403
    %v7488 = vpop.f32.mrf.mxu0
    %v7489 = vadd.f32 %v7334, %v7488
    %7490 = vmatmul.f32.gmra.mxu0 %v7406
    %v7491 = vpop.f32.mrf.mxu0
    %v7492 = vadd.f32 %v7337, %v7491
    %7493 = vmatmul.f32.gmra.mxu0 %v7409
    %v7494 = vpop.f32.mrf.mxu0
    %v7495 = vadd.f32 %v7340, %v7494
    %7496 = vmatmul.f32.gmra.mxu0 %v7412
    %v7497 = vpop.f32.mrf.mxu0
    %v7498 = vadd.f32 %v7343, %v7497
    %7499 = vmatmul.f32.gmra.mxu0 %v7415
    %v7500 = vpop.f32.mrf.mxu0
    %v7501 = vadd.f32 %v7346, %v7500
    %7502 = vmatmul.f32.gmra.mxu0 %v7418
    %v7503 = vpop.f32.mrf.mxu0
    %v7504 = vadd.f32 %v7349, %v7503
    %7505 = vmatmul.f32.gmra.mxu0 %v7421
    %v7506 = vpop.f32.mrf.mxu0
    %v7507 = vadd.f32 %v7352, %v7506
    %7508 = vdwg.mxu0
    %v7509 = vld [vmem:[#allocation3 + $0x2] sm:$0xff]
    %v7510 = vld [vmem:[#allocation3 + $0xa] sm:$0xff]
    %v7511 = vld [vmem:[#allocation3 + $0x12] sm:$0xff]
    %v7512 = vld [vmem:[#allocation3 + $0x1a] sm:$0xff]
    %v7513 = vld [vmem:[#allocation3 + $0x22] sm:$0xff]
    %v7514 = vld [vmem:[#allocation3 + $0x2a] sm:$0xff]
    %v7515 = vld [vmem:[#allocation3 + $0x32] sm:$0xff]
    %v7516 = vld [vmem:[#allocation3 + $0x3a] sm:$0xff]
    %v7517 = vld [vmem:[#allocation3 + $0x42] sm:$0xff]
    %v7518 = vld [vmem:[#allocation3 + $0x4a] sm:$0xff]
    %v7519 = vld [vmem:[#allocation3 + $0x52] sm:$0xff]
    %v7520 = vld [vmem:[#allocation3 + $0x5a] sm:$0xff]
    %v7521 = vld [vmem:[#allocation3 + $0x62] sm:$0xff]
    %v7522 = vld [vmem:[#allocation3 + $0x6a] sm:$0xff]
    %v7523 = vld [vmem:[#allocation3 + $0x72] sm:$0xff]
    %v7524 = vld [vmem:[#allocation3 + $0x7a] sm:$0xff]
    %v7525 = vld [vmem:[#allocation3 + $0x82] sm:$0xff]
    %v7526 = vld [vmem:[#allocation3 + $0x8a] sm:$0xff]
    %v7527 = vld [vmem:[#allocation3 + $0x92] sm:$0xff]
    %v7528 = vld [vmem:[#allocation3 + $0x9a] sm:$0xff]
    %v7529 = vld [vmem:[#allocation3 + $0xa2] sm:$0xff]
    %v7530 = vld [vmem:[#allocation3 + $0xaa] sm:$0xff]
    %v7531 = vld [vmem:[#allocation3 + $0xb2] sm:$0x3]
    %s7532 = scalar_lea.vmem %s4, 64
    %v7533 = vld [vmem:[%s7532] sm:$0xff]
    %v7534 = vld [vmem:[%s7532 + $0x8] sm:$0xff]
    %v7535 = vld [vmem:[%s7532 + $0x10] sm:$0xff]
    %v7536 = vld [vmem:[%s7532 + $0x18] sm:$0xff]
    %v7538 = vsel %vm5857, %v7509, 0
    %v7541 = vsel %vm5857, %v7510, 0
    %v7544 = vsel %vm5857, %v7511, 0
    %v7547 = vsel %vm5857, %v7512, 0
    %v7550 = vsel %vm5857, %v7513, 0
    %v7553 = vsel %vm5857, %v7514, 0
    %v7556 = vsel %vm5857, %v7515, 0
    %v7559 = vsel %vm5857, %v7516, 0
    %v7562 = vsel %vm5857, %v7517, 0
    %v7565 = vsel %vm5857, %v7518, 0
    %v7568 = vsel %vm5857, %v7519, 0
    %v7571 = vsel %vm5857, %v7520, 0
    %v7574 = vsel %vm5857, %v7521, 0
    %v7577 = vsel %vm5857, %v7522, 0
    %v7580 = vsel %vm5857, %v7523, 0
    %v7583 = vsel %vm5857, %v7524, 0
    %v7586 = vsel %vm5857, %v7525, 0
    %v7589 = vsel %vm5857, %v7526, 0
    %v7592 = vsel %vm5857, %v7527, 0
    %v7595 = vsel %vm5857, %v7528, 0
    %v7598 = vsel %vm5857, %v7529, 0
    %v7601 = vsel %vm5857, %v7530, 0
    %v7604 = vsel %vm5857, %v7531, 0
    %7606 = vmatpush.msra.mxu0 0.0
    %7607 = vmatpush.msra.mxu0 0.0
    %7608 = vmatpush.msra.mxu0 0.0
    %7609 = vmatpush.msra.mxu0 0.0
    %7610 = vmatpush.msra.mxu0 0.0
    %7611 = vmatpush.msra.mxu0 0.0
    %7612 = vmatpush.msra.mxu0 0.0
    %7613 = vmatpush.msra.mxu0 0.0
    %7614 = vmatpush.msra.mxu0 0.0
    %7615 = vmatpush.msra.mxu0 0.0
    %7616 = vmatpush.msra.mxu0 0.0
    %7617 = vmatpush.msra.mxu0 0.0
    %7618 = vmatpush.msra.mxu0 %v7536
    %7619 = vmatpush.msra.mxu0 %v7535
    %7620 = vmatpush.msra.mxu0 %v7534
    %7621 = vmatpush.msra.mxu0 %v7533
    %7622 = vmatmul.f32.gmra.mxu0 %v7538
    %v7623 = vpop.f32.mrf.mxu0
    %v7624 = vadd.f32 0.0, %v7623
    %7625 = vmatmul.f32.gmra.mxu0 %v7541
    %v7626 = vpop.f32.mrf.mxu0
    %v7627 = vadd.f32 0.0, %v7626
    %7628 = vmatmul.f32.gmra.mxu0 %v7544
    %v7629 = vpop.f32.mrf.mxu0
    %v7630 = vadd.f32 0.0, %v7629
    %7631 = vmatmul.f32.gmra.mxu0 %v7547
    %v7632 = vpop.f32.mrf.mxu0
    %v7633 = vadd.f32 0.0, %v7632
    %7634 = vmatmul.f32.gmra.mxu0 %v7550
    %v7635 = vpop.f32.mrf.mxu0
    %v7636 = vadd.f32 0.0, %v7635
    %7637 = vmatmul.f32.gmra.mxu0 %v7553
    %v7638 = vpop.f32.mrf.mxu0
    %v7639 = vadd.f32 0.0, %v7638
    %7640 = vmatmul.f32.gmra.mxu0 %v7556
    %v7641 = vpop.f32.mrf.mxu0
    %v7642 = vadd.f32 0.0, %v7641
    %7643 = vmatmul.f32.gmra.mxu0 %v7559
    %v7644 = vpop.f32.mrf.mxu0
    %v7645 = vadd.f32 0.0, %v7644
    %7646 = vmatmul.f32.gmra.mxu0 %v7562
    %v7647 = vpop.f32.mrf.mxu0
    %v7648 = vadd.f32 0.0, %v7647
    %7649 = vmatmul.f32.gmra.mxu0 %v7565
    %v7650 = vpop.f32.mrf.mxu0
    %v7651 = vadd.f32 0.0, %v7650
    %7652 = vmatmul.f32.gmra.mxu0 %v7568
    %v7653 = vpop.f32.mrf.mxu0
    %v7654 = vadd.f32 0.0, %v7653
    %7655 = vmatmul.f32.gmra.mxu0 %v7571
    %v7656 = vpop.f32.mrf.mxu0
    %v7657 = vadd.f32 0.0, %v7656
    %7658 = vmatmul.f32.gmra.mxu0 %v7574
    %v7659 = vpop.f32.mrf.mxu0
    %v7660 = vadd.f32 0.0, %v7659
    %7661 = vmatmul.f32.gmra.mxu0 %v7577
    %v7662 = vpop.f32.mrf.mxu0
    %v7663 = vadd.f32 0.0, %v7662
    %7664 = vmatmul.f32.gmra.mxu0 %v7580
    %v7665 = vpop.f32.mrf.mxu0
    %v7666 = vadd.f32 0.0, %v7665
    %7667 = vmatmul.f32.gmra.mxu0 %v7583
    %v7668 = vpop.f32.mrf.mxu0
    %v7669 = vadd.f32 0.0, %v7668
    %7670 = vmatmul.f32.gmra.mxu0 %v7586
    %v7671 = vpop.f32.mrf.mxu0
    %v7672 = vadd.f32 0.0, %v7671
    %7673 = vmatmul.f32.gmra.mxu0 %v7589
    %v7674 = vpop.f32.mrf.mxu0
    %v7675 = vadd.f32 0.0, %v7674
    %7676 = vmatmul.f32.gmra.mxu0 %v7592
    %v7677 = vpop.f32.mrf.mxu0
    %v7678 = vadd.f32 0.0, %v7677
    %7679 = vmatmul.f32.gmra.mxu0 %v7595
    %v7680 = vpop.f32.mrf.mxu0
    %v7681 = vadd.f32 0.0, %v7680
    %7682 = vmatmul.f32.gmra.mxu0 %v7598
    %v7683 = vpop.f32.mrf.mxu0
    %v7684 = vadd.f32 0.0, %v7683
    %7685 = vmatmul.f32.gmra.mxu0 %v7601
    %v7686 = vpop.f32.mrf.mxu0
    %v7687 = vadd.f32 0.0, %v7686
    %7688 = vmatmul.f32.gmra.mxu0 %v7604
    %v7689 = vpop.f32.mrf.mxu0
    %v7690 = vadd.f32 0.0, %v7689
    %7691 = vdwg.mxu0
    %v7692 = vadd.f32 %v7441, %v7624
    %v7693 = vadd.f32 %v7444, %v7627
    %v7694 = vadd.f32 %v7447, %v7630
    %v7695 = vadd.f32 %v7450, %v7633
    %v7696 = vadd.f32 %v7453, %v7636
    %v7697 = vadd.f32 %v7456, %v7639
    %v7698 = vadd.f32 %v7459, %v7642
    %v7699 = vadd.f32 %v7462, %v7645
    %v7700 = vadd.f32 %v7465, %v7648
    %v7701 = vadd.f32 %v7468, %v7651
    %v7702 = vadd.f32 %v7471, %v7654
    %v7703 = vadd.f32 %v7474, %v7657
    %v7704 = vadd.f32 %v7477, %v7660
    %v7705 = vadd.f32 %v7480, %v7663
    %v7706 = vadd.f32 %v7483, %v7666
    %v7707 = vadd.f32 %v7486, %v7669
    %v7708 = vadd.f32 %v7489, %v7672
    %v7709 = vadd.f32 %v7492, %v7675
    %v7710 = vadd.f32 %v7495, %v7678
    %v7711 = vadd.f32 %v7498, %v7681
    %v7712 = vadd.f32 %v7501, %v7684
    %v7713 = vadd.f32 %v7504, %v7687
    %v7714 = vadd.f32 %v7507, %v7690
    %v7715 = vld [vmem:[#allocation3 + $0xa] sm:$0xff]
    %v7716 = vld [vmem:[#allocation3 + $0x12] sm:$0xff]
    %v7717 = vld [vmem:[#allocation3 + $0x1a] sm:$0xff]
    %v7718 = vld [vmem:[#allocation3 + $0x22] sm:$0xff]
    %v7719 = vld [vmem:[#allocation3 + $0x2a] sm:$0xff]
    %v7720 = vld [vmem:[#allocation3 + $0x32] sm:$0xff]
    %v7721 = vld [vmem:[#allocation3 + $0x3a] sm:$0xff]
    %v7722 = vld [vmem:[#allocation3 + $0x42] sm:$0xff]
    %v7723 = vld [vmem:[#allocation3 + $0x4a] sm:$0xff]
    %v7724 = vld [vmem:[#allocation3 + $0x52] sm:$0xff]
    %v7725 = vld [vmem:[#allocation3 + $0x5a] sm:$0xff]
    %v7726 = vld [vmem:[#allocation3 + $0x62] sm:$0xff]
    %v7727 = vld [vmem:[#allocation3 + $0x6a] sm:$0xff]
    %v7728 = vld [vmem:[#allocation3 + $0x72] sm:$0xff]
    %v7729 = vld [vmem:[#allocation3 + $0x7a] sm:$0xff]
    %v7730 = vld [vmem:[#allocation3 + $0x82] sm:$0xff]
    %v7731 = vld [vmem:[#allocation3 + $0x8a] sm:$0xff]
    %v7732 = vld [vmem:[#allocation3 + $0x92] sm:$0xff]
    %v7733 = vld [vmem:[#allocation3 + $0x9a] sm:$0xff]
    %v7734 = vld [vmem:[#allocation3 + $0xa2] sm:$0xff]
    %v7735 = vld [vmem:[#allocation3 + $0xaa] sm:$0xff]
    %v7736 = vld [vmem:[#allocation3 + $0xb2] sm:$0xff]
    %v7737 = vld [vmem:[#allocation3 + $0xba] sm:$0x3]
    %s7738 = scalar_lea.vmem %s4, 96
    %v7739 = vld [vmem:[%s7738] sm:$0xff]
    %v7740 = vld [vmem:[%s7738 + $0x8] sm:$0xff]
    %v7741 = vld [vmem:[%s7738 + $0x10] sm:$0xff]
    %v7742 = vld [vmem:[%s7738 + $0x18] sm:$0xff]
    %v7744 = vsel %vm5857, %v7715, 0
    %v7747 = vsel %vm5857, %v7716, 0
    %v7750 = vsel %vm5857, %v7717, 0
    %v7753 = vsel %vm5857, %v7718, 0
    %v7756 = vsel %vm5857, %v7719, 0
    %v7759 = vsel %vm5857, %v7720, 0
    %v7762 = vsel %vm5857, %v7721, 0
    %v7765 = vsel %vm5857, %v7722, 0
    %v7768 = vsel %vm5857, %v7723, 0
    %v7771 = vsel %vm5857, %v7724, 0
    %v7774 = vsel %vm5857, %v7725, 0
    %v7777 = vsel %vm5857, %v7726, 0
    %v7780 = vsel %vm5857, %v7727, 0
    %v7783 = vsel %vm5857, %v7728, 0
    %v7786 = vsel %vm5857, %v7729, 0
    %v7789 = vsel %vm5857, %v7730, 0
    %v7792 = vsel %vm5857, %v7731, 0
    %v7795 = vsel %vm5857, %v7732, 0
    %v7798 = vsel %vm5857, %v7733, 0
    %v7801 = vsel %vm5857, %v7734, 0
    %v7804 = vsel %vm5857, %v7735, 0
    %v7807 = vsel %vm5857, %v7736, 0
    %v7810 = vsel %vm5857, %v7737, 0
    %7812 = vmatpush.msra.mxu0 0.0
    %7813 = vmatpush.msra.mxu0 0.0
    %7814 = vmatpush.msra.mxu0 0.0
    %7815 = vmatpush.msra.mxu0 0.0
    %7816 = vmatpush.msra.mxu0 0.0
    %7817 = vmatpush.msra.mxu0 0.0
    %7818 = vmatpush.msra.mxu0 0.0
    %7819 = vmatpush.msra.mxu0 0.0
    %7820 = vmatpush.msra.mxu0 0.0
    %7821 = vmatpush.msra.mxu0 0.0
    %7822 = vmatpush.msra.mxu0 0.0
    %7823 = vmatpush.msra.mxu0 0.0
    %7824 = vmatpush.msra.mxu0 %v7742
    %7825 = vmatpush.msra.mxu0 %v7741
    %7826 = vmatpush.msra.mxu0 %v7740
    %7827 = vmatpush.msra.mxu0 %v7739
    %7828 = vmatmul.f32.gmra.mxu0 %v7744
    %v7829 = vpop.f32.mrf.mxu0
    %v7830 = vadd.f32 0.0, %v7829
    %7831 = vmatmul.f32.gmra.mxu0 %v7747
    %v7832 = vpop.f32.mrf.mxu0
    %v7833 = vadd.f32 0.0, %v7832
    %7834 = vmatmul.f32.gmra.mxu0 %v7750
    %v7835 = vpop.f32.mrf.mxu0
    %v7836 = vadd.f32 0.0, %v7835
    %7837 = vmatmul.f32.gmra.mxu0 %v7753
    %v7838 = vpop.f32.mrf.mxu0
    %v7839 = vadd.f32 0.0, %v7838
    %7840 = vmatmul.f32.gmra.mxu0 %v7756
    %v7841 = vpop.f32.mrf.mxu0
    %v7842 = vadd.f32 0.0, %v7841
    %7843 = vmatmul.f32.gmra.mxu0 %v7759
    %v7844 = vpop.f32.mrf.mxu0
    %v7845 = vadd.f32 0.0, %v7844
    %7846 = vmatmul.f32.gmra.mxu0 %v7762
    %v7847 = vpop.f32.mrf.mxu0
    %v7848 = vadd.f32 0.0, %v7847
    %7849 = vmatmul.f32.gmra.mxu0 %v7765
    %v7850 = vpop.f32.mrf.mxu0
    %v7851 = vadd.f32 0.0, %v7850
    %7852 = vmatmul.f32.gmra.mxu0 %v7768
    %v7853 = vpop.f32.mrf.mxu0
    %v7854 = vadd.f32 0.0, %v7853
    %7855 = vmatmul.f32.gmra.mxu0 %v7771
    %v7856 = vpop.f32.mrf.mxu0
    %v7857 = vadd.f32 0.0, %v7856
    %7858 = vmatmul.f32.gmra.mxu0 %v7774
    %v7859 = vpop.f32.mrf.mxu0
    %v7860 = vadd.f32 0.0, %v7859
    %7861 = vmatmul.f32.gmra.mxu0 %v7777
    %v7862 = vpop.f32.mrf.mxu0
    %v7863 = vadd.f32 0.0, %v7862
    %7864 = vmatmul.f32.gmra.mxu0 %v7780
    %v7865 = vpop.f32.mrf.mxu0
    %v7866 = vadd.f32 0.0, %v7865
    %7867 = vmatmul.f32.gmra.mxu0 %v7783
    %v7868 = vpop.f32.mrf.mxu0
    %v7869 = vadd.f32 0.0, %v7868
    %7870 = vmatmul.f32.gmra.mxu0 %v7786
    %v7871 = vpop.f32.mrf.mxu0
    %v7872 = vadd.f32 0.0, %v7871
    %7873 = vmatmul.f32.gmra.mxu0 %v7789
    %v7874 = vpop.f32.mrf.mxu0
    %v7875 = vadd.f32 0.0, %v7874
    %7876 = vmatmul.f32.gmra.mxu0 %v7792
    %v7877 = vpop.f32.mrf.mxu0
    %v7878 = vadd.f32 0.0, %v7877
    %7879 = vmatmul.f32.gmra.mxu0 %v7795
    %v7880 = vpop.f32.mrf.mxu0
    %v7881 = vadd.f32 0.0, %v7880
    %7882 = vmatmul.f32.gmra.mxu0 %v7798
    %v7883 = vpop.f32.mrf.mxu0
    %v7884 = vadd.f32 0.0, %v7883
    %7885 = vmatmul.f32.gmra.mxu0 %v7801
    %v7886 = vpop.f32.mrf.mxu0
    %v7887 = vadd.f32 0.0, %v7886
    %7888 = vmatmul.f32.gmra.mxu0 %v7804
    %v7889 = vpop.f32.mrf.mxu0
    %v7890 = vadd.f32 0.0, %v7889
    %7891 = vmatmul.f32.gmra.mxu0 %v7807
    %v7892 = vpop.f32.mrf.mxu0
    %v7893 = vadd.f32 0.0, %v7892
    %7894 = vmatmul.f32.gmra.mxu0 %v7810
    %v7895 = vpop.f32.mrf.mxu0
    %v7896 = vadd.f32 0.0, %v7895
    %7897 = vdwg.mxu0
    %v7898 = vadd.f32 %v7692, %v7830
    %v7899 = vadd.f32 %v7693, %v7833
    %v7900 = vadd.f32 %v7694, %v7836
    %v7901 = vadd.f32 %v7695, %v7839
    %v7902 = vadd.f32 %v7696, %v7842
    %v7903 = vadd.f32 %v7697, %v7845
    %v7904 = vadd.f32 %v7698, %v7848
    %v7905 = vadd.f32 %v7699, %v7851
    %v7906 = vadd.f32 %v7700, %v7854
    %v7907 = vadd.f32 %v7701, %v7857
    %v7908 = vadd.f32 %v7702, %v7860
    %v7909 = vadd.f32 %v7703, %v7863
    %v7910 = vadd.f32 %v7704, %v7866
    %v7911 = vadd.f32 %v7705, %v7869
    %v7912 = vadd.f32 %v7706, %v7872
    %v7913 = vadd.f32 %v7707, %v7875
    %v7914 = vadd.f32 %v7708, %v7878
    %v7915 = vadd.f32 %v7709, %v7881
    %v7916 = vadd.f32 %v7710, %v7884
    %v7917 = vadd.f32 %v7711, %v7887
    %v7918 = vadd.f32 %v7712, %v7890
    %v7919 = vadd.f32 %v7713, %v7893
    %v7920 = vadd.f32 %v7714, %v7896
    %v7921 = vld [vmem:[#allocation3 + $0xb] sm:$0xff]
    %v7922 = vld [vmem:[#allocation3 + $0x13] sm:$0xff]
    %v7923 = vld [vmem:[#allocation3 + $0x1b] sm:$0xff]
    %v7924 = vld [vmem:[#allocation3 + $0x23] sm:$0xff]
    %v7925 = vld [vmem:[#allocation3 + $0x2b] sm:$0xff]
    %v7926 = vld [vmem:[#allocation3 + $0x33] sm:$0xff]
    %v7927 = vld [vmem:[#allocation3 + $0x3b] sm:$0xff]
    %v7928 = vld [vmem:[#allocation3 + $0x43] sm:$0xff]
    %v7929 = vld [vmem:[#allocation3 + $0x4b] sm:$0xff]
    %v7930 = vld [vmem:[#allocation3 + $0x53] sm:$0xff]
    %v7931 = vld [vmem:[#allocation3 + $0x5b] sm:$0xff]
    %v7932 = vld [vmem:[#allocation3 + $0x63] sm:$0xff]
    %v7933 = vld [vmem:[#allocation3 + $0x6b] sm:$0xff]
    %v7934 = vld [vmem:[#allocation3 + $0x73] sm:$0xff]
    %v7935 = vld [vmem:[#allocation3 + $0x7b] sm:$0xff]
    %v7936 = vld [vmem:[#allocation3 + $0x83] sm:$0xff]
    %v7937 = vld [vmem:[#allocation3 + $0x8b] sm:$0xff]
    %v7938 = vld [vmem:[#allocation3 + $0x93] sm:$0xff]
    %v7939 = vld [vmem:[#allocation3 + $0x9b] sm:$0xff]
    %v7940 = vld [vmem:[#allocation3 + $0xa3] sm:$0xff]
    %v7941 = vld [vmem:[#allocation3 + $0xab] sm:$0xff]
    %v7942 = vld [vmem:[#allocation3 + $0xb3] sm:$0xff]
    %v7943 = vld [vmem:[#allocation3 + $0xbb] sm:$0x3]
    %s7944 = scalar_lea.vmem %s4, 128
    %v7945 = vld [vmem:[%s7944] sm:$0xff]
    %v7946 = vld [vmem:[%s7944 + $0x8] sm:$0xff]
    %v7947 = vld [vmem:[%s7944 + $0x10] sm:$0xff]
    %v7948 = vld [vmem:[%s7944 + $0x18] sm:$0xff]
    %v7950 = vsel %vm5857, %v7921, 0
    %v7953 = vsel %vm5857, %v7922, 0
    %v7956 = vsel %vm5857, %v7923, 0
    %v7959 = vsel %vm5857, %v7924, 0
    %v7962 = vsel %vm5857, %v7925, 0
    %v7965 = vsel %vm5857, %v7926, 0
    %v7968 = vsel %vm5857, %v7927, 0
    %v7971 = vsel %vm5857, %v7928, 0
    %v7974 = vsel %vm5857, %v7929, 0
    %v7977 = vsel %vm5857, %v7930, 0
    %v7980 = vsel %vm5857, %v7931, 0
    %v7983 = vsel %vm5857, %v7932, 0
    %v7986 = vsel %vm5857, %v7933, 0
    %v7989 = vsel %vm5857, %v7934, 0
    %v7992 = vsel %vm5857, %v7935, 0
    %v7995 = vsel %vm5857, %v7936, 0
    %v7998 = vsel %vm5857, %v7937, 0
    %v8001 = vsel %vm5857, %v7938, 0
    %v8004 = vsel %vm5857, %v7939, 0
    %v8007 = vsel %vm5857, %v7940, 0
    %v8010 = vsel %vm5857, %v7941, 0
    %v8013 = vsel %vm5857, %v7942, 0
    %v8016 = vsel %vm5857, %v7943, 0
    %8018 = vmatpush.msra.mxu0 0.0
    %8019 = vmatpush.msra.mxu0 0.0
    %8020 = vmatpush.msra.mxu0 0.0
    %8021 = vmatpush.msra.mxu0 0.0
    %8022 = vmatpush.msra.mxu0 0.0
    %8023 = vmatpush.msra.mxu0 0.0
    %8024 = vmatpush.msra.mxu0 0.0
    %8025 = vmatpush.msra.mxu0 0.0
    %8026 = vmatpush.msra.mxu0 0.0
    %8027 = vmatpush.msra.mxu0 0.0
    %8028 = vmatpush.msra.mxu0 0.0
    %8029 = vmatpush.msra.mxu0 0.0
    %8030 = vmatpush.msra.mxu0 %v7948
    %8031 = vmatpush.msra.mxu0 %v7947
    %8032 = vmatpush.msra.mxu0 %v7946
    %8033 = vmatpush.msra.mxu0 %v7945
    %8034 = vmatmul.f32.gmra.mxu0 %v7950
    %v8035 = vpop.f32.mrf.mxu0
    %v8036 = vadd.f32 0.0, %v8035
    %8037 = vmatmul.f32.gmra.mxu0 %v7953
    %v8038 = vpop.f32.mrf.mxu0
    %v8039 = vadd.f32 0.0, %v8038
    %8040 = vmatmul.f32.gmra.mxu0 %v7956
    %v8041 = vpop.f32.mrf.mxu0
    %v8042 = vadd.f32 0.0, %v8041
    %8043 = vmatmul.f32.gmra.mxu0 %v7959
    %v8044 = vpop.f32.mrf.mxu0
    %v8045 = vadd.f32 0.0, %v8044
    %8046 = vmatmul.f32.gmra.mxu0 %v7962
    %v8047 = vpop.f32.mrf.mxu0
    %v8048 = vadd.f32 0.0, %v8047
    %8049 = vmatmul.f32.gmra.mxu0 %v7965
    %v8050 = vpop.f32.mrf.mxu0
    %v8051 = vadd.f32 0.0, %v8050
    %8052 = vmatmul.f32.gmra.mxu0 %v7968
    %v8053 = vpop.f32.mrf.mxu0
    %v8054 = vadd.f32 0.0, %v8053
    %8055 = vmatmul.f32.gmra.mxu0 %v7971
    %v8056 = vpop.f32.mrf.mxu0
    %v8057 = vadd.f32 0.0, %v8056
    %8058 = vmatmul.f32.gmra.mxu0 %v7974
    %v8059 = vpop.f32.mrf.mxu0
    %v8060 = vadd.f32 0.0, %v8059
    %8061 = vmatmul.f32.gmra.mxu0 %v7977
    %v8062 = vpop.f32.mrf.mxu0
    %v8063 = vadd.f32 0.0, %v8062
    %8064 = vmatmul.f32.gmra.mxu0 %v7980
    %v8065 = vpop.f32.mrf.mxu0
    %v8066 = vadd.f32 0.0, %v8065
    %8067 = vmatmul.f32.gmra.mxu0 %v7983
    %v8068 = vpop.f32.mrf.mxu0
    %v8069 = vadd.f32 0.0, %v8068
    %8070 = vmatmul.f32.gmra.mxu0 %v7986
    %v8071 = vpop.f32.mrf.mxu0
    %v8072 = vadd.f32 0.0, %v8071
    %8073 = vmatmul.f32.gmra.mxu0 %v7989
    %v8074 = vpop.f32.mrf.mxu0
    %v8075 = vadd.f32 0.0, %v8074
    %8076 = vmatmul.f32.gmra.mxu0 %v7992
    %v8077 = vpop.f32.mrf.mxu0
    %v8078 = vadd.f32 0.0, %v8077
    %8079 = vmatmul.f32.gmra.mxu0 %v7995
    %v8080 = vpop.f32.mrf.mxu0
    %v8081 = vadd.f32 0.0, %v8080
    %8082 = vmatmul.f32.gmra.mxu0 %v7998
    %v8083 = vpop.f32.mrf.mxu0
    %v8084 = vadd.f32 0.0, %v8083
    %8085 = vmatmul.f32.gmra.mxu0 %v8001
    %v8086 = vpop.f32.mrf.mxu0
    %v8087 = vadd.f32 0.0, %v8086
    %8088 = vmatmul.f32.gmra.mxu0 %v8004
    %v8089 = vpop.f32.mrf.mxu0
    %v8090 = vadd.f32 0.0, %v8089
    %8091 = vmatmul.f32.gmra.mxu0 %v8007
    %v8092 = vpop.f32.mrf.mxu0
    %v8093 = vadd.f32 0.0, %v8092
    %8094 = vmatmul.f32.gmra.mxu0 %v8010
    %v8095 = vpop.f32.mrf.mxu0
    %v8096 = vadd.f32 0.0, %v8095
    %8097 = vmatmul.f32.gmra.mxu0 %v8013
    %v8098 = vpop.f32.mrf.mxu0
    %v8099 = vadd.f32 0.0, %v8098
    %8100 = vmatmul.f32.gmra.mxu0 %v8016
    %v8101 = vpop.f32.mrf.mxu0
    %v8102 = vadd.f32 0.0, %v8101
    %8103 = vdwg.mxu0
    %v8104 = vadd.f32 %v7898, %v8036
    %v8105 = vadd.f32 %v7899, %v8039
    %v8106 = vadd.f32 %v7900, %v8042
    %v8107 = vadd.f32 %v7901, %v8045
    %v8108 = vadd.f32 %v7902, %v8048
    %v8109 = vadd.f32 %v7903, %v8051
    %v8110 = vadd.f32 %v7904, %v8054
    %v8111 = vadd.f32 %v7905, %v8057
    %v8112 = vadd.f32 %v7906, %v8060
    %v8113 = vadd.f32 %v7907, %v8063
    %v8114 = vadd.f32 %v7908, %v8066
    %v8115 = vadd.f32 %v7909, %v8069
    %v8116 = vadd.f32 %v7910, %v8072
    %v8117 = vadd.f32 %v7911, %v8075
    %v8118 = vadd.f32 %v7912, %v8078
    %v8119 = vadd.f32 %v7913, %v8081
    %v8120 = vadd.f32 %v7914, %v8084
    %v8121 = vadd.f32 %v7915, %v8087
    %v8122 = vadd.f32 %v7916, %v8090
    %v8123 = vadd.f32 %v7917, %v8093
    %v8124 = vadd.f32 %v7918, %v8096
    %v8125 = vadd.f32 %v7919, %v8099
    %v8126 = vadd.f32 %v7920, %v8102
    %v8127 = vld [vmem:[#allocation3 + $0xc] sm:$0xff]
    %v8128 = vld [vmem:[#allocation3 + $0x14] sm:$0xff]
    %v8129 = vld [vmem:[#allocation3 + $0x1c] sm:$0xff]
    %v8130 = vld [vmem:[#allocation3 + $0x24] sm:$0xff]
    %v8131 = vld [vmem:[#allocation3 + $0x2c] sm:$0xff]
    %v8132 = vld [vmem:[#allocation3 + $0x34] sm:$0xff]
    %v8133 = vld [vmem:[#allocation3 + $0x3c] sm:$0xff]
    %v8134 = vld [vmem:[#allocation3 + $0x44] sm:$0xff]
    %v8135 = vld [vmem:[#allocation3 + $0x4c] sm:$0xff]
    %v8136 = vld [vmem:[#allocation3 + $0x54] sm:$0xff]
    %v8137 = vld [vmem:[#allocation3 + $0x5c] sm:$0xff]
    %v8138 = vld [vmem:[#allocation3 + $0x64] sm:$0xff]
    %v8139 = vld [vmem:[#allocation3 + $0x6c] sm:$0xff]
    %v8140 = vld [vmem:[#allocation3 + $0x74] sm:$0xff]
    %v8141 = vld [vmem:[#allocation3 + $0x7c] sm:$0xff]
    %v8142 = vld [vmem:[#allocation3 + $0x84] sm:$0xff]
    %v8143 = vld [vmem:[#allocation3 + $0x8c] sm:$0xff]
    %v8144 = vld [vmem:[#allocation3 + $0x94] sm:$0xff]
    %v8145 = vld [vmem:[#allocation3 + $0x9c] sm:$0xff]
    %v8146 = vld [vmem:[#allocation3 + $0xa4] sm:$0xff]
    %v8147 = vld [vmem:[#allocation3 + $0xac] sm:$0xff]
    %v8148 = vld [vmem:[#allocation3 + $0xb4] sm:$0xff]
    %v8149 = vld [vmem:[#allocation3 + $0xbc] sm:$0x3]
    %s8150 = scalar_lea.vmem %s4, 160
    %v8151 = vld [vmem:[%s8150] sm:$0xff]
    %v8152 = vld [vmem:[%s8150 + $0x8] sm:$0xff]
    %v8153 = vld [vmem:[%s8150 + $0x10] sm:$0xff]
    %v8154 = vld [vmem:[%s8150 + $0x18] sm:$0xff]
    %v8156 = vsel %vm5857, %v8127, 0
    %v8159 = vsel %vm5857, %v8128, 0
    %v8162 = vsel %vm5857, %v8129, 0
    %v8165 = vsel %vm5857, %v8130, 0
    %v8168 = vsel %vm5857, %v8131, 0
    %v8171 = vsel %vm5857, %v8132, 0
    %v8174 = vsel %vm5857, %v8133, 0
    %v8177 = vsel %vm5857, %v8134, 0
    %v8180 = vsel %vm5857, %v8135, 0
    %v8183 = vsel %vm5857, %v8136, 0
    %v8186 = vsel %vm5857, %v8137, 0
    %v8189 = vsel %vm5857, %v8138, 0
    %v8192 = vsel %vm5857, %v8139, 0
    %v8195 = vsel %vm5857, %v8140, 0
    %v8198 = vsel %vm5857, %v8141, 0
    %v8201 = vsel %vm5857, %v8142, 0
    %v8204 = vsel %vm5857, %v8143, 0
    %v8207 = vsel %vm5857, %v8144, 0
    %v8210 = vsel %vm5857, %v8145, 0
    %v8213 = vsel %vm5857, %v8146, 0
    %v8216 = vsel %vm5857, %v8147, 0
    %v8219 = vsel %vm5857, %v8148, 0
    %v8222 = vsel %vm5857, %v8149, 0
    %8224 = vmatpush.msra.mxu0 0.0
    %8225 = vmatpush.msra.mxu0 0.0
    %8226 = vmatpush.msra.mxu0 0.0
    %8227 = vmatpush.msra.mxu0 0.0
    %8228 = vmatpush.msra.mxu0 0.0
    %8229 = vmatpush.msra.mxu0 0.0
    %8230 = vmatpush.msra.mxu0 0.0
    %8231 = vmatpush.msra.mxu0 0.0
    %8232 = vmatpush.msra.mxu0 0.0
    %8233 = vmatpush.msra.mxu0 0.0
    %8234 = vmatpush.msra.mxu0 0.0
    %8235 = vmatpush.msra.mxu0 0.0
    %8236 = vmatpush.msra.mxu0 %v8154
    %8237 = vmatpush.msra.mxu0 %v8153
    %8238 = vmatpush.msra.mxu0 %v8152
    %8239 = vmatpush.msra.mxu0 %v8151
    %8240 = vmatmul.f32.gmra.mxu0 %v8156
    %v8241 = vpop.f32.mrf.mxu0
    %v8242 = vadd.f32 0.0, %v8241
    %8243 = vmatmul.f32.gmra.mxu0 %v8159
    %v8244 = vpop.f32.mrf.mxu0
    %v8245 = vadd.f32 0.0, %v8244
    %8246 = vmatmul.f32.gmra.mxu0 %v8162
    %v8247 = vpop.f32.mrf.mxu0
    %v8248 = vadd.f32 0.0, %v8247
    %8249 = vmatmul.f32.gmra.mxu0 %v8165
    %v8250 = vpop.f32.mrf.mxu0
    %v8251 = vadd.f32 0.0, %v8250
    %8252 = vmatmul.f32.gmra.mxu0 %v8168
    %v8253 = vpop.f32.mrf.mxu0
    %v8254 = vadd.f32 0.0, %v8253
    %8255 = vmatmul.f32.gmra.mxu0 %v8171
    %v8256 = vpop.f32.mrf.mxu0
    %v8257 = vadd.f32 0.0, %v8256
    %8258 = vmatmul.f32.gmra.mxu0 %v8174
    %v8259 = vpop.f32.mrf.mxu0
    %v8260 = vadd.f32 0.0, %v8259
    %8261 = vmatmul.f32.gmra.mxu0 %v8177
    %v8262 = vpop.f32.mrf.mxu0
    %v8263 = vadd.f32 0.0, %v8262
    %8264 = vmatmul.f32.gmra.mxu0 %v8180
    %v8265 = vpop.f32.mrf.mxu0
    %v8266 = vadd.f32 0.0, %v8265
    %8267 = vmatmul.f32.gmra.mxu0 %v8183
    %v8268 = vpop.f32.mrf.mxu0
    %v8269 = vadd.f32 0.0, %v8268
    %8270 = vmatmul.f32.gmra.mxu0 %v8186
    %v8271 = vpop.f32.mrf.mxu0
    %v8272 = vadd.f32 0.0, %v8271
    %8273 = vmatmul.f32.gmra.mxu0 %v8189
    %v8274 = vpop.f32.mrf.mxu0
    %v8275 = vadd.f32 0.0, %v8274
    %8276 = vmatmul.f32.gmra.mxu0 %v8192
    %v8277 = vpop.f32.mrf.mxu0
    %v8278 = vadd.f32 0.0, %v8277
    %8279 = vmatmul.f32.gmra.mxu0 %v8195
    %v8280 = vpop.f32.mrf.mxu0
    %v8281 = vadd.f32 0.0, %v8280
    %8282 = vmatmul.f32.gmra.mxu0 %v8198
    %v8283 = vpop.f32.mrf.mxu0
    %v8284 = vadd.f32 0.0, %v8283
    %8285 = vmatmul.f32.gmra.mxu0 %v8201
    %v8286 = vpop.f32.mrf.mxu0
    %v8287 = vadd.f32 0.0, %v8286
    %8288 = vmatmul.f32.gmra.mxu0 %v8204
    %v8289 = vpop.f32.mrf.mxu0
    %v8290 = vadd.f32 0.0, %v8289
    %8291 = vmatmul.f32.gmra.mxu0 %v8207
    %v8292 = vpop.f32.mrf.mxu0
    %v8293 = vadd.f32 0.0, %v8292
    %8294 = vmatmul.f32.gmra.mxu0 %v8210
    %v8295 = vpop.f32.mrf.mxu0
    %v8296 = vadd.f32 0.0, %v8295
    %8297 = vmatmul.f32.gmra.mxu0 %v8213
    %v8298 = vpop.f32.mrf.mxu0
    %v8299 = vadd.f32 0.0, %v8298
    %8300 = vmatmul.f32.gmra.mxu0 %v8216
    %v8301 = vpop.f32.mrf.mxu0
    %v8302 = vadd.f32 0.0, %v8301
    %8303 = vmatmul.f32.gmra.mxu0 %v8219
    %v8304 = vpop.f32.mrf.mxu0
    %v8305 = vadd.f32 0.0, %v8304
    %8306 = vmatmul.f32.gmra.mxu0 %v8222
    %v8307 = vpop.f32.mrf.mxu0
    %v8308 = vadd.f32 0.0, %v8307
    %8309 = vdwg.mxu0
    %v8310 = vadd.f32 %v8104, %v8242
    %v8311 = vadd.f32 %v8105, %v8245
    %v8312 = vadd.f32 %v8106, %v8248
    %v8313 = vadd.f32 %v8107, %v8251
    %v8314 = vadd.f32 %v8108, %v8254
    %v8315 = vadd.f32 %v8109, %v8257
    %v8316 = vadd.f32 %v8110, %v8260
    %v8317 = vadd.f32 %v8111, %v8263
    %v8318 = vadd.f32 %v8112, %v8266
    %v8319 = vadd.f32 %v8113, %v8269
    %v8320 = vadd.f32 %v8114, %v8272
    %v8321 = vadd.f32 %v8115, %v8275
    %v8322 = vadd.f32 %v8116, %v8278
    %v8323 = vadd.f32 %v8117, %v8281
    %v8324 = vadd.f32 %v8118, %v8284
    %v8325 = vadd.f32 %v8119, %v8287
    %v8326 = vadd.f32 %v8120, %v8290
    %v8327 = vadd.f32 %v8121, %v8293
    %v8328 = vadd.f32 %v8122, %v8296
    %v8329 = vadd.f32 %v8123, %v8299
    %v8330 = vadd.f32 %v8124, %v8302
    %v8331 = vadd.f32 %v8125, %v8305
    %v8332 = vadd.f32 %v8126, %v8308
    %v8333 = vld [vmem:[#allocation3 + $0x14] sm:$0xff]
    %v8334 = vld [vmem:[#allocation3 + $0x1c] sm:$0xff]
    %v8335 = vld [vmem:[#allocation3 + $0x24] sm:$0xff]
    %v8336 = vld [vmem:[#allocation3 + $0x2c] sm:$0xff]
    %v8337 = vld [vmem:[#allocation3 + $0x34] sm:$0xff]
    %v8338 = vld [vmem:[#allocation3 + $0x3c] sm:$0xff]
    %v8339 = vld [vmem:[#allocation3 + $0x44] sm:$0xff]
    %v8340 = vld [vmem:[#allocation3 + $0x4c] sm:$0xff]
    %v8341 = vld [vmem:[#allocation3 + $0x54] sm:$0xff]
    %v8342 = vld [vmem:[#allocation3 + $0x5c] sm:$0xff]
    %v8343 = vld [vmem:[#allocation3 + $0x64] sm:$0xff]
    %v8344 = vld [vmem:[#allocation3 + $0x6c] sm:$0xff]
    %v8345 = vld [vmem:[#allocation3 + $0x74] sm:$0xff]
    %v8346 = vld [vmem:[#allocation3 + $0x7c] sm:$0xff]
    %v8347 = vld [vmem:[#allocation3 + $0x84] sm:$0xff]
    %v8348 = vld [vmem:[#allocation3 + $0x8c] sm:$0xff]
    %v8349 = vld [vmem:[#allocation3 + $0x94] sm:$0xff]
    %v8350 = vld [vmem:[#allocation3 + $0x9c] sm:$0xff]
    %v8351 = vld [vmem:[#allocation3 + $0xa4] sm:$0xff]
    %v8352 = vld [vmem:[#allocation3 + $0xac] sm:$0xff]
    %v8353 = vld [vmem:[#allocation3 + $0xb4] sm:$0xff]
    %v8354 = vld [vmem:[#allocation3 + $0xbc] sm:$0xff]
    %v8355 = vld [vmem:[#allocation3 + $0xc4] sm:$0x3]
    %s8356 = scalar_lea.vmem %s4, 192
    %v8357 = vld [vmem:[%s8356] sm:$0xff]
    %v8358 = vld [vmem:[%s8356 + $0x8] sm:$0xff]
    %v8359 = vld [vmem:[%s8356 + $0x10] sm:$0xff]
    %v8360 = vld [vmem:[%s8356 + $0x18] sm:$0xff]
    %v8362 = vsel %vm5857, %v8333, 0
    %v8365 = vsel %vm5857, %v8334, 0
    %v8368 = vsel %vm5857, %v8335, 0
    %v8371 = vsel %vm5857, %v8336, 0
    %v8374 = vsel %vm5857, %v8337, 0
    %v8377 = vsel %vm5857, %v8338, 0
    %v8380 = vsel %vm5857, %v8339, 0
    %v8383 = vsel %vm5857, %v8340, 0
    %v8386 = vsel %vm5857, %v8341, 0
    %v8389 = vsel %vm5857, %v8342, 0
    %v8392 = vsel %vm5857, %v8343, 0
    %v8395 = vsel %vm5857, %v8344, 0
    %v8398 = vsel %vm5857, %v8345, 0
    %v8401 = vsel %vm5857, %v8346, 0
    %v8404 = vsel %vm5857, %v8347, 0
    %v8407 = vsel %vm5857, %v8348, 0
    %v8410 = vsel %vm5857, %v8349, 0
    %v8413 = vsel %vm5857, %v8350, 0
    %v8416 = vsel %vm5857, %v8351, 0
    %v8419 = vsel %vm5857, %v8352, 0
    %v8422 = vsel %vm5857, %v8353, 0
    %v8425 = vsel %vm5857, %v8354, 0
    %v8428 = vsel %vm5857, %v8355, 0
    %8430 = vmatpush.msra.mxu0 0.0
    %8431 = vmatpush.msra.mxu0 0.0
    %8432 = vmatpush.msra.mxu0 0.0
    %8433 = vmatpush.msra.mxu0 0.0
    %8434 = vmatpush.msra.mxu0 0.0
    %8435 = vmatpush.msra.mxu0 0.0
    %8436 = vmatpush.msra.mxu0 0.0
    %8437 = vmatpush.msra.mxu0 0.0
    %8438 = vmatpush.msra.mxu0 0.0
    %8439 = vmatpush.msra.mxu0 0.0
    %8440 = vmatpush.msra.mxu0 0.0
    %8441 = vmatpush.msra.mxu0 0.0
    %8442 = vmatpush.msra.mxu0 %v8360
    %8443 = vmatpush.msra.mxu0 %v8359
    %8444 = vmatpush.msra.mxu0 %v8358
    %8445 = vmatpush.msra.mxu0 %v8357
    %8446 = vmatmul.f32.gmra.mxu0 %v8362
    %v8447 = vpop.f32.mrf.mxu0
    %v8448 = vadd.f32 0.0, %v8447
    %8449 = vmatmul.f32.gmra.mxu0 %v8365
    %v8450 = vpop.f32.mrf.mxu0
    %v8451 = vadd.f32 0.0, %v8450
    %8452 = vmatmul.f32.gmra.mxu0 %v8368
    %v8453 = vpop.f32.mrf.mxu0
    %v8454 = vadd.f32 0.0, %v8453
    %8455 = vmatmul.f32.gmra.mxu0 %v8371
    %v8456 = vpop.f32.mrf.mxu0
    %v8457 = vadd.f32 0.0, %v8456
    %8458 = vmatmul.f32.gmra.mxu0 %v8374
    %v8459 = vpop.f32.mrf.mxu0
    %v8460 = vadd.f32 0.0, %v8459
    %8461 = vmatmul.f32.gmra.mxu0 %v8377
    %v8462 = vpop.f32.mrf.mxu0
    %v8463 = vadd.f32 0.0, %v8462
    %8464 = vmatmul.f32.gmra.mxu0 %v8380
    %v8465 = vpop.f32.mrf.mxu0
    %v8466 = vadd.f32 0.0, %v8465
    %8467 = vmatmul.f32.gmra.mxu0 %v8383
    %v8468 = vpop.f32.mrf.mxu0
    %v8469 = vadd.f32 0.0, %v8468
    %8470 = vmatmul.f32.gmra.mxu0 %v8386
    %v8471 = vpop.f32.mrf.mxu0
    %v8472 = vadd.f32 0.0, %v8471
    %8473 = vmatmul.f32.gmra.mxu0 %v8389
    %v8474 = vpop.f32.mrf.mxu0
    %v8475 = vadd.f32 0.0, %v8474
    %8476 = vmatmul.f32.gmra.mxu0 %v8392
    %v8477 = vpop.f32.mrf.mxu0
    %v8478 = vadd.f32 0.0, %v8477
    %8479 = vmatmul.f32.gmra.mxu0 %v8395
    %v8480 = vpop.f32.mrf.mxu0
    %v8481 = vadd.f32 0.0, %v8480
    %8482 = vmatmul.f32.gmra.mxu0 %v8398
    %v8483 = vpop.f32.mrf.mxu0
    %v8484 = vadd.f32 0.0, %v8483
    %8485 = vmatmul.f32.gmra.mxu0 %v8401
    %v8486 = vpop.f32.mrf.mxu0
    %v8487 = vadd.f32 0.0, %v8486
    %8488 = vmatmul.f32.gmra.mxu0 %v8404
    %v8489 = vpop.f32.mrf.mxu0
    %v8490 = vadd.f32 0.0, %v8489
    %8491 = vmatmul.f32.gmra.mxu0 %v8407
    %v8492 = vpop.f32.mrf.mxu0
    %v8493 = vadd.f32 0.0, %v8492
    %8494 = vmatmul.f32.gmra.mxu0 %v8410
    %v8495 = vpop.f32.mrf.mxu0
    %v8496 = vadd.f32 0.0, %v8495
    %8497 = vmatmul.f32.gmra.mxu0 %v8413
    %v8498 = vpop.f32.mrf.mxu0
    %v8499 = vadd.f32 0.0, %v8498
    %8500 = vmatmul.f32.gmra.mxu0 %v8416
    %v8501 = vpop.f32.mrf.mxu0
    %v8502 = vadd.f32 0.0, %v8501
    %8503 = vmatmul.f32.gmra.mxu0 %v8419
    %v8504 = vpop.f32.mrf.mxu0
    %v8505 = vadd.f32 0.0, %v8504
    %8506 = vmatmul.f32.gmra.mxu0 %v8422
    %v8507 = vpop.f32.mrf.mxu0
    %v8508 = vadd.f32 0.0, %v8507
    %8509 = vmatmul.f32.gmra.mxu0 %v8425
    %v8510 = vpop.f32.mrf.mxu0
    %v8511 = vadd.f32 0.0, %v8510
    %8512 = vmatmul.f32.gmra.mxu0 %v8428
    %v8513 = vpop.f32.mrf.mxu0
    %v8514 = vadd.f32 0.0, %v8513
    %8515 = vdwg.mxu0
    %v8516 = vadd.f32 %v8310, %v8448
    %v8517 = vadd.f32 %v8311, %v8451
    %v8518 = vadd.f32 %v8312, %v8454
    %v8519 = vadd.f32 %v8313, %v8457
    %v8520 = vadd.f32 %v8314, %v8460
    %v8521 = vadd.f32 %v8315, %v8463
    %v8522 = vadd.f32 %v8316, %v8466
    %v8523 = vadd.f32 %v8317, %v8469
    %v8524 = vadd.f32 %v8318, %v8472
    %v8525 = vadd.f32 %v8319, %v8475
    %v8526 = vadd.f32 %v8320, %v8478
    %v8527 = vadd.f32 %v8321, %v8481
    %v8528 = vadd.f32 %v8322, %v8484
    %v8529 = vadd.f32 %v8323, %v8487
    %v8530 = vadd.f32 %v8324, %v8490
    %v8531 = vadd.f32 %v8325, %v8493
    %v8532 = vadd.f32 %v8326, %v8496
    %v8533 = vadd.f32 %v8327, %v8499
    %v8534 = vadd.f32 %v8328, %v8502
    %v8535 = vadd.f32 %v8329, %v8505
    %v8536 = vadd.f32 %v8330, %v8508
    %v8537 = vadd.f32 %v8331, %v8511
    %v8538 = vadd.f32 %v8332, %v8514
    %v8539 = vld [vmem:[#allocation3 + $0x15] sm:$0xff]
    %v8540 = vld [vmem:[#allocation3 + $0x1d] sm:$0xff]
    %v8541 = vld [vmem:[#allocation3 + $0x25] sm:$0xff]
    %v8542 = vld [vmem:[#allocation3 + $0x2d] sm:$0xff]
    %v8543 = vld [vmem:[#allocation3 + $0x35] sm:$0xff]
    %v8544 = vld [vmem:[#allocation3 + $0x3d] sm:$0xff]
    %v8545 = vld [vmem:[#allocation3 + $0x45] sm:$0xff]
    %v8546 = vld [vmem:[#allocation3 + $0x4d] sm:$0xff]
    %v8547 = vld [vmem:[#allocation3 + $0x55] sm:$0xff]
    %v8548 = vld [vmem:[#allocation3 + $0x5d] sm:$0xff]
    %v8549 = vld [vmem:[#allocation3 + $0x65] sm:$0xff]
    %v8550 = vld [vmem:[#allocation3 + $0x6d] sm:$0xff]
    %v8551 = vld [vmem:[#allocation3 + $0x75] sm:$0xff]
    %v8552 = vld [vmem:[#allocation3 + $0x7d] sm:$0xff]
    %v8553 = vld [vmem:[#allocation3 + $0x85] sm:$0xff]
    %v8554 = vld [vmem:[#allocation3 + $0x8d] sm:$0xff]
    %v8555 = vld [vmem:[#allocation3 + $0x95] sm:$0xff]
    %v8556 = vld [vmem:[#allocation3 + $0x9d] sm:$0xff]
    %v8557 = vld [vmem:[#allocation3 + $0xa5] sm:$0xff]
    %v8558 = vld [vmem:[#allocation3 + $0xad] sm:$0xff]
    %v8559 = vld [vmem:[#allocation3 + $0xb5] sm:$0xff]
    %v8560 = vld [vmem:[#allocation3 + $0xbd] sm:$0xff]
    %v8561 = vld [vmem:[#allocation3 + $0xc5] sm:$0x3]
    %s8562 = scalar_lea.vmem %s4, 224
    %v8563 = vld [vmem:[%s8562] sm:$0xff]
    %v8564 = vld [vmem:[%s8562 + $0x8] sm:$0xff]
    %v8565 = vld [vmem:[%s8562 + $0x10] sm:$0xff]
    %v8566 = vld [vmem:[%s8562 + $0x18] sm:$0xff]
    %v8568 = vsel %vm5857, %v8539, 0
    %v8571 = vsel %vm5857, %v8540, 0
    %v8574 = vsel %vm5857, %v8541, 0
    %v8577 = vsel %vm5857, %v8542, 0
    %v8580 = vsel %vm5857, %v8543, 0
    %v8583 = vsel %vm5857, %v8544, 0
    %v8586 = vsel %vm5857, %v8545, 0
    %v8589 = vsel %vm5857, %v8546, 0
    %v8592 = vsel %vm5857, %v8547, 0
    %v8595 = vsel %vm5857, %v8548, 0
    %v8598 = vsel %vm5857, %v8549, 0
    %v8601 = vsel %vm5857, %v8550, 0
    %v8604 = vsel %vm5857, %v8551, 0
    %v8607 = vsel %vm5857, %v8552, 0
    %v8610 = vsel %vm5857, %v8553, 0
    %v8613 = vsel %vm5857, %v8554, 0
    %v8616 = vsel %vm5857, %v8555, 0
    %v8619 = vsel %vm5857, %v8556, 0
    %v8622 = vsel %vm5857, %v8557, 0
    %v8625 = vsel %vm5857, %v8558, 0
    %v8628 = vsel %vm5857, %v8559, 0
    %v8631 = vsel %vm5857, %v8560, 0
    %v8634 = vsel %vm5857, %v8561, 0
    %8636 = vmatpush.msra.mxu0 0.0
    %8637 = vmatpush.msra.mxu0 0.0
    %8638 = vmatpush.msra.mxu0 0.0
    %8639 = vmatpush.msra.mxu0 0.0
    %8640 = vmatpush.msra.mxu0 0.0
    %8641 = vmatpush.msra.mxu0 0.0
    %8642 = vmatpush.msra.mxu0 0.0
    %8643 = vmatpush.msra.mxu0 0.0
    %8644 = vmatpush.msra.mxu0 0.0
    %8645 = vmatpush.msra.mxu0 0.0
    %8646 = vmatpush.msra.mxu0 0.0
    %8647 = vmatpush.msra.mxu0 0.0
    %8648 = vmatpush.msra.mxu0 %v8566
    %8649 = vmatpush.msra.mxu0 %v8565
    %8650 = vmatpush.msra.mxu0 %v8564
    %8651 = vmatpush.msra.mxu0 %v8563
    %8652 = vmatmul.f32.gmra.mxu0 %v8568
    %v8653 = vpop.f32.mrf.mxu0
    %v8654 = vadd.f32 0.0, %v8653
    %8655 = vmatmul.f32.gmra.mxu0 %v8571
    %v8656 = vpop.f32.mrf.mxu0
    %v8657 = vadd.f32 0.0, %v8656
    %8658 = vmatmul.f32.gmra.mxu0 %v8574
    %v8659 = vpop.f32.mrf.mxu0
    %v8660 = vadd.f32 0.0, %v8659
    %8661 = vmatmul.f32.gmra.mxu0 %v8577
    %v8662 = vpop.f32.mrf.mxu0
    %v8663 = vadd.f32 0.0, %v8662
    %8664 = vmatmul.f32.gmra.mxu0 %v8580
    %v8665 = vpop.f32.mrf.mxu0
    %v8666 = vadd.f32 0.0, %v8665
    %8667 = vmatmul.f32.gmra.mxu0 %v8583
    %v8668 = vpop.f32.mrf.mxu0
    %v8669 = vadd.f32 0.0, %v8668
    %8670 = vmatmul.f32.gmra.mxu0 %v8586
    %v8671 = vpop.f32.mrf.mxu0
    %v8672 = vadd.f32 0.0, %v8671
    %8673 = vmatmul.f32.gmra.mxu0 %v8589
    %v8674 = vpop.f32.mrf.mxu0
    %v8675 = vadd.f32 0.0, %v8674
    %8676 = vmatmul.f32.gmra.mxu0 %v8592
    %v8677 = vpop.f32.mrf.mxu0
    %v8678 = vadd.f32 0.0, %v8677
    %8679 = vmatmul.f32.gmra.mxu0 %v8595
    %v8680 = vpop.f32.mrf.mxu0
    %v8681 = vadd.f32 0.0, %v8680
    %8682 = vmatmul.f32.gmra.mxu0 %v8598
    %v8683 = vpop.f32.mrf.mxu0
    %v8684 = vadd.f32 0.0, %v8683
    %8685 = vmatmul.f32.gmra.mxu0 %v8601
    %v8686 = vpop.f32.mrf.mxu0
    %v8687 = vadd.f32 0.0, %v8686
    %8688 = vmatmul.f32.gmra.mxu0 %v8604
    %v8689 = vpop.f32.mrf.mxu0
    %v8690 = vadd.f32 0.0, %v8689
    %8691 = vmatmul.f32.gmra.mxu0 %v8607
    %v8692 = vpop.f32.mrf.mxu0
    %v8693 = vadd.f32 0.0, %v8692
    %8694 = vmatmul.f32.gmra.mxu0 %v8610
    %v8695 = vpop.f32.mrf.mxu0
    %v8696 = vadd.f32 0.0, %v8695
    %8697 = vmatmul.f32.gmra.mxu0 %v8613
    %v8698 = vpop.f32.mrf.mxu0
    %v8699 = vadd.f32 0.0, %v8698
    %8700 = vmatmul.f32.gmra.mxu0 %v8616
    %v8701 = vpop.f32.mrf.mxu0
    %v8702 = vadd.f32 0.0, %v8701
    %8703 = vmatmul.f32.gmra.mxu0 %v8619
    %v8704 = vpop.f32.mrf.mxu0
    %v8705 = vadd.f32 0.0, %v8704
    %8706 = vmatmul.f32.gmra.mxu0 %v8622
    %v8707 = vpop.f32.mrf.mxu0
    %v8708 = vadd.f32 0.0, %v8707
    %8709 = vmatmul.f32.gmra.mxu0 %v8625
    %v8710 = vpop.f32.mrf.mxu0
    %v8711 = vadd.f32 0.0, %v8710
    %8712 = vmatmul.f32.gmra.mxu0 %v8628
    %v8713 = vpop.f32.mrf.mxu0
    %v8714 = vadd.f32 0.0, %v8713
    %8715 = vmatmul.f32.gmra.mxu0 %v8631
    %v8716 = vpop.f32.mrf.mxu0
    %v8717 = vadd.f32 0.0, %v8716
    %8718 = vmatmul.f32.gmra.mxu0 %v8634
    %v8719 = vpop.f32.mrf.mxu0
    %v8720 = vadd.f32 0.0, %v8719
    %8721 = vdwg.mxu0
    %v8722 = vadd.f32 %v8516, %v8654
    %v8723 = vadd.f32 %v8517, %v8657
    %v8724 = vadd.f32 %v8518, %v8660
    %v8725 = vadd.f32 %v8519, %v8663
    %v8726 = vadd.f32 %v8520, %v8666
    %v8727 = vadd.f32 %v8521, %v8669
    %v8728 = vadd.f32 %v8522, %v8672
    %v8729 = vadd.f32 %v8523, %v8675
    %v8730 = vadd.f32 %v8524, %v8678
    %v8731 = vadd.f32 %v8525, %v8681
    %v8732 = vadd.f32 %v8526, %v8684
    %v8733 = vadd.f32 %v8527, %v8687
    %v8734 = vadd.f32 %v8528, %v8690
    %v8735 = vadd.f32 %v8529, %v8693
    %v8736 = vadd.f32 %v8530, %v8696
    %v8737 = vadd.f32 %v8531, %v8699
    %v8738 = vadd.f32 %v8532, %v8702
    %v8739 = vadd.f32 %v8533, %v8705
    %v8740 = vadd.f32 %v8534, %v8708
    %v8741 = vadd.f32 %v8535, %v8711
    %v8742 = vadd.f32 %v8536, %v8714
    %v8743 = vadd.f32 %v8537, %v8717
    %v8744 = vadd.f32 %v8538, %v8720
    %v8745 = vld [vmem:[#allocation3 + $0x16] sm:$0xff]
    %v8746 = vld [vmem:[#allocation3 + $0x1e] sm:$0xff]
    %v8747 = vld [vmem:[#allocation3 + $0x26] sm:$0xff]
    %v8748 = vld [vmem:[#allocation3 + $0x2e] sm:$0xff]
    %v8749 = vld [vmem:[#allocation3 + $0x36] sm:$0xff]
    %v8750 = vld [vmem:[#allocation3 + $0x3e] sm:$0xff]
    %v8751 = vld [vmem:[#allocation3 + $0x46] sm:$0xff]
    %v8752 = vld [vmem:[#allocation3 + $0x4e] sm:$0xff]
    %v8753 = vld [vmem:[#allocation3 + $0x56] sm:$0xff]
    %v8754 = vld [vmem:[#allocation3 + $0x5e] sm:$0xff]
    %v8755 = vld [vmem:[#allocation3 + $0x66] sm:$0xff]
    %v8756 = vld [vmem:[#allocation3 + $0x6e] sm:$0xff]
    %v8757 = vld [vmem:[#allocation3 + $0x76] sm:$0xff]
    %v8758 = vld [vmem:[#allocation3 + $0x7e] sm:$0xff]
    %v8759 = vld [vmem:[#allocation3 + $0x86] sm:$0xff]
    %v8760 = vld [vmem:[#allocation3 + $0x8e] sm:$0xff]
    %v8761 = vld [vmem:[#allocation3 + $0x96] sm:$0xff]
    %v8762 = vld [vmem:[#allocation3 + $0x9e] sm:$0xff]
    %v8763 = vld [vmem:[#allocation3 + $0xa6] sm:$0xff]
    %v8764 = vld [vmem:[#allocation3 + $0xae] sm:$0xff]
    %v8765 = vld [vmem:[#allocation3 + $0xb6] sm:$0xff]
    %v8766 = vld [vmem:[#allocation3 + $0xbe] sm:$0xff]
    %v8767 = vld [vmem:[#allocation3 + $0xc6] sm:$0x3]
    %s8768 = scalar_lea.vmem %s4, 256
    %v8769 = vld [vmem:[%s8768] sm:$0xff]
    %v8770 = vld [vmem:[%s8768 + $0x8] sm:$0xff]
    %v8771 = vld [vmem:[%s8768 + $0x10] sm:$0xff]
    %v8772 = vld [vmem:[%s8768 + $0x18] sm:$0xff]
    %v8774 = vsel %vm5857, %v8745, 0
    %v8777 = vsel %vm5857, %v8746, 0
    %v8780 = vsel %vm5857, %v8747, 0
    %v8783 = vsel %vm5857, %v8748, 0
    %v8786 = vsel %vm5857, %v8749, 0
    %v8789 = vsel %vm5857, %v8750, 0
    %v8792 = vsel %vm5857, %v8751, 0
    %v8795 = vsel %vm5857, %v8752, 0
    %v8798 = vsel %vm5857, %v8753, 0
    %v8801 = vsel %vm5857, %v8754, 0
    %v8804 = vsel %vm5857, %v8755, 0
    %v8807 = vsel %vm5857, %v8756, 0
    %v8810 = vsel %vm5857, %v8757, 0
    %v8813 = vsel %vm5857, %v8758, 0
    %v8816 = vsel %vm5857, %v8759, 0
    %v8819 = vsel %vm5857, %v8760, 0
    %v8822 = vsel %vm5857, %v8761, 0
    %v8825 = vsel %vm5857, %v8762, 0
    %v8828 = vsel %vm5857, %v8763, 0
    %v8831 = vsel %vm5857, %v8764, 0
    %v8834 = vsel %vm5857, %v8765, 0
    %v8837 = vsel %vm5857, %v8766, 0
    %v8840 = vsel %vm5857, %v8767, 0
    %8842 = vmatpush.msra.mxu0 0.0
    %8843 = vmatpush.msra.mxu0 0.0
    %8844 = vmatpush.msra.mxu0 0.0
    %8845 = vmatpush.msra.mxu0 0.0
    %8846 = vmatpush.msra.mxu0 0.0
    %8847 = vmatpush.msra.mxu0 0.0
    %8848 = vmatpush.msra.mxu0 0.0
    %8849 = vmatpush.msra.mxu0 0.0
    %8850 = vmatpush.msra.mxu0 0.0
    %8851 = vmatpush.msra.mxu0 0.0
    %8852 = vmatpush.msra.mxu0 0.0
    %8853 = vmatpush.msra.mxu0 0.0
    %8854 = vmatpush.msra.mxu0 %v8772
    %8855 = vmatpush.msra.mxu0 %v8771
    %8856 = vmatpush.msra.mxu0 %v8770
    %8857 = vmatpush.msra.mxu0 %v8769
    %8858 = vmatmul.f32.gmra.mxu0 %v8774
    %v8859 = vpop.f32.mrf.mxu0
    %v8860 = vadd.f32 0.0, %v8859
    %8861 = vmatmul.f32.gmra.mxu0 %v8777
    %v8862 = vpop.f32.mrf.mxu0
    %v8863 = vadd.f32 0.0, %v8862
    %8864 = vmatmul.f32.gmra.mxu0 %v8780
    %v8865 = vpop.f32.mrf.mxu0
    %v8866 = vadd.f32 0.0, %v8865
    %8867 = vmatmul.f32.gmra.mxu0 %v8783
    %v8868 = vpop.f32.mrf.mxu0
    %v8869 = vadd.f32 0.0, %v8868
    %8870 = vmatmul.f32.gmra.mxu0 %v8786
    %v8871 = vpop.f32.mrf.mxu0
    %v8872 = vadd.f32 0.0, %v8871
    %8873 = vmatmul.f32.gmra.mxu0 %v8789
    %v8874 = vpop.f32.mrf.mxu0
    %v8875 = vadd.f32 0.0, %v8874
    %8876 = vmatmul.f32.gmra.mxu0 %v8792
    %v8877 = vpop.f32.mrf.mxu0
    %v8878 = vadd.f32 0.0, %v8877
    %8879 = vmatmul.f32.gmra.mxu0 %v8795
    %v8880 = vpop.f32.mrf.mxu0
    %v8881 = vadd.f32 0.0, %v8880
    %8882 = vmatmul.f32.gmra.mxu0 %v8798
    %v8883 = vpop.f32.mrf.mxu0
    %v8884 = vadd.f32 0.0, %v8883
    %8885 = vmatmul.f32.gmra.mxu0 %v8801
    %v8886 = vpop.f32.mrf.mxu0
    %v8887 = vadd.f32 0.0, %v8886
    %8888 = vmatmul.f32.gmra.mxu0 %v8804
    %v8889 = vpop.f32.mrf.mxu0
    %v8890 = vadd.f32 0.0, %v8889
    %8891 = vmatmul.f32.gmra.mxu0 %v8807
    %v8892 = vpop.f32.mrf.mxu0
    %v8893 = vadd.f32 0.0, %v8892
    %8894 = vmatmul.f32.gmra.mxu0 %v8810
    %v8895 = vpop.f32.mrf.mxu0
    %v8896 = vadd.f32 0.0, %v8895
    %8897 = vmatmul.f32.gmra.mxu0 %v8813
    %v8898 = vpop.f32.mrf.mxu0
    %v8899 = vadd.f32 0.0, %v8898
    %8900 = vmatmul.f32.gmra.mxu0 %v8816
    %v8901 = vpop.f32.mrf.mxu0
    %v8902 = vadd.f32 0.0, %v8901
    %8903 = vmatmul.f32.gmra.mxu0 %v8819
    %v8904 = vpop.f32.mrf.mxu0
    %v8905 = vadd.f32 0.0, %v8904
    %8906 = vmatmul.f32.gmra.mxu0 %v8822
    %v8907 = vpop.f32.mrf.mxu0
    %v8908 = vadd.f32 0.0, %v8907
    %8909 = vmatmul.f32.gmra.mxu0 %v8825
    %v8910 = vpop.f32.mrf.mxu0
    %v8911 = vadd.f32 0.0, %v8910
    %8912 = vmatmul.f32.gmra.mxu0 %v8828
    %v8913 = vpop.f32.mrf.mxu0
    %v8914 = vadd.f32 0.0, %v8913
    %8915 = vmatmul.f32.gmra.mxu0 %v8831
    %v8916 = vpop.f32.mrf.mxu0
    %v8917 = vadd.f32 0.0, %v8916
    %8918 = vmatmul.f32.gmra.mxu0 %v8834
    %v8919 = vpop.f32.mrf.mxu0
    %v8920 = vadd.f32 0.0, %v8919
    %8921 = vmatmul.f32.gmra.mxu0 %v8837
    %v8922 = vpop.f32.mrf.mxu0
    %v8923 = vadd.f32 0.0, %v8922
    %8924 = vmatmul.f32.gmra.mxu0 %v8840
    %v8925 = vpop.f32.mrf.mxu0
    %v8926 = vadd.f32 0.0, %v8925
    %8927 = vdwg.mxu0
    %v8928 = vadd.f32 %v8722, %v8860
    %v8929 = vadd.f32 %v8723, %v8863
    %v8930 = vadd.f32 %v8724, %v8866
    %v8931 = vadd.f32 %v8725, %v8869
    %v8932 = vadd.f32 %v8726, %v8872
    %v8933 = vadd.f32 %v8727, %v8875
    %v8934 = vadd.f32 %v8728, %v8878
    %v8935 = vadd.f32 %v8729, %v8881
    %v8936 = vadd.f32 %v8730, %v8884
    %v8937 = vadd.f32 %v8731, %v8887
    %v8938 = vadd.f32 %v8732, %v8890
    %v8939 = vadd.f32 %v8733, %v8893
    %v8940 = vadd.f32 %v8734, %v8896
    %v8941 = vadd.f32 %v8735, %v8899
    %v8942 = vadd.f32 %v8736, %v8902
    %v8943 = vadd.f32 %v8737, %v8905
    %v8944 = vadd.f32 %v8738, %v8908
    %v8945 = vadd.f32 %v8739, %v8911
    %v8946 = vadd.f32 %v8740, %v8914
    %v8947 = vadd.f32 %v8741, %v8917
    %v8948 = vadd.f32 %v8742, %v8920
    %v8949 = vadd.f32 %v8743, %v8923
    %v8950 = vadd.f32 %v8744, %v8926
    %v8951 = vld [vmem:[%s5] sm:$0x1]
    %v8953 = vperm.slane %v8951, 0
    %v8955 = vadd.f32 %v8928, %v8953
    %v8956 = vadd.f32 %v8929, %v8953
    %v8957 = vadd.f32 %v8930, %v8953
    %v8958 = vadd.f32 %v8931, %v8953
    %v8959 = vadd.f32 %v8932, %v8953
    %v8960 = vadd.f32 %v8933, %v8953
    %v8961 = vadd.f32 %v8934, %v8953
    %v8962 = vadd.f32 %v8935, %v8953
    %v8963 = vadd.f32 %v8936, %v8953
    %v8964 = vadd.f32 %v8937, %v8953
    %v8965 = vadd.f32 %v8938, %v8953
    %v8966 = vadd.f32 %v8939, %v8953
    %v8967 = vadd.f32 %v8940, %v8953
    %v8968 = vadd.f32 %v8941, %v8953
    %v8969 = vadd.f32 %v8942, %v8953
    %v8970 = vadd.f32 %v8943, %v8953
    %v8971 = vadd.f32 %v8944, %v8953
    %v8972 = vadd.f32 %v8945, %v8953
    %v8973 = vadd.f32 %v8946, %v8953
    %v8974 = vadd.f32 %v8947, %v8953
    %v8975 = vadd.f32 %v8948, %v8953
    %v8976 = vadd.f32 %v8949, %v8953
    %v8977 = vadd.f32 %v8950, %v8953
    %v8978 = vmax.f32 %v8955, 0.0
    %v8979 = vmax.f32 %v8956, 0.0
    %v8980 = vmax.f32 %v8957, 0.0
    %v8981 = vmax.f32 %v8958, 0.0
    %v8982 = vmax.f32 %v8959, 0.0
    %v8983 = vmax.f32 %v8960, 0.0
    %v8984 = vmax.f32 %v8961, 0.0
    %v8985 = vmax.f32 %v8962, 0.0
    %v8986 = vmax.f32 %v8963, 0.0
    %v8987 = vmax.f32 %v8964, 0.0
    %v8988 = vmax.f32 %v8965, 0.0
    %v8989 = vmax.f32 %v8966, 0.0
    %v8990 = vmax.f32 %v8967, 0.0
    %v8991 = vmax.f32 %v8968, 0.0
    %v8992 = vmax.f32 %v8969, 0.0
    %v8993 = vmax.f32 %v8970, 0.0
    %v8994 = vmax.f32 %v8971, 0.0
    %v8995 = vmax.f32 %v8972, 0.0
    %v8996 = vmax.f32 %v8973, 0.0
    %v8997 = vmax.f32 %v8974, 0.0
    %v8998 = vmax.f32 %v8975, 0.0
    %v8999 = vmax.f32 %v8976, 0.0
    %v9000 = vmax.f32 %v8977, 0.0
    %vm9001 = vcmask 523264
    %9002 = vst.msk [vmem:[#allocation4] sm:$0xff] %vm9001, %v8978
    %9003 = vst.msk [vmem:[#allocation4 + $0x8] sm:$0xff] %vm9001, %v8979
    %9004 = vst.msk [vmem:[#allocation4 + $0x10] sm:$0xff] %vm9001, %v8980
    %9005 = vst.msk [vmem:[#allocation4 + $0x18] sm:$0xff] %vm9001, %v8981
    %9006 = vst.msk [vmem:[#allocation4 + $0x20] sm:$0xff] %vm9001, %v8982
    %9007 = vst.msk [vmem:[#allocation4 + $0x28] sm:$0xff] %vm9001, %v8983
    %9008 = vst.msk [vmem:[#allocation4 + $0x30] sm:$0xff] %vm9001, %v8984
    %9009 = vst.msk [vmem:[#allocation4 + $0x38] sm:$0xff] %vm9001, %v8985
    %9010 = vst.msk [vmem:[#allocation4 + $0x40] sm:$0xff] %vm9001, %v8986
    %9011 = vst.msk [vmem:[#allocation4 + $0x48] sm:$0xff] %vm9001, %v8987
    %9012 = vst.msk [vmem:[#allocation4 + $0x50] sm:$0xff] %vm9001, %v8988
    %9013 = vst.msk [vmem:[#allocation4 + $0x58] sm:$0xff] %vm9001, %v8989
    %9014 = vst.msk [vmem:[#allocation4 + $0x60] sm:$0xff] %vm9001, %v8990
    %9015 = vst.msk [vmem:[#allocation4 + $0x68] sm:$0xff] %vm9001, %v8991
    %9016 = vst.msk [vmem:[#allocation4 + $0x70] sm:$0xff] %vm9001, %v8992
    %9017 = vst.msk [vmem:[#allocation4 + $0x78] sm:$0xff] %vm9001, %v8993
    %9018 = vst.msk [vmem:[#allocation4 + $0x80] sm:$0xff] %vm9001, %v8994
    %9019 = vst.msk [vmem:[#allocation4 + $0x88] sm:$0xff] %vm9001, %v8995
    %9020 = vst.msk [vmem:[#allocation4 + $0x90] sm:$0xff] %vm9001, %v8996
    %9021 = vst.msk [vmem:[#allocation4 + $0x98] sm:$0xff] %vm9001, %v8997
    %9022 = vst.msk [vmem:[#allocation4 + $0xa0] sm:$0xff] %vm9001, %v8998
    %9023 = vst.msk [vmem:[#allocation4 + $0xa8] sm:$0xff] %vm9001, %v8999
    %vm9024 = vcmask 517120
    %9025 = vst.msk [vmem:[#allocation4 + $0xb0] sm:$0x3] %vm9024, %v9000
    %v9026 = vld [vmem:[#allocation4] sm:$0xff]
    %v9027 = vld [vmem:[#allocation4 + $0x8] sm:$0xff]
    %v9028 = vld [vmem:[#allocation4 + $0x10] sm:$0xff]
    %v9029 = vld [vmem:[#allocation4 + $0x18] sm:$0xff]
    %v9030 = vld [vmem:[#allocation4 + $0x20] sm:$0xff]
    %v9031 = vld [vmem:[#allocation4 + $0x28] sm:$0xff]
    %v9032 = vld [vmem:[#allocation4 + $0x30] sm:$0xff]
    %v9033 = vld [vmem:[#allocation4 + $0x38] sm:$0xff]
    %v9034 = vld [vmem:[#allocation4 + $0x40] sm:$0xff]
    %v9035 = vld [vmem:[#allocation4 + $0x48] sm:$0xff]
    %v9036 = vld [vmem:[#allocation4 + $0x50] sm:$0xff]
    %v9037 = vld [vmem:[#allocation4 + $0x58] sm:$0xff]
    %v9038 = vld [vmem:[#allocation4 + $0x60] sm:$0xff]
    %v9039 = vld [vmem:[#allocation4 + $0x68] sm:$0xff]
    %v9040 = vld [vmem:[#allocation4 + $0x70] sm:$0xff]
    %v9041 = vld [vmem:[#allocation4 + $0x78] sm:$0xff]
    %v9042 = vld [vmem:[#allocation4 + $0x80] sm:$0xff]
    %v9043 = vld [vmem:[#allocation4 + $0x88] sm:$0xff]
    %v9044 = vld [vmem:[#allocation4 + $0x90] sm:$0xff]
    %v9045 = vld [vmem:[#allocation4 + $0x98] sm:$0xff]
    %v9046 = vld [vmem:[#allocation4 + $0xa0] sm:$0x7f]
    %v9047 = vld [vmem:[#allocation4 + $0x1] sm:$0xff]
    %v9048 = vld [vmem:[#allocation4 + $0x9] sm:$0xff]
    %v9049 = vld [vmem:[#allocation4 + $0x11] sm:$0xff]
    %v9050 = vld [vmem:[#allocation4 + $0x19] sm:$0xff]
    %v9051 = vld [vmem:[#allocation4 + $0x21] sm:$0xff]
    %v9052 = vld [vmem:[#allocation4 + $0x29] sm:$0xff]
    %v9053 = vld [vmem:[#allocation4 + $0x31] sm:$0xff]
    %v9054 = vld [vmem:[#allocation4 + $0x39] sm:$0xff]
    %v9055 = vld [vmem:[#allocation4 + $0x41] sm:$0xff]
    %v9056 = vld [vmem:[#allocation4 + $0x49] sm:$0xff]
    %v9057 = vld [vmem:[#allocation4 + $0x51] sm:$0xff]
    %v9058 = vld [vmem:[#allocation4 + $0x59] sm:$0xff]
    %v9059 = vld [vmem:[#allocation4 + $0x61] sm:$0xff]
    %v9060 = vld [vmem:[#allocation4 + $0x69] sm:$0xff]
    %v9061 = vld [vmem:[#allocation4 + $0x71] sm:$0xff]
    %v9062 = vld [vmem:[#allocation4 + $0x79] sm:$0xff]
    %v9063 = vld [vmem:[#allocation4 + $0x81] sm:$0xff]
    %v9064 = vld [vmem:[#allocation4 + $0x89] sm:$0xff]
    %v9065 = vld [vmem:[#allocation4 + $0x91] sm:$0xff]
    %v9066 = vld [vmem:[#allocation4 + $0x99] sm:$0xff]
    %v9067 = vld [vmem:[#allocation4 + $0xa1] sm:$0x7f]
    %v9068 = vmax.f32 %v9026, %v9047
    %v9069 = vmax.f32 %v9027, %v9048
    %v9070 = vmax.f32 %v9028, %v9049
    %v9071 = vmax.f32 %v9029, %v9050
    %v9072 = vmax.f32 %v9030, %v9051
    %v9073 = vmax.f32 %v9031, %v9052
    %v9074 = vmax.f32 %v9032, %v9053
    %v9075 = vmax.f32 %v9033, %v9054
    %v9076 = vmax.f32 %v9034, %v9055
    %v9077 = vmax.f32 %v9035, %v9056
    %v9078 = vmax.f32 %v9036, %v9057
    %v9079 = vmax.f32 %v9037, %v9058
    %v9080 = vmax.f32 %v9038, %v9059
    %v9081 = vmax.f32 %v9039, %v9060
    %v9082 = vmax.f32 %v9040, %v9061
    %v9083 = vmax.f32 %v9041, %v9062
    %v9084 = vmax.f32 %v9042, %v9063
    %v9085 = vmax.f32 %v9043, %v9064
    %v9086 = vmax.f32 %v9044, %v9065
    %v9087 = vmax.f32 %v9045, %v9066
    %v9088 = vmax.f32 %v9046, %v9067
    %v9089 = vld [vmem:[#allocation4 + $0xa] sm:$0xff]
    %v9090 = vld [vmem:[#allocation4 + $0x12] sm:$0xff]
    %v9091 = vld [vmem:[#allocation4 + $0x1a] sm:$0xff]
    %v9092 = vld [vmem:[#allocation4 + $0x22] sm:$0xff]
    %v9093 = vld [vmem:[#allocation4 + $0x2a] sm:$0xff]
    %v9094 = vld [vmem:[#allocation4 + $0x32] sm:$0xff]
    %v9095 = vld [vmem:[#allocation4 + $0x3a] sm:$0xff]
    %v9096 = vld [vmem:[#allocation4 + $0x42] sm:$0xff]
    %v9097 = vld [vmem:[#allocation4 + $0x4a] sm:$0xff]
    %v9098 = vld [vmem:[#allocation4 + $0x52] sm:$0xff]
    %v9099 = vld [vmem:[#allocation4 + $0x5a] sm:$0xff]
    %v9100 = vld [vmem:[#allocation4 + $0x62] sm:$0xff]
    %v9101 = vld [vmem:[#allocation4 + $0x6a] sm:$0xff]
    %v9102 = vld [vmem:[#allocation4 + $0x72] sm:$0xff]
    %v9103 = vld [vmem:[#allocation4 + $0x7a] sm:$0xff]
    %v9104 = vld [vmem:[#allocation4 + $0x82] sm:$0xff]
    %v9105 = vld [vmem:[#allocation4 + $0x8a] sm:$0xff]
    %v9106 = vld [vmem:[#allocation4 + $0x92] sm:$0xff]
    %v9107 = vld [vmem:[#allocation4 + $0x9a] sm:$0xff]
    %v9108 = vld [vmem:[#allocation4 + $0xa2] sm:$0xff]
    %v9109 = vld [vmem:[#allocation4 + $0xaa] sm:$0x7f]
    %v9110 = vld [vmem:[#allocation4 + $0xb] sm:$0xff]
    %v9111 = vld [vmem:[#allocation4 + $0x13] sm:$0xff]
    %v9112 = vld [vmem:[#allocation4 + $0x1b] sm:$0xff]
    %v9113 = vld [vmem:[#allocation4 + $0x23] sm:$0xff]
    %v9114 = vld [vmem:[#allocation4 + $0x2b] sm:$0xff]
    %v9115 = vld [vmem:[#allocation4 + $0x33] sm:$0xff]
    %v9116 = vld [vmem:[#allocation4 + $0x3b] sm:$0xff]
    %v9117 = vld [vmem:[#allocation4 + $0x43] sm:$0xff]
    %v9118 = vld [vmem:[#allocation4 + $0x4b] sm:$0xff]
    %v9119 = vld [vmem:[#allocation4 + $0x53] sm:$0xff]
    %v9120 = vld [vmem:[#allocation4 + $0x5b] sm:$0xff]
    %v9121 = vld [vmem:[#allocation4 + $0x63] sm:$0xff]
    %v9122 = vld [vmem:[#allocation4 + $0x6b] sm:$0xff]
    %v9123 = vld [vmem:[#allocation4 + $0x73] sm:$0xff]
    %v9124 = vld [vmem:[#allocation4 + $0x7b] sm:$0xff]
    %v9125 = vld [vmem:[#allocation4 + $0x83] sm:$0xff]
    %v9126 = vld [vmem:[#allocation4 + $0x8b] sm:$0xff]
    %v9127 = vld [vmem:[#allocation4 + $0x93] sm:$0xff]
    %v9128 = vld [vmem:[#allocation4 + $0x9b] sm:$0xff]
    %v9129 = vld [vmem:[#allocation4 + $0xa3] sm:$0xff]
    %v9130 = vld [vmem:[#allocation4 + $0xab] sm:$0x7f]
    %v9131 = vmax.f32 %v9089, %v9110
    %v9132 = vmax.f32 %v9090, %v9111
    %v9133 = vmax.f32 %v9091, %v9112
    %v9134 = vmax.f32 %v9092, %v9113
    %v9135 = vmax.f32 %v9093, %v9114
    %v9136 = vmax.f32 %v9094, %v9115
    %v9137 = vmax.f32 %v9095, %v9116
    %v9138 = vmax.f32 %v9096, %v9117
    %v9139 = vmax.f32 %v9097, %v9118
    %v9140 = vmax.f32 %v9098, %v9119
    %v9141 = vmax.f32 %v9099, %v9120
    %v9142 = vmax.f32 %v9100, %v9121
    %v9143 = vmax.f32 %v9101, %v9122
    %v9144 = vmax.f32 %v9102, %v9123
    %v9145 = vmax.f32 %v9103, %v9124
    %v9146 = vmax.f32 %v9104, %v9125
    %v9147 = vmax.f32 %v9105, %v9126
    %v9148 = vmax.f32 %v9106, %v9127
    %v9149 = vmax.f32 %v9107, %v9128
    %v9150 = vmax.f32 %v9108, %v9129
    %v9151 = vmax.f32 %v9109, %v9130
    %v9152 = vmax.f32 %v9068, %v9131
    %v9153 = vmax.f32 %v9069, %v9132
    %v9154 = vmax.f32 %v9070, %v9133
    %v9155 = vmax.f32 %v9071, %v9134
    %v9156 = vmax.f32 %v9072, %v9135
    %v9157 = vmax.f32 %v9073, %v9136
    %v9158 = vmax.f32 %v9074, %v9137
    %v9159 = vmax.f32 %v9075, %v9138
    %v9160 = vmax.f32 %v9076, %v9139
    %v9161 = vmax.f32 %v9077, %v9140
    %v9162 = vmax.f32 %v9078, %v9141
    %v9163 = vmax.f32 %v9079, %v9142
    %v9164 = vmax.f32 %v9080, %v9143
    %v9165 = vmax.f32 %v9081, %v9144
    %v9166 = vmax.f32 %v9082, %v9145
    %v9167 = vmax.f32 %v9083, %v9146
    %v9168 = vmax.f32 %v9084, %v9147
    %v9169 = vmax.f32 %v9085, %v9148
    %v9170 = vmax.f32 %v9086, %v9149
    %v9171 = vmax.f32 %v9087, %v9150
    %v9172 = vmax.f32 %v9088, %v9151
    %v9173 = vld [vmem:[%s6] sm:$0xff]
    %v9174 = vld [vmem:[%s6 + $0x8] sm:$0xff]
    %v9175 = vld [vmem:[%s6 + $0x10] sm:$0xff]
    %v9176 = vld [vmem:[%s6 + $0x18] sm:$0xff]
    %v9177 = vld [vmem:[%s6 + $0x20] sm:$0xff]
    %v9178 = vld [vmem:[%s6 + $0x28] sm:$0xff]
    %v9179 = vld [vmem:[%s6 + $0x30] sm:$0xff]
    %v9180 = vld [vmem:[%s6 + $0x38] sm:$0xff]
    %v9181 = vld [vmem:[%s6 + $0x40] sm:$0xff]
    %v9182 = vld [vmem:[%s6 + $0x48] sm:$0xff]
    %v9183 = vld [vmem:[%s6 + $0x50] sm:$0xff]
    %v9184 = vld [vmem:[%s6 + $0x58] sm:$0xff]
    %v9185 = vld [vmem:[%s6 + $0x60] sm:$0xff]
    %v9186 = vld [vmem:[%s6 + $0x68] sm:$0xff]
    %v9187 = vld [vmem:[%s6 + $0x70] sm:$0xff]
    %v9188 = vld [vmem:[%s6 + $0x78] sm:$0xff]
    %v9189 = vld [vmem:[%s6 + $0x80] sm:$0xff]
    %v9190 = vld [vmem:[%s6 + $0x88] sm:$0xff]
    %vm9191 = vcmask 318464
    %v9193 = vsel %vm9191, %v9174, 0
    %v9196 = vsel %vm9191, %v9176, 0
    %v9199 = vsel %vm9191, %v9178, 0
    %v9202 = vsel %vm9191, %v9180, 0
    %v9205 = vsel %vm9191, %v9182, 0
    %v9208 = vsel %vm9191, %v9184, 0
    %v9211 = vsel %vm9191, %v9186, 0
    %v9214 = vsel %vm9191, %v9188, 0
    %v9217 = vsel %vm9191, %v9190, 0
    %v9220 = vsel %vm6655, %v9172, 0
    %9222 = vmatpush.msra.mxu0 %v9167
    %9223 = vmatpush.msra.mxu0 %v9166
    %9224 = vmatpush.msra.mxu0 %v9165
    %9225 = vmatpush.msra.mxu0 %v9164
    %9226 = vmatpush.msra.mxu0 %v9163
    %9227 = vmatpush.msra.mxu0 %v9162
    %9228 = vmatpush.msra.mxu0 %v9161
    %9229 = vmatpush.msra.mxu0 %v9160
    %9230 = vmatpush.msra.mxu0 %v9159
    %9231 = vmatpush.msra.mxu0 %v9158
    %9232 = vmatpush.msra.mxu0 %v9157
    %9233 = vmatpush.msra.mxu0 %v9156
    %9234 = vmatpush.msra.mxu0 %v9155
    %9235 = vmatpush.msra.mxu0 %v9154
    %9236 = vmatpush.msra.mxu0 %v9153
    %9237 = vmatpush.msra.mxu0 %v9152
    %9238 = vmatmul.f32.gmra.mxu0 %v9173
    %v9239 = vpop.f32.mrf.mxu0
    %v9240 = vadd.f32 0.0, %v9239
    %9241 = vmatmul.f32.gmra.mxu0 %v9175
    %v9242 = vpop.f32.mrf.mxu0
    %v9243 = vadd.f32 0.0, %v9242
    %9244 = vmatmul.f32.gmra.mxu0 %v9177
    %v9245 = vpop.f32.mrf.mxu0
    %v9246 = vadd.f32 0.0, %v9245
    %9247 = vmatmul.f32.gmra.mxu0 %v9179
    %v9248 = vpop.f32.mrf.mxu0
    %v9249 = vadd.f32 0.0, %v9248
    %9250 = vmatmul.f32.gmra.mxu0 %v9181
    %v9251 = vpop.f32.mrf.mxu0
    %v9252 = vadd.f32 0.0, %v9251
    %9253 = vmatmul.f32.gmra.mxu0 %v9183
    %v9254 = vpop.f32.mrf.mxu0
    %v9255 = vadd.f32 0.0, %v9254
    %9256 = vmatmul.f32.gmra.mxu0 %v9185
    %v9257 = vpop.f32.mrf.mxu0
    %v9258 = vadd.f32 0.0, %v9257
    %9259 = vmatmul.f32.gmra.mxu0 %v9187
    %v9260 = vpop.f32.mrf.mxu0
    %v9261 = vadd.f32 0.0, %v9260
    %9262 = vmatmul.f32.gmra.mxu0 %v9189
    %v9263 = vpop.f32.mrf.mxu0
    %v9264 = vadd.f32 0.0, %v9263
    %9265 = vdwg.mxu0
    %9266 = vmatpush.msra.mxu0 0.0
    %9267 = vmatpush.msra.mxu0 0.0
    %9268 = vmatpush.msra.mxu0 0.0
    %9269 = vmatpush.msra.mxu0 0.0
    %9270 = vmatpush.msra.mxu0 0.0
    %9271 = vmatpush.msra.mxu0 0.0
    %9272 = vmatpush.msra.mxu0 0.0
    %9273 = vmatpush.msra.mxu0 0.0
    %9274 = vmatpush.msra.mxu0 0.0
    %9275 = vmatpush.msra.mxu0 0.0
    %9276 = vmatpush.msra.mxu0 0.0
    %9277 = vmatpush.msra.mxu0 %v9220
    %9278 = vmatpush.msra.mxu0 %v9171
    %9279 = vmatpush.msra.mxu0 %v9170
    %9280 = vmatpush.msra.mxu0 %v9169
    %9281 = vmatpush.msra.mxu0 %v9168
    %9282 = vmatmul.f32.gmra.mxu0 %v9193
    %v9283 = vpop.f32.mrf.mxu0
    %v9284 = vadd.f32 %v9240, %v9283
    %9285 = vmatmul.f32.gmra.mxu0 %v9196
    %v9286 = vpop.f32.mrf.mxu0
    %v9287 = vadd.f32 %v9243, %v9286
    %9288 = vmatmul.f32.gmra.mxu0 %v9199
    %v9289 = vpop.f32.mrf.mxu0
    %v9290 = vadd.f32 %v9246, %v9289
    %9291 = vmatmul.f32.gmra.mxu0 %v9202
    %v9292 = vpop.f32.mrf.mxu0
    %v9293 = vadd.f32 %v9249, %v9292
    %9294 = vmatmul.f32.gmra.mxu0 %v9205
    %v9295 = vpop.f32.mrf.mxu0
    %v9296 = vadd.f32 %v9252, %v9295
    %9297 = vmatmul.f32.gmra.mxu0 %v9208
    %v9298 = vpop.f32.mrf.mxu0
    %v9299 = vadd.f32 %v9255, %v9298
    %9300 = vmatmul.f32.gmra.mxu0 %v9211
    %v9301 = vpop.f32.mrf.mxu0
    %v9302 = vadd.f32 %v9258, %v9301
    %9303 = vmatmul.f32.gmra.mxu0 %v9214
    %v9304 = vpop.f32.mrf.mxu0
    %v9305 = vadd.f32 %v9261, %v9304
    %9306 = vmatmul.f32.gmra.mxu0 %v9217
    %v9307 = vpop.f32.mrf.mxu0
    %v9308 = vadd.f32 %v9264, %v9307
    %9309 = vdwg.mxu0
    %9310 = vst.msk [vmem:[#allocation5] sm:$0xff] %vm9001, %v9284
    %9311 = vst.msk [vmem:[#allocation5 + $0x8] sm:$0xff] %vm9001, %v9287
    %9312 = vst.msk [vmem:[#allocation5 + $0x10] sm:$0xff] %vm9001, %v9290
    %9313 = vst.msk [vmem:[#allocation5 + $0x18] sm:$0xff] %vm9001, %v9293
    %9314 = vst.msk [vmem:[#allocation5 + $0x20] sm:$0xff] %vm9001, %v9296
    %9315 = vst.msk [vmem:[#allocation5 + $0x28] sm:$0xff] %vm9001, %v9299
    %9316 = vst.msk [vmem:[#allocation5 + $0x30] sm:$0xff] %vm9001, %v9302
    %9317 = vst.msk [vmem:[#allocation5 + $0x38] sm:$0xff] %vm9001, %v9305
    %9318 = vst.msk [vmem:[#allocation5 + $0x40] sm:$0xff] %vm9001, %v9308
    %v9319 = vld [vmem:[#allocation5] sm:$0xff]
    %v9320 = vld [vmem:[#allocation5 + $0x8] sm:$0xff]
    %v9321 = vld [vmem:[#allocation5 + $0x10] sm:$0xff]
    %v9322 = vld [vmem:[#allocation5 + $0x18] sm:$0xff]
    %v9323 = vld [vmem:[#allocation5 + $0x20] sm:$0xff]
    %v9324 = vld [vmem:[#allocation5 + $0x28] sm:$0xff]
    %v9325 = vld [vmem:[#allocation5 + $0x30] sm:$0xff]
    %v9326 = vld [vmem:[#allocation5 + $0x38] sm:$0x3]
    %v9327 = vld [vmem:[#allocation9] sm:$0xff]
    %v9328 = vld [vmem:[#allocation9 + $0x8] sm:$0xff]
    %v9329 = vld [vmem:[#allocation9 + $0x10] sm:$0xff]
    %v9330 = vld [vmem:[#allocation9 + $0x18] sm:$0xff]
    %v9331 = vld [vmem:[#allocation9 + $0x20] sm:$0xff]
    %v9332 = vld [vmem:[#allocation9 + $0x28] sm:$0xff]
    %v9333 = vld [vmem:[#allocation9 + $0x30] sm:$0xff]
    %v9334 = vld [vmem:[#allocation9 + $0x38] sm:$0xff]
    %v9335 = vld [vmem:[#allocation5 + $0x1] sm:$0xff]
    %v9336 = vld [vmem:[#allocation5 + $0x9] sm:$0xff]
    %v9337 = vld [vmem:[#allocation5 + $0x11] sm:$0xff]
    %v9338 = vld [vmem:[#allocation5 + $0x19] sm:$0xff]
    %v9339 = vld [vmem:[#allocation5 + $0x21] sm:$0xff]
    %v9340 = vld [vmem:[#allocation5 + $0x29] sm:$0xff]
    %v9341 = vld [vmem:[#allocation5 + $0x31] sm:$0xff]
    %v9342 = vld [vmem:[#allocation5 + $0x39] sm:$0x3]
    %s9343 = scalar_lea.vmem [#allocation9], 64
    %v9344 = vld [vmem:[%s9343] sm:$0xff]
    %v9345 = vld [vmem:[%s9343 + $0x8] sm:$0xff]
    %v9346 = vld [vmem:[%s9343 + $0x10] sm:$0xff]
    %v9347 = vld [vmem:[%s9343 + $0x18] sm:$0xff]
    %v9348 = vld [vmem:[%s9343 + $0x20] sm:$0xff]
    %v9349 = vld [vmem:[%s9343 + $0x28] sm:$0xff]
    %v9350 = vld [vmem:[%s9343 + $0x30] sm:$0xff]
    %v9351 = vld [vmem:[%s9343 + $0x38] sm:$0xff]
    %v9353 = vsel %vm9001, %v9335, 0
    %v9356 = vsel %vm9001, %v9336, 0
    %v9359 = vsel %vm9001, %v9337, 0
    %v9362 = vsel %vm9001, %v9338, 0
    %v9365 = vsel %vm9001, %v9339, 0
    %v9368 = vsel %vm9001, %v9340, 0
    %v9371 = vsel %vm9001, %v9341, 0
    %v9374 = vsel %vm9001, %v9342, 0
    %9376 = vmatpush.msra.mxu0 0.0
    %9377 = vmatpush.msra.mxu0 0.0
    %9378 = vmatpush.msra.mxu0 0.0
    %9379 = vmatpush.msra.mxu0 0.0
    %9380 = vmatpush.msra.mxu0 0.0
    %9381 = vmatpush.msra.mxu0 0.0
    %9382 = vmatpush.msra.mxu0 0.0
    %9383 = vmatpush.msra.mxu0 0.0
    %9384 = vmatpush.msra.mxu0 %v9351
    %9385 = vmatpush.msra.mxu0 %v9350
    %9386 = vmatpush.msra.mxu0 %v9349
    %9387 = vmatpush.msra.mxu0 %v9348
    %9388 = vmatpush.msra.mxu0 %v9347
    %9389 = vmatpush.msra.mxu0 %v9346
    %9390 = vmatpush.msra.mxu0 %v9345
    %9391 = vmatpush.msra.mxu0 %v9344
    %9392 = vmatmul.f32.gmra.mxu0 %v9353
    %v9393 = vpop.f32.mrf.mxu0
    %v9394 = vadd.f32 0.0, %v9393
    %9395 = vmatmul.f32.gmra.mxu0 %v9356
    %v9396 = vpop.f32.mrf.mxu0
    %v9397 = vadd.f32 0.0, %v9396
    %9398 = vmatmul.f32.gmra.mxu0 %v9359
    %v9399 = vpop.f32.mrf.mxu0
    %v9400 = vadd.f32 0.0, %v9399
    %9401 = vmatmul.f32.gmra.mxu0 %v9362
    %v9402 = vpop.f32.mrf.mxu0
    %v9403 = vadd.f32 0.0, %v9402
    %9404 = vmatmul.f32.gmra.mxu0 %v9365
    %v9405 = vpop.f32.mrf.mxu0
    %v9406 = vadd.f32 0.0, %v9405
    %9407 = vmatmul.f32.gmra.mxu0 %v9368
    %v9408 = vpop.f32.mrf.mxu0
    %v9409 = vadd.f32 0.0, %v9408
    %9410 = vmatmul.f32.gmra.mxu0 %v9371
    %v9411 = vpop.f32.mrf.mxu0
    %v9412 = vadd.f32 0.0, %v9411
    %9413 = vmatmul.f32.gmra.mxu0 %v9374
    %v9414 = vpop.f32.mrf.mxu0
    %v9415 = vadd.f32 0.0, %v9414
    %9416 = vdwg.mxu0
    %v9418 = vsel %vm9001, %v9319, 0
    %v9421 = vsel %vm9001, %v9320, 0
    %v9424 = vsel %vm9001, %v9321, 0
    %v9427 = vsel %vm9001, %v9322, 0
    %v9430 = vsel %vm9001, %v9323, 0
    %v9433 = vsel %vm9001, %v9324, 0
    %v9436 = vsel %vm9001, %v9325, 0
    %v9439 = vsel %vm9001, %v9326, 0
    %9441 = vmatpush.msra.mxu0 0.0
    %9442 = vmatpush.msra.mxu0 0.0
    %9443 = vmatpush.msra.mxu0 0.0
    %9444 = vmatpush.msra.mxu0 0.0
    %9445 = vmatpush.msra.mxu0 0.0
    %9446 = vmatpush.msra.mxu0 0.0
    %9447 = vmatpush.msra.mxu0 0.0
    %9448 = vmatpush.msra.mxu0 0.0
    %9449 = vmatpush.msra.mxu0 %v9334
    %9450 = vmatpush.msra.mxu0 %v9333
    %9451 = vmatpush.msra.mxu0 %v9332
    %9452 = vmatpush.msra.mxu0 %v9331
    %9453 = vmatpush.msra.mxu0 %v9330
    %9454 = vmatpush.msra.mxu0 %v9329
    %9455 = vmatpush.msra.mxu0 %v9328
    %9456 = vmatpush.msra.mxu0 %v9327
    %9457 = vmatmul.f32.gmra.mxu0 %v9418
    %v9458 = vpop.f32.mrf.mxu0
    %v9459 = vadd.f32 %v9394, %v9458
    %9460 = vmatmul.f32.gmra.mxu0 %v9421
    %v9461 = vpop.f32.mrf.mxu0
    %v9462 = vadd.f32 %v9397, %v9461
    %9463 = vmatmul.f32.gmra.mxu0 %v9424
    %v9464 = vpop.f32.mrf.mxu0
    %v9465 = vadd.f32 %v9400, %v9464
    %9466 = vmatmul.f32.gmra.mxu0 %v9427
    %v9467 = vpop.f32.mrf.mxu0
    %v9468 = vadd.f32 %v9403, %v9467
    %9469 = vmatmul.f32.gmra.mxu0 %v9430
    %v9470 = vpop.f32.mrf.mxu0
    %v9471 = vadd.f32 %v9406, %v9470
    %9472 = vmatmul.f32.gmra.mxu0 %v9433
    %v9473 = vpop.f32.mrf.mxu0
    %v9474 = vadd.f32 %v9409, %v9473
    %9475 = vmatmul.f32.gmra.mxu0 %v9436
    %v9476 = vpop.f32.mrf.mxu0
    %v9477 = vadd.f32 %v9412, %v9476
    %9478 = vmatmul.f32.gmra.mxu0 %v9439
    %v9479 = vpop.f32.mrf.mxu0
    %v9480 = vadd.f32 %v9415, %v9479
    %9481 = vdwg.mxu0
    %v9482 = vld [vmem:[#allocation5 + $0x2] sm:$0xff]
    %v9483 = vld [vmem:[#allocation5 + $0xa] sm:$0xff]
    %v9484 = vld [vmem:[#allocation5 + $0x12] sm:$0xff]
    %v9485 = vld [vmem:[#allocation5 + $0x1a] sm:$0xff]
    %v9486 = vld [vmem:[#allocation5 + $0x22] sm:$0xff]
    %v9487 = vld [vmem:[#allocation5 + $0x2a] sm:$0xff]
    %v9488 = vld [vmem:[#allocation5 + $0x32] sm:$0xff]
    %v9489 = vld [vmem:[#allocation5 + $0x3a] sm:$0x3]
    %s9490 = scalar_lea.vmem [#allocation9], 128
    %v9491 = vld [vmem:[%s9490] sm:$0xff]
    %v9492 = vld [vmem:[%s9490 + $0x8] sm:$0xff]
    %v9493 = vld [vmem:[%s9490 + $0x10] sm:$0xff]
    %v9494 = vld [vmem:[%s9490 + $0x18] sm:$0xff]
    %v9495 = vld [vmem:[%s9490 + $0x20] sm:$0xff]
    %v9496 = vld [vmem:[%s9490 + $0x28] sm:$0xff]
    %v9497 = vld [vmem:[%s9490 + $0x30] sm:$0xff]
    %v9498 = vld [vmem:[%s9490 + $0x38] sm:$0xff]
    %v9500 = vsel %vm9001, %v9482, 0
    %v9503 = vsel %vm9001, %v9483, 0
    %v9506 = vsel %vm9001, %v9484, 0
    %v9509 = vsel %vm9001, %v9485, 0
    %v9512 = vsel %vm9001, %v9486, 0
    %v9515 = vsel %vm9001, %v9487, 0
    %v9518 = vsel %vm9001, %v9488, 0
    %v9521 = vsel %vm9001, %v9489, 0
    %9523 = vmatpush.msra.mxu0 0.0
    %9524 = vmatpush.msra.mxu0 0.0
    %9525 = vmatpush.msra.mxu0 0.0
    %9526 = vmatpush.msra.mxu0 0.0
    %9527 = vmatpush.msra.mxu0 0.0
    %9528 = vmatpush.msra.mxu0 0.0
    %9529 = vmatpush.msra.mxu0 0.0
    %9530 = vmatpush.msra.mxu0 0.0
    %9531 = vmatpush.msra.mxu0 %v9498
    %9532 = vmatpush.msra.mxu0 %v9497
    %9533 = vmatpush.msra.mxu0 %v9496
    %9534 = vmatpush.msra.mxu0 %v9495
    %9535 = vmatpush.msra.mxu0 %v9494
    %9536 = vmatpush.msra.mxu0 %v9493
    %9537 = vmatpush.msra.mxu0 %v9492
    %9538 = vmatpush.msra.mxu0 %v9491
    %9539 = vmatmul.f32.gmra.mxu0 %v9500
    %v9540 = vpop.f32.mrf.mxu0
    %v9541 = vadd.f32 0.0, %v9540
    %9542 = vmatmul.f32.gmra.mxu0 %v9503
    %v9543 = vpop.f32.mrf.mxu0
    %v9544 = vadd.f32 0.0, %v9543
    %9545 = vmatmul.f32.gmra.mxu0 %v9506
    %v9546 = vpop.f32.mrf.mxu0
    %v9547 = vadd.f32 0.0, %v9546
    %9548 = vmatmul.f32.gmra.mxu0 %v9509
    %v9549 = vpop.f32.mrf.mxu0
    %v9550 = vadd.f32 0.0, %v9549
    %9551 = vmatmul.f32.gmra.mxu0 %v9512
    %v9552 = vpop.f32.mrf.mxu0
    %v9553 = vadd.f32 0.0, %v9552
    %9554 = vmatmul.f32.gmra.mxu0 %v9515
    %v9555 = vpop.f32.mrf.mxu0
    %v9556 = vadd.f32 0.0, %v9555
    %9557 = vmatmul.f32.gmra.mxu0 %v9518
    %v9558 = vpop.f32.mrf.mxu0
    %v9559 = vadd.f32 0.0, %v9558
    %9560 = vmatmul.f32.gmra.mxu0 %v9521
    %v9561 = vpop.f32.mrf.mxu0
    %v9562 = vadd.f32 0.0, %v9561
    %9563 = vdwg.mxu0
    %v9564 = vadd.f32 %v9459, %v9541
    %v9565 = vadd.f32 %v9462, %v9544
    %v9566 = vadd.f32 %v9465, %v9547
    %v9567 = vadd.f32 %v9468, %v9550
    %v9568 = vadd.f32 %v9471, %v9553
    %v9569 = vadd.f32 %v9474, %v9556
    %v9570 = vadd.f32 %v9477, %v9559
    %v9571 = vadd.f32 %v9480, %v9562
    %v9572 = vld [vmem:[#allocation5 + $0x6] sm:$0xff]
    %v9573 = vld [vmem:[#allocation5 + $0xe] sm:$0xff]
    %v9574 = vld [vmem:[#allocation5 + $0x16] sm:$0xff]
    %v9575 = vld [vmem:[#allocation5 + $0x1e] sm:$0xff]
    %v9576 = vld [vmem:[#allocation5 + $0x26] sm:$0xff]
    %v9577 = vld [vmem:[#allocation5 + $0x2e] sm:$0xff]
    %v9578 = vld [vmem:[#allocation5 + $0x36] sm:$0xff]
    %v9579 = vld [vmem:[#allocation5 + $0x3e] sm:$0x3]
    %s9580 = scalar_lea.vmem [#allocation9], 192
    %v9581 = vld [vmem:[%s9580] sm:$0xff]
    %v9582 = vld [vmem:[%s9580 + $0x8] sm:$0xff]
    %v9583 = vld [vmem:[%s9580 + $0x10] sm:$0xff]
    %v9584 = vld [vmem:[%s9580 + $0x18] sm:$0xff]
    %v9585 = vld [vmem:[%s9580 + $0x20] sm:$0xff]
    %v9586 = vld [vmem:[%s9580 + $0x28] sm:$0xff]
    %v9587 = vld [vmem:[%s9580 + $0x30] sm:$0xff]
    %v9588 = vld [vmem:[%s9580 + $0x38] sm:$0xff]
    %v9590 = vsel %vm9001, %v9572, 0
    %v9593 = vsel %vm9001, %v9573, 0
    %v9596 = vsel %vm9001, %v9574, 0
    %v9599 = vsel %vm9001, %v9575, 0
    %v9602 = vsel %vm9001, %v9576, 0
    %v9605 = vsel %vm9001, %v9577, 0
    %v9608 = vsel %vm9001, %v9578, 0
    %v9611 = vsel %vm9001, %v9579, 0
    %9613 = vmatpush.msra.mxu0 0.0
    %9614 = vmatpush.msra.mxu0 0.0
    %9615 = vmatpush.msra.mxu0 0.0
    %9616 = vmatpush.msra.mxu0 0.0
    %9617 = vmatpush.msra.mxu0 0.0
    %9618 = vmatpush.msra.mxu0 0.0
    %9619 = vmatpush.msra.mxu0 0.0
    %9620 = vmatpush.msra.mxu0 0.0
    %9621 = vmatpush.msra.mxu0 %v9588
    %9622 = vmatpush.msra.mxu0 %v9587
    %9623 = vmatpush.msra.mxu0 %v9586
    %9624 = vmatpush.msra.mxu0 %v9585
    %9625 = vmatpush.msra.mxu0 %v9584
    %9626 = vmatpush.msra.mxu0 %v9583
    %9627 = vmatpush.msra.mxu0 %v9582
    %9628 = vmatpush.msra.mxu0 %v9581
    %9629 = vmatmul.f32.gmra.mxu0 %v9590
    %v9630 = vpop.f32.mrf.mxu0
    %v9631 = vadd.f32 0.0, %v9630
    %9632 = vmatmul.f32.gmra.mxu0 %v9593
    %v9633 = vpop.f32.mrf.mxu0
    %v9634 = vadd.f32 0.0, %v9633
    %9635 = vmatmul.f32.gmra.mxu0 %v9596
    %v9636 = vpop.f32.mrf.mxu0
    %v9637 = vadd.f32 0.0, %v9636
    %9638 = vmatmul.f32.gmra.mxu0 %v9599
    %v9639 = vpop.f32.mrf.mxu0
    %v9640 = vadd.f32 0.0, %v9639
    %9641 = vmatmul.f32.gmra.mxu0 %v9602
    %v9642 = vpop.f32.mrf.mxu0
    %v9643 = vadd.f32 0.0, %v9642
    %9644 = vmatmul.f32.gmra.mxu0 %v9605
    %v9645 = vpop.f32.mrf.mxu0
    %v9646 = vadd.f32 0.0, %v9645
    %9647 = vmatmul.f32.gmra.mxu0 %v9608
    %v9648 = vpop.f32.mrf.mxu0
    %v9649 = vadd.f32 0.0, %v9648
    %9650 = vmatmul.f32.gmra.mxu0 %v9611
    %v9651 = vpop.f32.mrf.mxu0
    %v9652 = vadd.f32 0.0, %v9651
    %9653 = vdwg.mxu0
    %v9654 = vadd.f32 %v9564, %v9631
    %v9655 = vadd.f32 %v9565, %v9634
    %v9656 = vadd.f32 %v9566, %v9637
    %v9657 = vadd.f32 %v9567, %v9640
    %v9658 = vadd.f32 %v9568, %v9643
    %v9659 = vadd.f32 %v9569, %v9646
    %v9660 = vadd.f32 %v9570, %v9649
    %v9661 = vadd.f32 %v9571, %v9652
    %v9662 = vld [vmem:[#allocation5 + $0x7] sm:$0xff]
    %v9663 = vld [vmem:[#allocation5 + $0xf] sm:$0xff]
    %v9664 = vld [vmem:[#allocation5 + $0x17] sm:$0xff]
    %v9665 = vld [vmem:[#allocation5 + $0x1f] sm:$0xff]
    %v9666 = vld [vmem:[#allocation5 + $0x27] sm:$0xff]
    %v9667 = vld [vmem:[#allocation5 + $0x2f] sm:$0xff]
    %v9668 = vld [vmem:[#allocation5 + $0x37] sm:$0xff]
    %v9669 = vld [vmem:[#allocation5 + $0x3f] sm:$0x3]
    %s9670 = scalar_lea.vmem [#allocation9], 256
    %v9671 = vld [vmem:[%s9670] sm:$0xff]
    %v9672 = vld [vmem:[%s9670 + $0x8] sm:$0xff]
    %v9673 = vld [vmem:[%s9670 + $0x10] sm:$0xff]
    %v9674 = vld [vmem:[%s9670 + $0x18] sm:$0xff]
    %v9675 = vld [vmem:[%s9670 + $0x20] sm:$0xff]
    %v9676 = vld [vmem:[%s9670 + $0x28] sm:$0xff]
    %v9677 = vld [vmem:[%s9670 + $0x30] sm:$0xff]
    %v9678 = vld [vmem:[%s9670 + $0x38] sm:$0xff]
    %v9680 = vsel %vm9001, %v9662, 0
    %v9683 = vsel %vm9001, %v9663, 0
    %v9686 = vsel %vm9001, %v9664, 0
    %v9689 = vsel %vm9001, %v9665, 0
    %v9692 = vsel %vm9001, %v9666, 0
    %v9695 = vsel %vm9001, %v9667, 0
    %v9698 = vsel %vm9001, %v9668, 0
    %v9701 = vsel %vm9001, %v9669, 0
    %9703 = vmatpush.msra.mxu0 0.0
    %9704 = vmatpush.msra.mxu0 0.0
    %9705 = vmatpush.msra.mxu0 0.0
    %9706 = vmatpush.msra.mxu0 0.0
    %9707 = vmatpush.msra.mxu0 0.0
    %9708 = vmatpush.msra.mxu0 0.0
    %9709 = vmatpush.msra.mxu0 0.0
    %9710 = vmatpush.msra.mxu0 0.0
    %9711 = vmatpush.msra.mxu0 %v9678
    %9712 = vmatpush.msra.mxu0 %v9677
    %9713 = vmatpush.msra.mxu0 %v9676
    %9714 = vmatpush.msra.mxu0 %v9675
    %9715 = vmatpush.msra.mxu0 %v9674
    %9716 = vmatpush.msra.mxu0 %v9673
    %9717 = vmatpush.msra.mxu0 %v9672
    %9718 = vmatpush.msra.mxu0 %v9671
    %9719 = vmatmul.f32.gmra.mxu0 %v9680
    %v9720 = vpop.f32.mrf.mxu0
    %v9721 = vadd.f32 0.0, %v9720
    %9722 = vmatmul.f32.gmra.mxu0 %v9683
    %v9723 = vpop.f32.mrf.mxu0
    %v9724 = vadd.f32 0.0, %v9723
    %9725 = vmatmul.f32.gmra.mxu0 %v9686
    %v9726 = vpop.f32.mrf.mxu0
    %v9727 = vadd.f32 0.0, %v9726
    %9728 = vmatmul.f32.gmra.mxu0 %v9689
    %v9729 = vpop.f32.mrf.mxu0
    %v9730 = vadd.f32 0.0, %v9729
    %9731 = vmatmul.f32.gmra.mxu0 %v9692
    %v9732 = vpop.f32.mrf.mxu0
    %v9733 = vadd.f32 0.0, %v9732
    %9734 = vmatmul.f32.gmra.mxu0 %v9695
    %v9735 = vpop.f32.mrf.mxu0
    %v9736 = vadd.f32 0.0, %v9735
    %9737 = vmatmul.f32.gmra.mxu0 %v9698
    %v9738 = vpop.f32.mrf.mxu0
    %v9739 = vadd.f32 0.0, %v9738
    %9740 = vmatmul.f32.gmra.mxu0 %v9701
    %v9741 = vpop.f32.mrf.mxu0
    %v9742 = vadd.f32 0.0, %v9741
    %9743 = vdwg.mxu0
    %v9744 = vadd.f32 %v9654, %v9721
    %v9745 = vadd.f32 %v9655, %v9724
    %v9746 = vadd.f32 %v9656, %v9727
    %v9747 = vadd.f32 %v9657, %v9730
    %v9748 = vadd.f32 %v9658, %v9733
    %v9749 = vadd.f32 %v9659, %v9736
    %v9750 = vadd.f32 %v9660, %v9739
    %v9751 = vadd.f32 %v9661, %v9742
    %v9752 = vld [vmem:[#allocation5 + $0x8] sm:$0xff]
    %v9753 = vld [vmem:[#allocation5 + $0x10] sm:$0xff]
    %v9754 = vld [vmem:[#allocation5 + $0x18] sm:$0xff]
    %v9755 = vld [vmem:[#allocation5 + $0x20] sm:$0xff]
    %v9756 = vld [vmem:[#allocation5 + $0x28] sm:$0xff]
    %v9757 = vld [vmem:[#allocation5 + $0x30] sm:$0xff]
    %v9758 = vld [vmem:[#allocation5 + $0x38] sm:$0xff]
    %v9759 = vld [vmem:[#allocation5 + $0x40] sm:$0x3]
    %s9760 = scalar_lea.vmem [#allocation9], 320
    %v9761 = vld [vmem:[%s9760] sm:$0xff]
    %v9762 = vld [vmem:[%s9760 + $0x8] sm:$0xff]
    %v9763 = vld [vmem:[%s9760 + $0x10] sm:$0xff]
    %v9764 = vld [vmem:[%s9760 + $0x18] sm:$0xff]
    %v9765 = vld [vmem:[%s9760 + $0x20] sm:$0xff]
    %v9766 = vld [vmem:[%s9760 + $0x28] sm:$0xff]
    %v9767 = vld [vmem:[%s9760 + $0x30] sm:$0xff]
    %v9768 = vld [vmem:[%s9760 + $0x38] sm:$0xff]
    %v9770 = vsel %vm9001, %v9752, 0
    %v9773 = vsel %vm9001, %v9753, 0
    %v9776 = vsel %vm9001, %v9754, 0
    %v9779 = vsel %vm9001, %v9755, 0
    %v9782 = vsel %vm9001, %v9756, 0
    %v9785 = vsel %vm9001, %v9757, 0
    %v9788 = vsel %vm9001, %v9758, 0
    %v9791 = vsel %vm9001, %v9759, 0
    %9793 = vmatpush.msra.mxu0 0.0
    %9794 = vmatpush.msra.mxu0 0.0
    %9795 = vmatpush.msra.mxu0 0.0
    %9796 = vmatpush.msra.mxu0 0.0
    %9797 = vmatpush.msra.mxu0 0.0
    %9798 = vmatpush.msra.mxu0 0.0
    %9799 = vmatpush.msra.mxu0 0.0
    %9800 = vmatpush.msra.mxu0 0.0
    %9801 = vmatpush.msra.mxu0 %v9768
    %9802 = vmatpush.msra.mxu0 %v9767
    %9803 = vmatpush.msra.mxu0 %v9766
    %9804 = vmatpush.msra.mxu0 %v9765
    %9805 = vmatpush.msra.mxu0 %v9764
    %9806 = vmatpush.msra.mxu0 %v9763
    %9807 = vmatpush.msra.mxu0 %v9762
    %9808 = vmatpush.msra.mxu0 %v9761
    %9809 = vmatmul.f32.gmra.mxu0 %v9770
    %v9810 = vpop.f32.mrf.mxu0
    %v9811 = vadd.f32 0.0, %v9810
    %9812 = vmatmul.f32.gmra.mxu0 %v9773
    %v9813 = vpop.f32.mrf.mxu0
    %v9814 = vadd.f32 0.0, %v9813
    %9815 = vmatmul.f32.gmra.mxu0 %v9776
    %v9816 = vpop.f32.mrf.mxu0
    %v9817 = vadd.f32 0.0, %v9816
    %9818 = vmatmul.f32.gmra.mxu0 %v9779
    %v9819 = vpop.f32.mrf.mxu0
    %v9820 = vadd.f32 0.0, %v9819
    %9821 = vmatmul.f32.gmra.mxu0 %v9782
    %v9822 = vpop.f32.mrf.mxu0
    %v9823 = vadd.f32 0.0, %v9822
    %9824 = vmatmul.f32.gmra.mxu0 %v9785
    %v9825 = vpop.f32.mrf.mxu0
    %v9826 = vadd.f32 0.0, %v9825
    %9827 = vmatmul.f32.gmra.mxu0 %v9788
    %v9828 = vpop.f32.mrf.mxu0
    %v9829 = vadd.f32 0.0, %v9828
    %9830 = vmatmul.f32.gmra.mxu0 %v9791
    %v9831 = vpop.f32.mrf.mxu0
    %v9832 = vadd.f32 0.0, %v9831
    %9833 = vdwg.mxu0
    %v9834 = vadd.f32 %v9744, %v9811
    %v9835 = vadd.f32 %v9745, %v9814
    %v9836 = vadd.f32 %v9746, %v9817
    %v9837 = vadd.f32 %v9747, %v9820
    %v9838 = vadd.f32 %v9748, %v9823
    %v9839 = vadd.f32 %v9749, %v9826
    %v9840 = vadd.f32 %v9750, %v9829
    %v9841 = vadd.f32 %v9751, %v9832
    %v9842 = vld [vmem:[#allocation5 + $0xc] sm:$0xff]
    %v9843 = vld [vmem:[#allocation5 + $0x14] sm:$0xff]
    %v9844 = vld [vmem:[#allocation5 + $0x1c] sm:$0xff]
    %v9845 = vld [vmem:[#allocation5 + $0x24] sm:$0xff]
    %v9846 = vld [vmem:[#allocation5 + $0x2c] sm:$0xff]
    %v9847 = vld [vmem:[#allocation5 + $0x34] sm:$0xff]
    %v9848 = vld [vmem:[#allocation5 + $0x3c] sm:$0xff]
    %v9849 = vld [vmem:[#allocation5 + $0x44] sm:$0x3]
    %s9850 = scalar_lea.vmem [#allocation9], 384
    %v9851 = vld [vmem:[%s9850] sm:$0xff]
    %v9852 = vld [vmem:[%s9850 + $0x8] sm:$0xff]
    %v9853 = vld [vmem:[%s9850 + $0x10] sm:$0xff]
    %v9854 = vld [vmem:[%s9850 + $0x18] sm:$0xff]
    %v9855 = vld [vmem:[%s9850 + $0x20] sm:$0xff]
    %v9856 = vld [vmem:[%s9850 + $0x28] sm:$0xff]
    %v9857 = vld [vmem:[%s9850 + $0x30] sm:$0xff]
    %v9858 = vld [vmem:[%s9850 + $0x38] sm:$0xff]
    %v9860 = vsel %vm9001, %v9842, 0
    %v9863 = vsel %vm9001, %v9843, 0
    %v9866 = vsel %vm9001, %v9844, 0
    %v9869 = vsel %vm9001, %v9845, 0
    %v9872 = vsel %vm9001, %v9846, 0
    %v9875 = vsel %vm9001, %v9847, 0
    %v9878 = vsel %vm9001, %v9848, 0
    %v9881 = vsel %vm9001, %v9849, 0
    %9883 = vmatpush.msra.mxu0 0.0
    %9884 = vmatpush.msra.mxu0 0.0
    %9885 = vmatpush.msra.mxu0 0.0
    %9886 = vmatpush.msra.mxu0 0.0
    %9887 = vmatpush.msra.mxu0 0.0
    %9888 = vmatpush.msra.mxu0 0.0
    %9889 = vmatpush.msra.mxu0 0.0
    %9890 = vmatpush.msra.mxu0 0.0
    %9891 = vmatpush.msra.mxu0 %v9858
    %9892 = vmatpush.msra.mxu0 %v9857
    %9893 = vmatpush.msra.mxu0 %v9856
    %9894 = vmatpush.msra.mxu0 %v9855
    %9895 = vmatpush.msra.mxu0 %v9854
    %9896 = vmatpush.msra.mxu0 %v9853
    %9897 = vmatpush.msra.mxu0 %v9852
    %9898 = vmatpush.msra.mxu0 %v9851
    %9899 = vmatmul.f32.gmra.mxu0 %v9860
    %v9900 = vpop.f32.mrf.mxu0
    %v9901 = vadd.f32 0.0, %v9900
    %9902 = vmatmul.f32.gmra.mxu0 %v9863
    %v9903 = vpop.f32.mrf.mxu0
    %v9904 = vadd.f32 0.0, %v9903
    %9905 = vmatmul.f32.gmra.mxu0 %v9866
    %v9906 = vpop.f32.mrf.mxu0
    %v9907 = vadd.f32 0.0, %v9906
    %9908 = vmatmul.f32.gmra.mxu0 %v9869
    %v9909 = vpop.f32.mrf.mxu0
    %v9910 = vadd.f32 0.0, %v9909
    %9911 = vmatmul.f32.gmra.mxu0 %v9872
    %v9912 = vpop.f32.mrf.mxu0
    %v9913 = vadd.f32 0.0, %v9912
    %9914 = vmatmul.f32.gmra.mxu0 %v9875
    %v9915 = vpop.f32.mrf.mxu0
    %v9916 = vadd.f32 0.0, %v9915
    %9917 = vmatmul.f32.gmra.mxu0 %v9878
    %v9918 = vpop.f32.mrf.mxu0
    %v9919 = vadd.f32 0.0, %v9918
    %9920 = vmatmul.f32.gmra.mxu0 %v9881
    %v9921 = vpop.f32.mrf.mxu0
    %v9922 = vadd.f32 0.0, %v9921
    %9923 = vdwg.mxu0
    %v9924 = vadd.f32 %v9834, %v9901
    %v9925 = vadd.f32 %v9835, %v9904
    %v9926 = vadd.f32 %v9836, %v9907
    %v9927 = vadd.f32 %v9837, %v9910
    %v9928 = vadd.f32 %v9838, %v9913
    %v9929 = vadd.f32 %v9839, %v9916
    %v9930 = vadd.f32 %v9840, %v9919
    %v9931 = vadd.f32 %v9841, %v9922
    %v9932 = vld [vmem:[#allocation5 + $0xd] sm:$0xff]
    %v9933 = vld [vmem:[#allocation5 + $0x15] sm:$0xff]
    %v9934 = vld [vmem:[#allocation5 + $0x1d] sm:$0xff]
    %v9935 = vld [vmem:[#allocation5 + $0x25] sm:$0xff]
    %v9936 = vld [vmem:[#allocation5 + $0x2d] sm:$0xff]
    %v9937 = vld [vmem:[#allocation5 + $0x35] sm:$0xff]
    %v9938 = vld [vmem:[#allocation5 + $0x3d] sm:$0xff]
    %v9939 = vld [vmem:[#allocation5 + $0x45] sm:$0x3]
    %s9940 = scalar_lea.vmem [#allocation9], 448
    %v9941 = vld [vmem:[%s9940] sm:$0xff]
    %v9942 = vld [vmem:[%s9940 + $0x8] sm:$0xff]
    %v9943 = vld [vmem:[%s9940 + $0x10] sm:$0xff]
    %v9944 = vld [vmem:[%s9940 + $0x18] sm:$0xff]
    %v9945 = vld [vmem:[%s9940 + $0x20] sm:$0xff]
    %v9946 = vld [vmem:[%s9940 + $0x28] sm:$0xff]
    %v9947 = vld [vmem:[%s9940 + $0x30] sm:$0xff]
    %v9948 = vld [vmem:[%s9940 + $0x38] sm:$0xff]
    %v9950 = vsel %vm9001, %v9932, 0
    %v9953 = vsel %vm9001, %v9933, 0
    %v9956 = vsel %vm9001, %v9934, 0
    %v9959 = vsel %vm9001, %v9935, 0
    %v9962 = vsel %vm9001, %v9936, 0
    %v9965 = vsel %vm9001, %v9937, 0
    %v9968 = vsel %vm9001, %v9938, 0
    %v9971 = vsel %vm9001, %v9939, 0
    %9973 = vmatpush.msra.mxu0 0.0
    %9974 = vmatpush.msra.mxu0 0.0
    %9975 = vmatpush.msra.mxu0 0.0
    %9976 = vmatpush.msra.mxu0 0.0
    %9977 = vmatpush.msra.mxu0 0.0
    %9978 = vmatpush.msra.mxu0 0.0
    %9979 = vmatpush.msra.mxu0 0.0
    %9980 = vmatpush.msra.mxu0 0.0
    %9981 = vmatpush.msra.mxu0 %v9948
    %9982 = vmatpush.msra.mxu0 %v9947
    %9983 = vmatpush.msra.mxu0 %v9946
    %9984 = vmatpush.msra.mxu0 %v9945
    %9985 = vmatpush.msra.mxu0 %v9944
    %9986 = vmatpush.msra.mxu0 %v9943
    %9987 = vmatpush.msra.mxu0 %v9942
    %9988 = vmatpush.msra.mxu0 %v9941
    %9989 = vmatmul.f32.gmra.mxu0 %v9950
    %v9990 = vpop.f32.mrf.mxu0
    %v9991 = vadd.f32 0.0, %v9990
    %9992 = vmatmul.f32.gmra.mxu0 %v9953
    %v9993 = vpop.f32.mrf.mxu0
    %v9994 = vadd.f32 0.0, %v9993
    %9995 = vmatmul.f32.gmra.mxu0 %v9956
    %v9996 = vpop.f32.mrf.mxu0
    %v9997 = vadd.f32 0.0, %v9996
    %9998 = vmatmul.f32.gmra.mxu0 %v9959
    %v9999 = vpop.f32.mrf.mxu0
    %v10000 = vadd.f32 0.0, %v9999
    %10001 = vmatmul.f32.gmra.mxu0 %v9962
    %v10002 = vpop.f32.mrf.mxu0
    %v10003 = vadd.f32 0.0, %v10002
    %10004 = vmatmul.f32.gmra.mxu0 %v9965
    %v10005 = vpop.f32.mrf.mxu0
    %v10006 = vadd.f32 0.0, %v10005
    %10007 = vmatmul.f32.gmra.mxu0 %v9968
    %v10008 = vpop.f32.mrf.mxu0
    %v10009 = vadd.f32 0.0, %v10008
    %10010 = vmatmul.f32.gmra.mxu0 %v9971
    %v10011 = vpop.f32.mrf.mxu0
    %v10012 = vadd.f32 0.0, %v10011
    %10013 = vdwg.mxu0
    %v10014 = vadd.f32 %v9924, %v9991
    %v10015 = vadd.f32 %v9925, %v9994
    %v10016 = vadd.f32 %v9926, %v9997
    %v10017 = vadd.f32 %v9927, %v10000
    %v10018 = vadd.f32 %v9928, %v10003
    %v10019 = vadd.f32 %v9929, %v10006
    %v10020 = vadd.f32 %v9930, %v10009
    %v10021 = vadd.f32 %v9931, %v10012
    %v10022 = vld [vmem:[#allocation5 + $0xe] sm:$0xff]
    %v10023 = vld [vmem:[#allocation5 + $0x16] sm:$0xff]
    %v10024 = vld [vmem:[#allocation5 + $0x1e] sm:$0xff]
    %v10025 = vld [vmem:[#allocation5 + $0x26] sm:$0xff]
    %v10026 = vld [vmem:[#allocation5 + $0x2e] sm:$0xff]
    %v10027 = vld [vmem:[#allocation5 + $0x36] sm:$0xff]
    %v10028 = vld [vmem:[#allocation5 + $0x3e] sm:$0xff]
    %v10029 = vld [vmem:[#allocation5 + $0x46] sm:$0x3]
    %s10030 = scalar_lea.vmem [#allocation9], 512
    %v10031 = vld [vmem:[%s10030] sm:$0xff]
    %v10032 = vld [vmem:[%s10030 + $0x8] sm:$0xff]
    %v10033 = vld [vmem:[%s10030 + $0x10] sm:$0xff]
    %v10034 = vld [vmem:[%s10030 + $0x18] sm:$0xff]
    %v10035 = vld [vmem:[%s10030 + $0x20] sm:$0xff]
    %v10036 = vld [vmem:[%s10030 + $0x28] sm:$0xff]
    %v10037 = vld [vmem:[%s10030 + $0x30] sm:$0xff]
    %v10038 = vld [vmem:[%s10030 + $0x38] sm:$0xff]
    %v10040 = vsel %vm9001, %v10022, 0
    %v10043 = vsel %vm9001, %v10023, 0
    %v10046 = vsel %vm9001, %v10024, 0
    %v10049 = vsel %vm9001, %v10025, 0
    %v10052 = vsel %vm9001, %v10026, 0
    %v10055 = vsel %vm9001, %v10027, 0
    %v10058 = vsel %vm9001, %v10028, 0
    %v10061 = vsel %vm9001, %v10029, 0
    %10063 = vmatpush.msra.mxu0 0.0
    %10064 = vmatpush.msra.mxu0 0.0
    %10065 = vmatpush.msra.mxu0 0.0
    %10066 = vmatpush.msra.mxu0 0.0
    %10067 = vmatpush.msra.mxu0 0.0
    %10068 = vmatpush.msra.mxu0 0.0
    %10069 = vmatpush.msra.mxu0 0.0
    %10070 = vmatpush.msra.mxu0 0.0
    %10071 = vmatpush.msra.mxu0 %v10038
    %10072 = vmatpush.msra.mxu0 %v10037
    %10073 = vmatpush.msra.mxu0 %v10036
    %10074 = vmatpush.msra.mxu0 %v10035
    %10075 = vmatpush.msra.mxu0 %v10034
    %10076 = vmatpush.msra.mxu0 %v10033
    %10077 = vmatpush.msra.mxu0 %v10032
    %10078 = vmatpush.msra.mxu0 %v10031
    %10079 = vmatmul.f32.gmra.mxu0 %v10040
    %v10080 = vpop.f32.mrf.mxu0
    %v10081 = vadd.f32 0.0, %v10080
    %10082 = vmatmul.f32.gmra.mxu0 %v10043
    %v10083 = vpop.f32.mrf.mxu0
    %v10084 = vadd.f32 0.0, %v10083
    %10085 = vmatmul.f32.gmra.mxu0 %v10046
    %v10086 = vpop.f32.mrf.mxu0
    %v10087 = vadd.f32 0.0, %v10086
    %10088 = vmatmul.f32.gmra.mxu0 %v10049
    %v10089 = vpop.f32.mrf.mxu0
    %v10090 = vadd.f32 0.0, %v10089
    %10091 = vmatmul.f32.gmra.mxu0 %v10052
    %v10092 = vpop.f32.mrf.mxu0
    %v10093 = vadd.f32 0.0, %v10092
    %10094 = vmatmul.f32.gmra.mxu0 %v10055
    %v10095 = vpop.f32.mrf.mxu0
    %v10096 = vadd.f32 0.0, %v10095
    %10097 = vmatmul.f32.gmra.mxu0 %v10058
    %v10098 = vpop.f32.mrf.mxu0
    %v10099 = vadd.f32 0.0, %v10098
    %10100 = vmatmul.f32.gmra.mxu0 %v10061
    %v10101 = vpop.f32.mrf.mxu0
    %v10102 = vadd.f32 0.0, %v10101
    %10103 = vdwg.mxu0
    %v10104 = vadd.f32 %v10014, %v10081
    %v10105 = vadd.f32 %v10015, %v10084
    %v10106 = vadd.f32 %v10016, %v10087
    %v10107 = vadd.f32 %v10017, %v10090
    %v10108 = vadd.f32 %v10018, %v10093
    %v10109 = vadd.f32 %v10019, %v10096
    %v10110 = vadd.f32 %v10020, %v10099
    %v10111 = vadd.f32 %v10021, %v10102
    %v10112 = vld [vmem:[%s8] sm:$0x1]
    %v10114 = vperm.slane %v10112, 0
    %v10116 = vadd.f32 %v10104, %v10114
    %v10117 = vadd.f32 %v10105, %v10114
    %v10118 = vadd.f32 %v10106, %v10114
    %v10119 = vadd.f32 %v10107, %v10114
    %v10120 = vadd.f32 %v10108, %v10114
    %v10121 = vadd.f32 %v10109, %v10114
    %v10122 = vadd.f32 %v10110, %v10114
    %v10123 = vadd.f32 %v10111, %v10114
    %v10124 = vmax.f32 %v10116, 0.0
    %v10125 = vmax.f32 %v10117, 0.0
    %v10126 = vmax.f32 %v10118, 0.0
    %v10127 = vmax.f32 %v10119, 0.0
    %v10128 = vmax.f32 %v10120, 0.0
    %v10129 = vmax.f32 %v10121, 0.0
    %v10130 = vmax.f32 %v10122, 0.0
    %v10131 = vmax.f32 %v10123, 0.0
    %10132 = vst [vmem:[#allocation6] sm:$0xff] %v10124
    %10133 = vst [vmem:[#allocation6 + $0x8] sm:$0xff] %v10125
    %10134 = vst [vmem:[#allocation6 + $0x10] sm:$0xff] %v10126
    %10135 = vst [vmem:[#allocation6 + $0x18] sm:$0xff] %v10127
    %10136 = vst [vmem:[#allocation6 + $0x20] sm:$0xff] %v10128
    %10137 = vst [vmem:[#allocation6 + $0x28] sm:$0xff] %v10129
    %10138 = vst [vmem:[#allocation6 + $0x30] sm:$0xff] %v10130
    %10139 = vst [vmem:[#allocation6 + $0x38] sm:$0x3] %v10131
    %v10140 = vld [vmem:[#allocation6] sm:$0xff]
    %v10141 = vld [vmem:[#allocation6 + $0x8] sm:$0xff]
    %v10142 = vld [vmem:[#allocation6 + $0x10] sm:$0xff]
    %v10143 = vld [vmem:[#allocation6 + $0x18] sm:$0xff]
    %v10144 = vld [vmem:[#allocation6 + $0x20] sm:$0xff]
    %v10145 = vld [vmem:[#allocation6 + $0x28] sm:$0xff]
    %v10146 = vld [vmem:[#allocation6 + $0x30] sm:$0x7]
    %v10147 = vld [vmem:[#allocation6 + $0x1] sm:$0xff]
    %v10148 = vld [vmem:[#allocation6 + $0x9] sm:$0xff]
    %v10149 = vld [vmem:[#allocation6 + $0x11] sm:$0xff]
    %v10150 = vld [vmem:[#allocation6 + $0x19] sm:$0xff]
    %v10151 = vld [vmem:[#allocation6 + $0x21] sm:$0xff]
    %v10152 = vld [vmem:[#allocation6 + $0x29] sm:$0xff]
    %v10153 = vld [vmem:[#allocation6 + $0x31] sm:$0x7]
    %v10154 = vmax.f32 %v10140, %v10147
    %v10155 = vmax.f32 %v10141, %v10148
    %v10156 = vmax.f32 %v10142, %v10149
    %v10157 = vmax.f32 %v10143, %v10150
    %v10158 = vmax.f32 %v10144, %v10151
    %v10159 = vmax.f32 %v10145, %v10152
    %v10160 = vmax.f32 %v10146, %v10153
    %v10161 = vld [vmem:[#allocation6 + $0x6] sm:$0xff]
    %v10162 = vld [vmem:[#allocation6 + $0xe] sm:$0xff]
    %v10163 = vld [vmem:[#allocation6 + $0x16] sm:$0xff]
    %v10164 = vld [vmem:[#allocation6 + $0x1e] sm:$0xff]
    %v10165 = vld [vmem:[#allocation6 + $0x26] sm:$0xff]
    %v10166 = vld [vmem:[#allocation6 + $0x2e] sm:$0xff]
    %v10167 = vld [vmem:[#allocation6 + $0x36] sm:$0x7]
    %v10168 = vld [vmem:[#allocation6 + $0x7] sm:$0xff]
    %v10169 = vld [vmem:[#allocation6 + $0xf] sm:$0xff]
    %v10170 = vld [vmem:[#allocation6 + $0x17] sm:$0xff]
    %v10171 = vld [vmem:[#allocation6 + $0x1f] sm:$0xff]
    %v10172 = vld [vmem:[#allocation6 + $0x27] sm:$0xff]
    %v10173 = vld [vmem:[#allocation6 + $0x2f] sm:$0xff]
    %v10174 = vld [vmem:[#allocation6 + $0x37] sm:$0x7]
    %v10175 = vmax.f32 %v10161, %v10168
    %v10176 = vmax.f32 %v10162, %v10169
    %v10177 = vmax.f32 %v10163, %v10170
    %v10178 = vmax.f32 %v10164, %v10171
    %v10179 = vmax.f32 %v10165, %v10172
    %v10180 = vmax.f32 %v10166, %v10173
    %v10181 = vmax.f32 %v10167, %v10174
    %v10182 = vmax.f32 %v10154, %v10175
    %v10183 = vmax.f32 %v10155, %v10176
    %v10184 = vmax.f32 %v10156, %v10177
    %v10185 = vmax.f32 %v10157, %v10178
    %v10186 = vmax.f32 %v10158, %v10179
    %v10187 = vmax.f32 %v10159, %v10180
    %v10188 = vmax.f32 %v10160, %v10181
    %v10189 = vld [vmem:[%s9] sm:$0xff]
    %v10190 = vld [vmem:[%s9 + $0x8] sm:$0xff]
    %v10191 = vld [vmem:[%s9 + $0x10] sm:$0xff]
    %v10192 = vld [vmem:[%s9 + $0x18] sm:$0xff]
    %vm10193 = vcmask 416768
    %v10195 = vsel %vm10193, %v10189, 0
    %v10198 = vsel %vm10193, %v10190, 0
    %v10201 = vsel %vm10193, %v10191, 0
    %v10204 = vsel %vm10193, %v10192, 0
    %v10207 = vsel %vm499, %v10188, 0
    %10209 = vmatpush.msra.mxu0 0.0
    %10210 = vmatpush.msra.mxu0 0.0
    %10211 = vmatpush.msra.mxu0 0.0
    %10212 = vmatpush.msra.mxu0 0.0
    %10213 = vmatpush.msra.mxu0 0.0
    %10214 = vmatpush.msra.mxu0 0.0
    %10215 = vmatpush.msra.mxu0 0.0
    %10216 = vmatpush.msra.mxu0 0.0
    %10217 = vmatpush.msra.mxu0 0.0
    %10218 = vmatpush.msra.mxu0 %v10207
    %10219 = vmatpush.msra.mxu0 %v10187
    %10220 = vmatpush.msra.mxu0 %v10186
    %10221 = vmatpush.msra.mxu0 %v10185
    %10222 = vmatpush.msra.mxu0 %v10184
    %10223 = vmatpush.msra.mxu0 %v10183
    %10224 = vmatpush.msra.mxu0 %v10182
    %10225 = vmatmul.f32.gmra.mxu0 %v10195
    %v10226 = vpop.f32.mrf.mxu0
    %v10227 = vadd.f32 0.0, %v10226
    %10228 = vmatmul.f32.gmra.mxu0 %v10198
    %v10229 = vpop.f32.mrf.mxu0
    %v10230 = vadd.f32 0.0, %v10229
    %10231 = vmatmul.f32.gmra.mxu0 %v10201
    %v10232 = vpop.f32.mrf.mxu0
    %v10233 = vadd.f32 0.0, %v10232
    %10234 = vmatmul.f32.gmra.mxu0 %v10204
    %v10235 = vpop.f32.mrf.mxu0
    %v10236 = vadd.f32 0.0, %v10235
    %10237 = vdwg.mxu0
    %10238 = vst [vmem:[#allocation7] sm:$0xff] %v10227
    %10239 = vst [vmem:[#allocation7 + $0x8] sm:$0xff] %v10230
    %10240 = vst [vmem:[#allocation7 + $0x10] sm:$0xff] %v10233
    %10241 = vst [vmem:[#allocation7 + $0x18] sm:$0xff] %v10236
    %v10242 = vld [vmem:[#allocation7] sm:$0xff]
    %v10243 = vld [vmem:[#allocation7 + $0x8] sm:$0xff]
    %v10244 = vld [vmem:[#allocation7 + $0x10] sm:$0x3f]
    %v10245 = vld [vmem:[%s10] sm:$0xff]
    %v10246 = vld [vmem:[%s10 + $0x8] sm:$0xff]
    %v10247 = vld [vmem:[%s10 + $0x10] sm:$0xff]
    %v10248 = vld [vmem:[%s10 + $0x18] sm:$0xff]
    %v10249 = vld [vmem:[%s10 + $0x20] sm:$0xff]
    %v10250 = vld [vmem:[%s10 + $0x28] sm:$0xff]
    %v10251 = vld [vmem:[%s10 + $0x30] sm:$0xff]
    %v10252 = vld [vmem:[%s10 + $0x38] sm:$0xff]
    %v10253 = vld [vmem:[%s10 + $0x40] sm:$0xff]
    %v10254 = vld [vmem:[%s10 + $0x48] sm:$0xff]
    %v10255 = vld [vmem:[%s10 + $0x50] sm:$0xff]
    %v10256 = vld [vmem:[%s10 + $0x58] sm:$0xff]
    %v10257 = vld [vmem:[%s10 + $0x60] sm:$0xff]
    %v10258 = vld [vmem:[%s10 + $0x68] sm:$0xff]
    %v10259 = vld [vmem:[%s10 + $0x70] sm:$0xff]
    %v10260 = vld [vmem:[%s10 + $0x78] sm:$0xff]
    %v10261 = vld [vmem:[%s10 + $0x80] sm:$0xff]
    %v10262 = vld [vmem:[%s10 + $0x88] sm:$0xff]
    %v10263 = vld [vmem:[%s10 + $0x90] sm:$0xff]
    %v10264 = vld [vmem:[%s10 + $0x98] sm:$0xff]
    %v10265 = vld [vmem:[%s10 + $0xa0] sm:$0xff]
    %v10266 = vld [vmem:[%s10 + $0xa8] sm:$0xff]
    %v10267 = vld [vmem:[%s10 + $0xb0] sm:$0xff]
    %v10268 = vld [vmem:[%s10 + $0xb8] sm:$0xff]
    %v10269 = vld [vmem:[%s10 + $0xc0] sm:$0xff]
    %v10270 = vld [vmem:[%s10 + $0xc8] sm:$0xff]
    %v10271 = vld [vmem:[%s10 + $0xd0] sm:$0xff]
    %v10272 = vld [vmem:[%s10 + $0xd8] sm:$0xff]
    %v10273 = vld [vmem:[%s10 + $0xe0] sm:$0xff]
    %v10274 = vld [vmem:[%s10 + $0xe8] sm:$0xff]
    %v10275 = vld [vmem:[%s10 + $0xf0] sm:$0xff]
    %v10276 = vld [vmem:[%s10 + $0xf8] sm:$0xff]
    %v10277 = vld [vmem:[#allocation7 + $0x1] sm:$0xff]
    %v10278 = vld [vmem:[#allocation7 + $0x9] sm:$0xff]
    %v10279 = vld [vmem:[#allocation7 + $0x11] sm:$0x3f]
    %s10280 = scalar_lea.vmem %s10, 256
    %v10281 = vld [vmem:[%s10280] sm:$0xff]
    %v10282 = vld [vmem:[%s10280 + $0x8] sm:$0xff]
    %v10283 = vld [vmem:[%s10280 + $0x10] sm:$0xff]
    %v10284 = vld [vmem:[%s10280 + $0x18] sm:$0xff]
    %v10285 = vld [vmem:[%s10280 + $0x20] sm:$0xff]
    %v10286 = vld [vmem:[%s10280 + $0x28] sm:$0xff]
    %v10287 = vld [vmem:[%s10280 + $0x30] sm:$0xff]
    %v10288 = vld [vmem:[%s10280 + $0x38] sm:$0xff]
    %v10289 = vld [vmem:[%s10280 + $0x40] sm:$0xff]
    %v10290 = vld [vmem:[%s10280 + $0x48] sm:$0xff]
    %v10291 = vld [vmem:[%s10280 + $0x50] sm:$0xff]
    %v10292 = vld [vmem:[%s10280 + $0x58] sm:$0xff]
    %v10293 = vld [vmem:[%s10280 + $0x60] sm:$0xff]
    %v10294 = vld [vmem:[%s10280 + $0x68] sm:$0xff]
    %v10295 = vld [vmem:[%s10280 + $0x70] sm:$0xff]
    %v10296 = vld [vmem:[%s10280 + $0x78] sm:$0xff]
    %v10297 = vld [vmem:[%s10280 + $0x80] sm:$0xff]
    %v10298 = vld [vmem:[%s10280 + $0x88] sm:$0xff]
    %v10299 = vld [vmem:[%s10280 + $0x90] sm:$0xff]
    %v10300 = vld [vmem:[%s10280 + $0x98] sm:$0xff]
    %v10301 = vld [vmem:[%s10280 + $0xa0] sm:$0xff]
    %v10302 = vld [vmem:[%s10280 + $0xa8] sm:$0xff]
    %v10303 = vld [vmem:[%s10280 + $0xb0] sm:$0xff]
    %v10304 = vld [vmem:[%s10280 + $0xb8] sm:$0xff]
    %v10305 = vld [vmem:[%s10280 + $0xc0] sm:$0xff]
    %v10306 = vld [vmem:[%s10280 + $0xc8] sm:$0xff]
    %v10307 = vld [vmem:[%s10280 + $0xd0] sm:$0xff]
    %v10308 = vld [vmem:[%s10280 + $0xd8] sm:$0xff]
    %v10309 = vld [vmem:[%s10280 + $0xe0] sm:$0xff]
    %v10310 = vld [vmem:[%s10280 + $0xe8] sm:$0xff]
    %v10311 = vld [vmem:[%s10280 + $0xf0] sm:$0xff]
    %v10312 = vld [vmem:[%s10280 + $0xf8] sm:$0xff]
    %10313 = vmatpush.msra.mxu0 %v10311
    %10314 = vmatpush.msra.mxu0 %v10309
    %10315 = vmatpush.msra.mxu0 %v10307
    %10316 = vmatpush.msra.mxu0 %v10305
    %10317 = vmatpush.msra.mxu0 %v10303
    %10318 = vmatpush.msra.mxu0 %v10301
    %10319 = vmatpush.msra.mxu0 %v10299
    %10320 = vmatpush.msra.mxu0 %v10297
    %10321 = vmatpush.msra.mxu0 %v10295
    %10322 = vmatpush.msra.mxu0 %v10293
    %10323 = vmatpush.msra.mxu0 %v10291
    %10324 = vmatpush.msra.mxu0 %v10289
    %10325 = vmatpush.msra.mxu0 %v10287
    %10326 = vmatpush.msra.mxu0 %v10285
    %10327 = vmatpush.msra.mxu0 %v10283
    %10328 = vmatpush.msra.mxu0 %v10281
    %10329 = vmatmul.f32.gmra.mxu0 %v10277
    %v10330 = vpop.f32.mrf.mxu0
    %v10331 = vadd.f32 0.0, %v10330
    %10332 = vmatmul.f32.gmra.mxu0 %v10278
    %v10333 = vpop.f32.mrf.mxu0
    %v10334 = vadd.f32 0.0, %v10333
    %10335 = vmatmul.f32.gmra.mxu0 %v10279
    %v10336 = vpop.f32.mrf.mxu0
    %v10337 = vadd.f32 0.0, %v10336
    %10338 = vdwg.mxu0
    %10339 = vmatpush.msra.mxu0 %v10312
    %10340 = vmatpush.msra.mxu0 %v10310
    %10341 = vmatpush.msra.mxu0 %v10308
    %10342 = vmatpush.msra.mxu0 %v10306
    %10343 = vmatpush.msra.mxu0 %v10304
    %10344 = vmatpush.msra.mxu0 %v10302
    %10345 = vmatpush.msra.mxu0 %v10300
    %10346 = vmatpush.msra.mxu0 %v10298
    %10347 = vmatpush.msra.mxu0 %v10296
    %10348 = vmatpush.msra.mxu0 %v10294
    %10349 = vmatpush.msra.mxu0 %v10292
    %10350 = vmatpush.msra.mxu0 %v10290
    %10351 = vmatpush.msra.mxu0 %v10288
    %10352 = vmatpush.msra.mxu0 %v10286
    %10353 = vmatpush.msra.mxu0 %v10284
    %10354 = vmatpush.msra.mxu0 %v10282
    %10355 = vmatmul.f32.gmra.mxu0 %v10277
    %v10356 = vpop.f32.mrf.mxu0
    %v10357 = vadd.f32 0.0, %v10356
    %10358 = vmatmul.f32.gmra.mxu0 %v10278
    %v10359 = vpop.f32.mrf.mxu0
    %v10360 = vadd.f32 0.0, %v10359
    %10361 = vmatmul.f32.gmra.mxu0 %v10279
    %v10362 = vpop.f32.mrf.mxu0
    %v10363 = vadd.f32 0.0, %v10362
    %10364 = vdwg.mxu0
    %10365 = vmatpush.msra.mxu0 %v10275
    %10366 = vmatpush.msra.mxu0 %v10273
    %10367 = vmatpush.msra.mxu0 %v10271
    %10368 = vmatpush.msra.mxu0 %v10269
    %10369 = vmatpush.msra.mxu0 %v10267
    %10370 = vmatpush.msra.mxu0 %v10265
    %10371 = vmatpush.msra.mxu0 %v10263
    %10372 = vmatpush.msra.mxu0 %v10261
    %10373 = vmatpush.msra.mxu0 %v10259
    %10374 = vmatpush.msra.mxu0 %v10257
    %10375 = vmatpush.msra.mxu0 %v10255
    %10376 = vmatpush.msra.mxu0 %v10253
    %10377 = vmatpush.msra.mxu0 %v10251
    %10378 = vmatpush.msra.mxu0 %v10249
    %10379 = vmatpush.msra.mxu0 %v10247
    %10380 = vmatpush.msra.mxu0 %v10245
    %10381 = vmatmul.f32.gmra.mxu0 %v10242
    %v10382 = vpop.f32.mrf.mxu0
    %v10383 = vadd.f32 %v10331, %v10382
    %10384 = vmatmul.f32.gmra.mxu0 %v10243
    %v10385 = vpop.f32.mrf.mxu0
    %v10386 = vadd.f32 %v10334, %v10385
    %10387 = vmatmul.f32.gmra.mxu0 %v10244
    %v10388 = vpop.f32.mrf.mxu0
    %v10389 = vadd.f32 %v10337, %v10388
    %10390 = vdwg.mxu0
    %10391 = vmatpush.msra.mxu0 %v10276
    %10392 = vmatpush.msra.mxu0 %v10274
    %10393 = vmatpush.msra.mxu0 %v10272
    %10394 = vmatpush.msra.mxu0 %v10270
    %10395 = vmatpush.msra.mxu0 %v10268
    %10396 = vmatpush.msra.mxu0 %v10266
    %10397 = vmatpush.msra.mxu0 %v10264
    %10398 = vmatpush.msra.mxu0 %v10262
    %10399 = vmatpush.msra.mxu0 %v10260
    %10400 = vmatpush.msra.mxu0 %v10258
    %10401 = vmatpush.msra.mxu0 %v10256
    %10402 = vmatpush.msra.mxu0 %v10254
    %10403 = vmatpush.msra.mxu0 %v10252
    %10404 = vmatpush.msra.mxu0 %v10250
    %10405 = vmatpush.msra.mxu0 %v10248
    %10406 = vmatpush.msra.mxu0 %v10246
    %10407 = vmatmul.f32.gmra.mxu0 %v10242
    %v10408 = vpop.f32.mrf.mxu0
    %v10409 = vadd.f32 %v10357, %v10408
    %10410 = vmatmul.f32.gmra.mxu0 %v10243
    %v10411 = vpop.f32.mrf.mxu0
    %v10412 = vadd.f32 %v10360, %v10411
    %10413 = vmatmul.f32.gmra.mxu0 %v10244
    %v10414 = vpop.f32.mrf.mxu0
    %v10415 = vadd.f32 %v10363, %v10414
    %10416 = vdwg.mxu0
    %v10417 = vld [vmem:[#allocation7 + $0x2] sm:$0xff]
    %v10418 = vld [vmem:[#allocation7 + $0xa] sm:$0xff]
    %v10419 = vld [vmem:[#allocation7 + $0x12] sm:$0x3f]
    %s10420 = scalar_lea.vmem %s10, 512
    %v10421 = vld [vmem:[%s10420] sm:$0xff]
    %v10422 = vld [vmem:[%s10420 + $0x8] sm:$0xff]
    %v10423 = vld [vmem:[%s10420 + $0x10] sm:$0xff]
    %v10424 = vld [vmem:[%s10420 + $0x18] sm:$0xff]
    %v10425 = vld [vmem:[%s10420 + $0x20] sm:$0xff]
    %v10426 = vld [vmem:[%s10420 + $0x28] sm:$0xff]
    %v10427 = vld [vmem:[%s10420 + $0x30] sm:$0xff]
    %v10428 = vld [vmem:[%s10420 + $0x38] sm:$0xff]
    %v10429 = vld [vmem:[%s10420 + $0x40] sm:$0xff]
    %v10430 = vld [vmem:[%s10420 + $0x48] sm:$0xff]
    %v10431 = vld [vmem:[%s10420 + $0x50] sm:$0xff]
    %v10432 = vld [vmem:[%s10420 + $0x58] sm:$0xff]
    %v10433 = vld [vmem:[%s10420 + $0x60] sm:$0xff]
    %v10434 = vld [vmem:[%s10420 + $0x68] sm:$0xff]
    %v10435 = vld [vmem:[%s10420 + $0x70] sm:$0xff]
    %v10436 = vld [vmem:[%s10420 + $0x78] sm:$0xff]
    %v10437 = vld [vmem:[%s10420 + $0x80] sm:$0xff]
    %v10438 = vld [vmem:[%s10420 + $0x88] sm:$0xff]
    %v10439 = vld [vmem:[%s10420 + $0x90] sm:$0xff]
    %v10440 = vld [vmem:[%s10420 + $0x98] sm:$0xff]
    %v10441 = vld [vmem:[%s10420 + $0xa0] sm:$0xff]
    %v10442 = vld [vmem:[%s10420 + $0xa8] sm:$0xff]
    %v10443 = vld [vmem:[%s10420 + $0xb0] sm:$0xff]
    %v10444 = vld [vmem:[%s10420 + $0xb8] sm:$0xff]
    %v10445 = vld [vmem:[%s10420 + $0xc0] sm:$0xff]
    %v10446 = vld [vmem:[%s10420 + $0xc8] sm:$0xff]
    %v10447 = vld [vmem:[%s10420 + $0xd0] sm:$0xff]
    %v10448 = vld [vmem:[%s10420 + $0xd8] sm:$0xff]
    %v10449 = vld [vmem:[%s10420 + $0xe0] sm:$0xff]
    %v10450 = vld [vmem:[%s10420 + $0xe8] sm:$0xff]
    %v10451 = vld [vmem:[%s10420 + $0xf0] sm:$0xff]
    %v10452 = vld [vmem:[%s10420 + $0xf8] sm:$0xff]
    %10453 = vmatpush.msra.mxu0 %v10451
    %10454 = vmatpush.msra.mxu0 %v10449
    %10455 = vmatpush.msra.mxu0 %v10447
    %10456 = vmatpush.msra.mxu0 %v10445
    %10457 = vmatpush.msra.mxu0 %v10443
    %10458 = vmatpush.msra.mxu0 %v10441
    %10459 = vmatpush.msra.mxu0 %v10439
    %10460 = vmatpush.msra.mxu0 %v10437
    %10461 = vmatpush.msra.mxu0 %v10435
    %10462 = vmatpush.msra.mxu0 %v10433
    %10463 = vmatpush.msra.mxu0 %v10431
    %10464 = vmatpush.msra.mxu0 %v10429
    %10465 = vmatpush.msra.mxu0 %v10427
    %10466 = vmatpush.msra.mxu0 %v10425
    %10467 = vmatpush.msra.mxu0 %v10423
    %10468 = vmatpush.msra.mxu0 %v10421
    %10469 = vmatmul.f32.gmra.mxu0 %v10417
    %v10470 = vpop.f32.mrf.mxu0
    %v10471 = vadd.f32 0.0, %v10470
    %10472 = vmatmul.f32.gmra.mxu0 %v10418
    %v10473 = vpop.f32.mrf.mxu0
    %v10474 = vadd.f32 0.0, %v10473
    %10475 = vmatmul.f32.gmra.mxu0 %v10419
    %v10476 = vpop.f32.mrf.mxu0
    %v10477 = vadd.f32 0.0, %v10476
    %10478 = vdwg.mxu0
    %10479 = vmatpush.msra.mxu0 %v10452
    %10480 = vmatpush.msra.mxu0 %v10450
    %10481 = vmatpush.msra.mxu0 %v10448
    %10482 = vmatpush.msra.mxu0 %v10446
    %10483 = vmatpush.msra.mxu0 %v10444
    %10484 = vmatpush.msra.mxu0 %v10442
    %10485 = vmatpush.msra.mxu0 %v10440
    %10486 = vmatpush.msra.mxu0 %v10438
    %10487 = vmatpush.msra.mxu0 %v10436
    %10488 = vmatpush.msra.mxu0 %v10434
    %10489 = vmatpush.msra.mxu0 %v10432
    %10490 = vmatpush.msra.mxu0 %v10430
    %10491 = vmatpush.msra.mxu0 %v10428
    %10492 = vmatpush.msra.mxu0 %v10426
    %10493 = vmatpush.msra.mxu0 %v10424
    %10494 = vmatpush.msra.mxu0 %v10422
    %10495 = vmatmul.f32.gmra.mxu0 %v10417
    %v10496 = vpop.f32.mrf.mxu0
    %v10497 = vadd.f32 0.0, %v10496
    %10498 = vmatmul.f32.gmra.mxu0 %v10418
    %v10499 = vpop.f32.mrf.mxu0
    %v10500 = vadd.f32 0.0, %v10499
    %10501 = vmatmul.f32.gmra.mxu0 %v10419
    %v10502 = vpop.f32.mrf.mxu0
    %v10503 = vadd.f32 0.0, %v10502
    %10504 = vdwg.mxu0
    %v10505 = vadd.f32 %v10383, %v10471
    %v10506 = vadd.f32 %v10409, %v10497
    %v10507 = vadd.f32 %v10386, %v10474
    %v10508 = vadd.f32 %v10412, %v10500
    %v10509 = vadd.f32 %v10389, %v10477
    %v10510 = vadd.f32 %v10415, %v10503
    %v10511 = vld [vmem:[#allocation7 + $0x4] sm:$0xff]
    %v10512 = vld [vmem:[#allocation7 + $0xc] sm:$0xff]
    %v10513 = vld [vmem:[#allocation7 + $0x14] sm:$0x3f]
    %s10514 = scalar_lea.vmem %s10, 768
    %v10515 = vld [vmem:[%s10514] sm:$0xff]
    %v10516 = vld [vmem:[%s10514 + $0x8] sm:$0xff]
    %v10517 = vld [vmem:[%s10514 + $0x10] sm:$0xff]
    %v10518 = vld [vmem:[%s10514 + $0x18] sm:$0xff]
    %v10519 = vld [vmem:[%s10514 + $0x20] sm:$0xff]
    %v10520 = vld [vmem:[%s10514 + $0x28] sm:$0xff]
    %v10521 = vld [vmem:[%s10514 + $0x30] sm:$0xff]
    %v10522 = vld [vmem:[%s10514 + $0x38] sm:$0xff]
    %v10523 = vld [vmem:[%s10514 + $0x40] sm:$0xff]
    %v10524 = vld [vmem:[%s10514 + $0x48] sm:$0xff]
    %v10525 = vld [vmem:[%s10514 + $0x50] sm:$0xff]
    %v10526 = vld [vmem:[%s10514 + $0x58] sm:$0xff]
    %v10527 = vld [vmem:[%s10514 + $0x60] sm:$0xff]
    %v10528 = vld [vmem:[%s10514 + $0x68] sm:$0xff]
    %v10529 = vld [vmem:[%s10514 + $0x70] sm:$0xff]
    %v10530 = vld [vmem:[%s10514 + $0x78] sm:$0xff]
    %v10531 = vld [vmem:[%s10514 + $0x80] sm:$0xff]
    %v10532 = vld [vmem:[%s10514 + $0x88] sm:$0xff]
    %v10533 = vld [vmem:[%s10514 + $0x90] sm:$0xff]
    %v10534 = vld [vmem:[%s10514 + $0x98] sm:$0xff]
    %v10535 = vld [vmem:[%s10514 + $0xa0] sm:$0xff]
    %v10536 = vld [vmem:[%s10514 + $0xa8] sm:$0xff]
    %v10537 = vld [vmem:[%s10514 + $0xb0] sm:$0xff]
    %v10538 = vld [vmem:[%s10514 + $0xb8] sm:$0xff]
    %v10539 = vld [vmem:[%s10514 + $0xc0] sm:$0xff]
    %v10540 = vld [vmem:[%s10514 + $0xc8] sm:$0xff]
    %v10541 = vld [vmem:[%s10514 + $0xd0] sm:$0xff]
    %v10542 = vld [vmem:[%s10514 + $0xd8] sm:$0xff]
    %v10543 = vld [vmem:[%s10514 + $0xe0] sm:$0xff]
    %v10544 = vld [vmem:[%s10514 + $0xe8] sm:$0xff]
    %v10545 = vld [vmem:[%s10514 + $0xf0] sm:$0xff]
    %v10546 = vld [vmem:[%s10514 + $0xf8] sm:$0xff]
    %10547 = vmatpush.msra.mxu0 %v10545
    %10548 = vmatpush.msra.mxu0 %v10543
    %10549 = vmatpush.msra.mxu0 %v10541
    %10550 = vmatpush.msra.mxu0 %v10539
    %10551 = vmatpush.msra.mxu0 %v10537
    %10552 = vmatpush.msra.mxu0 %v10535
    %10553 = vmatpush.msra.mxu0 %v10533
    %10554 = vmatpush.msra.mxu0 %v10531
    %10555 = vmatpush.msra.mxu0 %v10529
    %10556 = vmatpush.msra.mxu0 %v10527
    %10557 = vmatpush.msra.mxu0 %v10525
    %10558 = vmatpush.msra.mxu0 %v10523
    %10559 = vmatpush.msra.mxu0 %v10521
    %10560 = vmatpush.msra.mxu0 %v10519
    %10561 = vmatpush.msra.mxu0 %v10517
    %10562 = vmatpush.msra.mxu0 %v10515
    %10563 = vmatmul.f32.gmra.mxu0 %v10511
    %v10564 = vpop.f32.mrf.mxu0
    %v10565 = vadd.f32 0.0, %v10564
    %10566 = vmatmul.f32.gmra.mxu0 %v10512
    %v10567 = vpop.f32.mrf.mxu0
    %v10568 = vadd.f32 0.0, %v10567
    %10569 = vmatmul.f32.gmra.mxu0 %v10513
    %v10570 = vpop.f32.mrf.mxu0
    %v10571 = vadd.f32 0.0, %v10570
    %10572 = vdwg.mxu0
    %10573 = vmatpush.msra.mxu0 %v10546
    %10574 = vmatpush.msra.mxu0 %v10544
    %10575 = vmatpush.msra.mxu0 %v10542
    %10576 = vmatpush.msra.mxu0 %v10540
    %10577 = vmatpush.msra.mxu0 %v10538
    %10578 = vmatpush.msra.mxu0 %v10536
    %10579 = vmatpush.msra.mxu0 %v10534
    %10580 = vmatpush.msra.mxu0 %v10532
    %10581 = vmatpush.msra.mxu0 %v10530
    %10582 = vmatpush.msra.mxu0 %v10528
    %10583 = vmatpush.msra.mxu0 %v10526
    %10584 = vmatpush.msra.mxu0 %v10524
    %10585 = vmatpush.msra.mxu0 %v10522
    %10586 = vmatpush.msra.mxu0 %v10520
    %10587 = vmatpush.msra.mxu0 %v10518
    %10588 = vmatpush.msra.mxu0 %v10516
    %10589 = vmatmul.f32.gmra.mxu0 %v10511
    %v10590 = vpop.f32.mrf.mxu0
    %v10591 = vadd.f32 0.0, %v10590
    %10592 = vmatmul.f32.gmra.mxu0 %v10512
    %v10593 = vpop.f32.mrf.mxu0
    %v10594 = vadd.f32 0.0, %v10593
    %10595 = vmatmul.f32.gmra.mxu0 %v10513
    %v10596 = vpop.f32.mrf.mxu0
    %v10597 = vadd.f32 0.0, %v10596
    %10598 = vdwg.mxu0
    %v10599 = vadd.f32 %v10505, %v10565
    %v10600 = vadd.f32 %v10506, %v10591
    %v10601 = vadd.f32 %v10507, %v10568
    %v10602 = vadd.f32 %v10508, %v10594
    %v10603 = vadd.f32 %v10509, %v10571
    %v10604 = vadd.f32 %v10510, %v10597
    %v10605 = vld [vmem:[#allocation7 + $0x5] sm:$0xff]
    %v10606 = vld [vmem:[#allocation7 + $0xd] sm:$0xff]
    %v10607 = vld [vmem:[#allocation7 + $0x15] sm:$0x3f]
    %s10608 = scalar_lea.vmem %s10, 1024
    %v10609 = vld [vmem:[%s10608] sm:$0xff]
    %v10610 = vld [vmem:[%s10608 + $0x8] sm:$0xff]
    %v10611 = vld [vmem:[%s10608 + $0x10] sm:$0xff]
    %v10612 = vld [vmem:[%s10608 + $0x18] sm:$0xff]
    %v10613 = vld [vmem:[%s10608 + $0x20] sm:$0xff]
    %v10614 = vld [vmem:[%s10608 + $0x28] sm:$0xff]
    %v10615 = vld [vmem:[%s10608 + $0x30] sm:$0xff]
    %v10616 = vld [vmem:[%s10608 + $0x38] sm:$0xff]
    %v10617 = vld [vmem:[%s10608 + $0x40] sm:$0xff]
    %v10618 = vld [vmem:[%s10608 + $0x48] sm:$0xff]
    %v10619 = vld [vmem:[%s10608 + $0x50] sm:$0xff]
    %v10620 = vld [vmem:[%s10608 + $0x58] sm:$0xff]
    %v10621 = vld [vmem:[%s10608 + $0x60] sm:$0xff]
    %v10622 = vld [vmem:[%s10608 + $0x68] sm:$0xff]
    %v10623 = vld [vmem:[%s10608 + $0x70] sm:$0xff]
    %v10624 = vld [vmem:[%s10608 + $0x78] sm:$0xff]
    %v10625 = vld [vmem:[%s10608 + $0x80] sm:$0xff]
    %v10626 = vld [vmem:[%s10608 + $0x88] sm:$0xff]
    %v10627 = vld [vmem:[%s10608 + $0x90] sm:$0xff]
    %v10628 = vld [vmem:[%s10608 + $0x98] sm:$0xff]
    %v10629 = vld [vmem:[%s10608 + $0xa0] sm:$0xff]
    %v10630 = vld [vmem:[%s10608 + $0xa8] sm:$0xff]
    %v10631 = vld [vmem:[%s10608 + $0xb0] sm:$0xff]
    %v10632 = vld [vmem:[%s10608 + $0xb8] sm:$0xff]
    %v10633 = vld [vmem:[%s10608 + $0xc0] sm:$0xff]
    %v10634 = vld [vmem:[%s10608 + $0xc8] sm:$0xff]
    %v10635 = vld [vmem:[%s10608 + $0xd0] sm:$0xff]
    %v10636 = vld [vmem:[%s10608 + $0xd8] sm:$0xff]
    %v10637 = vld [vmem:[%s10608 + $0xe0] sm:$0xff]
    %v10638 = vld [vmem:[%s10608 + $0xe8] sm:$0xff]
    %v10639 = vld [vmem:[%s10608 + $0xf0] sm:$0xff]
    %v10640 = vld [vmem:[%s10608 + $0xf8] sm:$0xff]
    %10641 = vmatpush.msra.mxu0 %v10639
    %10642 = vmatpush.msra.mxu0 %v10637
    %10643 = vmatpush.msra.mxu0 %v10635
    %10644 = vmatpush.msra.mxu0 %v10633
    %10645 = vmatpush.msra.mxu0 %v10631
    %10646 = vmatpush.msra.mxu0 %v10629
    %10647 = vmatpush.msra.mxu0 %v10627
    %10648 = vmatpush.msra.mxu0 %v10625
    %10649 = vmatpush.msra.mxu0 %v10623
    %10650 = vmatpush.msra.mxu0 %v10621
    %10651 = vmatpush.msra.mxu0 %v10619
    %10652 = vmatpush.msra.mxu0 %v10617
    %10653 = vmatpush.msra.mxu0 %v10615
    %10654 = vmatpush.msra.mxu0 %v10613
    %10655 = vmatpush.msra.mxu0 %v10611
    %10656 = vmatpush.msra.mxu0 %v10609
    %10657 = vmatmul.f32.gmra.mxu0 %v10605
    %v10658 = vpop.f32.mrf.mxu0
    %v10659 = vadd.f32 0.0, %v10658
    %10660 = vmatmul.f32.gmra.mxu0 %v10606
    %v10661 = vpop.f32.mrf.mxu0
    %v10662 = vadd.f32 0.0, %v10661
    %10663 = vmatmul.f32.gmra.mxu0 %v10607
    %v10664 = vpop.f32.mrf.mxu0
    %v10665 = vadd.f32 0.0, %v10664
    %10666 = vdwg.mxu0
    %10667 = vmatpush.msra.mxu0 %v10640
    %10668 = vmatpush.msra.mxu0 %v10638
    %10669 = vmatpush.msra.mxu0 %v10636
    %10670 = vmatpush.msra.mxu0 %v10634
    %10671 = vmatpush.msra.mxu0 %v10632
    %10672 = vmatpush.msra.mxu0 %v10630
    %10673 = vmatpush.msra.mxu0 %v10628
    %10674 = vmatpush.msra.mxu0 %v10626
    %10675 = vmatpush.msra.mxu0 %v10624
    %10676 = vmatpush.msra.mxu0 %v10622
    %10677 = vmatpush.msra.mxu0 %v10620
    %10678 = vmatpush.msra.mxu0 %v10618
    %10679 = vmatpush.msra.mxu0 %v10616
    %10680 = vmatpush.msra.mxu0 %v10614
    %10681 = vmatpush.msra.mxu0 %v10612
    %10682 = vmatpush.msra.mxu0 %v10610
    %10683 = vmatmul.f32.gmra.mxu0 %v10605
    %v10684 = vpop.f32.mrf.mxu0
    %v10685 = vadd.f32 0.0, %v10684
    %10686 = vmatmul.f32.gmra.mxu0 %v10606
    %v10687 = vpop.f32.mrf.mxu0
    %v10688 = vadd.f32 0.0, %v10687
    %10689 = vmatmul.f32.gmra.mxu0 %v10607
    %v10690 = vpop.f32.mrf.mxu0
    %v10691 = vadd.f32 0.0, %v10690
    %10692 = vdwg.mxu0
    %v10693 = vadd.f32 %v10599, %v10659
    %v10694 = vadd.f32 %v10600, %v10685
    %v10695 = vadd.f32 %v10601, %v10662
    %v10696 = vadd.f32 %v10602, %v10688
    %v10697 = vadd.f32 %v10603, %v10665
    %v10698 = vadd.f32 %v10604, %v10691
    %v10699 = vld [vmem:[#allocation7 + $0x6] sm:$0xff]
    %v10700 = vld [vmem:[#allocation7 + $0xe] sm:$0xff]
    %v10701 = vld [vmem:[#allocation7 + $0x16] sm:$0x3f]
    %s10702 = scalar_lea.vmem %s10, 1280
    %v10703 = vld [vmem:[%s10702] sm:$0xff]
    %v10704 = vld [vmem:[%s10702 + $0x8] sm:$0xff]
    %v10705 = vld [vmem:[%s10702 + $0x10] sm:$0xff]
    %v10706 = vld [vmem:[%s10702 + $0x18] sm:$0xff]
    %v10707 = vld [vmem:[%s10702 + $0x20] sm:$0xff]
    %v10708 = vld [vmem:[%s10702 + $0x28] sm:$0xff]
    %v10709 = vld [vmem:[%s10702 + $0x30] sm:$0xff]
    %v10710 = vld [vmem:[%s10702 + $0x38] sm:$0xff]
    %v10711 = vld [vmem:[%s10702 + $0x40] sm:$0xff]
    %v10712 = vld [vmem:[%s10702 + $0x48] sm:$0xff]
    %v10713 = vld [vmem:[%s10702 + $0x50] sm:$0xff]
    %v10714 = vld [vmem:[%s10702 + $0x58] sm:$0xff]
    %v10715 = vld [vmem:[%s10702 + $0x60] sm:$0xff]
    %v10716 = vld [vmem:[%s10702 + $0x68] sm:$0xff]
    %v10717 = vld [vmem:[%s10702 + $0x70] sm:$0xff]
    %v10718 = vld [vmem:[%s10702 + $0x78] sm:$0xff]
    %v10719 = vld [vmem:[%s10702 + $0x80] sm:$0xff]
    %v10720 = vld [vmem:[%s10702 + $0x88] sm:$0xff]
    %v10721 = vld [vmem:[%s10702 + $0x90] sm:$0xff]
    %v10722 = vld [vmem:[%s10702 + $0x98] sm:$0xff]
    %v10723 = vld [vmem:[%s10702 + $0xa0] sm:$0xff]
    %v10724 = vld [vmem:[%s10702 + $0xa8] sm:$0xff]
    %v10725 = vld [vmem:[%s10702 + $0xb0] sm:$0xff]
    %v10726 = vld [vmem:[%s10702 + $0xb8] sm:$0xff]
    %v10727 = vld [vmem:[%s10702 + $0xc0] sm:$0xff]
    %v10728 = vld [vmem:[%s10702 + $0xc8] sm:$0xff]
    %v10729 = vld [vmem:[%s10702 + $0xd0] sm:$0xff]
    %v10730 = vld [vmem:[%s10702 + $0xd8] sm:$0xff]
    %v10731 = vld [vmem:[%s10702 + $0xe0] sm:$0xff]
    %v10732 = vld [vmem:[%s10702 + $0xe8] sm:$0xff]
    %v10733 = vld [vmem:[%s10702 + $0xf0] sm:$0xff]
    %v10734 = vld [vmem:[%s10702 + $0xf8] sm:$0xff]
    %10735 = vmatpush.msra.mxu0 %v10733
    %10736 = vmatpush.msra.mxu0 %v10731
    %10737 = vmatpush.msra.mxu0 %v10729
    %10738 = vmatpush.msra.mxu0 %v10727
    %10739 = vmatpush.msra.mxu0 %v10725
    %10740 = vmatpush.msra.mxu0 %v10723
    %10741 = vmatpush.msra.mxu0 %v10721
    %10742 = vmatpush.msra.mxu0 %v10719
    %10743 = vmatpush.msra.mxu0 %v10717
    %10744 = vmatpush.msra.mxu0 %v10715
    %10745 = vmatpush.msra.mxu0 %v10713
    %10746 = vmatpush.msra.mxu0 %v10711
    %10747 = vmatpush.msra.mxu0 %v10709
    %10748 = vmatpush.msra.mxu0 %v10707
    %10749 = vmatpush.msra.mxu0 %v10705
    %10750 = vmatpush.msra.mxu0 %v10703
    %10751 = vmatmul.f32.gmra.mxu0 %v10699
    %v10752 = vpop.f32.mrf.mxu0
    %v10753 = vadd.f32 0.0, %v10752
    %10754 = vmatmul.f32.gmra.mxu0 %v10700
    %v10755 = vpop.f32.mrf.mxu0
    %v10756 = vadd.f32 0.0, %v10755
    %10757 = vmatmul.f32.gmra.mxu0 %v10701
    %v10758 = vpop.f32.mrf.mxu0
    %v10759 = vadd.f32 0.0, %v10758
    %10760 = vdwg.mxu0
    %10761 = vmatpush.msra.mxu0 %v10734
    %10762 = vmatpush.msra.mxu0 %v10732
    %10763 = vmatpush.msra.mxu0 %v10730
    %10764 = vmatpush.msra.mxu0 %v10728
    %10765 = vmatpush.msra.mxu0 %v10726
    %10766 = vmatpush.msra.mxu0 %v10724
    %10767 = vmatpush.msra.mxu0 %v10722
    %10768 = vmatpush.msra.mxu0 %v10720
    %10769 = vmatpush.msra.mxu0 %v10718
    %10770 = vmatpush.msra.mxu0 %v10716
    %10771 = vmatpush.msra.mxu0 %v10714
    %10772 = vmatpush.msra.mxu0 %v10712
    %10773 = vmatpush.msra.mxu0 %v10710
    %10774 = vmatpush.msra.mxu0 %v10708
    %10775 = vmatpush.msra.mxu0 %v10706
    %10776 = vmatpush.msra.mxu0 %v10704
    %10777 = vmatmul.f32.gmra.mxu0 %v10699
    %v10778 = vpop.f32.mrf.mxu0
    %v10779 = vadd.f32 0.0, %v10778
    %10780 = vmatmul.f32.gmra.mxu0 %v10700
    %v10781 = vpop.f32.mrf.mxu0
    %v10782 = vadd.f32 0.0, %v10781
    %10783 = vmatmul.f32.gmra.mxu0 %v10701
    %v10784 = vpop.f32.mrf.mxu0
    %v10785 = vadd.f32 0.0, %v10784
    %10786 = vdwg.mxu0
    %v10787 = vadd.f32 %v10693, %v10753
    %v10788 = vadd.f32 %v10694, %v10779
    %v10789 = vadd.f32 %v10695, %v10756
    %v10790 = vadd.f32 %v10696, %v10782
    %v10791 = vadd.f32 %v10697, %v10759
    %v10792 = vadd.f32 %v10698, %v10785
    %v10793 = vld [vmem:[#allocation7 + $0x8] sm:$0xff]
    %v10794 = vld [vmem:[#allocation7 + $0x10] sm:$0xff]
    %v10795 = vld [vmem:[#allocation7 + $0x18] sm:$0x3f]
    %s10796 = scalar_lea.vmem %s10, 1536
    %v10797 = vld [vmem:[%s10796] sm:$0xff]
    %v10798 = vld [vmem:[%s10796 + $0x8] sm:$0xff]
    %v10799 = vld [vmem:[%s10796 + $0x10] sm:$0xff]
    %v10800 = vld [vmem:[%s10796 + $0x18] sm:$0xff]
    %v10801 = vld [vmem:[%s10796 + $0x20] sm:$0xff]
    %v10802 = vld [vmem:[%s10796 + $0x28] sm:$0xff]
    %v10803 = vld [vmem:[%s10796 + $0x30] sm:$0xff]
    %v10804 = vld [vmem:[%s10796 + $0x38] sm:$0xff]
    %v10805 = vld [vmem:[%s10796 + $0x40] sm:$0xff]
    %v10806 = vld [vmem:[%s10796 + $0x48] sm:$0xff]
    %v10807 = vld [vmem:[%s10796 + $0x50] sm:$0xff]
    %v10808 = vld [vmem:[%s10796 + $0x58] sm:$0xff]
    %v10809 = vld [vmem:[%s10796 + $0x60] sm:$0xff]
    %v10810 = vld [vmem:[%s10796 + $0x68] sm:$0xff]
    %v10811 = vld [vmem:[%s10796 + $0x70] sm:$0xff]
    %v10812 = vld [vmem:[%s10796 + $0x78] sm:$0xff]
    %v10813 = vld [vmem:[%s10796 + $0x80] sm:$0xff]
    %v10814 = vld [vmem:[%s10796 + $0x88] sm:$0xff]
    %v10815 = vld [vmem:[%s10796 + $0x90] sm:$0xff]
    %v10816 = vld [vmem:[%s10796 + $0x98] sm:$0xff]
    %v10817 = vld [vmem:[%s10796 + $0xa0] sm:$0xff]
    %v10818 = vld [vmem:[%s10796 + $0xa8] sm:$0xff]
    %v10819 = vld [vmem:[%s10796 + $0xb0] sm:$0xff]
    %v10820 = vld [vmem:[%s10796 + $0xb8] sm:$0xff]
    %v10821 = vld [vmem:[%s10796 + $0xc0] sm:$0xff]
    %v10822 = vld [vmem:[%s10796 + $0xc8] sm:$0xff]
    %v10823 = vld [vmem:[%s10796 + $0xd0] sm:$0xff]
    %v10824 = vld [vmem:[%s10796 + $0xd8] sm:$0xff]
    %v10825 = vld [vmem:[%s10796 + $0xe0] sm:$0xff]
    %v10826 = vld [vmem:[%s10796 + $0xe8] sm:$0xff]
    %v10827 = vld [vmem:[%s10796 + $0xf0] sm:$0xff]
    %v10828 = vld [vmem:[%s10796 + $0xf8] sm:$0xff]
    %10829 = vmatpush.msra.mxu0 %v10827
    %10830 = vmatpush.msra.mxu0 %v10825
    %10831 = vmatpush.msra.mxu0 %v10823
    %10832 = vmatpush.msra.mxu0 %v10821
    %10833 = vmatpush.msra.mxu0 %v10819
    %10834 = vmatpush.msra.mxu0 %v10817
    %10835 = vmatpush.msra.mxu0 %v10815
    %10836 = vmatpush.msra.mxu0 %v10813
    %10837 = vmatpush.msra.mxu0 %v10811
    %10838 = vmatpush.msra.mxu0 %v10809
    %10839 = vmatpush.msra.mxu0 %v10807
    %10840 = vmatpush.msra.mxu0 %v10805
    %10841 = vmatpush.msra.mxu0 %v10803
    %10842 = vmatpush.msra.mxu0 %v10801
    %10843 = vmatpush.msra.mxu0 %v10799
    %10844 = vmatpush.msra.mxu0 %v10797
    %10845 = vmatmul.f32.gmra.mxu0 %v10793
    %v10846 = vpop.f32.mrf.mxu0
    %v10847 = vadd.f32 0.0, %v10846
    %10848 = vmatmul.f32.gmra.mxu0 %v10794
    %v10849 = vpop.f32.mrf.mxu0
    %v10850 = vadd.f32 0.0, %v10849
    %10851 = vmatmul.f32.gmra.mxu0 %v10795
    %v10852 = vpop.f32.mrf.mxu0
    %v10853 = vadd.f32 0.0, %v10852
    %10854 = vdwg.mxu0
    %10855 = vmatpush.msra.mxu0 %v10828
    %10856 = vmatpush.msra.mxu0 %v10826
    %10857 = vmatpush.msra.mxu0 %v10824
    %10858 = vmatpush.msra.mxu0 %v10822
    %10859 = vmatpush.msra.mxu0 %v10820
    %10860 = vmatpush.msra.mxu0 %v10818
    %10861 = vmatpush.msra.mxu0 %v10816
    %10862 = vmatpush.msra.mxu0 %v10814
    %10863 = vmatpush.msra.mxu0 %v10812
    %10864 = vmatpush.msra.mxu0 %v10810
    %10865 = vmatpush.msra.mxu0 %v10808
    %10866 = vmatpush.msra.mxu0 %v10806
    %10867 = vmatpush.msra.mxu0 %v10804
    %10868 = vmatpush.msra.mxu0 %v10802
    %10869 = vmatpush.msra.mxu0 %v10800
    %10870 = vmatpush.msra.mxu0 %v10798
    %10871 = vmatmul.f32.gmra.mxu0 %v10793
    %v10872 = vpop.f32.mrf.mxu0
    %v10873 = vadd.f32 0.0, %v10872
    %10874 = vmatmul.f32.gmra.mxu0 %v10794
    %v10875 = vpop.f32.mrf.mxu0
    %v10876 = vadd.f32 0.0, %v10875
    %10877 = vmatmul.f32.gmra.mxu0 %v10795
    %v10878 = vpop.f32.mrf.mxu0
    %v10879 = vadd.f32 0.0, %v10878
    %10880 = vdwg.mxu0
    %v10881 = vadd.f32 %v10787, %v10847
    %v10882 = vadd.f32 %v10788, %v10873
    %v10883 = vadd.f32 %v10789, %v10850
    %v10884 = vadd.f32 %v10790, %v10876
    %v10885 = vadd.f32 %v10791, %v10853
    %v10886 = vadd.f32 %v10792, %v10879
    %v10887 = vld [vmem:[#allocation7 + $0x9] sm:$0xff]
    %v10888 = vld [vmem:[#allocation7 + $0x11] sm:$0xff]
    %v10889 = vld [vmem:[#allocation7 + $0x19] sm:$0x3f]
    %s10890 = scalar_lea.vmem %s10, 1792
    %v10891 = vld [vmem:[%s10890] sm:$0xff]
    %v10892 = vld [vmem:[%s10890 + $0x8] sm:$0xff]
    %v10893 = vld [vmem:[%s10890 + $0x10] sm:$0xff]
    %v10894 = vld [vmem:[%s10890 + $0x18] sm:$0xff]
    %v10895 = vld [vmem:[%s10890 + $0x20] sm:$0xff]
    %v10896 = vld [vmem:[%s10890 + $0x28] sm:$0xff]
    %v10897 = vld [vmem:[%s10890 + $0x30] sm:$0xff]
    %v10898 = vld [vmem:[%s10890 + $0x38] sm:$0xff]
    %v10899 = vld [vmem:[%s10890 + $0x40] sm:$0xff]
    %v10900 = vld [vmem:[%s10890 + $0x48] sm:$0xff]
    %v10901 = vld [vmem:[%s10890 + $0x50] sm:$0xff]
    %v10902 = vld [vmem:[%s10890 + $0x58] sm:$0xff]
    %v10903 = vld [vmem:[%s10890 + $0x60] sm:$0xff]
    %v10904 = vld [vmem:[%s10890 + $0x68] sm:$0xff]
    %v10905 = vld [vmem:[%s10890 + $0x70] sm:$0xff]
    %v10906 = vld [vmem:[%s10890 + $0x78] sm:$0xff]
    %v10907 = vld [vmem:[%s10890 + $0x80] sm:$0xff]
    %v10908 = vld [vmem:[%s10890 + $0x88] sm:$0xff]
    %v10909 = vld [vmem:[%s10890 + $0x90] sm:$0xff]
    %v10910 = vld [vmem:[%s10890 + $0x98] sm:$0xff]
    %v10911 = vld [vmem:[%s10890 + $0xa0] sm:$0xff]
    %v10912 = vld [vmem:[%s10890 + $0xa8] sm:$0xff]
    %v10913 = vld [vmem:[%s10890 + $0xb0] sm:$0xff]
    %v10914 = vld [vmem:[%s10890 + $0xb8] sm:$0xff]
    %v10915 = vld [vmem:[%s10890 + $0xc0] sm:$0xff]
    %v10916 = vld [vmem:[%s10890 + $0xc8] sm:$0xff]
    %v10917 = vld [vmem:[%s10890 + $0xd0] sm:$0xff]
    %v10918 = vld [vmem:[%s10890 + $0xd8] sm:$0xff]
    %v10919 = vld [vmem:[%s10890 + $0xe0] sm:$0xff]
    %v10920 = vld [vmem:[%s10890 + $0xe8] sm:$0xff]
    %v10921 = vld [vmem:[%s10890 + $0xf0] sm:$0xff]
    %v10922 = vld [vmem:[%s10890 + $0xf8] sm:$0xff]
    %10923 = vmatpush.msra.mxu0 %v10921
    %10924 = vmatpush.msra.mxu0 %v10919
    %10925 = vmatpush.msra.mxu0 %v10917
    %10926 = vmatpush.msra.mxu0 %v10915
    %10927 = vmatpush.msra.mxu0 %v10913
    %10928 = vmatpush.msra.mxu0 %v10911
    %10929 = vmatpush.msra.mxu0 %v10909
    %10930 = vmatpush.msra.mxu0 %v10907
    %10931 = vmatpush.msra.mxu0 %v10905
    %10932 = vmatpush.msra.mxu0 %v10903
    %10933 = vmatpush.msra.mxu0 %v10901
    %10934 = vmatpush.msra.mxu0 %v10899
    %10935 = vmatpush.msra.mxu0 %v10897
    %10936 = vmatpush.msra.mxu0 %v10895
    %10937 = vmatpush.msra.mxu0 %v10893
    %10938 = vmatpush.msra.mxu0 %v10891
    %10939 = vmatmul.f32.gmra.mxu0 %v10887
    %v10940 = vpop.f32.mrf.mxu0
    %v10941 = vadd.f32 0.0, %v10940
    %10942 = vmatmul.f32.gmra.mxu0 %v10888
    %v10943 = vpop.f32.mrf.mxu0
    %v10944 = vadd.f32 0.0, %v10943
    %10945 = vmatmul.f32.gmra.mxu0 %v10889
    %v10946 = vpop.f32.mrf.mxu0
    %v10947 = vadd.f32 0.0, %v10946
    %10948 = vdwg.mxu0
    %10949 = vmatpush.msra.mxu0 %v10922
    %10950 = vmatpush.msra.mxu0 %v10920
    %10951 = vmatpush.msra.mxu0 %v10918
    %10952 = vmatpush.msra.mxu0 %v10916
    %10953 = vmatpush.msra.mxu0 %v10914
    %10954 = vmatpush.msra.mxu0 %v10912
    %10955 = vmatpush.msra.mxu0 %v10910
    %10956 = vmatpush.msra.mxu0 %v10908
    %10957 = vmatpush.msra.mxu0 %v10906
    %10958 = vmatpush.msra.mxu0 %v10904
    %10959 = vmatpush.msra.mxu0 %v10902
    %10960 = vmatpush.msra.mxu0 %v10900
    %10961 = vmatpush.msra.mxu0 %v10898
    %10962 = vmatpush.msra.mxu0 %v10896
    %10963 = vmatpush.msra.mxu0 %v10894
    %10964 = vmatpush.msra.mxu0 %v10892
    %10965 = vmatmul.f32.gmra.mxu0 %v10887
    %v10966 = vpop.f32.mrf.mxu0
    %v10967 = vadd.f32 0.0, %v10966
    %10968 = vmatmul.f32.gmra.mxu0 %v10888
    %v10969 = vpop.f32.mrf.mxu0
    %v10970 = vadd.f32 0.0, %v10969
    %10971 = vmatmul.f32.gmra.mxu0 %v10889
    %v10972 = vpop.f32.mrf.mxu0
    %v10973 = vadd.f32 0.0, %v10972
    %10974 = vdwg.mxu0
    %v10975 = vadd.f32 %v10881, %v10941
    %v10976 = vadd.f32 %v10882, %v10967
    %v10977 = vadd.f32 %v10883, %v10944
    %v10978 = vadd.f32 %v10884, %v10970
    %v10979 = vadd.f32 %v10885, %v10947
    %v10980 = vadd.f32 %v10886, %v10973
    %v10981 = vld [vmem:[#allocation7 + $0xa] sm:$0xff]
    %v10982 = vld [vmem:[#allocation7 + $0x12] sm:$0xff]
    %v10983 = vld [vmem:[#allocation7 + $0x1a] sm:$0x3f]
    %s10984 = scalar_lea.vmem %s10, 2048
    %v10985 = vld [vmem:[%s10984] sm:$0xff]
    %v10986 = vld [vmem:[%s10984 + $0x8] sm:$0xff]
    %v10987 = vld [vmem:[%s10984 + $0x10] sm:$0xff]
    %v10988 = vld [vmem:[%s10984 + $0x18] sm:$0xff]
    %v10989 = vld [vmem:[%s10984 + $0x20] sm:$0xff]
    %v10990 = vld [vmem:[%s10984 + $0x28] sm:$0xff]
    %v10991 = vld [vmem:[%s10984 + $0x30] sm:$0xff]
    %v10992 = vld [vmem:[%s10984 + $0x38] sm:$0xff]
    %v10993 = vld [vmem:[%s10984 + $0x40] sm:$0xff]
    %v10994 = vld [vmem:[%s10984 + $0x48] sm:$0xff]
    %v10995 = vld [vmem:[%s10984 + $0x50] sm:$0xff]
    %v10996 = vld [vmem:[%s10984 + $0x58] sm:$0xff]
    %v10997 = vld [vmem:[%s10984 + $0x60] sm:$0xff]
    %v10998 = vld [vmem:[%s10984 + $0x68] sm:$0xff]
    %v10999 = vld [vmem:[%s10984 + $0x70] sm:$0xff]
    %v11000 = vld [vmem:[%s10984 + $0x78] sm:$0xff]
    %v11001 = vld [vmem:[%s10984 + $0x80] sm:$0xff]
    %v11002 = vld [vmem:[%s10984 + $0x88] sm:$0xff]
    %v11003 = vld [vmem:[%s10984 + $0x90] sm:$0xff]
    %v11004 = vld [vmem:[%s10984 + $0x98] sm:$0xff]
    %v11005 = vld [vmem:[%s10984 + $0xa0] sm:$0xff]
    %v11006 = vld [vmem:[%s10984 + $0xa8] sm:$0xff]
    %v11007 = vld [vmem:[%s10984 + $0xb0] sm:$0xff]
    %v11008 = vld [vmem:[%s10984 + $0xb8] sm:$0xff]
    %v11009 = vld [vmem:[%s10984 + $0xc0] sm:$0xff]
    %v11010 = vld [vmem:[%s10984 + $0xc8] sm:$0xff]
    %v11011 = vld [vmem:[%s10984 + $0xd0] sm:$0xff]
    %v11012 = vld [vmem:[%s10984 + $0xd8] sm:$0xff]
    %v11013 = vld [vmem:[%s10984 + $0xe0] sm:$0xff]
    %v11014 = vld [vmem:[%s10984 + $0xe8] sm:$0xff]
    %v11015 = vld [vmem:[%s10984 + $0xf0] sm:$0xff]
    %v11016 = vld [vmem:[%s10984 + $0xf8] sm:$0xff]
    %11017 = vmatpush.msra.mxu0 %v11015
    %11018 = vmatpush.msra.mxu0 %v11013
    %11019 = vmatpush.msra.mxu0 %v11011
    %11020 = vmatpush.msra.mxu0 %v11009
    %11021 = vmatpush.msra.mxu0 %v11007
    %11022 = vmatpush.msra.mxu0 %v11005
    %11023 = vmatpush.msra.mxu0 %v11003
    %11024 = vmatpush.msra.mxu0 %v11001
    %11025 = vmatpush.msra.mxu0 %v10999
    %11026 = vmatpush.msra.mxu0 %v10997
    %11027 = vmatpush.msra.mxu0 %v10995
    %11028 = vmatpush.msra.mxu0 %v10993
    %11029 = vmatpush.msra.mxu0 %v10991
    %11030 = vmatpush.msra.mxu0 %v10989
    %11031 = vmatpush.msra.mxu0 %v10987
    %11032 = vmatpush.msra.mxu0 %v10985
    %11033 = vmatmul.f32.gmra.mxu0 %v10981
    %v11034 = vpop.f32.mrf.mxu0
    %v11035 = vadd.f32 0.0, %v11034
    %11036 = vmatmul.f32.gmra.mxu0 %v10982
    %v11037 = vpop.f32.mrf.mxu0
    %v11038 = vadd.f32 0.0, %v11037
    %11039 = vmatmul.f32.gmra.mxu0 %v10983
    %v11040 = vpop.f32.mrf.mxu0
    %v11041 = vadd.f32 0.0, %v11040
    %11042 = vdwg.mxu0
    %11043 = vmatpush.msra.mxu0 %v11016
    %11044 = vmatpush.msra.mxu0 %v11014
    %11045 = vmatpush.msra.mxu0 %v11012
    %11046 = vmatpush.msra.mxu0 %v11010
    %11047 = vmatpush.msra.mxu0 %v11008
    %11048 = vmatpush.msra.mxu0 %v11006
    %11049 = vmatpush.msra.mxu0 %v11004
    %11050 = vmatpush.msra.mxu0 %v11002
    %11051 = vmatpush.msra.mxu0 %v11000
    %11052 = vmatpush.msra.mxu0 %v10998
    %11053 = vmatpush.msra.mxu0 %v10996
    %11054 = vmatpush.msra.mxu0 %v10994
    %11055 = vmatpush.msra.mxu0 %v10992
    %11056 = vmatpush.msra.mxu0 %v10990
    %11057 = vmatpush.msra.mxu0 %v10988
    %11058 = vmatpush.msra.mxu0 %v10986
    %11059 = vmatmul.f32.gmra.mxu0 %v10981
    %v11060 = vpop.f32.mrf.mxu0
    %v11061 = vadd.f32 0.0, %v11060
    %11062 = vmatmul.f32.gmra.mxu0 %v10982
    %v11063 = vpop.f32.mrf.mxu0
    %v11064 = vadd.f32 0.0, %v11063
    %11065 = vmatmul.f32.gmra.mxu0 %v10983
    %v11066 = vpop.f32.mrf.mxu0
    %v11067 = vadd.f32 0.0, %v11066
    %11068 = vdwg.mxu0
    %v11069 = vadd.f32 %v10975, %v11035
    %v11070 = vadd.f32 %v10976, %v11061
    %v11071 = vadd.f32 %v10977, %v11038
    %v11072 = vadd.f32 %v10978, %v11064
    %v11073 = vadd.f32 %v10979, %v11041
    %v11074 = vadd.f32 %v10980, %v11067
    %v11075 = vld [vmem:[%s11] sm:$0x3]
    %v11077 = vperm.slane %v11075, 0
    %v11078 = vperm.slane %v11075, 1
    %v11081 = vadd.f32 %v11069, %v11077
    %v11082 = vadd.f32 %v11070, %v11078
    %v11083 = vadd.f32 %v11071, %v11077
    %v11084 = vadd.f32 %v11072, %v11078
    %v11085 = vadd.f32 %v11073, %v11077
    %v11086 = vadd.f32 %v11074, %v11078
    %v11087 = vmax.f32 %v11081, 0.0
    %v11088 = vmax.f32 %v11082, 0.0
    %v11089 = vmax.f32 %v11083, 0.0
    %v11090 = vmax.f32 %v11084, 0.0
    %v11091 = vmax.f32 %v11085, 0.0
    %v11092 = vmax.f32 %v11086, 0.0
    %11093 = vst [vmem:[#allocation8] sm:$0xff] %v11087
    %11094 = vst [vmem:[#allocation8 + $0x8] sm:$0xff] %v11088
    %11095 = vst [vmem:[#allocation8 + $0x10] sm:$0xff] %v11089
    %11096 = vst [vmem:[#allocation8 + $0x18] sm:$0xff] %v11090
    %11097 = vst [vmem:[#allocation8 + $0x20] sm:$0x3f] %v11091
    %11098 = vst [vmem:[#allocation8 + $0x28] sm:$0x3f] %v11092
    %v11099 = vld [vmem:[#allocation8] sm:$0xff]
    %v11100 = vld [vmem:[#allocation8 + $0x8] sm:$0xff]
    %v11101 = vld [vmem:[#allocation8 + $0x10] sm:$0xff]
    %v11102 = vld [vmem:[#allocation8 + $0x18] sm:$0xff]
    %v11103 = vld [vmem:[#allocation8 + $0x20] sm:$0x1]
    %v11104 = vld [vmem:[#allocation8 + $0x28] sm:$0x1]
    %v11105 = vld [vmem:[#allocation8] sm:$0xfe]
    %v11106 = vld [vmem:[#allocation8 + $0x8] sm:$0xfe]
    %v11107 = vld [vmem:[#allocation8 + $0x20] sm:$0x3]
    %v11108 = vld [vmem:[#allocation8 + $0x28] sm:$0x3]
    %v11115 = vrot.slane %v11105, 1
    %v11116 = vrot.slane %v11101, 1
    %v11117 = vsel %vm6655, %v11115, %v11116
    %v11118 = vrot.slane %v11106, 1
    %v11119 = vrot.slane %v11102, 1
    %v11120 = vsel %vm6655, %v11118, %v11119
    %v11121 = vrot.slane %v11107, 1
    %v11122 = vsel %vm6655, %v11116, %v11121
    %v11123 = vrot.slane %v11108, 1
    %v11124 = vsel %vm6655, %v11119, %v11123
    %v11131 = vmax.f32 %v11099, %v11117
    %v11132 = vmax.f32 %v11100, %v11120
    %v11133 = vmax.f32 %v11101, %v11122
    %v11134 = vmax.f32 %v11102, %v11124
    %v11135 = vmax.f32 %v11103, %v11121
    %v11136 = vmax.f32 %v11104, %v11123
    %v11137 = vld [vmem:[#allocation8] sm:$0xf0]
    %v11138 = vld [vmem:[#allocation8 + $0x8] sm:$0xf0]
    %v11139 = vld [vmem:[#allocation8 + $0x20] sm:$0x1f]
    %v11140 = vld [vmem:[#allocation8 + $0x28] sm:$0x1f]
    %v11141 = vld [vmem:[#allocation8] sm:$0xe0]
    %v11142 = vld [vmem:[#allocation8 + $0x8] sm:$0xe0]
    %v11143 = vld [vmem:[#allocation8 + $0x20] sm:$0x3f]
    %v11144 = vld [vmem:[#allocation8 + $0x28] sm:$0x3f]
    %v11149 = vrot.slane %v11141, 1
    %v11150 = vsel %vm6655, %v11149, %v11116
    %v11151 = vrot.slane %v11142, 1
    %v11152 = vsel %vm6655, %v11151, %v11119
    %v11153 = vrot.slane %v11143, 1
    %v11154 = vsel %vm6655, %v11116, %v11153
    %v11155 = vrot.slane %v11144, 1
    %v11156 = vsel %vm6655, %v11119, %v11155
    %v11163 = vmax.f32 %v11137, %v11150
    %v11164 = vmax.f32 %v11138, %v11152
    %v11165 = vmax.f32 %v11101, %v11154
    %v11166 = vmax.f32 %v11102, %v11156
    %v11167 = vmax.f32 %v11139, %v11153
    %v11168 = vmax.f32 %v11140, %v11155
    %vm11175 = vcmask 1043456
    %v11176 = vrot.slane %v11163, 4
    %v11177 = vrot.slane %v11165, 4
    %v11178 = vsel %vm11175, %v11176, %v11177
    %v11179 = vrot.slane %v11164, 4
    %v11180 = vrot.slane %v11166, 4
    %v11181 = vsel %vm11175, %v11179, %v11180
    %v11182 = vrot.slane %v11167, 4
    %v11183 = vsel %vm11175, %v11177, %v11182
    %v11184 = vrot.slane %v11168, 4
    %v11185 = vsel %vm11175, %v11180, %v11184
    %v11192 = vmax.f32 %v11131, %v11178
    %v11193 = vmax.f32 %v11132, %v11181
    %v11194 = vmax.f32 %v11133, %v11183
    %v11195 = vmax.f32 %v11134, %v11185
    %v11196 = vmax.f32 %v11135, %v11182
    %v11197 = vmax.f32 %v11136, %v11184
    %v11198 = vld [vmem:[%s12] sm:$0x3]
    %vm11199 = vcmask 138240
    %v11201 = vsel %vm11199, %v11198, 0
    %vm11203 = vcmask 1040384
    %v11205 = vsel %vm11203, %v11196, 0
    %v11208 = vsel %vm11203, %v11197, 0
    %11210 = vmatpush.msra.mxu0 0.0
    %11211 = vmatpush.msra.mxu0 0.0
    %11212 = vmatpush.msra.mxu0 0.0
    %11213 = vmatpush.msra.mxu0 0.0
    %11214 = vmatpush.msra.mxu0 0.0
    %11215 = vmatpush.msra.mxu0 0.0
    %11216 = vmatpush.msra.mxu0 0.0
    %11217 = vmatpush.msra.mxu0 0.0
    %11218 = vmatpush.msra.mxu0 0.0
    %11219 = vmatpush.msra.mxu0 0.0
    %11220 = vmatpush.msra.mxu0 0.0
    %11221 = vmatpush.msra.mxu0 0.0
    %11222 = vmatpush.msra.mxu0 0.0
    %11223 = vmatpush.msra.mxu0 %v11205
    %11224 = vmatpush.msra.mxu0 %v11194
    %11225 = vmatpush.msra.mxu0 %v11192
    %11226 = vmatmul.f32.gmra.mxu0 %v11201
    %v11227 = vpop.f32.mrf.mxu0
    %v11228 = vadd.f32 0.0, %v11227
    %11229 = vdwg.mxu0
    %11230 = vmatpush.msra.mxu0 0.0
    %11231 = vmatpush.msra.mxu0 0.0
    %11232 = vmatpush.msra.mxu0 0.0
    %11233 = vmatpush.msra.mxu0 0.0
    %11234 = vmatpush.msra.mxu0 0.0
    %11235 = vmatpush.msra.mxu0 0.0
    %11236 = vmatpush.msra.mxu0 0.0
    %11237 = vmatpush.msra.mxu0 0.0
    %11238 = vmatpush.msra.mxu0 0.0
    %11239 = vmatpush.msra.mxu0 0.0
    %11240 = vmatpush.msra.mxu0 0.0
    %11241 = vmatpush.msra.mxu0 0.0
    %11242 = vmatpush.msra.mxu0 0.0
    %11243 = vmatpush.msra.mxu0 %v11208
    %11244 = vmatpush.msra.mxu0 %v11195
    %11245 = vmatpush.msra.mxu0 %v11193
    %11246 = vmatmul.f32.gmra.mxu0 %v11201
    %v11247 = vpop.f32.mrf.mxu0
    %v11248 = vadd.f32 0.0, %v11247
    %11249 = vdwg.mxu0
    %v11250 = vld [vmem:[#allocation12] sm:$0xff]
    %v11251 = vld [vmem:[#allocation12 + $0x8] sm:$0xff]
    %v11252 = vld [vmem:[#allocation12 + $0x10] sm:$0xff]
    %v11253 = vld [vmem:[#allocation12 + $0x18] sm:$0xff]
    %v11254 = vld [vmem:[#allocation12 + $0x20] sm:$0xff]
    %v11255 = vld [vmem:[#allocation12 + $0x28] sm:$0xff]
    %v11256 = vld [vmem:[#allocation12 + $0x30] sm:$0xff]
    %v11257 = vld [vmem:[#allocation12 + $0x38] sm:$0xff]
    %v11258 = vld [vmem:[#allocation12 + $0x40] sm:$0xff]
    %v11259 = vld [vmem:[#allocation12 + $0x48] sm:$0xff]
    %v11260 = vld [vmem:[#allocation12 + $0x50] sm:$0xff]
    %v11261 = vld [vmem:[#allocation12 + $0x58] sm:$0xff]
    %v11262 = vld [vmem:[#allocation12 + $0x60] sm:$0xff]
    %v11263 = vld [vmem:[#allocation12 + $0x68] sm:$0xff]
    %v11264 = vld [vmem:[#allocation12 + $0x70] sm:$0xff]
    %v11265 = vld [vmem:[#allocation12 + $0x78] sm:$0xff]
    %v11266 = vld [vmem:[#allocation12 + $0x80] sm:$0xff]
    %v11267 = vld [vmem:[#allocation12 + $0x88] sm:$0xff]
    %v11268 = vld [vmem:[#allocation12 + $0x90] sm:$0xff]
    %v11269 = vld [vmem:[#allocation12 + $0x98] sm:$0xff]
    %v11270 = vld [vmem:[#allocation12 + $0xa0] sm:$0xff]
    %v11271 = vld [vmem:[#allocation12 + $0xa8] sm:$0xff]
    %v11272 = vld [vmem:[#allocation12 + $0xb0] sm:$0xff]
    %v11273 = vld [vmem:[#allocation12 + $0xb8] sm:$0xff]
    %v11274 = vld [vmem:[#allocation12 + $0xc0] sm:$0xff]
    %v11275 = vld [vmem:[#allocation12 + $0xc8] sm:$0xff]
    %v11276 = vld [vmem:[#allocation12 + $0xd0] sm:$0xff]
    %v11277 = vld [vmem:[#allocation12 + $0xd8] sm:$0xff]
    %v11278 = vld [vmem:[#allocation12 + $0xe0] sm:$0xff]
    %v11279 = vld [vmem:[#allocation12 + $0xe8] sm:$0xff]
    %v11280 = vld [vmem:[#allocation12 + $0xf0] sm:$0xff]
    %v11281 = vld [vmem:[#allocation12 + $0xf8] sm:$0xff]
    %v11282 = vld [vmem:[#allocation12 + $0x100] sm:$0xff]
    %v11283 = vld [vmem:[#allocation12 + $0x108] sm:$0xff]
    %v11284 = vld [vmem:[#allocation12 + $0x110] sm:$0xff]
    %v11285 = vld [vmem:[#allocation12 + $0x118] sm:$0xff]
    %v11286 = vld [vmem:[#allocation12 + $0x120] sm:$0xff]
    %v11287 = vld [vmem:[#allocation12 + $0x128] sm:$0xff]
    %v11288 = vld [vmem:[#allocation12 + $0x130] sm:$0xff]
    %v11289 = vld [vmem:[#allocation12 + $0x138] sm:$0xff]
    %v11290 = vld [vmem:[#allocation12 + $0x140] sm:$0xff]
    %v11291 = vld [vmem:[#allocation12 + $0x148] sm:$0xff]
    %v11292 = vld [vmem:[#allocation12 + $0x150] sm:$0xff]
    %v11293 = vld [vmem:[#allocation12 + $0x158] sm:$0xff]
    %v11294 = vld [vmem:[#allocation12 + $0x160] sm:$0xff]
    %v11295 = vld [vmem:[#allocation12 + $0x168] sm:$0xff]
    %v11296 = vld [vmem:[#allocation12 + $0x170] sm:$0xff]
    %v11297 = vld [vmem:[#allocation12 + $0x178] sm:$0xff]
    %v11298 = vld [vmem:[#allocation12 + $0x180] sm:$0xff]
    %v11299 = vld [vmem:[#allocation12 + $0x188] sm:$0xff]
    %v11300 = vld [vmem:[#allocation12 + $0x190] sm:$0xff]
    %v11301 = vld [vmem:[#allocation12 + $0x198] sm:$0xff]
    %v11302 = vld [vmem:[#allocation12 + $0x1a0] sm:$0xff]
    %v11303 = vld [vmem:[#allocation12 + $0x1a8] sm:$0xff]
    %v11304 = vld [vmem:[#allocation12 + $0x1b0] sm:$0xff]
    %v11305 = vld [vmem:[#allocation12 + $0x1b8] sm:$0xff]
    %v11306 = vld [vmem:[#allocation12 + $0x1c0] sm:$0xff]
    %v11307 = vld [vmem:[#allocation12 + $0x1c8] sm:$0xff]
    %v11308 = vld [vmem:[#allocation12 + $0x1d0] sm:$0xff]
    %v11309 = vld [vmem:[#allocation12 + $0x1d8] sm:$0xff]
    %v11310 = vld [vmem:[#allocation12 + $0x1e0] sm:$0xff]
    %v11311 = vld [vmem:[#allocation12 + $0x1e8] sm:$0xff]
    %v11312 = vld [vmem:[#allocation12 + $0x1f0] sm:$0xff]
    %v11313 = vld [vmem:[#allocation12 + $0x1f8] sm:$0xff]
    %v11314 = vld [vmem:[#allocation12 + $0x200] sm:$0xff]
    %v11315 = vld [vmem:[#allocation12 + $0x208] sm:$0xff]
    %v11316 = vld [vmem:[#allocation12 + $0x210] sm:$0xff]
    %v11317 = vld [vmem:[#allocation12 + $0x218] sm:$0xff]
    %v11318 = vld [vmem:[#allocation12 + $0x220] sm:$0xff]
    %v11319 = vld [vmem:[#allocation12 + $0x228] sm:$0xff]
    %v11320 = vld [vmem:[#allocation12 + $0x230] sm:$0xff]
    %v11321 = vld [vmem:[#allocation12 + $0x238] sm:$0xff]
    %v11322 = vld [vmem:[#allocation12 + $0x240] sm:$0xff]
    %v11323 = vld [vmem:[#allocation12 + $0x248] sm:$0xff]
    %v11324 = vld [vmem:[#allocation12 + $0x250] sm:$0xff]
    %v11325 = vld [vmem:[#allocation12 + $0x258] sm:$0xff]
    %v11326 = vld [vmem:[#allocation12 + $0x260] sm:$0xff]
    %v11327 = vld [vmem:[#allocation12 + $0x268] sm:$0xff]
    %v11328 = vld [vmem:[#allocation12 + $0x270] sm:$0xff]
    %v11329 = vld [vmem:[#allocation12 + $0x278] sm:$0xff]
    %v11330 = vld [vmem:[#allocation12 + $0x280] sm:$0xff]
    %v11331 = vld [vmem:[#allocation12 + $0x288] sm:$0xff]
    %v11332 = vld [vmem:[#allocation12 + $0x290] sm:$0xff]
    %v11333 = vld [vmem:[#allocation12 + $0x298] sm:$0xff]
    %v11334 = vld [vmem:[#allocation12 + $0x2a0] sm:$0xff]
    %v11335 = vld [vmem:[#allocation12 + $0x2a8] sm:$0xff]
    %v11336 = vld [vmem:[#allocation12 + $0x2b0] sm:$0xff]
    %v11337 = vld [vmem:[#allocation12 + $0x2b8] sm:$0xff]
    %v11338 = vld [vmem:[#allocation12 + $0x2c0] sm:$0xff]
    %v11339 = vld [vmem:[#allocation12 + $0x2c8] sm:$0xff]
    %v11340 = vld [vmem:[#allocation12 + $0x2d0] sm:$0xff]
    %v11341 = vld [vmem:[#allocation12 + $0x2d8] sm:$0xff]
    %v11342 = vld [vmem:[#allocation12 + $0x2e0] sm:$0xff]
    %v11343 = vld [vmem:[#allocation12 + $0x2e8] sm:$0xff]
    %v11344 = vld [vmem:[#allocation12 + $0x2f0] sm:$0xff]
    %v11345 = vld [vmem:[#allocation12 + $0x2f8] sm:$0xff]
    %v11346 = vld [vmem:[#allocation12 + $0x300] sm:$0xff]
    %v11347 = vld [vmem:[#allocation12 + $0x308] sm:$0xff]
    %v11348 = vld [vmem:[#allocation12 + $0x310] sm:$0xff]
    %v11349 = vld [vmem:[#allocation12 + $0x318] sm:$0xff]
    %v11350 = vld [vmem:[#allocation12 + $0x320] sm:$0xff]
    %v11351 = vld [vmem:[#allocation12 + $0x328] sm:$0xff]
    %v11352 = vld [vmem:[#allocation12 + $0x330] sm:$0xff]
    %v11353 = vld [vmem:[#allocation12 + $0x338] sm:$0xff]
    %v11354 = vld [vmem:[#allocation12 + $0x340] sm:$0xff]
    %v11355 = vld [vmem:[#allocation12 + $0x348] sm:$0xff]
    %v11356 = vld [vmem:[#allocation12 + $0x350] sm:$0xff]
    %v11357 = vld [vmem:[#allocation12 + $0x358] sm:$0xff]
    %v11358 = vld [vmem:[#allocation12 + $0x360] sm:$0xff]
    %v11359 = vld [vmem:[#allocation12 + $0x368] sm:$0xff]
    %v11360 = vld [vmem:[#allocation12 + $0x370] sm:$0xff]
    %v11361 = vld [vmem:[#allocation12 + $0x378] sm:$0xff]
    %v11362 = vld [vmem:[#allocation12 + $0x380] sm:$0xff]
    %v11363 = vld [vmem:[#allocation12 + $0x388] sm:$0xff]
    %v11364 = vld [vmem:[#allocation12 + $0x390] sm:$0xff]
    %v11365 = vld [vmem:[#allocation12 + $0x398] sm:$0xff]
    %v11366 = vld [vmem:[#allocation12 + $0x3a0] sm:$0xff]
    %v11367 = vld [vmem:[#allocation12 + $0x3a8] sm:$0xff]
    %v11368 = vld [vmem:[#allocation12 + $0x3b0] sm:$0xff]
    %v11369 = vld [vmem:[#allocation12 + $0x3b8] sm:$0xff]
    %v11370 = vld [vmem:[#allocation12 + $0x3c0] sm:$0xff]
    %v11371 = vld [vmem:[#allocation12 + $0x3c8] sm:$0xff]
    %v11372 = vld [vmem:[#allocation12 + $0x3d0] sm:$0xff]
    %v11373 = vld [vmem:[#allocation12 + $0x3d8] sm:$0xff]
    %v11374 = vld [vmem:[#allocation12 + $0x3e0] sm:$0xff]
    %v11375 = vld [vmem:[#allocation12 + $0x3e8] sm:$0xff]
    %v11376 = vld [vmem:[#allocation12 + $0x3f0] sm:$0xff]
    %v11377 = vld [vmem:[#allocation12 + $0x3f8] sm:$0xff]
    %v11378 = vld [vmem:[%s14] sm:$0xf]
    %v11380 = vperm.slane %v11378, 0
    %v11381 = vperm.slane %v11378, 1
    %v11382 = vperm.slane %v11378, 2
    %v11383 = vperm.slane %v11378, 3
    %11388 = vmatpush.msra.mxu0 %v11310
    %11389 = vmatpush.msra.mxu0 %v11306
    %11390 = vmatpush.msra.mxu0 %v11302
    %11391 = vmatpush.msra.mxu0 %v11298
    %11392 = vmatpush.msra.mxu0 %v11294
    %11393 = vmatpush.msra.mxu0 %v11290
    %11394 = vmatpush.msra.mxu0 %v11286
    %11395 = vmatpush.msra.mxu0 %v11282
    %11396 = vmatpush.msra.mxu0 %v11278
    %11397 = vmatpush.msra.mxu0 %v11274
    %11398 = vmatpush.msra.mxu0 %v11270
    %11399 = vmatpush.msra.mxu0 %v11266
    %11400 = vmatpush.msra.mxu0 %v11262
    %11401 = vmatpush.msra.mxu0 %v11258
    %11402 = vmatpush.msra.mxu0 %v11254
    %11403 = vmatpush.msra.mxu0 %v11250
    %11404 = vmatmul.f32.gmra.mxu0 %v11228
    %v11405 = vpop.f32.mrf.mxu0
    %v11406 = vadd.f32 %v11380, %v11405
    %11407 = vdwg.mxu0
    %11408 = vmatpush.msra.mxu0 %v11374
    %11409 = vmatpush.msra.mxu0 %v11370
    %11410 = vmatpush.msra.mxu0 %v11366
    %11411 = vmatpush.msra.mxu0 %v11362
    %11412 = vmatpush.msra.mxu0 %v11358
    %11413 = vmatpush.msra.mxu0 %v11354
    %11414 = vmatpush.msra.mxu0 %v11350
    %11415 = vmatpush.msra.mxu0 %v11346
    %11416 = vmatpush.msra.mxu0 %v11342
    %11417 = vmatpush.msra.mxu0 %v11338
    %11418 = vmatpush.msra.mxu0 %v11334
    %11419 = vmatpush.msra.mxu0 %v11330
    %11420 = vmatpush.msra.mxu0 %v11326
    %11421 = vmatpush.msra.mxu0 %v11322
    %11422 = vmatpush.msra.mxu0 %v11318
    %11423 = vmatpush.msra.mxu0 %v11314
    %11424 = vmatmul.f32.gmra.mxu0 %v11248
    %v11425 = vpop.f32.mrf.mxu0
    %v11426 = vadd.f32 %v11406, %v11425
    %11427 = vdwg.mxu0
    %11428 = vmatpush.msra.mxu0 %v11311
    %11429 = vmatpush.msra.mxu0 %v11307
    %11430 = vmatpush.msra.mxu0 %v11303
    %11431 = vmatpush.msra.mxu0 %v11299
    %11432 = vmatpush.msra.mxu0 %v11295
    %11433 = vmatpush.msra.mxu0 %v11291
    %11434 = vmatpush.msra.mxu0 %v11287
    %11435 = vmatpush.msra.mxu0 %v11283
    %11436 = vmatpush.msra.mxu0 %v11279
    %11437 = vmatpush.msra.mxu0 %v11275
    %11438 = vmatpush.msra.mxu0 %v11271
    %11439 = vmatpush.msra.mxu0 %v11267
    %11440 = vmatpush.msra.mxu0 %v11263
    %11441 = vmatpush.msra.mxu0 %v11259
    %11442 = vmatpush.msra.mxu0 %v11255
    %11443 = vmatpush.msra.mxu0 %v11251
    %11444 = vmatmul.f32.gmra.mxu0 %v11228
    %v11445 = vpop.f32.mrf.mxu0
    %v11446 = vadd.f32 %v11381, %v11445
    %11447 = vdwg.mxu0
    %11448 = vmatpush.msra.mxu0 %v11375
    %11449 = vmatpush.msra.mxu0 %v11371
    %11450 = vmatpush.msra.mxu0 %v11367
    %11451 = vmatpush.msra.mxu0 %v11363
    %11452 = vmatpush.msra.mxu0 %v11359
    %11453 = vmatpush.msra.mxu0 %v11355
    %11454 = vmatpush.msra.mxu0 %v11351
    %11455 = vmatpush.msra.mxu0 %v11347
    %11456 = vmatpush.msra.mxu0 %v11343
    %11457 = vmatpush.msra.mxu0 %v11339
    %11458 = vmatpush.msra.mxu0 %v11335
    %11459 = vmatpush.msra.mxu0 %v11331
    %11460 = vmatpush.msra.mxu0 %v11327
    %11461 = vmatpush.msra.mxu0 %v11323
    %11462 = vmatpush.msra.mxu0 %v11319
    %11463 = vmatpush.msra.mxu0 %v11315
    %11464 = vmatmul.f32.gmra.mxu0 %v11248
    %v11465 = vpop.f32.mrf.mxu0
    %v11466 = vadd.f32 %v11446, %v11465
    %11467 = vdwg.mxu0
    %11468 = vmatpush.msra.mxu0 %v11312
    %11469 = vmatpush.msra.mxu0 %v11308
    %11470 = vmatpush.msra.mxu0 %v11304
    %11471 = vmatpush.msra.mxu0 %v11300
    %11472 = vmatpush.msra.mxu0 %v11296
    %11473 = vmatpush.msra.mxu0 %v11292
    %11474 = vmatpush.msra.mxu0 %v11288
    %11475 = vmatpush.msra.mxu0 %v11284
    %11476 = vmatpush.msra.mxu0 %v11280
    %11477 = vmatpush.msra.mxu0 %v11276
    %11478 = vmatpush.msra.mxu0 %v11272
    %11479 = vmatpush.msra.mxu0 %v11268
    %11480 = vmatpush.msra.mxu0 %v11264
    %11481 = vmatpush.msra.mxu0 %v11260
    %11482 = vmatpush.msra.mxu0 %v11256
    %11483 = vmatpush.msra.mxu0 %v11252
    %11484 = vmatmul.f32.gmra.mxu0 %v11228
    %v11485 = vpop.f32.mrf.mxu0
    %v11486 = vadd.f32 %v11382, %v11485
    %11487 = vdwg.mxu0
    %11488 = vmatpush.msra.mxu0 %v11376
    %11489 = vmatpush.msra.mxu0 %v11372
    %11490 = vmatpush.msra.mxu0 %v11368
    %11491 = vmatpush.msra.mxu0 %v11364
    %11492 = vmatpush.msra.mxu0 %v11360
    %11493 = vmatpush.msra.mxu0 %v11356
    %11494 = vmatpush.msra.mxu0 %v11352
    %11495 = vmatpush.msra.mxu0 %v11348
    %11496 = vmatpush.msra.mxu0 %v11344
    %11497 = vmatpush.msra.mxu0 %v11340
    %11498 = vmatpush.msra.mxu0 %v11336
    %11499 = vmatpush.msra.mxu0 %v11332
    %11500 = vmatpush.msra.mxu0 %v11328
    %11501 = vmatpush.msra.mxu0 %v11324
    %11502 = vmatpush.msra.mxu0 %v11320
    %11503 = vmatpush.msra.mxu0 %v11316
    %11504 = vmatmul.f32.gmra.mxu0 %v11248
    %v11505 = vpop.f32.mrf.mxu0
    %v11506 = vadd.f32 %v11486, %v11505
    %11507 = vdwg.mxu0
    %11508 = vmatpush.msra.mxu0 %v11313
    %11509 = vmatpush.msra.mxu0 %v11309
    %11510 = vmatpush.msra.mxu0 %v11305
    %11511 = vmatpush.msra.mxu0 %v11301
    %11512 = vmatpush.msra.mxu0 %v11297
    %11513 = vmatpush.msra.mxu0 %v11293
    %11514 = vmatpush.msra.mxu0 %v11289
    %11515 = vmatpush.msra.mxu0 %v11285
    %11516 = vmatpush.msra.mxu0 %v11281
    %11517 = vmatpush.msra.mxu0 %v11277
    %11518 = vmatpush.msra.mxu0 %v11273
    %11519 = vmatpush.msra.mxu0 %v11269
    %11520 = vmatpush.msra.mxu0 %v11265
    %11521 = vmatpush.msra.mxu0 %v11261
    %11522 = vmatpush.msra.mxu0 %v11257
    %11523 = vmatpush.msra.mxu0 %v11253
    %11524 = vmatmul.f32.gmra.mxu0 %v11228
    %v11525 = vpop.f32.mrf.mxu0
    %v11526 = vadd.f32 %v11383, %v11525
    %11527 = vdwg.mxu0
    %11528 = vmatpush.msra.mxu0 %v11377
    %11529 = vmatpush.msra.mxu0 %v11373
    %11530 = vmatpush.msra.mxu0 %v11369
    %11531 = vmatpush.msra.mxu0 %v11365
    %11532 = vmatpush.msra.mxu0 %v11361
    %11533 = vmatpush.msra.mxu0 %v11357
    %11534 = vmatpush.msra.mxu0 %v11353
    %11535 = vmatpush.msra.mxu0 %v11349
    %11536 = vmatpush.msra.mxu0 %v11345
    %11537 = vmatpush.msra.mxu0 %v11341
    %11538 = vmatpush.msra.mxu0 %v11337
    %11539 = vmatpush.msra.mxu0 %v11333
    %11540 = vmatpush.msra.mxu0 %v11329
    %11541 = vmatpush.msra.mxu0 %v11325
    %11542 = vmatpush.msra.mxu0 %v11321
    %11543 = vmatpush.msra.mxu0 %v11317
    %11544 = vmatmul.f32.gmra.mxu0 %v11248
    %v11545 = vpop.f32.mrf.mxu0
    %v11546 = vadd.f32 %v11526, %v11545
    %11547 = vdwg.mxu0
    %v11548 = vmax.f32 %v11426, 0.0
    %v11549 = vmax.f32 %v11466, 0.0
    %v11550 = vmax.f32 %v11506, 0.0
    %v11551 = vmax.f32 %v11546, 0.0
    %v11552 = vld [vmem:[#allocation14] sm:$0xff]
    %v11553 = vld [vmem:[#allocation14 + $0x8] sm:$0xff]
    %v11554 = vld [vmem:[#allocation14 + $0x10] sm:$0xff]
    %v11555 = vld [vmem:[#allocation14 + $0x18] sm:$0xff]
    %v11556 = vld [vmem:[#allocation14 + $0x20] sm:$0xff]
    %v11557 = vld [vmem:[#allocation14 + $0x28] sm:$0xff]
    %v11558 = vld [vmem:[#allocation14 + $0x30] sm:$0xff]
    %v11559 = vld [vmem:[#allocation14 + $0x38] sm:$0xff]
    %v11560 = vld [vmem:[#allocation14 + $0x40] sm:$0xff]
    %v11561 = vld [vmem:[#allocation14 + $0x48] sm:$0xff]
    %v11562 = vld [vmem:[#allocation14 + $0x50] sm:$0xff]
    %v11563 = vld [vmem:[#allocation14 + $0x58] sm:$0xff]
    %v11564 = vld [vmem:[#allocation14 + $0x60] sm:$0xff]
    %v11565 = vld [vmem:[#allocation14 + $0x68] sm:$0xff]
    %v11566 = vld [vmem:[#allocation14 + $0x70] sm:$0xff]
    %v11567 = vld [vmem:[#allocation14 + $0x78] sm:$0xff]
    %v11568 = vld [vmem:[#allocation14 + $0x80] sm:$0xff]
    %v11569 = vld [vmem:[#allocation14 + $0x88] sm:$0xff]
    %v11570 = vld [vmem:[#allocation14 + $0x90] sm:$0xff]
    %v11571 = vld [vmem:[#allocation14 + $0x98] sm:$0xff]
    %v11572 = vld [vmem:[#allocation14 + $0xa0] sm:$0xff]
    %v11573 = vld [vmem:[#allocation14 + $0xa8] sm:$0xff]
    %v11574 = vld [vmem:[#allocation14 + $0xb0] sm:$0xff]
    %v11575 = vld [vmem:[#allocation14 + $0xb8] sm:$0xff]
    %v11576 = vld [vmem:[#allocation14 + $0xc0] sm:$0xff]
    %v11577 = vld [vmem:[#allocation14 + $0xc8] sm:$0xff]
    %v11578 = vld [vmem:[#allocation14 + $0xd0] sm:$0xff]
    %v11579 = vld [vmem:[#allocation14 + $0xd8] sm:$0xff]
    %v11580 = vld [vmem:[#allocation14 + $0xe0] sm:$0xff]
    %v11581 = vld [vmem:[#allocation14 + $0xe8] sm:$0xff]
    %v11582 = vld [vmem:[#allocation14 + $0xf0] sm:$0xff]
    %v11583 = vld [vmem:[#allocation14 + $0xf8] sm:$0xff]
    %v11584 = vld [vmem:[#allocation14 + $0x100] sm:$0xff]
    %v11585 = vld [vmem:[#allocation14 + $0x108] sm:$0xff]
    %v11586 = vld [vmem:[#allocation14 + $0x110] sm:$0xff]
    %v11587 = vld [vmem:[#allocation14 + $0x118] sm:$0xff]
    %v11588 = vld [vmem:[#allocation14 + $0x120] sm:$0xff]
    %v11589 = vld [vmem:[#allocation14 + $0x128] sm:$0xff]
    %v11590 = vld [vmem:[#allocation14 + $0x130] sm:$0xff]
    %v11591 = vld [vmem:[#allocation14 + $0x138] sm:$0xff]
    %v11592 = vld [vmem:[#allocation14 + $0x140] sm:$0xff]
    %v11593 = vld [vmem:[#allocation14 + $0x148] sm:$0xff]
    %v11594 = vld [vmem:[#allocation14 + $0x150] sm:$0xff]
    %v11595 = vld [vmem:[#allocation14 + $0x158] sm:$0xff]
    %v11596 = vld [vmem:[#allocation14 + $0x160] sm:$0xff]
    %v11597 = vld [vmem:[#allocation14 + $0x168] sm:$0xff]
    %v11598 = vld [vmem:[#allocation14 + $0x170] sm:$0xff]
    %v11599 = vld [vmem:[#allocation14 + $0x178] sm:$0xff]
    %v11600 = vld [vmem:[#allocation14 + $0x180] sm:$0xff]
    %v11601 = vld [vmem:[#allocation14 + $0x188] sm:$0xff]
    %v11602 = vld [vmem:[#allocation14 + $0x190] sm:$0xff]
    %v11603 = vld [vmem:[#allocation14 + $0x198] sm:$0xff]
    %v11604 = vld [vmem:[#allocation14 + $0x1a0] sm:$0xff]
    %v11605 = vld [vmem:[#allocation14 + $0x1a8] sm:$0xff]
    %v11606 = vld [vmem:[#allocation14 + $0x1b0] sm:$0xff]
    %v11607 = vld [vmem:[#allocation14 + $0x1b8] sm:$0xff]
    %v11608 = vld [vmem:[#allocation14 + $0x1c0] sm:$0xff]
    %v11609 = vld [vmem:[#allocation14 + $0x1c8] sm:$0xff]
    %v11610 = vld [vmem:[#allocation14 + $0x1d0] sm:$0xff]
    %v11611 = vld [vmem:[#allocation14 + $0x1d8] sm:$0xff]
    %v11612 = vld [vmem:[#allocation14 + $0x1e0] sm:$0xff]
    %v11613 = vld [vmem:[#allocation14 + $0x1e8] sm:$0xff]
    %v11614 = vld [vmem:[#allocation14 + $0x1f0] sm:$0xff]
    %v11615 = vld [vmem:[#allocation14 + $0x1f8] sm:$0xff]
    %v11616 = vld [vmem:[#allocation14 + $0x200] sm:$0xff]
    %v11617 = vld [vmem:[#allocation14 + $0x208] sm:$0xff]
    %v11618 = vld [vmem:[#allocation14 + $0x210] sm:$0xff]
    %v11619 = vld [vmem:[#allocation14 + $0x218] sm:$0xff]
    %v11620 = vld [vmem:[#allocation14 + $0x220] sm:$0xff]
    %v11621 = vld [vmem:[#allocation14 + $0x228] sm:$0xff]
    %v11622 = vld [vmem:[#allocation14 + $0x230] sm:$0xff]
    %v11623 = vld [vmem:[#allocation14 + $0x238] sm:$0xff]
    %v11624 = vld [vmem:[#allocation14 + $0x240] sm:$0xff]
    %v11625 = vld [vmem:[#allocation14 + $0x248] sm:$0xff]
    %v11626 = vld [vmem:[#allocation14 + $0x250] sm:$0xff]
    %v11627 = vld [vmem:[#allocation14 + $0x258] sm:$0xff]
    %v11628 = vld [vmem:[#allocation14 + $0x260] sm:$0xff]
    %v11629 = vld [vmem:[#allocation14 + $0x268] sm:$0xff]
    %v11630 = vld [vmem:[#allocation14 + $0x270] sm:$0xff]
    %v11631 = vld [vmem:[#allocation14 + $0x278] sm:$0xff]
    %v11632 = vld [vmem:[#allocation14 + $0x280] sm:$0xff]
    %v11633 = vld [vmem:[#allocation14 + $0x288] sm:$0xff]
    %v11634 = vld [vmem:[#allocation14 + $0x290] sm:$0xff]
    %v11635 = vld [vmem:[#allocation14 + $0x298] sm:$0xff]
    %v11636 = vld [vmem:[#allocation14 + $0x2a0] sm:$0xff]
    %v11637 = vld [vmem:[#allocation14 + $0x2a8] sm:$0xff]
    %v11638 = vld [vmem:[#allocation14 + $0x2b0] sm:$0xff]
    %v11639 = vld [vmem:[#allocation14 + $0x2b8] sm:$0xff]
    %v11640 = vld [vmem:[#allocation14 + $0x2c0] sm:$0xff]
    %v11641 = vld [vmem:[#allocation14 + $0x2c8] sm:$0xff]
    %v11642 = vld [vmem:[#allocation14 + $0x2d0] sm:$0xff]
    %v11643 = vld [vmem:[#allocation14 + $0x2d8] sm:$0xff]
    %v11644 = vld [vmem:[#allocation14 + $0x2e0] sm:$0xff]
    %v11645 = vld [vmem:[#allocation14 + $0x2e8] sm:$0xff]
    %v11646 = vld [vmem:[#allocation14 + $0x2f0] sm:$0xff]
    %v11647 = vld [vmem:[#allocation14 + $0x2f8] sm:$0xff]
    %v11648 = vld [vmem:[#allocation14 + $0x300] sm:$0xff]
    %v11649 = vld [vmem:[#allocation14 + $0x308] sm:$0xff]
    %v11650 = vld [vmem:[#allocation14 + $0x310] sm:$0xff]
    %v11651 = vld [vmem:[#allocation14 + $0x318] sm:$0xff]
    %v11652 = vld [vmem:[#allocation14 + $0x320] sm:$0xff]
    %v11653 = vld [vmem:[#allocation14 + $0x328] sm:$0xff]
    %v11654 = vld [vmem:[#allocation14 + $0x330] sm:$0xff]
    %v11655 = vld [vmem:[#allocation14 + $0x338] sm:$0xff]
    %v11656 = vld [vmem:[#allocation14 + $0x340] sm:$0xff]
    %v11657 = vld [vmem:[#allocation14 + $0x348] sm:$0xff]
    %v11658 = vld [vmem:[#allocation14 + $0x350] sm:$0xff]
    %v11659 = vld [vmem:[#allocation14 + $0x358] sm:$0xff]
    %v11660 = vld [vmem:[#allocation14 + $0x360] sm:$0xff]
    %v11661 = vld [vmem:[#allocation14 + $0x368] sm:$0xff]
    %v11662 = vld [vmem:[#allocation14 + $0x370] sm:$0xff]
    %v11663 = vld [vmem:[#allocation14 + $0x378] sm:$0xff]
    %v11664 = vld [vmem:[#allocation14 + $0x380] sm:$0xff]
    %v11665 = vld [vmem:[#allocation14 + $0x388] sm:$0xff]
    %v11666 = vld [vmem:[#allocation14 + $0x390] sm:$0xff]
    %v11667 = vld [vmem:[#allocation14 + $0x398] sm:$0xff]
    %v11668 = vld [vmem:[#allocation14 + $0x3a0] sm:$0xff]
    %v11669 = vld [vmem:[#allocation14 + $0x3a8] sm:$0xff]
    %v11670 = vld [vmem:[#allocation14 + $0x3b0] sm:$0xff]
    %v11671 = vld [vmem:[#allocation14 + $0x3b8] sm:$0xff]
    %v11672 = vld [vmem:[#allocation14 + $0x3c0] sm:$0xff]
    %v11673 = vld [vmem:[#allocation14 + $0x3c8] sm:$0xff]
    %v11674 = vld [vmem:[#allocation14 + $0x3d0] sm:$0xff]
    %v11675 = vld [vmem:[#allocation14 + $0x3d8] sm:$0xff]
    %v11676 = vld [vmem:[#allocation14 + $0x3e0] sm:$0xff]
    %v11677 = vld [vmem:[#allocation14 + $0x3e8] sm:$0xff]
    %v11678 = vld [vmem:[#allocation14 + $0x3f0] sm:$0xff]
    %v11679 = vld [vmem:[#allocation14 + $0x3f8] sm:$0xff]
    %v11680 = vld [vmem:[%s16] sm:$0x3]
    %v11682 = vperm.slane %v11680, 0
    %v11683 = vperm.slane %v11680, 1
    %11686 = vmatpush.msra.mxu0 %v11582
    %11687 = vmatpush.msra.mxu0 %v11580
    %11688 = vmatpush.msra.mxu0 %v11578
    %11689 = vmatpush.msra.mxu0 %v11576
    %11690 = vmatpush.msra.mxu0 %v11574
    %11691 = vmatpush.msra.mxu0 %v11572
    %11692 = vmatpush.msra.mxu0 %v11570
    %11693 = vmatpush.msra.mxu0 %v11568
    %11694 = vmatpush.msra.mxu0 %v11566
    %11695 = vmatpush.msra.mxu0 %v11564
    %11696 = vmatpush.msra.mxu0 %v11562
    %11697 = vmatpush.msra.mxu0 %v11560
    %11698 = vmatpush.msra.mxu0 %v11558
    %11699 = vmatpush.msra.mxu0 %v11556
    %11700 = vmatpush.msra.mxu0 %v11554
    %11701 = vmatpush.msra.mxu0 %v11552
    %11702 = vmatmul.f32.gmra.mxu0 %v11548
    %v11703 = vpop.f32.mrf.mxu0
    %v11704 = vadd.f32 %v11682, %v11703
    %11705 = vdwg.mxu0
    %11706 = vmatpush.msra.mxu0 %v11614
    %11707 = vmatpush.msra.mxu0 %v11612
    %11708 = vmatpush.msra.mxu0 %v11610
    %11709 = vmatpush.msra.mxu0 %v11608
    %11710 = vmatpush.msra.mxu0 %v11606
    %11711 = vmatpush.msra.mxu0 %v11604
    %11712 = vmatpush.msra.mxu0 %v11602
    %11713 = vmatpush.msra.mxu0 %v11600
    %11714 = vmatpush.msra.mxu0 %v11598
    %11715 = vmatpush.msra.mxu0 %v11596
    %11716 = vmatpush.msra.mxu0 %v11594
    %11717 = vmatpush.msra.mxu0 %v11592
    %11718 = vmatpush.msra.mxu0 %v11590
    %11719 = vmatpush.msra.mxu0 %v11588
    %11720 = vmatpush.msra.mxu0 %v11586
    %11721 = vmatpush.msra.mxu0 %v11584
    %11722 = vmatmul.f32.gmra.mxu0 %v11549
    %v11723 = vpop.f32.mrf.mxu0
    %v11724 = vadd.f32 %v11704, %v11723
    %11725 = vdwg.mxu0
    %11726 = vmatpush.msra.mxu0 %v11646
    %11727 = vmatpush.msra.mxu0 %v11644
    %11728 = vmatpush.msra.mxu0 %v11642
    %11729 = vmatpush.msra.mxu0 %v11640
    %11730 = vmatpush.msra.mxu0 %v11638
    %11731 = vmatpush.msra.mxu0 %v11636
    %11732 = vmatpush.msra.mxu0 %v11634
    %11733 = vmatpush.msra.mxu0 %v11632
    %11734 = vmatpush.msra.mxu0 %v11630
    %11735 = vmatpush.msra.mxu0 %v11628
    %11736 = vmatpush.msra.mxu0 %v11626
    %11737 = vmatpush.msra.mxu0 %v11624
    %11738 = vmatpush.msra.mxu0 %v11622
    %11739 = vmatpush.msra.mxu0 %v11620
    %11740 = vmatpush.msra.mxu0 %v11618
    %11741 = vmatpush.msra.mxu0 %v11616
    %11742 = vmatmul.f32.gmra.mxu0 %v11550
    %v11743 = vpop.f32.mrf.mxu0
    %v11744 = vadd.f32 %v11724, %v11743
    %11745 = vdwg.mxu0
    %11746 = vmatpush.msra.mxu0 %v11678
    %11747 = vmatpush.msra.mxu0 %v11676
    %11748 = vmatpush.msra.mxu0 %v11674
    %11749 = vmatpush.msra.mxu0 %v11672
    %11750 = vmatpush.msra.mxu0 %v11670
    %11751 = vmatpush.msra.mxu0 %v11668
    %11752 = vmatpush.msra.mxu0 %v11666
    %11753 = vmatpush.msra.mxu0 %v11664
    %11754 = vmatpush.msra.mxu0 %v11662
    %11755 = vmatpush.msra.mxu0 %v11660
    %11756 = vmatpush.msra.mxu0 %v11658
    %11757 = vmatpush.msra.mxu0 %v11656
    %11758 = vmatpush.msra.mxu0 %v11654
    %11759 = vmatpush.msra.mxu0 %v11652
    %11760 = vmatpush.msra.mxu0 %v11650
    %11761 = vmatpush.msra.mxu0 %v11648
    %11762 = vmatmul.f32.gmra.mxu0 %v11551
    %v11763 = vpop.f32.mrf.mxu0
    %v11764 = vadd.f32 %v11744, %v11763
    %11765 = vdwg.mxu0
    %11766 = vmatpush.msra.mxu0 %v11583
    %11767 = vmatpush.msra.mxu0 %v11581
    %11768 = vmatpush.msra.mxu0 %v11579
    %11769 = vmatpush.msra.mxu0 %v11577
    %11770 = vmatpush.msra.mxu0 %v11575
    %11771 = vmatpush.msra.mxu0 %v11573
    %11772 = vmatpush.msra.mxu0 %v11571
    %11773 = vmatpush.msra.mxu0 %v11569
    %11774 = vmatpush.msra.mxu0 %v11567
    %11775 = vmatpush.msra.mxu0 %v11565
    %11776 = vmatpush.msra.mxu0 %v11563
    %11777 = vmatpush.msra.mxu0 %v11561
    %11778 = vmatpush.msra.mxu0 %v11559
    %11779 = vmatpush.msra.mxu0 %v11557
    %11780 = vmatpush.msra.mxu0 %v11555
    %11781 = vmatpush.msra.mxu0 %v11553
    %11782 = vmatmul.f32.gmra.mxu0 %v11548
    %v11783 = vpop.f32.mrf.mxu0
    %v11784 = vadd.f32 %v11683, %v11783
    %11785 = vdwg.mxu0
    %11786 = vmatpush.msra.mxu0 %v11615
    %11787 = vmatpush.msra.mxu0 %v11613
    %11788 = vmatpush.msra.mxu0 %v11611
    %11789 = vmatpush.msra.mxu0 %v11609
    %11790 = vmatpush.msra.mxu0 %v11607
    %11791 = vmatpush.msra.mxu0 %v11605
    %11792 = vmatpush.msra.mxu0 %v11603
    %11793 = vmatpush.msra.mxu0 %v11601
    %11794 = vmatpush.msra.mxu0 %v11599
    %11795 = vmatpush.msra.mxu0 %v11597
    %11796 = vmatpush.msra.mxu0 %v11595
    %11797 = vmatpush.msra.mxu0 %v11593
    %11798 = vmatpush.msra.mxu0 %v11591
    %11799 = vmatpush.msra.mxu0 %v11589
    %11800 = vmatpush.msra.mxu0 %v11587
    %11801 = vmatpush.msra.mxu0 %v11585
    %11802 = vmatmul.f32.gmra.mxu0 %v11549
    %v11803 = vpop.f32.mrf.mxu0
    %v11804 = vadd.f32 %v11784, %v11803
    %11805 = vdwg.mxu0
    %11806 = vmatpush.msra.mxu0 %v11647
    %11807 = vmatpush.msra.mxu0 %v11645
    %11808 = vmatpush.msra.mxu0 %v11643
    %11809 = vmatpush.msra.mxu0 %v11641
    %11810 = vmatpush.msra.mxu0 %v11639
    %11811 = vmatpush.msra.mxu0 %v11637
    %11812 = vmatpush.msra.mxu0 %v11635
    %11813 = vmatpush.msra.mxu0 %v11633
    %11814 = vmatpush.msra.mxu0 %v11631
    %11815 = vmatpush.msra.mxu0 %v11629
    %11816 = vmatpush.msra.mxu0 %v11627
    %11817 = vmatpush.msra.mxu0 %v11625
    %11818 = vmatpush.msra.mxu0 %v11623
    %11819 = vmatpush.msra.mxu0 %v11621
    %11820 = vmatpush.msra.mxu0 %v11619
    %11821 = vmatpush.msra.mxu0 %v11617
    %11822 = vmatmul.f32.gmra.mxu0 %v11550
    %v11823 = vpop.f32.mrf.mxu0
    %v11824 = vadd.f32 %v11804, %v11823
    %11825 = vdwg.mxu0
    %11826 = vmatpush.msra.mxu0 %v11679
    %11827 = vmatpush.msra.mxu0 %v11677
    %11828 = vmatpush.msra.mxu0 %v11675
    %11829 = vmatpush.msra.mxu0 %v11673
    %11830 = vmatpush.msra.mxu0 %v11671
    %11831 = vmatpush.msra.mxu0 %v11669
    %11832 = vmatpush.msra.mxu0 %v11667
    %11833 = vmatpush.msra.mxu0 %v11665
    %11834 = vmatpush.msra.mxu0 %v11663
    %11835 = vmatpush.msra.mxu0 %v11661
    %11836 = vmatpush.msra.mxu0 %v11659
    %11837 = vmatpush.msra.mxu0 %v11657
    %11838 = vmatpush.msra.mxu0 %v11655
    %11839 = vmatpush.msra.mxu0 %v11653
    %11840 = vmatpush.msra.mxu0 %v11651
    %11841 = vmatpush.msra.mxu0 %v11649
    %11842 = vmatmul.f32.gmra.mxu0 %v11551
    %v11843 = vpop.f32.mrf.mxu0
    %v11844 = vadd.f32 %v11824, %v11843
    %11845 = vdwg.mxu0
    %v11846 = vmax.f32 %v11764, 0.0
    %v11847 = vmax.f32 %v11844, 0.0
    %v11848 = vld [vmem:[%s17] sm:$0xff]
    %v11849 = vld [vmem:[%s17 + $0x8] sm:$0xff]
    %v11850 = vld [vmem:[%s17 + $0x10] sm:$0xff]
    %v11851 = vld [vmem:[%s17 + $0x18] sm:$0xff]
    %v11852 = vld [vmem:[%s17 + $0x20] sm:$0xff]
    %v11853 = vld [vmem:[%s17 + $0x28] sm:$0xff]
    %v11854 = vld [vmem:[%s17 + $0x30] sm:$0xff]
    %v11855 = vld [vmem:[%s17 + $0x38] sm:$0xff]
    %v11856 = vld [vmem:[%s17 + $0x40] sm:$0xff]
    %v11857 = vld [vmem:[%s17 + $0x48] sm:$0xff]
    %v11858 = vld [vmem:[%s17 + $0x50] sm:$0xff]
    %v11859 = vld [vmem:[%s17 + $0x58] sm:$0xff]
    %v11860 = vld [vmem:[%s17 + $0x60] sm:$0xff]
    %v11861 = vld [vmem:[%s17 + $0x68] sm:$0xff]
    %v11862 = vld [vmem:[%s17 + $0x70] sm:$0xff]
    %v11863 = vld [vmem:[%s17 + $0x78] sm:$0xff]
    %v11864 = vld [vmem:[%s17 + $0x80] sm:$0xff]
    %v11865 = vld [vmem:[%s17 + $0x88] sm:$0xff]
    %v11866 = vld [vmem:[%s17 + $0x90] sm:$0xff]
    %v11867 = vld [vmem:[%s17 + $0x98] sm:$0xff]
    %v11868 = vld [vmem:[%s17 + $0xa0] sm:$0xff]
    %v11869 = vld [vmem:[%s17 + $0xa8] sm:$0xff]
    %v11870 = vld [vmem:[%s17 + $0xb0] sm:$0xff]
    %v11871 = vld [vmem:[%s17 + $0xb8] sm:$0xff]
    %v11872 = vld [vmem:[%s17 + $0xc0] sm:$0xff]
    %v11873 = vld [vmem:[%s17 + $0xc8] sm:$0xff]
    %v11874 = vld [vmem:[%s17 + $0xd0] sm:$0xff]
    %v11875 = vld [vmem:[%s17 + $0xd8] sm:$0xff]
    %v11876 = vld [vmem:[%s17 + $0xe0] sm:$0xff]
    %v11877 = vld [vmem:[%s17 + $0xe8] sm:$0xff]
    %v11878 = vld [vmem:[%s17 + $0xf0] sm:$0xff]
    %v11879 = vld [vmem:[%s17 + $0xf8] sm:$0xff]
    %v11880 = vld [vmem:[%s18] sm:$0x1]
    %v11882 = vperm.slane %v11880, 0
    %11884 = vmatpush.msra.mxu0 %v11863
    %11885 = vmatpush.msra.mxu0 %v11862
    %11886 = vmatpush.msra.mxu0 %v11861
    %11887 = vmatpush.msra.mxu0 %v11860
    %11888 = vmatpush.msra.mxu0 %v11859
    %11889 = vmatpush.msra.mxu0 %v11858
    %11890 = vmatpush.msra.mxu0 %v11857
    %11891 = vmatpush.msra.mxu0 %v11856
    %11892 = vmatpush.msra.mxu0 %v11855
    %11893 = vmatpush.msra.mxu0 %v11854
    %11894 = vmatpush.msra.mxu0 %v11853
    %11895 = vmatpush.msra.mxu0 %v11852
    %11896 = vmatpush.msra.mxu0 %v11851
    %11897 = vmatpush.msra.mxu0 %v11850
    %11898 = vmatpush.msra.mxu0 %v11849
    %11899 = vmatpush.msra.mxu0 %v11848
    %11900 = vmatmul.f32.gmra.mxu0 %v11846
    %v11901 = vpop.f32.mrf.mxu0
    %v11902 = vadd.f32 %v11882, %v11901
    %11903 = vdwg.mxu0
    %11904 = vmatpush.msra.mxu0 %v11879
    %11905 = vmatpush.msra.mxu0 %v11878
    %11906 = vmatpush.msra.mxu0 %v11877
    %11907 = vmatpush.msra.mxu0 %v11876
    %11908 = vmatpush.msra.mxu0 %v11875
    %11909 = vmatpush.msra.mxu0 %v11874
    %11910 = vmatpush.msra.mxu0 %v11873
    %11911 = vmatpush.msra.mxu0 %v11872
    %11912 = vmatpush.msra.mxu0 %v11871
    %11913 = vmatpush.msra.mxu0 %v11870
    %11914 = vmatpush.msra.mxu0 %v11869
    %11915 = vmatpush.msra.mxu0 %v11868
    %11916 = vmatpush.msra.mxu0 %v11867
    %11917 = vmatpush.msra.mxu0 %v11866
    %11918 = vmatpush.msra.mxu0 %v11865
    %11919 = vmatpush.msra.mxu0 %v11864
    %11920 = vmatmul.f32.gmra.mxu0 %v11847
    %v11921 = vpop.f32.mrf.mxu0
    %v11922 = vadd.f32 %v11902, %v11921
    %11923 = vdwg.mxu0
    %vm11924 = vcmask 9216
    %11925 = vst.msk [vmem:[#allocation15] sm:$0x3] %vm11924, %v11922
    // Predicated region
    $region90: #{bombus_forward.1} parent=1 // pred_check
      _
    $region91: #{bombus_forward.1} parent=1 // pred_check_branch
      %11927 = sbr.rel (0) target = $region93
    $region92: #{bombus_forward.1} parent=1 // pred_region
      %11929 = vsyncadd [#allocation11], 0
      %s11931 = sshll.u32 [#allocation15], 4
      %s11932 = int_to_ptr.vmem [resolvable:$true] %s11931
      %s11933 = sshll.u32 %s19, 4
      %s11934 = int_to_ptr.hbm [resolvable:$true] %s11933
      %11936 = dma.vmem_to_hbm [thread:$0]  %s11932, 32, %s11934, [#allocation11]
    $region93: #{bombus_forward.1} parent=1 // pred_fallthru
      _
    // Predicated region
    $region94: #{bombus_forward.1} parent=1 // pred_check
      _
    $region95: #{bombus_forward.1} parent=1 // pred_check_branch
      %11938 = sbr.rel (0) target = $region97
    $region96: #{bombus_forward.1} parent=1 // pred_region
      %11940 = dma.done [#allocation11], 32
    $region97: #{bombus_forward.1} parent=1 // pred_fallthru
      _
    %11941 = vsyncpa [#allocation10], 1
    %11942 = vsyncpa [#allocation13], 1
    %11943 = vsyncpa [#allocation11], 1

</llo_original>
